<compile_context>
chip_gen: v7x
topology: tpu7x:2x2x1
jax: 0.10.0
libtpu: 0.0.40
codegen_flags: <defaults>
</compile_context>

<pallas_src>
import jax
import jax.numpy as jnp
from jax.experimental import pallas as pl
from jax.experimental.pallas import tpu as pltpu

N_STEPS = 1  # grid steps over the flattened (i, j) contraction axis (1 is optimal for bf16)


def _round_up(x, m):
    return ((x + m - 1) // m) * m


def mio_kernel(m_ref, w_ref, bb_ref, w1t_ref, b1_ref, w2t_ref, b2_ref,
               out_ref, z_acc):
    k = pl.program_id(0)

    @pl.when(k == 0)
    def _init():
        z_acc[...] = jnp.zeros_like(z_acc)

    # Bilinear pooling as a flat matmul chunk (bf16 operands, f32 accumulation):
    #   z[b, o] += sum_k m[b, k] * Wflat[k, o]
    z_acc[...] += jnp.dot(m_ref[...], w_ref[...],
                          preferred_element_type=jnp.float32)        # (B, D)

    # FC head + softmax, fused on the last reduction step.
    @pl.when(k == pl.num_programs(0) - 1)
    def _finalize():
        z = z_acc[...] + bb_ref[...]                                  # (B, D)
        h = jnp.maximum(
            jnp.dot(z, w1t_ref[...], preferred_element_type=jnp.float32)
            + b1_ref[...], 0.0)                                       # (B, H)
        logits = (jnp.dot(h, w2t_ref[...], preferred_element_type=jnp.float32)
                  + b2_ref[...])                                      # (B, C)
        mx = jnp.max(logits, axis=-1, keepdims=True)
        e = jnp.exp(logits - mx)
        out_ref[...] = (e / jnp.sum(e, axis=-1, keepdims=True)).astype(out_ref.dtype)


def prepare_params(w_bil, b_bil, w1, b1, w2, b2):
    """One-time weight preprocessing (transpose / flatten / pad / bf16 cast)."""
    D = w_bil.shape[0]
    K = D * D
    tk = _round_up(pl.cdiv(K, N_STEPS), 128)   # per-step K tile, multiple of 128
    kp = tk * N_STEPS
    # Wflat[(i*D + j), o] = W[o, i, j]; pad K axis with zeros (exact), store bf16.
    w_flat = jnp.pad(w_bil.transpose(1, 2, 0).reshape(K, D), ((0, kp - K), (0, 0)))
    return {
        "w_flat": w_flat.astype(jnp.bfloat16),   # (Kp, D) bf16 -- the only big operand
        "bb": b_bil.reshape(1, D),               # (1, D) f32
        "w1t": w1.T,                             # (D, H) f32
        "b1": b1.reshape(1, -1),                 # (1, H) f32
        "w2t": w2.T,                             # (H, C) f32
        "b2": b2.reshape(1, -1),                 # (1, C) f32
    }


@jax.jit
def mio_forward(x1, x2, params):
    """x1, x2: (B, D) float32. Returns softmax probabilities (B, C) float32."""
    B, D = x1.shape
    K = D * D
    w_flat = params["w_flat"]
    kp = w_flat.shape[0]
    tk = kp // N_STEPS
    H = params["w1t"].shape[1]
    C = params["w2t"].shape[1]

    # M[b, i*D + j] = x1[b, i] * x2[b, j]  (tiny), bf16, zero-padded to Kp.
    # allow_input_fusion below lets XLA fold this into the pallas_call input stream.
    m = (x1[:, :, None] * x2[:, None, :]).reshape(B, K).astype(jnp.bfloat16)
    m = jnp.pad(m, ((0, 0), (0, kp - K)))

    cost = pl.CostEstimate(
        flops=2 * B * (D * D * D + D * H + H * C),
        transcendentals=B * C,
        bytes_accessed=int(2 * (kp * D + B * kp)               # bf16 Wflat + M
                           + 4 * (D * H + H * C + D + H + C + B * C)),
    )

    out = pl.pallas_call(
        mio_kernel,
        out_shape=jax.ShapeDtypeStruct((B, C), jnp.float32),
        grid_spec=pltpu.PrefetchScalarGridSpec(
            num_scalar_prefetch=0,
            grid=(N_STEPS,),  # reduction over the flattened (i, j) axis
            in_specs=[
                pl.BlockSpec((B, tk), lambda k: (0, k)),   # M chunk      (B, Tk) bf16
                pl.BlockSpec((tk, D), lambda k: (k, 0)),   # Wflat chunk  (Tk, D) bf16
                pl.BlockSpec((1, D), lambda k: (0, 0)),    # bilinear bias
                pl.BlockSpec((D, H), lambda k: (0, 0)),    # fc1 weight^T
                pl.BlockSpec((1, H), lambda k: (0, 0)),    # fc1 bias
                pl.BlockSpec((H, C), lambda k: (0, 0)),    # fc2 weight^T
                pl.BlockSpec((1, C), lambda k: (0, 0)),    # fc2 bias
            ],
            out_specs=pl.BlockSpec((B, C), lambda k: (0, 0)),
            scratch_shapes=[pltpu.VMEM((B, D), jnp.float32)],  # z accumulator (f32)
        ),
        compiler_params=pltpu.CompilerParams(
            dimension_semantics=("arbitrary",),
            # Allow the tiny M producer (outer product + pad + bf16 cast) to fuse
            # into the pallas_call input; all other operands are plain parameters.
            allow_input_fusion=[True, False, False, False, False, False, False],
        ),
        cost_estimate=cost,
    )(m, w_flat, params["bb"], params["w1t"], params["b1"],
      params["w2t"], params["b2"])
    return out


def ref_forward(x1, x2, w_bil, b_bil, w1, b1, w2, b2):
    """Pure-JAX f32 reference mirroring the PyTorch forward."""
    z = jnp.einsum('bi,oij,bj->bo', x1, w_bil, x2) + b_bil
    h = jnp.maximum(z @ w1.T + b1, 0.0)
    logits = h @ w2.T + b2
    return jax.nn.softmax(logits, axis=1)


if __name__ == "__main__":
    B = 2            # batch
    D = 120          # cnn_output_dim
    H = 128          # fcn_hidden_dim
    C = 2            # output_dim

    key = jax.random.PRNGKey(0)
    k_x1, k_x2, k_w, k_bw, k_w1, k_b1, k_w2, k_b2 = jax.random.split(key, 8)

    # Deterministic inputs
    x1 = jax.random.normal(k_x1, (B, D), dtype=jnp.float32)
    x2 = jax.random.normal(k_x2, (B, D), dtype=jnp.float32)

    # Deterministic parameters (PyTorch-style uniform(-1/sqrt(fan_in), 1/sqrt(fan_in)))
    s_bil = 1.0 / jnp.sqrt(D)
    s_fc1 = 1.0 / jnp.sqrt(D)
    s_fc2 = 1.0 / jnp.sqrt(H)
    w_bil = jax.random.uniform(k_w, (D, D, D), jnp.float32, -s_bil, s_bil)
    b_bil = jax.random.uniform(k_bw, (D,), jnp.float32, -s_bil, s_bil)
    w1 = jax.random.uniform(k_w1, (H, D), jnp.float32, -s_fc1, s_fc1)
    b1 = jax.random.uniform(k_b1, (H,), jnp.float32, -s_fc1, s_fc1)
    w2 = jax.random.uniform(k_w2, (C, H), jnp.float32, -s_fc2, s_fc2)
    b2 = jax.random.uniform(k_b2, (C,), jnp.float32, -s_fc2, s_fc2)

    params = prepare_params(w_bil, b_bil, w1, b1, w2, b2)

    out = mio_forward(x1, x2, params)
    out = jax.block_until_ready(out)

    ref = ref_forward(x1, x2, w_bil, b_bil, w1, b1, w2, b2)
    assert out.shape == (B, C), out.shape
    # Tolerance loosened vs. the f32 version: operands of the big matmul are bf16
    # (accumulation is f32), so the softmax output carries ~1e-3..1e-2 error.
    assert jnp.allclose(out, ref, rtol=3e-2, atol=3e-2), (out, ref)

    print("KERNEL_OK")
</pallas_src>

<mosaic_0001>
module attributes {stable_mosaic.version = 11 : i64} {
  func.func @mio_kernel(%arg0: i32, %arg1: memref<2x14464xbf16, #tpu.memory_space<vmem>>, %arg2: memref<14464x120xbf16, #tpu.memory_space<vmem>>, %arg3: memref<1x120xf32, #tpu.memory_space<vmem>>, %arg4: memref<120x128xf32, #tpu.memory_space<vmem>>, %arg5: memref<1x128xf32, #tpu.memory_space<vmem>>, %arg6: memref<128x2xf32, #tpu.memory_space<vmem>>, %arg7: memref<1x2xf32, #tpu.memory_space<vmem>>, %arg8: memref<2x2xf32, #tpu.memory_space<vmem>>, %arg9: memref<2x120xf32, #tpu.memory_space<vmem>>) attributes {dimension_semantics = [#tpu.dimension_semantics<arbitrary>], iteration_bounds = array<i64: 1>, scalar_prefetch = 0 : i64, scratch_operands = 1 : i64, tpu.core_type = #tpu.core_type<tc>, window_params = [{transform_indices = @transform_0, window_bounds = array<i64: 2, 14464>}, {transform_indices = @transform_1, window_bounds = array<i64: 14464, 120>}, {pipeline_mode = #tpu.pipeline_mode<synchronous>, transform_indices = @transform_2, window_bounds = array<i64: 1, 120>}, {pipeline_mode = #tpu.pipeline_mode<synchronous>, transform_indices = @transform_3, window_bounds = array<i64: 120, 128>}, {pipeline_mode = #tpu.pipeline_mode<synchronous>, transform_indices = @transform_4, window_bounds = array<i64: 1, 128>}, {pipeline_mode = #tpu.pipeline_mode<synchronous>, transform_indices = @transform_5, window_bounds = array<i64: 128, 2>}, {pipeline_mode = #tpu.pipeline_mode<synchronous>, transform_indices = @transform_6, window_bounds = array<i64: 1, 2>}, {pipeline_mode = #tpu.pipeline_mode<synchronous>, transform_indices = @transform_7, window_bounds = array<i64: 2, 2>}]} {
    %c0_i32 = arith.constant 0 : i32
    %0 = arith.cmpi eq, %arg0, %c0_i32 : i32
    %1 = arith.extui %0 : i1 to i32
    %c0_i32_0 = arith.constant 0 : i32
    %2 = arith.cmpi ne, %1, %c0_i32_0 : i32
    scf.if %2 {
      %cst_10 = arith.constant 0.000000e+00 : f32
      %12 = vector.broadcast %cst_10 : f32 to vector<2x120xf32>
      %c0_11 = arith.constant 0 : index
      %c0_12 = arith.constant 0 : index
      %13 = vector.load %arg9[%c0_11, %c0_12] : memref<2x120xf32, #tpu.memory_space<vmem>>, vector<2x120xf32>
      tpu.vector_store %arg9[%c0_11, %c0_12], %12 {strides = array<i32>} : memref<2x120xf32, #tpu.memory_space<vmem>>, vector<2x120xf32>,
    } else {
    }
    %c0 = arith.constant 0 : index
    %c0_1 = arith.constant 0 : index
    %3 = vector.load %arg9[%c0, %c0_1] : memref<2x120xf32, #tpu.memory_space<vmem>>, vector<2x120xf32>
    %c0_2 = arith.constant 0 : index
    %c0_3 = arith.constant 0 : index
    %4 = vector.load %arg1[%c0_2, %c0_3] : memref<2x14464xbf16, #tpu.memory_space<vmem>>, vector<2x14464xbf16>
    %c0_4 = arith.constant 0 : index
    %c0_5 = arith.constant 0 : index
    %5 = vector.load %arg2[%c0_4, %c0_5] : memref<14464x120xbf16, #tpu.memory_space<vmem>>, vector<14464x120xbf16>
    %cst = arith.constant dense<0.000000e+00> : vector<2x120xf32>
    %6 = tpu.matmul %4, %5, %cst {dimension_numbers = #tpu.dot_dimension_numbers<[1], [0], [0], [1], [0, 0, 1, 1], [], []>} : vector<2x14464xbf16>, vector<14464x120xbf16>, vector<2x120xf32> -> vector<2x120xf32>
    %7 = arith.addf %3, %6 : vector<2x120xf32>
    %c0_6 = arith.constant 0 : index
    %c0_7 = arith.constant 0 : index
    %8 = vector.load %arg9[%c0_6, %c0_7] : memref<2x120xf32, #tpu.memory_space<vmem>>, vector<2x120xf32>
    tpu.vector_store %arg9[%c0_6, %c0_7], %7 {strides = array<i32>} : memref<2x120xf32, #tpu.memory_space<vmem>>, vector<2x120xf32>,
    %c0_i32_8 = arith.constant 0 : i32
    %9 = arith.cmpi eq, %arg0, %c0_i32_8 : i32
    %10 = arith.extui %9 : i1 to i32
    %c0_i32_9 = arith.constant 0 : i32
    %11 = arith.cmpi ne, %10, %c0_i32_9 : i32
    scf.if %11 {
      %c0_10 = arith.constant 0 : index
      %c0_11 = arith.constant 0 : index
      %12 = vector.load %arg9[%c0_10, %c0_11] : memref<2x120xf32, #tpu.memory_space<vmem>>, vector<2x120xf32>
      %c0_12 = arith.constant 0 : index
      %c0_13 = arith.constant 0 : index
      %13 = vector.load %arg3[%c0_12, %c0_13] : memref<1x120xf32, #tpu.memory_space<vmem>>, vector<1x120xf32>
      %14 = vector.broadcast %13 : vector<1x120xf32> to vector<2x120xf32>
      %15 = arith.addf %12, %14 : vector<2x120xf32>
      %c0_14 = arith.constant 0 : index
      %c0_15 = arith.constant 0 : index
      %16 = vector.load %arg4[%c0_14, %c0_15] : memref<120x128xf32, #tpu.memory_space<vmem>>, vector<120x128xf32>
      %cst_16 = arith.constant dense<0.000000e+00> : vector<2x128xf32>
      %17 = tpu.matmul %15, %16, %cst_16 {dimension_numbers = #tpu.dot_dimension_numbers<[1], [0], [0], [1], [0, 0, 1, 1], [], []>} : vector<2x120xf32>, vector<120x128xf32>, vector<2x128xf32> -> vector<2x128xf32>
      %c0_17 = arith.constant 0 : index
      %c0_18 = arith.constant 0 : index
      %18 = vector.load %arg5[%c0_17, %c0_18] : memref<1x128xf32, #tpu.memory_space<vmem>>, vector<1x128xf32>
      %19 = vector.broadcast %18 : vector<1x128xf32> to vector<2x128xf32>
      %20 = arith.addf %17, %19 : vector<2x128xf32>
      %cst_19 = arith.constant 0.000000e+00 : f32
      %21 = vector.broadcast %cst_19 : f32 to vector<2x128xf32>
      %22 = arith.maximumf %20, %21 : vector<2x128xf32>
      %c0_20 = arith.constant 0 : index
      %c0_21 = arith.constant 0 : index
      %23 = vector.load %arg6[%c0_20, %c0_21] : memref<128x2xf32, #tpu.memory_space<vmem>>, vector<128x2xf32>
      %cst_22 = arith.constant dense<0.000000e+00> : vector<2x2xf32>
      %24 = tpu.matmul %22, %23, %cst_22 {dimension_numbers = #tpu.dot_dimension_numbers<[1], [0], [0], [1], [0, 0, 1, 1], [], []>} : vector<2x128xf32>, vector<128x2xf32>, vector<2x2xf32> -> vector<2x2xf32>
      %c0_23 = arith.constant 0 : index
      %c0_24 = arith.constant 0 : index
      %25 = vector.load %arg7[%c0_23, %c0_24] : memref<1x2xf32, #tpu.memory_space<vmem>>, vector<1x2xf32>
      %26 = vector.broadcast %25 : vector<1x2xf32> to vector<2x2xf32>
      %27 = arith.addf %24, %26 : vector<2x2xf32>
      %cst_25 = arith.constant dense<0xFF800000> : vector<2xf32>
      %28 = vector.multi_reduction <maximumf>, %27, %cst_25 [1] : vector<2x2xf32> to vector<2xf32>
      %29 = vector.shape_cast %28 : vector<2xf32> to vector<2x1xf32>
      %30 = vector.broadcast %29 : vector<2x1xf32> to vector<2x2xf32>
      %31 = arith.subf %27, %30 : vector<2x2xf32>
      %32 = math.exp %31 : vector<2x2xf32>
      %cst_26 = arith.constant dense<0.000000e+00> : vector<2xf32>
      %33 = vector.multi_reduction <add>, %32, %cst_26 [1] : vector<2x2xf32> to vector<2xf32>
      %34 = vector.shape_cast %33 : vector<2xf32> to vector<2x1xf32>
      %35 = vector.broadcast %34 : vector<2x1xf32> to vector<2x2xf32>
      %36 = arith.divf %32, %35 : vector<2x2xf32>
      %c0_27 = arith.constant 0 : index
      %c0_28 = arith.constant 0 : index
      %37 = vector.load %arg8[%c0_27, %c0_28] : memref<2x2xf32, #tpu.memory_space<vmem>>, vector<2x2xf32>
      tpu.vector_store %arg8[%c0_27, %c0_28], %36 {strides = array<i32>} : memref<2x2xf32, #tpu.memory_space<vmem>>, vector<2x2xf32>,
    } else {
    }
    return
  }
  func.func @transform_0(%arg0: i32) -> (i32, i32) {
    %c0_i32 = arith.constant 0 : i32
    %c0_i32_0 = arith.constant 0 : i32
    return %c0_i32, %arg0 : i32, i32
  }
  func.func @transform_1(%arg0: i32) -> (i32, i32) {
    %c0_i32 = arith.constant 0 : i32
    %c0_i32_0 = arith.constant 0 : i32
    return %arg0, %c0_i32 : i32, i32
  }
  func.func @transform_2(%arg0: i32) -> (i32, i32) {
    %c0_i32 = arith.constant 0 : i32
    %c0_i32_0 = arith.constant 0 : i32
    %c0_i32_1 = arith.constant 0 : i32
    return %c0_i32, %c0_i32_0 : i32, i32
  }
  func.func @transform_3(%arg0: i32) -> (i32, i32) {
    %c0_i32 = arith.constant 0 : i32
    %c0_i32_0 = arith.constant 0 : i32
    %c0_i32_1 = arith.constant 0 : i32
    return %c0_i32, %c0_i32_0 : i32, i32
  }
  func.func @transform_4(%arg0: i32) -> (i32, i32) {
    %c0_i32 = arith.constant 0 : i32
    %c0_i32_0 = arith.constant 0 : i32
    %c0_i32_1 = arith.constant 0 : i32
    return %c0_i32, %c0_i32_0 : i32, i32
  }
  func.func @transform_5(%arg0: i32) -> (i32, i32) {
    %c0_i32 = arith.constant 0 : i32
    %c0_i32_0 = arith.constant 0 : i32
    %c0_i32_1 = arith.constant 0 : i32
    return %c0_i32, %c0_i32_0 : i32, i32
  }
  func.func @transform_6(%arg0: i32) -> (i32, i32) {
    %c0_i32 = arith.constant 0 : i32
    %c0_i32_0 = arith.constant 0 : i32
    %c0_i32_1 = arith.constant 0 : i32
    return %c0_i32, %c0_i32_0 : i32, i32
  }
  func.func @transform_7(%arg0: i32) -> (i32, i32) {
    %c0_i32 = arith.constant 0 : i32
    %c0_i32_0 = arith.constant 0 : i32
    %c0_i32_1 = arith.constant 0 : i32
    return %c0_i32, %c0_i32_0 : i32, i32
  }
}

</mosaic_0001>

<llo_original>
// kernel: mio_forward.2
$region0: #{mio_forward.2}
  #allocation0 [shape = 'u32[]', space=smem, size = 0x4, offset = 0x4, fixed_abs, tag = 'smem constant byte address 0x4 - core index']
  #allocation1 [shape = 'u32[144,128]{1,0:T(1,128)}', space=vmem, size = 0x12000, scoped, tag = 'internal scratch']
  #allocation2 [shape = 'f32[2,120]{1,0:T(2,128)}', space=vmem, size = 0x400, scoped, tag = 'scratch operand']
  #allocation3 [shape = 'u32[2048]{0}', space=vmem, size = 0x2000, scoped, tag = 'scoped memory for mio_forward.2']
  #allocation4 [shape = 'u32[2048]{0}', space=vmem, size = 0x2000, scoped, tag = 'scoped memory for mio_forward.2']
  #allocation5 [shape = 'u32[2048]{0}', space=vmem, size = 0x2000, scoped, tag = 'scoped memory for mio_forward.2']
  #allocation6 [shape = 'u32[2048]{0}', space=vmem, size = 0x2000, scoped, tag = 'scoped memory for mio_forward.2']
  #allocation7 [shape = 'u32[2048]{0}', space=vmem, size = 0x2000, scoped, tag = 'scoped memory for mio_forward.2']
  %s0 = inlined_call_operand.vmem [shape: bf16[14464,120], index: 0, kind: input, shape index: {}]
  %s1 = inlined_call_operand.vmem [shape: f32[1,120], index: 1, kind: input, shape index: {}]
  %s2 = inlined_call_operand.vmem [shape: f32[120,128], index: 2, kind: input, shape index: {}]
  %s3 = inlined_call_operand.vmem [shape: f32[1,128], index: 3, kind: input, shape index: {}]
  %s4 = inlined_call_operand.vmem [shape: f32[128,2], index: 4, kind: input, shape index: {}]
  %s5 = inlined_call_operand.vmem [shape: f32[1,2], index: 5, kind: input, shape index: {}]
  %s6 = inlined_call_operand.vmem [shape: bf16[2,14400], index: 6, kind: input, shape index: {}]
  %s7 = inlined_call_operand.<no memory space> [shape: bf16[], index: 7, kind: input, shape index: {}]
  %s8 = inlined_call_operand.hbm [shape: f32[2,2], index: 8, kind: output, shape index: {}]
  %s9 = sld [smem:[#allocation0]]
  $region46: #{mio_forward.2} parent=0
    _
  %s11 = ssub.s32 1, %s9
  %s12 = scalar_select 0, %s11, %s9
  %v13 = vstv %s7
  %v14 = vunpack.i.l.bf16 %v13
  %v16 = vunpack.i.h.bf16 %v13
  $region1: #{mio_forward.2} parent=0
    #allocation8 [shape = 'u8[1024]{0}', space=vmem, size = 0x400, scoped, tag = 'output window, operand 0, single buffered']
    #allocation9 [shape = 's32[1]{0}', space=sflag, size = 0x4, scoped, tag = 'scoped memory for mio_forward.2']
    #allocation10 [shape = 'u8[57856]{0}', space=vmem, size = 0xe400, dematerialized = true, scoped, tag = 'FusionAdapter Buffer %fusion.1 = bf16[2,14464]{1,0:T(2,128)(2,1)} fusion(%param_6.1, %param_7), kind=kLoop, calls=%fused_computation.2.clone, metadata={op_name="jit(mio_forward)/jit(_pad)/pad" stack_frame_id=10}']
    %18 = vsyncpa [#allocation9], 0
    // Predicated region
    $region2: #{mio_forward.2} parent=1 // pred_check
      _
    $region3: #{mio_forward.2} parent=1 // pred_check_branch
      %20 = sbr.rel (0) target = $region5
    $region4: #{mio_forward.2} parent=1 // pred_region
      _
    $region5: #{mio_forward.2} parent=1 // pred_fallthru
      _
    // Predicated region
    $region6: #{mio_forward.2} parent=1 // pred_check
      _
    $region7: #{mio_forward.2} parent=1 // pred_check_branch
      %22 = sbr.rel (0) target = $region9
    $region8: #{mio_forward.2} parent=1 // pred_region
      _
    $region9: #{mio_forward.2} parent=1 // pred_fallthru
      _
    // Predicated region
    $region10: #{mio_forward.2} parent=1 // pred_check
      _
    $region11: #{mio_forward.2} parent=1 // pred_check_branch
      %24 = sbr.rel (0) target = $region13
    $region12: #{mio_forward.2} parent=1 // pred_region
      _
    $region13: #{mio_forward.2} parent=1 // pred_fallthru
      _
    // Predicated region
    $region14: #{mio_forward.2} parent=1 // pred_check
      _
    $region15: #{mio_forward.2} parent=1 // pred_check_branch
      %26 = sbr.rel (0) target = $region17
    $region16: #{mio_forward.2} parent=1 // pred_region
      _
    $region17: #{mio_forward.2} parent=1 // pred_fallthru
      _
    // Predicated region
    $region18: #{mio_forward.2} parent=1 // pred_check
      _
    $region19: #{mio_forward.2} parent=1 // pred_check_branch
      %28 = sbr.rel (0) target = $region21
    $region20: #{mio_forward.2} parent=1 // pred_region
      _
    $region21: #{mio_forward.2} parent=1 // pred_fallthru
      _
    // Predicated region
    $region22: #{mio_forward.2} parent=1 // pred_check
      _
    $region23: #{mio_forward.2} parent=1 // pred_check_branch
      %30 = sbr.rel (0) target = $region25
    $region24: #{mio_forward.2} parent=1 // pred_region
      _
    $region25: #{mio_forward.2} parent=1 // pred_fallthru
      _
    // Predicated region
    $region26: #{mio_forward.2} parent=1 // pred_check
      _
    $region27: #{mio_forward.2} parent=1 // pred_check_branch
      %32 = sbr.rel (0) target = $region29
    $region28: #{mio_forward.2} parent=1 // pred_region
      _
    $region29: #{mio_forward.2} parent=1 // pred_fallthru
      _
    %s34 = sor.u32 3, 1
    %s35 = sand.u32 %s34, 1
    %v36 = vld [vmem:[%s6] sm:%s35]
    %v37 = vunpack.c.l.bf16 %v36
    %v38 = vunpack.c.h.bf16 %v36
    %v39 = vlaneseq
    %v40 = vshrl.u32 %v39, 7
    %vm42 = vcmp.lt.s32.totalorder %v40, 2
    %v43 = vsel %vm42, %v37, %v14
    %v44 = vlaneseq
    %v45 = vand.u32 %v44, 127
    %vm47 = vcmp.lt.s32.totalorder %v45, 14400
    %v48 = vsel %vm47, %v43, %v14
    %v49 = vpack.c.bf16 0.0, %v48
    %51 = vst [vmem:[#allocation10] sm:$0x1] %v49
    %s52 = scalar_lea.vmem %s6, 1
    %s54 = sor.u32 3, 1
    %s55 = sand.u32 %s54, 1
    %v56 = vld [vmem:[%s52] sm:%s55]
    %v57 = vunpack.c.l.bf16 %v56
    %v58 = vunpack.c.h.bf16 %v56
    %v59 = vlaneseq
    %v60 = vshrl.u32 %v59, 7
    %vm62 = vcmp.lt.s32.totalorder %v60, 2
    %v63 = vsel %vm62, %v57, %v14
    %v64 = vlaneseq
    %v65 = vand.u32 %v64, 127
    %v66 = vadd.s32 %v65, 128
    %vm67 = vcmp.lt.s32.totalorder %v66, 14400
    %v68 = vsel %vm67, %v63, %v14
    %s69 = scalar_lea.vmem [#allocation10], 1
    %v70 = vpack.c.bf16 0.0, %v68
    %72 = vst [vmem:[%s69] sm:$0x1] %v70
    %s73 = scalar_lea.vmem %s6, 2
    %s75 = sor.u32 3, 1
    %s76 = sand.u32 %s75, 1
    %v77 = vld [vmem:[%s73] sm:%s76]
    %v78 = vunpack.c.l.bf16 %v77
    %v79 = vunpack.c.h.bf16 %v77
    %v80 = vlaneseq
    %v81 = vshrl.u32 %v80, 7
    %vm83 = vcmp.lt.s32.totalorder %v81, 2
    %v84 = vsel %vm83, %v78, %v14
    %v85 = vlaneseq
    %v86 = vand.u32 %v85, 127
    %v87 = vadd.s32 %v86, 256
    %vm88 = vcmp.lt.s32.totalorder %v87, 14400
    %v89 = vsel %vm88, %v84, %v14
    %s90 = scalar_lea.vmem [#allocation10], 2
    %v91 = vpack.c.bf16 0.0, %v89
    %93 = vst [vmem:[%s90] sm:$0x1] %v91
    %s94 = scalar_lea.vmem %s6, 3
    %s96 = sor.u32 3, 1
    %s97 = sand.u32 %s96, 1
    %v98 = vld [vmem:[%s94] sm:%s97]
    %v99 = vunpack.c.l.bf16 %v98
    %v100 = vunpack.c.h.bf16 %v98
    %v101 = vlaneseq
    %v102 = vshrl.u32 %v101, 7
    %vm104 = vcmp.lt.s32.totalorder %v102, 2
    %v105 = vsel %vm104, %v99, %v14
    %v106 = vlaneseq
    %v107 = vand.u32 %v106, 127
    %v108 = vadd.s32 %v107, 384
    %vm109 = vcmp.lt.s32.totalorder %v108, 14400
    %v110 = vsel %vm109, %v105, %v14
    %s111 = scalar_lea.vmem [#allocation10], 3
    %v112 = vpack.c.bf16 0.0, %v110
    %114 = vst [vmem:[%s111] sm:$0x1] %v112
    %s115 = scalar_lea.vmem %s6, 4
    %s117 = sor.u32 3, 1
    %s118 = sand.u32 %s117, 1
    %v119 = vld [vmem:[%s115] sm:%s118]
    %v120 = vunpack.c.l.bf16 %v119
    %v121 = vunpack.c.h.bf16 %v119
    %v122 = vlaneseq
    %v123 = vshrl.u32 %v122, 7
    %vm125 = vcmp.lt.s32.totalorder %v123, 2
    %v126 = vsel %vm125, %v120, %v14
    %v127 = vlaneseq
    %v128 = vand.u32 %v127, 127
    %v129 = vadd.s32 %v128, 512
    %vm130 = vcmp.lt.s32.totalorder %v129, 14400
    %v131 = vsel %vm130, %v126, %v14
    %s132 = scalar_lea.vmem [#allocation10], 4
    %v133 = vpack.c.bf16 0.0, %v131
    %135 = vst [vmem:[%s132] sm:$0x1] %v133
    %s136 = scalar_lea.vmem %s6, 5
    %s138 = sor.u32 3, 1
    %s139 = sand.u32 %s138, 1
    %v140 = vld [vmem:[%s136] sm:%s139]
    %v141 = vunpack.c.l.bf16 %v140
    %v142 = vunpack.c.h.bf16 %v140
    %v143 = vlaneseq
    %v144 = vshrl.u32 %v143, 7
    %vm146 = vcmp.lt.s32.totalorder %v144, 2
    %v147 = vsel %vm146, %v141, %v14
    %v148 = vlaneseq
    %v149 = vand.u32 %v148, 127
    %v150 = vadd.s32 %v149, 640
    %vm151 = vcmp.lt.s32.totalorder %v150, 14400
    %v152 = vsel %vm151, %v147, %v14
    %s153 = scalar_lea.vmem [#allocation10], 5
    %v154 = vpack.c.bf16 0.0, %v152
    %156 = vst [vmem:[%s153] sm:$0x1] %v154
    %s157 = scalar_lea.vmem %s6, 6
    %s159 = sor.u32 3, 1
    %s160 = sand.u32 %s159, 1
    %v161 = vld [vmem:[%s157] sm:%s160]
    %v162 = vunpack.c.l.bf16 %v161
    %v163 = vunpack.c.h.bf16 %v161
    %v164 = vlaneseq
    %v165 = vshrl.u32 %v164, 7
    %vm167 = vcmp.lt.s32.totalorder %v165, 2
    %v168 = vsel %vm167, %v162, %v14
    %v169 = vlaneseq
    %v170 = vand.u32 %v169, 127
    %v171 = vadd.s32 %v170, 768
    %vm172 = vcmp.lt.s32.totalorder %v171, 14400
    %v173 = vsel %vm172, %v168, %v14
    %s174 = scalar_lea.vmem [#allocation10], 6
    %v175 = vpack.c.bf16 0.0, %v173
    %177 = vst [vmem:[%s174] sm:$0x1] %v175
    %s178 = scalar_lea.vmem %s6, 7
    %s180 = sor.u32 3, 1
    %s181 = sand.u32 %s180, 1
    %v182 = vld [vmem:[%s178] sm:%s181]
    %v183 = vunpack.c.l.bf16 %v182
    %v184 = vunpack.c.h.bf16 %v182
    %v185 = vlaneseq
    %v186 = vshrl.u32 %v185, 7
    %vm188 = vcmp.lt.s32.totalorder %v186, 2
    %v189 = vsel %vm188, %v183, %v14
    %v190 = vlaneseq
    %v191 = vand.u32 %v190, 127
    %v192 = vadd.s32 %v191, 896
    %vm193 = vcmp.lt.s32.totalorder %v192, 14400
    %v194 = vsel %vm193, %v189, %v14
    %s195 = scalar_lea.vmem [#allocation10], 7
    %v196 = vpack.c.bf16 0.0, %v194
    %198 = vst [vmem:[%s195] sm:$0x1] %v196
    %s199 = scalar_lea.vmem %s6, 8
    %s201 = sor.u32 3, 1
    %s202 = sand.u32 %s201, 1
    %v203 = vld [vmem:[%s199] sm:%s202]
    %v204 = vunpack.c.l.bf16 %v203
    %v205 = vunpack.c.h.bf16 %v203
    %v206 = vlaneseq
    %v207 = vshrl.u32 %v206, 7
    %vm209 = vcmp.lt.s32.totalorder %v207, 2
    %v210 = vsel %vm209, %v204, %v14
    %v211 = vlaneseq
    %v212 = vand.u32 %v211, 127
    %v213 = vadd.s32 %v212, 1024
    %vm214 = vcmp.lt.s32.totalorder %v213, 14400
    %v215 = vsel %vm214, %v210, %v14
    %s216 = scalar_lea.vmem [#allocation10], 8
    %v217 = vpack.c.bf16 0.0, %v215
    %219 = vst [vmem:[%s216] sm:$0x1] %v217
    %s220 = scalar_lea.vmem %s6, 9
    %s222 = sor.u32 3, 1
    %s223 = sand.u32 %s222, 1
    %v224 = vld [vmem:[%s220] sm:%s223]
    %v225 = vunpack.c.l.bf16 %v224
    %v226 = vunpack.c.h.bf16 %v224
    %v227 = vlaneseq
    %v228 = vshrl.u32 %v227, 7
    %vm230 = vcmp.lt.s32.totalorder %v228, 2
    %v231 = vsel %vm230, %v225, %v14
    %v232 = vlaneseq
    %v233 = vand.u32 %v232, 127
    %v234 = vadd.s32 %v233, 1152
    %vm235 = vcmp.lt.s32.totalorder %v234, 14400
    %v236 = vsel %vm235, %v231, %v14
    %s237 = scalar_lea.vmem [#allocation10], 9
    %v238 = vpack.c.bf16 0.0, %v236
    %240 = vst [vmem:[%s237] sm:$0x1] %v238
    %s241 = scalar_lea.vmem %s6, 10
    %s243 = sor.u32 3, 1
    %s244 = sand.u32 %s243, 1
    %v245 = vld [vmem:[%s241] sm:%s244]
    %v246 = vunpack.c.l.bf16 %v245
    %v247 = vunpack.c.h.bf16 %v245
    %v248 = vlaneseq
    %v249 = vshrl.u32 %v248, 7
    %vm251 = vcmp.lt.s32.totalorder %v249, 2
    %v252 = vsel %vm251, %v246, %v14
    %v253 = vlaneseq
    %v254 = vand.u32 %v253, 127
    %v255 = vadd.s32 %v254, 1280
    %vm256 = vcmp.lt.s32.totalorder %v255, 14400
    %v257 = vsel %vm256, %v252, %v14
    %s258 = scalar_lea.vmem [#allocation10], 10
    %v259 = vpack.c.bf16 0.0, %v257
    %261 = vst [vmem:[%s258] sm:$0x1] %v259
    %s262 = scalar_lea.vmem %s6, 11
    %s264 = sor.u32 3, 1
    %s265 = sand.u32 %s264, 1
    %v266 = vld [vmem:[%s262] sm:%s265]
    %v267 = vunpack.c.l.bf16 %v266
    %v268 = vunpack.c.h.bf16 %v266
    %v269 = vlaneseq
    %v270 = vshrl.u32 %v269, 7
    %vm272 = vcmp.lt.s32.totalorder %v270, 2
    %v273 = vsel %vm272, %v267, %v14
    %v274 = vlaneseq
    %v275 = vand.u32 %v274, 127
    %v276 = vadd.s32 %v275, 1408
    %vm277 = vcmp.lt.s32.totalorder %v276, 14400
    %v278 = vsel %vm277, %v273, %v14
    %s279 = scalar_lea.vmem [#allocation10], 11
    %v280 = vpack.c.bf16 0.0, %v278
    %282 = vst [vmem:[%s279] sm:$0x1] %v280
    %s283 = scalar_lea.vmem %s6, 12
    %s285 = sor.u32 3, 1
    %s286 = sand.u32 %s285, 1
    %v287 = vld [vmem:[%s283] sm:%s286]
    %v288 = vunpack.c.l.bf16 %v287
    %v289 = vunpack.c.h.bf16 %v287
    %v290 = vlaneseq
    %v291 = vshrl.u32 %v290, 7
    %vm293 = vcmp.lt.s32.totalorder %v291, 2
    %v294 = vsel %vm293, %v288, %v14
    %v295 = vlaneseq
    %v296 = vand.u32 %v295, 127
    %v297 = vadd.s32 %v296, 1536
    %vm298 = vcmp.lt.s32.totalorder %v297, 14400
    %v299 = vsel %vm298, %v294, %v14
    %s300 = scalar_lea.vmem [#allocation10], 12
    %v301 = vpack.c.bf16 0.0, %v299
    %303 = vst [vmem:[%s300] sm:$0x1] %v301
    %s304 = scalar_lea.vmem %s6, 13
    %s306 = sor.u32 3, 1
    %s307 = sand.u32 %s306, 1
    %v308 = vld [vmem:[%s304] sm:%s307]
    %v309 = vunpack.c.l.bf16 %v308
    %v310 = vunpack.c.h.bf16 %v308
    %v311 = vlaneseq
    %v312 = vshrl.u32 %v311, 7
    %vm314 = vcmp.lt.s32.totalorder %v312, 2
    %v315 = vsel %vm314, %v309, %v14
    %v316 = vlaneseq
    %v317 = vand.u32 %v316, 127
    %v318 = vadd.s32 %v317, 1664
    %vm319 = vcmp.lt.s32.totalorder %v318, 14400
    %v320 = vsel %vm319, %v315, %v14
    %s321 = scalar_lea.vmem [#allocation10], 13
    %v322 = vpack.c.bf16 0.0, %v320
    %324 = vst [vmem:[%s321] sm:$0x1] %v322
    %s325 = scalar_lea.vmem %s6, 14
    %s327 = sor.u32 3, 1
    %s328 = sand.u32 %s327, 1
    %v329 = vld [vmem:[%s325] sm:%s328]
    %v330 = vunpack.c.l.bf16 %v329
    %v331 = vunpack.c.h.bf16 %v329
    %v332 = vlaneseq
    %v333 = vshrl.u32 %v332, 7
    %vm335 = vcmp.lt.s32.totalorder %v333, 2
    %v336 = vsel %vm335, %v330, %v14
    %v337 = vlaneseq
    %v338 = vand.u32 %v337, 127
    %v339 = vadd.s32 %v338, 1792
    %vm340 = vcmp.lt.s32.totalorder %v339, 14400
    %v341 = vsel %vm340, %v336, %v14
    %s342 = scalar_lea.vmem [#allocation10], 14
    %v343 = vpack.c.bf16 0.0, %v341
    %345 = vst [vmem:[%s342] sm:$0x1] %v343
    %s346 = scalar_lea.vmem %s6, 15
    %s348 = sor.u32 3, 1
    %s349 = sand.u32 %s348, 1
    %v350 = vld [vmem:[%s346] sm:%s349]
    %v351 = vunpack.c.l.bf16 %v350
    %v352 = vunpack.c.h.bf16 %v350
    %v353 = vlaneseq
    %v354 = vshrl.u32 %v353, 7
    %vm356 = vcmp.lt.s32.totalorder %v354, 2
    %v357 = vsel %vm356, %v351, %v14
    %v358 = vlaneseq
    %v359 = vand.u32 %v358, 127
    %v360 = vadd.s32 %v359, 1920
    %vm361 = vcmp.lt.s32.totalorder %v360, 14400
    %v362 = vsel %vm361, %v357, %v14
    %s363 = scalar_lea.vmem [#allocation10], 15
    %v364 = vpack.c.bf16 0.0, %v362
    %366 = vst [vmem:[%s363] sm:$0x1] %v364
    %s367 = scalar_lea.vmem %s6, 16
    %s369 = sor.u32 3, 1
    %s370 = sand.u32 %s369, 1
    %v371 = vld [vmem:[%s367] sm:%s370]
    %v372 = vunpack.c.l.bf16 %v371
    %v373 = vunpack.c.h.bf16 %v371
    %v374 = vlaneseq
    %v375 = vshrl.u32 %v374, 7
    %vm377 = vcmp.lt.s32.totalorder %v375, 2
    %v378 = vsel %vm377, %v372, %v14
    %v379 = vlaneseq
    %v380 = vand.u32 %v379, 127
    %v381 = vadd.s32 %v380, 2048
    %vm382 = vcmp.lt.s32.totalorder %v381, 14400
    %v383 = vsel %vm382, %v378, %v14
    %s384 = scalar_lea.vmem [#allocation10], 16
    %v385 = vpack.c.bf16 0.0, %v383
    %387 = vst [vmem:[%s384] sm:$0x1] %v385
    %s388 = scalar_lea.vmem %s6, 17
    %s390 = sor.u32 3, 1
    %s391 = sand.u32 %s390, 1
    %v392 = vld [vmem:[%s388] sm:%s391]
    %v393 = vunpack.c.l.bf16 %v392
    %v394 = vunpack.c.h.bf16 %v392
    %v395 = vlaneseq
    %v396 = vshrl.u32 %v395, 7
    %vm398 = vcmp.lt.s32.totalorder %v396, 2
    %v399 = vsel %vm398, %v393, %v14
    %v400 = vlaneseq
    %v401 = vand.u32 %v400, 127
    %v402 = vadd.s32 %v401, 2176
    %vm403 = vcmp.lt.s32.totalorder %v402, 14400
    %v404 = vsel %vm403, %v399, %v14
    %s405 = scalar_lea.vmem [#allocation10], 17
    %v406 = vpack.c.bf16 0.0, %v404
    %408 = vst [vmem:[%s405] sm:$0x1] %v406
    %s409 = scalar_lea.vmem %s6, 18
    %s411 = sor.u32 3, 1
    %s412 = sand.u32 %s411, 1
    %v413 = vld [vmem:[%s409] sm:%s412]
    %v414 = vunpack.c.l.bf16 %v413
    %v415 = vunpack.c.h.bf16 %v413
    %v416 = vlaneseq
    %v417 = vshrl.u32 %v416, 7
    %vm419 = vcmp.lt.s32.totalorder %v417, 2
    %v420 = vsel %vm419, %v414, %v14
    %v421 = vlaneseq
    %v422 = vand.u32 %v421, 127
    %v423 = vadd.s32 %v422, 2304
    %vm424 = vcmp.lt.s32.totalorder %v423, 14400
    %v425 = vsel %vm424, %v420, %v14
    %s426 = scalar_lea.vmem [#allocation10], 18
    %v427 = vpack.c.bf16 0.0, %v425
    %429 = vst [vmem:[%s426] sm:$0x1] %v427
    %s430 = scalar_lea.vmem %s6, 19
    %s432 = sor.u32 3, 1
    %s433 = sand.u32 %s432, 1
    %v434 = vld [vmem:[%s430] sm:%s433]
    %v435 = vunpack.c.l.bf16 %v434
    %v436 = vunpack.c.h.bf16 %v434
    %v437 = vlaneseq
    %v438 = vshrl.u32 %v437, 7
    %vm440 = vcmp.lt.s32.totalorder %v438, 2
    %v441 = vsel %vm440, %v435, %v14
    %v442 = vlaneseq
    %v443 = vand.u32 %v442, 127
    %v444 = vadd.s32 %v443, 2432
    %vm445 = vcmp.lt.s32.totalorder %v444, 14400
    %v446 = vsel %vm445, %v441, %v14
    %s447 = scalar_lea.vmem [#allocation10], 19
    %v448 = vpack.c.bf16 0.0, %v446
    %450 = vst [vmem:[%s447] sm:$0x1] %v448
    %s451 = scalar_lea.vmem %s6, 20
    %s453 = sor.u32 3, 1
    %s454 = sand.u32 %s453, 1
    %v455 = vld [vmem:[%s451] sm:%s454]
    %v456 = vunpack.c.l.bf16 %v455
    %v457 = vunpack.c.h.bf16 %v455
    %v458 = vlaneseq
    %v459 = vshrl.u32 %v458, 7
    %vm461 = vcmp.lt.s32.totalorder %v459, 2
    %v462 = vsel %vm461, %v456, %v14
    %v463 = vlaneseq
    %v464 = vand.u32 %v463, 127
    %v465 = vadd.s32 %v464, 2560
    %vm466 = vcmp.lt.s32.totalorder %v465, 14400
    %v467 = vsel %vm466, %v462, %v14
    %s468 = scalar_lea.vmem [#allocation10], 20
    %v469 = vpack.c.bf16 0.0, %v467
    %471 = vst [vmem:[%s468] sm:$0x1] %v469
    %s472 = scalar_lea.vmem %s6, 21
    %s474 = sor.u32 3, 1
    %s475 = sand.u32 %s474, 1
    %v476 = vld [vmem:[%s472] sm:%s475]
    %v477 = vunpack.c.l.bf16 %v476
    %v478 = vunpack.c.h.bf16 %v476
    %v479 = vlaneseq
    %v480 = vshrl.u32 %v479, 7
    %vm482 = vcmp.lt.s32.totalorder %v480, 2
    %v483 = vsel %vm482, %v477, %v14
    %v484 = vlaneseq
    %v485 = vand.u32 %v484, 127
    %v486 = vadd.s32 %v485, 2688
    %vm487 = vcmp.lt.s32.totalorder %v486, 14400
    %v488 = vsel %vm487, %v483, %v14
    %s489 = scalar_lea.vmem [#allocation10], 21
    %v490 = vpack.c.bf16 0.0, %v488
    %492 = vst [vmem:[%s489] sm:$0x1] %v490
    %s493 = scalar_lea.vmem %s6, 22
    %s495 = sor.u32 3, 1
    %s496 = sand.u32 %s495, 1
    %v497 = vld [vmem:[%s493] sm:%s496]
    %v498 = vunpack.c.l.bf16 %v497
    %v499 = vunpack.c.h.bf16 %v497
    %v500 = vlaneseq
    %v501 = vshrl.u32 %v500, 7
    %vm503 = vcmp.lt.s32.totalorder %v501, 2
    %v504 = vsel %vm503, %v498, %v14
    %v505 = vlaneseq
    %v506 = vand.u32 %v505, 127
    %v507 = vadd.s32 %v506, 2816
    %vm508 = vcmp.lt.s32.totalorder %v507, 14400
    %v509 = vsel %vm508, %v504, %v14
    %s510 = scalar_lea.vmem [#allocation10], 22
    %v511 = vpack.c.bf16 0.0, %v509
    %513 = vst [vmem:[%s510] sm:$0x1] %v511
    %s514 = scalar_lea.vmem %s6, 23
    %s516 = sor.u32 3, 1
    %s517 = sand.u32 %s516, 1
    %v518 = vld [vmem:[%s514] sm:%s517]
    %v519 = vunpack.c.l.bf16 %v518
    %v520 = vunpack.c.h.bf16 %v518
    %v521 = vlaneseq
    %v522 = vshrl.u32 %v521, 7
    %vm524 = vcmp.lt.s32.totalorder %v522, 2
    %v525 = vsel %vm524, %v519, %v14
    %v526 = vlaneseq
    %v527 = vand.u32 %v526, 127
    %v528 = vadd.s32 %v527, 2944
    %vm529 = vcmp.lt.s32.totalorder %v528, 14400
    %v530 = vsel %vm529, %v525, %v14
    %s531 = scalar_lea.vmem [#allocation10], 23
    %v532 = vpack.c.bf16 0.0, %v530
    %534 = vst [vmem:[%s531] sm:$0x1] %v532
    %s535 = scalar_lea.vmem %s6, 24
    %s537 = sor.u32 3, 1
    %s538 = sand.u32 %s537, 1
    %v539 = vld [vmem:[%s535] sm:%s538]
    %v540 = vunpack.c.l.bf16 %v539
    %v541 = vunpack.c.h.bf16 %v539
    %v542 = vlaneseq
    %v543 = vshrl.u32 %v542, 7
    %vm545 = vcmp.lt.s32.totalorder %v543, 2
    %v546 = vsel %vm545, %v540, %v14
    %v547 = vlaneseq
    %v548 = vand.u32 %v547, 127
    %v549 = vadd.s32 %v548, 3072
    %vm550 = vcmp.lt.s32.totalorder %v549, 14400
    %v551 = vsel %vm550, %v546, %v14
    %s552 = scalar_lea.vmem [#allocation10], 24
    %v553 = vpack.c.bf16 0.0, %v551
    %555 = vst [vmem:[%s552] sm:$0x1] %v553
    %s556 = scalar_lea.vmem %s6, 25
    %s558 = sor.u32 3, 1
    %s559 = sand.u32 %s558, 1
    %v560 = vld [vmem:[%s556] sm:%s559]
    %v561 = vunpack.c.l.bf16 %v560
    %v562 = vunpack.c.h.bf16 %v560
    %v563 = vlaneseq
    %v564 = vshrl.u32 %v563, 7
    %vm566 = vcmp.lt.s32.totalorder %v564, 2
    %v567 = vsel %vm566, %v561, %v14
    %v568 = vlaneseq
    %v569 = vand.u32 %v568, 127
    %v570 = vadd.s32 %v569, 3200
    %vm571 = vcmp.lt.s32.totalorder %v570, 14400
    %v572 = vsel %vm571, %v567, %v14
    %s573 = scalar_lea.vmem [#allocation10], 25
    %v574 = vpack.c.bf16 0.0, %v572
    %576 = vst [vmem:[%s573] sm:$0x1] %v574
    %s577 = scalar_lea.vmem %s6, 26
    %s579 = sor.u32 3, 1
    %s580 = sand.u32 %s579, 1
    %v581 = vld [vmem:[%s577] sm:%s580]
    %v582 = vunpack.c.l.bf16 %v581
    %v583 = vunpack.c.h.bf16 %v581
    %v584 = vlaneseq
    %v585 = vshrl.u32 %v584, 7
    %vm587 = vcmp.lt.s32.totalorder %v585, 2
    %v588 = vsel %vm587, %v582, %v14
    %v589 = vlaneseq
    %v590 = vand.u32 %v589, 127
    %v591 = vadd.s32 %v590, 3328
    %vm592 = vcmp.lt.s32.totalorder %v591, 14400
    %v593 = vsel %vm592, %v588, %v14
    %s594 = scalar_lea.vmem [#allocation10], 26
    %v595 = vpack.c.bf16 0.0, %v593
    %597 = vst [vmem:[%s594] sm:$0x1] %v595
    %s598 = scalar_lea.vmem %s6, 27
    %s600 = sor.u32 3, 1
    %s601 = sand.u32 %s600, 1
    %v602 = vld [vmem:[%s598] sm:%s601]
    %v603 = vunpack.c.l.bf16 %v602
    %v604 = vunpack.c.h.bf16 %v602
    %v605 = vlaneseq
    %v606 = vshrl.u32 %v605, 7
    %vm608 = vcmp.lt.s32.totalorder %v606, 2
    %v609 = vsel %vm608, %v603, %v14
    %v610 = vlaneseq
    %v611 = vand.u32 %v610, 127
    %v612 = vadd.s32 %v611, 3456
    %vm613 = vcmp.lt.s32.totalorder %v612, 14400
    %v614 = vsel %vm613, %v609, %v14
    %s615 = scalar_lea.vmem [#allocation10], 27
    %v616 = vpack.c.bf16 0.0, %v614
    %618 = vst [vmem:[%s615] sm:$0x1] %v616
    %s619 = scalar_lea.vmem %s6, 28
    %s621 = sor.u32 3, 1
    %s622 = sand.u32 %s621, 1
    %v623 = vld [vmem:[%s619] sm:%s622]
    %v624 = vunpack.c.l.bf16 %v623
    %v625 = vunpack.c.h.bf16 %v623
    %v626 = vlaneseq
    %v627 = vshrl.u32 %v626, 7
    %vm629 = vcmp.lt.s32.totalorder %v627, 2
    %v630 = vsel %vm629, %v624, %v14
    %v631 = vlaneseq
    %v632 = vand.u32 %v631, 127
    %v633 = vadd.s32 %v632, 3584
    %vm634 = vcmp.lt.s32.totalorder %v633, 14400
    %v635 = vsel %vm634, %v630, %v14
    %s636 = scalar_lea.vmem [#allocation10], 28
    %v637 = vpack.c.bf16 0.0, %v635
    %639 = vst [vmem:[%s636] sm:$0x1] %v637
    %s640 = scalar_lea.vmem %s6, 29
    %s642 = sor.u32 3, 1
    %s643 = sand.u32 %s642, 1
    %v644 = vld [vmem:[%s640] sm:%s643]
    %v645 = vunpack.c.l.bf16 %v644
    %v646 = vunpack.c.h.bf16 %v644
    %v647 = vlaneseq
    %v648 = vshrl.u32 %v647, 7
    %vm650 = vcmp.lt.s32.totalorder %v648, 2
    %v651 = vsel %vm650, %v645, %v14
    %v652 = vlaneseq
    %v653 = vand.u32 %v652, 127
    %v654 = vadd.s32 %v653, 3712
    %vm655 = vcmp.lt.s32.totalorder %v654, 14400
    %v656 = vsel %vm655, %v651, %v14
    %s657 = scalar_lea.vmem [#allocation10], 29
    %v658 = vpack.c.bf16 0.0, %v656
    %660 = vst [vmem:[%s657] sm:$0x1] %v658
    %s661 = scalar_lea.vmem %s6, 30
    %s663 = sor.u32 3, 1
    %s664 = sand.u32 %s663, 1
    %v665 = vld [vmem:[%s661] sm:%s664]
    %v666 = vunpack.c.l.bf16 %v665
    %v667 = vunpack.c.h.bf16 %v665
    %v668 = vlaneseq
    %v669 = vshrl.u32 %v668, 7
    %vm671 = vcmp.lt.s32.totalorder %v669, 2
    %v672 = vsel %vm671, %v666, %v14
    %v673 = vlaneseq
    %v674 = vand.u32 %v673, 127
    %v675 = vadd.s32 %v674, 3840
    %vm676 = vcmp.lt.s32.totalorder %v675, 14400
    %v677 = vsel %vm676, %v672, %v14
    %s678 = scalar_lea.vmem [#allocation10], 30
    %v679 = vpack.c.bf16 0.0, %v677
    %681 = vst [vmem:[%s678] sm:$0x1] %v679
    %s682 = scalar_lea.vmem %s6, 31
    %s684 = sor.u32 3, 1
    %s685 = sand.u32 %s684, 1
    %v686 = vld [vmem:[%s682] sm:%s685]
    %v687 = vunpack.c.l.bf16 %v686
    %v688 = vunpack.c.h.bf16 %v686
    %v689 = vlaneseq
    %v690 = vshrl.u32 %v689, 7
    %vm692 = vcmp.lt.s32.totalorder %v690, 2
    %v693 = vsel %vm692, %v687, %v14
    %v694 = vlaneseq
    %v695 = vand.u32 %v694, 127
    %v696 = vadd.s32 %v695, 3968
    %vm697 = vcmp.lt.s32.totalorder %v696, 14400
    %v698 = vsel %vm697, %v693, %v14
    %s699 = scalar_lea.vmem [#allocation10], 31
    %v700 = vpack.c.bf16 0.0, %v698
    %702 = vst [vmem:[%s699] sm:$0x1] %v700
    %s703 = scalar_lea.vmem %s6, 32
    %s705 = sor.u32 3, 1
    %s706 = sand.u32 %s705, 1
    %v707 = vld [vmem:[%s703] sm:%s706]
    %v708 = vunpack.c.l.bf16 %v707
    %v709 = vunpack.c.h.bf16 %v707
    %v710 = vlaneseq
    %v711 = vshrl.u32 %v710, 7
    %vm713 = vcmp.lt.s32.totalorder %v711, 2
    %v714 = vsel %vm713, %v708, %v14
    %v715 = vlaneseq
    %v716 = vand.u32 %v715, 127
    %v717 = vadd.s32 %v716, 4096
    %vm718 = vcmp.lt.s32.totalorder %v717, 14400
    %v719 = vsel %vm718, %v714, %v14
    %s720 = scalar_lea.vmem [#allocation10], 32
    %v721 = vpack.c.bf16 0.0, %v719
    %723 = vst [vmem:[%s720] sm:$0x1] %v721
    %s724 = scalar_lea.vmem %s6, 33
    %s726 = sor.u32 3, 1
    %s727 = sand.u32 %s726, 1
    %v728 = vld [vmem:[%s724] sm:%s727]
    %v729 = vunpack.c.l.bf16 %v728
    %v730 = vunpack.c.h.bf16 %v728
    %v731 = vlaneseq
    %v732 = vshrl.u32 %v731, 7
    %vm734 = vcmp.lt.s32.totalorder %v732, 2
    %v735 = vsel %vm734, %v729, %v14
    %v736 = vlaneseq
    %v737 = vand.u32 %v736, 127
    %v738 = vadd.s32 %v737, 4224
    %vm739 = vcmp.lt.s32.totalorder %v738, 14400
    %v740 = vsel %vm739, %v735, %v14
    %s741 = scalar_lea.vmem [#allocation10], 33
    %v742 = vpack.c.bf16 0.0, %v740
    %744 = vst [vmem:[%s741] sm:$0x1] %v742
    %s745 = scalar_lea.vmem %s6, 34
    %s747 = sor.u32 3, 1
    %s748 = sand.u32 %s747, 1
    %v749 = vld [vmem:[%s745] sm:%s748]
    %v750 = vunpack.c.l.bf16 %v749
    %v751 = vunpack.c.h.bf16 %v749
    %v752 = vlaneseq
    %v753 = vshrl.u32 %v752, 7
    %vm755 = vcmp.lt.s32.totalorder %v753, 2
    %v756 = vsel %vm755, %v750, %v14
    %v757 = vlaneseq
    %v758 = vand.u32 %v757, 127
    %v759 = vadd.s32 %v758, 4352
    %vm760 = vcmp.lt.s32.totalorder %v759, 14400
    %v761 = vsel %vm760, %v756, %v14
    %s762 = scalar_lea.vmem [#allocation10], 34
    %v763 = vpack.c.bf16 0.0, %v761
    %765 = vst [vmem:[%s762] sm:$0x1] %v763
    %s766 = scalar_lea.vmem %s6, 35
    %s768 = sor.u32 3, 1
    %s769 = sand.u32 %s768, 1
    %v770 = vld [vmem:[%s766] sm:%s769]
    %v771 = vunpack.c.l.bf16 %v770
    %v772 = vunpack.c.h.bf16 %v770
    %v773 = vlaneseq
    %v774 = vshrl.u32 %v773, 7
    %vm776 = vcmp.lt.s32.totalorder %v774, 2
    %v777 = vsel %vm776, %v771, %v14
    %v778 = vlaneseq
    %v779 = vand.u32 %v778, 127
    %v780 = vadd.s32 %v779, 4480
    %vm781 = vcmp.lt.s32.totalorder %v780, 14400
    %v782 = vsel %vm781, %v777, %v14
    %s783 = scalar_lea.vmem [#allocation10], 35
    %v784 = vpack.c.bf16 0.0, %v782
    %786 = vst [vmem:[%s783] sm:$0x1] %v784
    %s787 = scalar_lea.vmem %s6, 36
    %s789 = sor.u32 3, 1
    %s790 = sand.u32 %s789, 1
    %v791 = vld [vmem:[%s787] sm:%s790]
    %v792 = vunpack.c.l.bf16 %v791
    %v793 = vunpack.c.h.bf16 %v791
    %v794 = vlaneseq
    %v795 = vshrl.u32 %v794, 7
    %vm797 = vcmp.lt.s32.totalorder %v795, 2
    %v798 = vsel %vm797, %v792, %v14
    %v799 = vlaneseq
    %v800 = vand.u32 %v799, 127
    %v801 = vadd.s32 %v800, 4608
    %vm802 = vcmp.lt.s32.totalorder %v801, 14400
    %v803 = vsel %vm802, %v798, %v14
    %s804 = scalar_lea.vmem [#allocation10], 36
    %v805 = vpack.c.bf16 0.0, %v803
    %807 = vst [vmem:[%s804] sm:$0x1] %v805
    %s808 = scalar_lea.vmem %s6, 37
    %s810 = sor.u32 3, 1
    %s811 = sand.u32 %s810, 1
    %v812 = vld [vmem:[%s808] sm:%s811]
    %v813 = vunpack.c.l.bf16 %v812
    %v814 = vunpack.c.h.bf16 %v812
    %v815 = vlaneseq
    %v816 = vshrl.u32 %v815, 7
    %vm818 = vcmp.lt.s32.totalorder %v816, 2
    %v819 = vsel %vm818, %v813, %v14
    %v820 = vlaneseq
    %v821 = vand.u32 %v820, 127
    %v822 = vadd.s32 %v821, 4736
    %vm823 = vcmp.lt.s32.totalorder %v822, 14400
    %v824 = vsel %vm823, %v819, %v14
    %s825 = scalar_lea.vmem [#allocation10], 37
    %v826 = vpack.c.bf16 0.0, %v824
    %828 = vst [vmem:[%s825] sm:$0x1] %v826
    %s829 = scalar_lea.vmem %s6, 38
    %s831 = sor.u32 3, 1
    %s832 = sand.u32 %s831, 1
    %v833 = vld [vmem:[%s829] sm:%s832]
    %v834 = vunpack.c.l.bf16 %v833
    %v835 = vunpack.c.h.bf16 %v833
    %v836 = vlaneseq
    %v837 = vshrl.u32 %v836, 7
    %vm839 = vcmp.lt.s32.totalorder %v837, 2
    %v840 = vsel %vm839, %v834, %v14
    %v841 = vlaneseq
    %v842 = vand.u32 %v841, 127
    %v843 = vadd.s32 %v842, 4864
    %vm844 = vcmp.lt.s32.totalorder %v843, 14400
    %v845 = vsel %vm844, %v840, %v14
    %s846 = scalar_lea.vmem [#allocation10], 38
    %v847 = vpack.c.bf16 0.0, %v845
    %849 = vst [vmem:[%s846] sm:$0x1] %v847
    %s850 = scalar_lea.vmem %s6, 39
    %s852 = sor.u32 3, 1
    %s853 = sand.u32 %s852, 1
    %v854 = vld [vmem:[%s850] sm:%s853]
    %v855 = vunpack.c.l.bf16 %v854
    %v856 = vunpack.c.h.bf16 %v854
    %v857 = vlaneseq
    %v858 = vshrl.u32 %v857, 7
    %vm860 = vcmp.lt.s32.totalorder %v858, 2
    %v861 = vsel %vm860, %v855, %v14
    %v862 = vlaneseq
    %v863 = vand.u32 %v862, 127
    %v864 = vadd.s32 %v863, 4992
    %vm865 = vcmp.lt.s32.totalorder %v864, 14400
    %v866 = vsel %vm865, %v861, %v14
    %s867 = scalar_lea.vmem [#allocation10], 39
    %v868 = vpack.c.bf16 0.0, %v866
    %870 = vst [vmem:[%s867] sm:$0x1] %v868
    %s871 = scalar_lea.vmem %s6, 40
    %s873 = sor.u32 3, 1
    %s874 = sand.u32 %s873, 1
    %v875 = vld [vmem:[%s871] sm:%s874]
    %v876 = vunpack.c.l.bf16 %v875
    %v877 = vunpack.c.h.bf16 %v875
    %v878 = vlaneseq
    %v879 = vshrl.u32 %v878, 7
    %vm881 = vcmp.lt.s32.totalorder %v879, 2
    %v882 = vsel %vm881, %v876, %v14
    %v883 = vlaneseq
    %v884 = vand.u32 %v883, 127
    %v885 = vadd.s32 %v884, 5120
    %vm886 = vcmp.lt.s32.totalorder %v885, 14400
    %v887 = vsel %vm886, %v882, %v14
    %s888 = scalar_lea.vmem [#allocation10], 40
    %v889 = vpack.c.bf16 0.0, %v887
    %891 = vst [vmem:[%s888] sm:$0x1] %v889
    %s892 = scalar_lea.vmem %s6, 41
    %s894 = sor.u32 3, 1
    %s895 = sand.u32 %s894, 1
    %v896 = vld [vmem:[%s892] sm:%s895]
    %v897 = vunpack.c.l.bf16 %v896
    %v898 = vunpack.c.h.bf16 %v896
    %v899 = vlaneseq
    %v900 = vshrl.u32 %v899, 7
    %vm902 = vcmp.lt.s32.totalorder %v900, 2
    %v903 = vsel %vm902, %v897, %v14
    %v904 = vlaneseq
    %v905 = vand.u32 %v904, 127
    %v906 = vadd.s32 %v905, 5248
    %vm907 = vcmp.lt.s32.totalorder %v906, 14400
    %v908 = vsel %vm907, %v903, %v14
    %s909 = scalar_lea.vmem [#allocation10], 41
    %v910 = vpack.c.bf16 0.0, %v908
    %912 = vst [vmem:[%s909] sm:$0x1] %v910
    %s913 = scalar_lea.vmem %s6, 42
    %s915 = sor.u32 3, 1
    %s916 = sand.u32 %s915, 1
    %v917 = vld [vmem:[%s913] sm:%s916]
    %v918 = vunpack.c.l.bf16 %v917
    %v919 = vunpack.c.h.bf16 %v917
    %v920 = vlaneseq
    %v921 = vshrl.u32 %v920, 7
    %vm923 = vcmp.lt.s32.totalorder %v921, 2
    %v924 = vsel %vm923, %v918, %v14
    %v925 = vlaneseq
    %v926 = vand.u32 %v925, 127
    %v927 = vadd.s32 %v926, 5376
    %vm928 = vcmp.lt.s32.totalorder %v927, 14400
    %v929 = vsel %vm928, %v924, %v14
    %s930 = scalar_lea.vmem [#allocation10], 42
    %v931 = vpack.c.bf16 0.0, %v929
    %933 = vst [vmem:[%s930] sm:$0x1] %v931
    %s934 = scalar_lea.vmem %s6, 43
    %s936 = sor.u32 3, 1
    %s937 = sand.u32 %s936, 1
    %v938 = vld [vmem:[%s934] sm:%s937]
    %v939 = vunpack.c.l.bf16 %v938
    %v940 = vunpack.c.h.bf16 %v938
    %v941 = vlaneseq
    %v942 = vshrl.u32 %v941, 7
    %vm944 = vcmp.lt.s32.totalorder %v942, 2
    %v945 = vsel %vm944, %v939, %v14
    %v946 = vlaneseq
    %v947 = vand.u32 %v946, 127
    %v948 = vadd.s32 %v947, 5504
    %vm949 = vcmp.lt.s32.totalorder %v948, 14400
    %v950 = vsel %vm949, %v945, %v14
    %s951 = scalar_lea.vmem [#allocation10], 43
    %v952 = vpack.c.bf16 0.0, %v950
    %954 = vst [vmem:[%s951] sm:$0x1] %v952
    %s955 = scalar_lea.vmem %s6, 44
    %s957 = sor.u32 3, 1
    %s958 = sand.u32 %s957, 1
    %v959 = vld [vmem:[%s955] sm:%s958]
    %v960 = vunpack.c.l.bf16 %v959
    %v961 = vunpack.c.h.bf16 %v959
    %v962 = vlaneseq
    %v963 = vshrl.u32 %v962, 7
    %vm965 = vcmp.lt.s32.totalorder %v963, 2
    %v966 = vsel %vm965, %v960, %v14
    %v967 = vlaneseq
    %v968 = vand.u32 %v967, 127
    %v969 = vadd.s32 %v968, 5632
    %vm970 = vcmp.lt.s32.totalorder %v969, 14400
    %v971 = vsel %vm970, %v966, %v14
    %s972 = scalar_lea.vmem [#allocation10], 44
    %v973 = vpack.c.bf16 0.0, %v971
    %975 = vst [vmem:[%s972] sm:$0x1] %v973
    %s976 = scalar_lea.vmem %s6, 45
    %s978 = sor.u32 3, 1
    %s979 = sand.u32 %s978, 1
    %v980 = vld [vmem:[%s976] sm:%s979]
    %v981 = vunpack.c.l.bf16 %v980
    %v982 = vunpack.c.h.bf16 %v980
    %v983 = vlaneseq
    %v984 = vshrl.u32 %v983, 7
    %vm986 = vcmp.lt.s32.totalorder %v984, 2
    %v987 = vsel %vm986, %v981, %v14
    %v988 = vlaneseq
    %v989 = vand.u32 %v988, 127
    %v990 = vadd.s32 %v989, 5760
    %vm991 = vcmp.lt.s32.totalorder %v990, 14400
    %v992 = vsel %vm991, %v987, %v14
    %s993 = scalar_lea.vmem [#allocation10], 45
    %v994 = vpack.c.bf16 0.0, %v992
    %996 = vst [vmem:[%s993] sm:$0x1] %v994
    %s997 = scalar_lea.vmem %s6, 46
    %s999 = sor.u32 3, 1
    %s1000 = sand.u32 %s999, 1
    %v1001 = vld [vmem:[%s997] sm:%s1000]
    %v1002 = vunpack.c.l.bf16 %v1001
    %v1003 = vunpack.c.h.bf16 %v1001
    %v1004 = vlaneseq
    %v1005 = vshrl.u32 %v1004, 7
    %vm1007 = vcmp.lt.s32.totalorder %v1005, 2
    %v1008 = vsel %vm1007, %v1002, %v14
    %v1009 = vlaneseq
    %v1010 = vand.u32 %v1009, 127
    %v1011 = vadd.s32 %v1010, 5888
    %vm1012 = vcmp.lt.s32.totalorder %v1011, 14400
    %v1013 = vsel %vm1012, %v1008, %v14
    %s1014 = scalar_lea.vmem [#allocation10], 46
    %v1015 = vpack.c.bf16 0.0, %v1013
    %1017 = vst [vmem:[%s1014] sm:$0x1] %v1015
    %s1018 = scalar_lea.vmem %s6, 47
    %s1020 = sor.u32 3, 1
    %s1021 = sand.u32 %s1020, 1
    %v1022 = vld [vmem:[%s1018] sm:%s1021]
    %v1023 = vunpack.c.l.bf16 %v1022
    %v1024 = vunpack.c.h.bf16 %v1022
    %v1025 = vlaneseq
    %v1026 = vshrl.u32 %v1025, 7
    %vm1028 = vcmp.lt.s32.totalorder %v1026, 2
    %v1029 = vsel %vm1028, %v1023, %v14
    %v1030 = vlaneseq
    %v1031 = vand.u32 %v1030, 127
    %v1032 = vadd.s32 %v1031, 6016
    %vm1033 = vcmp.lt.s32.totalorder %v1032, 14400
    %v1034 = vsel %vm1033, %v1029, %v14
    %s1035 = scalar_lea.vmem [#allocation10], 47
    %v1036 = vpack.c.bf16 0.0, %v1034
    %1038 = vst [vmem:[%s1035] sm:$0x1] %v1036
    %s1039 = scalar_lea.vmem %s6, 48
    %s1041 = sor.u32 3, 1
    %s1042 = sand.u32 %s1041, 1
    %v1043 = vld [vmem:[%s1039] sm:%s1042]
    %v1044 = vunpack.c.l.bf16 %v1043
    %v1045 = vunpack.c.h.bf16 %v1043
    %v1046 = vlaneseq
    %v1047 = vshrl.u32 %v1046, 7
    %vm1049 = vcmp.lt.s32.totalorder %v1047, 2
    %v1050 = vsel %vm1049, %v1044, %v14
    %v1051 = vlaneseq
    %v1052 = vand.u32 %v1051, 127
    %v1053 = vadd.s32 %v1052, 6144
    %vm1054 = vcmp.lt.s32.totalorder %v1053, 14400
    %v1055 = vsel %vm1054, %v1050, %v14
    %s1056 = scalar_lea.vmem [#allocation10], 48
    %v1057 = vpack.c.bf16 0.0, %v1055
    %1059 = vst [vmem:[%s1056] sm:$0x1] %v1057
    %s1060 = scalar_lea.vmem %s6, 49
    %s1062 = sor.u32 3, 1
    %s1063 = sand.u32 %s1062, 1
    %v1064 = vld [vmem:[%s1060] sm:%s1063]
    %v1065 = vunpack.c.l.bf16 %v1064
    %v1066 = vunpack.c.h.bf16 %v1064
    %v1067 = vlaneseq
    %v1068 = vshrl.u32 %v1067, 7
    %vm1070 = vcmp.lt.s32.totalorder %v1068, 2
    %v1071 = vsel %vm1070, %v1065, %v14
    %v1072 = vlaneseq
    %v1073 = vand.u32 %v1072, 127
    %v1074 = vadd.s32 %v1073, 6272
    %vm1075 = vcmp.lt.s32.totalorder %v1074, 14400
    %v1076 = vsel %vm1075, %v1071, %v14
    %s1077 = scalar_lea.vmem [#allocation10], 49
    %v1078 = vpack.c.bf16 0.0, %v1076
    %1080 = vst [vmem:[%s1077] sm:$0x1] %v1078
    %s1081 = scalar_lea.vmem %s6, 50
    %s1083 = sor.u32 3, 1
    %s1084 = sand.u32 %s1083, 1
    %v1085 = vld [vmem:[%s1081] sm:%s1084]
    %v1086 = vunpack.c.l.bf16 %v1085
    %v1087 = vunpack.c.h.bf16 %v1085
    %v1088 = vlaneseq
    %v1089 = vshrl.u32 %v1088, 7
    %vm1091 = vcmp.lt.s32.totalorder %v1089, 2
    %v1092 = vsel %vm1091, %v1086, %v14
    %v1093 = vlaneseq
    %v1094 = vand.u32 %v1093, 127
    %v1095 = vadd.s32 %v1094, 6400
    %vm1096 = vcmp.lt.s32.totalorder %v1095, 14400
    %v1097 = vsel %vm1096, %v1092, %v14
    %s1098 = scalar_lea.vmem [#allocation10], 50
    %v1099 = vpack.c.bf16 0.0, %v1097
    %1101 = vst [vmem:[%s1098] sm:$0x1] %v1099
    %s1102 = scalar_lea.vmem %s6, 51
    %s1104 = sor.u32 3, 1
    %s1105 = sand.u32 %s1104, 1
    %v1106 = vld [vmem:[%s1102] sm:%s1105]
    %v1107 = vunpack.c.l.bf16 %v1106
    %v1108 = vunpack.c.h.bf16 %v1106
    %v1109 = vlaneseq
    %v1110 = vshrl.u32 %v1109, 7
    %vm1112 = vcmp.lt.s32.totalorder %v1110, 2
    %v1113 = vsel %vm1112, %v1107, %v14
    %v1114 = vlaneseq
    %v1115 = vand.u32 %v1114, 127
    %v1116 = vadd.s32 %v1115, 6528
    %vm1117 = vcmp.lt.s32.totalorder %v1116, 14400
    %v1118 = vsel %vm1117, %v1113, %v14
    %s1119 = scalar_lea.vmem [#allocation10], 51
    %v1120 = vpack.c.bf16 0.0, %v1118
    %1122 = vst [vmem:[%s1119] sm:$0x1] %v1120
    %s1123 = scalar_lea.vmem %s6, 52
    %s1125 = sor.u32 3, 1
    %s1126 = sand.u32 %s1125, 1
    %v1127 = vld [vmem:[%s1123] sm:%s1126]
    %v1128 = vunpack.c.l.bf16 %v1127
    %v1129 = vunpack.c.h.bf16 %v1127
    %v1130 = vlaneseq
    %v1131 = vshrl.u32 %v1130, 7
    %vm1133 = vcmp.lt.s32.totalorder %v1131, 2
    %v1134 = vsel %vm1133, %v1128, %v14
    %v1135 = vlaneseq
    %v1136 = vand.u32 %v1135, 127
    %v1137 = vadd.s32 %v1136, 6656
    %vm1138 = vcmp.lt.s32.totalorder %v1137, 14400
    %v1139 = vsel %vm1138, %v1134, %v14
    %s1140 = scalar_lea.vmem [#allocation10], 52
    %v1141 = vpack.c.bf16 0.0, %v1139
    %1143 = vst [vmem:[%s1140] sm:$0x1] %v1141
    %s1144 = scalar_lea.vmem %s6, 53
    %s1146 = sor.u32 3, 1
    %s1147 = sand.u32 %s1146, 1
    %v1148 = vld [vmem:[%s1144] sm:%s1147]
    %v1149 = vunpack.c.l.bf16 %v1148
    %v1150 = vunpack.c.h.bf16 %v1148
    %v1151 = vlaneseq
    %v1152 = vshrl.u32 %v1151, 7
    %vm1154 = vcmp.lt.s32.totalorder %v1152, 2
    %v1155 = vsel %vm1154, %v1149, %v14
    %v1156 = vlaneseq
    %v1157 = vand.u32 %v1156, 127
    %v1158 = vadd.s32 %v1157, 6784
    %vm1159 = vcmp.lt.s32.totalorder %v1158, 14400
    %v1160 = vsel %vm1159, %v1155, %v14
    %s1161 = scalar_lea.vmem [#allocation10], 53
    %v1162 = vpack.c.bf16 0.0, %v1160
    %1164 = vst [vmem:[%s1161] sm:$0x1] %v1162
    %s1165 = scalar_lea.vmem %s6, 54
    %s1167 = sor.u32 3, 1
    %s1168 = sand.u32 %s1167, 1
    %v1169 = vld [vmem:[%s1165] sm:%s1168]
    %v1170 = vunpack.c.l.bf16 %v1169
    %v1171 = vunpack.c.h.bf16 %v1169
    %v1172 = vlaneseq
    %v1173 = vshrl.u32 %v1172, 7
    %vm1175 = vcmp.lt.s32.totalorder %v1173, 2
    %v1176 = vsel %vm1175, %v1170, %v14
    %v1177 = vlaneseq
    %v1178 = vand.u32 %v1177, 127
    %v1179 = vadd.s32 %v1178, 6912
    %vm1180 = vcmp.lt.s32.totalorder %v1179, 14400
    %v1181 = vsel %vm1180, %v1176, %v14
    %s1182 = scalar_lea.vmem [#allocation10], 54
    %v1183 = vpack.c.bf16 0.0, %v1181
    %1185 = vst [vmem:[%s1182] sm:$0x1] %v1183
    %s1186 = scalar_lea.vmem %s6, 55
    %s1188 = sor.u32 3, 1
    %s1189 = sand.u32 %s1188, 1
    %v1190 = vld [vmem:[%s1186] sm:%s1189]
    %v1191 = vunpack.c.l.bf16 %v1190
    %v1192 = vunpack.c.h.bf16 %v1190
    %v1193 = vlaneseq
    %v1194 = vshrl.u32 %v1193, 7
    %vm1196 = vcmp.lt.s32.totalorder %v1194, 2
    %v1197 = vsel %vm1196, %v1191, %v14
    %v1198 = vlaneseq
    %v1199 = vand.u32 %v1198, 127
    %v1200 = vadd.s32 %v1199, 7040
    %vm1201 = vcmp.lt.s32.totalorder %v1200, 14400
    %v1202 = vsel %vm1201, %v1197, %v14
    %s1203 = scalar_lea.vmem [#allocation10], 55
    %v1204 = vpack.c.bf16 0.0, %v1202
    %1206 = vst [vmem:[%s1203] sm:$0x1] %v1204
    %s1207 = scalar_lea.vmem %s6, 56
    %s1209 = sor.u32 3, 1
    %s1210 = sand.u32 %s1209, 1
    %v1211 = vld [vmem:[%s1207] sm:%s1210]
    %v1212 = vunpack.c.l.bf16 %v1211
    %v1213 = vunpack.c.h.bf16 %v1211
    %v1214 = vlaneseq
    %v1215 = vshrl.u32 %v1214, 7
    %vm1217 = vcmp.lt.s32.totalorder %v1215, 2
    %v1218 = vsel %vm1217, %v1212, %v14
    %v1219 = vlaneseq
    %v1220 = vand.u32 %v1219, 127
    %v1221 = vadd.s32 %v1220, 7168
    %vm1222 = vcmp.lt.s32.totalorder %v1221, 14400
    %v1223 = vsel %vm1222, %v1218, %v14
    %s1224 = scalar_lea.vmem [#allocation10], 56
    %v1225 = vpack.c.bf16 0.0, %v1223
    %1227 = vst [vmem:[%s1224] sm:$0x1] %v1225
    %s1228 = scalar_lea.vmem %s6, 57
    %s1230 = sor.u32 3, 1
    %s1231 = sand.u32 %s1230, 1
    %v1232 = vld [vmem:[%s1228] sm:%s1231]
    %v1233 = vunpack.c.l.bf16 %v1232
    %v1234 = vunpack.c.h.bf16 %v1232
    %v1235 = vlaneseq
    %v1236 = vshrl.u32 %v1235, 7
    %vm1238 = vcmp.lt.s32.totalorder %v1236, 2
    %v1239 = vsel %vm1238, %v1233, %v14
    %v1240 = vlaneseq
    %v1241 = vand.u32 %v1240, 127
    %v1242 = vadd.s32 %v1241, 7296
    %vm1243 = vcmp.lt.s32.totalorder %v1242, 14400
    %v1244 = vsel %vm1243, %v1239, %v14
    %s1245 = scalar_lea.vmem [#allocation10], 57
    %v1246 = vpack.c.bf16 0.0, %v1244
    %1248 = vst [vmem:[%s1245] sm:$0x1] %v1246
    %s1249 = scalar_lea.vmem %s6, 58
    %s1251 = sor.u32 3, 1
    %s1252 = sand.u32 %s1251, 1
    %v1253 = vld [vmem:[%s1249] sm:%s1252]
    %v1254 = vunpack.c.l.bf16 %v1253
    %v1255 = vunpack.c.h.bf16 %v1253
    %v1256 = vlaneseq
    %v1257 = vshrl.u32 %v1256, 7
    %vm1259 = vcmp.lt.s32.totalorder %v1257, 2
    %v1260 = vsel %vm1259, %v1254, %v14
    %v1261 = vlaneseq
    %v1262 = vand.u32 %v1261, 127
    %v1263 = vadd.s32 %v1262, 7424
    %vm1264 = vcmp.lt.s32.totalorder %v1263, 14400
    %v1265 = vsel %vm1264, %v1260, %v14
    %s1266 = scalar_lea.vmem [#allocation10], 58
    %v1267 = vpack.c.bf16 0.0, %v1265
    %1269 = vst [vmem:[%s1266] sm:$0x1] %v1267
    %s1270 = scalar_lea.vmem %s6, 59
    %s1272 = sor.u32 3, 1
    %s1273 = sand.u32 %s1272, 1
    %v1274 = vld [vmem:[%s1270] sm:%s1273]
    %v1275 = vunpack.c.l.bf16 %v1274
    %v1276 = vunpack.c.h.bf16 %v1274
    %v1277 = vlaneseq
    %v1278 = vshrl.u32 %v1277, 7
    %vm1280 = vcmp.lt.s32.totalorder %v1278, 2
    %v1281 = vsel %vm1280, %v1275, %v14
    %v1282 = vlaneseq
    %v1283 = vand.u32 %v1282, 127
    %v1284 = vadd.s32 %v1283, 7552
    %vm1285 = vcmp.lt.s32.totalorder %v1284, 14400
    %v1286 = vsel %vm1285, %v1281, %v14
    %s1287 = scalar_lea.vmem [#allocation10], 59
    %v1288 = vpack.c.bf16 0.0, %v1286
    %1290 = vst [vmem:[%s1287] sm:$0x1] %v1288
    %s1291 = scalar_lea.vmem %s6, 60
    %s1293 = sor.u32 3, 1
    %s1294 = sand.u32 %s1293, 1
    %v1295 = vld [vmem:[%s1291] sm:%s1294]
    %v1296 = vunpack.c.l.bf16 %v1295
    %v1297 = vunpack.c.h.bf16 %v1295
    %v1298 = vlaneseq
    %v1299 = vshrl.u32 %v1298, 7
    %vm1301 = vcmp.lt.s32.totalorder %v1299, 2
    %v1302 = vsel %vm1301, %v1296, %v14
    %v1303 = vlaneseq
    %v1304 = vand.u32 %v1303, 127
    %v1305 = vadd.s32 %v1304, 7680
    %vm1306 = vcmp.lt.s32.totalorder %v1305, 14400
    %v1307 = vsel %vm1306, %v1302, %v14
    %s1308 = scalar_lea.vmem [#allocation10], 60
    %v1309 = vpack.c.bf16 0.0, %v1307
    %1311 = vst [vmem:[%s1308] sm:$0x1] %v1309
    %s1312 = scalar_lea.vmem %s6, 61
    %s1314 = sor.u32 3, 1
    %s1315 = sand.u32 %s1314, 1
    %v1316 = vld [vmem:[%s1312] sm:%s1315]
    %v1317 = vunpack.c.l.bf16 %v1316
    %v1318 = vunpack.c.h.bf16 %v1316
    %v1319 = vlaneseq
    %v1320 = vshrl.u32 %v1319, 7
    %vm1322 = vcmp.lt.s32.totalorder %v1320, 2
    %v1323 = vsel %vm1322, %v1317, %v14
    %v1324 = vlaneseq
    %v1325 = vand.u32 %v1324, 127
    %v1326 = vadd.s32 %v1325, 7808
    %vm1327 = vcmp.lt.s32.totalorder %v1326, 14400
    %v1328 = vsel %vm1327, %v1323, %v14
    %s1329 = scalar_lea.vmem [#allocation10], 61
    %v1330 = vpack.c.bf16 0.0, %v1328
    %1332 = vst [vmem:[%s1329] sm:$0x1] %v1330
    %s1333 = scalar_lea.vmem %s6, 62
    %s1335 = sor.u32 3, 1
    %s1336 = sand.u32 %s1335, 1
    %v1337 = vld [vmem:[%s1333] sm:%s1336]
    %v1338 = vunpack.c.l.bf16 %v1337
    %v1339 = vunpack.c.h.bf16 %v1337
    %v1340 = vlaneseq
    %v1341 = vshrl.u32 %v1340, 7
    %vm1343 = vcmp.lt.s32.totalorder %v1341, 2
    %v1344 = vsel %vm1343, %v1338, %v14
    %v1345 = vlaneseq
    %v1346 = vand.u32 %v1345, 127
    %v1347 = vadd.s32 %v1346, 7936
    %vm1348 = vcmp.lt.s32.totalorder %v1347, 14400
    %v1349 = vsel %vm1348, %v1344, %v14
    %s1350 = scalar_lea.vmem [#allocation10], 62
    %v1351 = vpack.c.bf16 0.0, %v1349
    %1353 = vst [vmem:[%s1350] sm:$0x1] %v1351
    %s1354 = scalar_lea.vmem %s6, 63
    %s1356 = sor.u32 3, 1
    %s1357 = sand.u32 %s1356, 1
    %v1358 = vld [vmem:[%s1354] sm:%s1357]
    %v1359 = vunpack.c.l.bf16 %v1358
    %v1360 = vunpack.c.h.bf16 %v1358
    %v1361 = vlaneseq
    %v1362 = vshrl.u32 %v1361, 7
    %vm1364 = vcmp.lt.s32.totalorder %v1362, 2
    %v1365 = vsel %vm1364, %v1359, %v14
    %v1366 = vlaneseq
    %v1367 = vand.u32 %v1366, 127
    %v1368 = vadd.s32 %v1367, 8064
    %vm1369 = vcmp.lt.s32.totalorder %v1368, 14400
    %v1370 = vsel %vm1369, %v1365, %v14
    %s1371 = scalar_lea.vmem [#allocation10], 63
    %v1372 = vpack.c.bf16 0.0, %v1370
    %1374 = vst [vmem:[%s1371] sm:$0x1] %v1372
    %s1375 = scalar_lea.vmem %s6, 64
    %s1377 = sor.u32 3, 1
    %s1378 = sand.u32 %s1377, 1
    %v1379 = vld [vmem:[%s1375] sm:%s1378]
    %v1380 = vunpack.c.l.bf16 %v1379
    %v1381 = vunpack.c.h.bf16 %v1379
    %v1382 = vlaneseq
    %v1383 = vshrl.u32 %v1382, 7
    %vm1385 = vcmp.lt.s32.totalorder %v1383, 2
    %v1386 = vsel %vm1385, %v1380, %v14
    %v1387 = vlaneseq
    %v1388 = vand.u32 %v1387, 127
    %v1389 = vadd.s32 %v1388, 8192
    %vm1390 = vcmp.lt.s32.totalorder %v1389, 14400
    %v1391 = vsel %vm1390, %v1386, %v14
    %s1392 = scalar_lea.vmem [#allocation10], 64
    %v1393 = vpack.c.bf16 0.0, %v1391
    %1395 = vst [vmem:[%s1392] sm:$0x1] %v1393
    %s1396 = scalar_lea.vmem %s6, 65
    %s1398 = sor.u32 3, 1
    %s1399 = sand.u32 %s1398, 1
    %v1400 = vld [vmem:[%s1396] sm:%s1399]
    %v1401 = vunpack.c.l.bf16 %v1400
    %v1402 = vunpack.c.h.bf16 %v1400
    %v1403 = vlaneseq
    %v1404 = vshrl.u32 %v1403, 7
    %vm1406 = vcmp.lt.s32.totalorder %v1404, 2
    %v1407 = vsel %vm1406, %v1401, %v14
    %v1408 = vlaneseq
    %v1409 = vand.u32 %v1408, 127
    %v1410 = vadd.s32 %v1409, 8320
    %vm1411 = vcmp.lt.s32.totalorder %v1410, 14400
    %v1412 = vsel %vm1411, %v1407, %v14
    %s1413 = scalar_lea.vmem [#allocation10], 65
    %v1414 = vpack.c.bf16 0.0, %v1412
    %1416 = vst [vmem:[%s1413] sm:$0x1] %v1414
    %s1417 = scalar_lea.vmem %s6, 66
    %s1419 = sor.u32 3, 1
    %s1420 = sand.u32 %s1419, 1
    %v1421 = vld [vmem:[%s1417] sm:%s1420]
    %v1422 = vunpack.c.l.bf16 %v1421
    %v1423 = vunpack.c.h.bf16 %v1421
    %v1424 = vlaneseq
    %v1425 = vshrl.u32 %v1424, 7
    %vm1427 = vcmp.lt.s32.totalorder %v1425, 2
    %v1428 = vsel %vm1427, %v1422, %v14
    %v1429 = vlaneseq
    %v1430 = vand.u32 %v1429, 127
    %v1431 = vadd.s32 %v1430, 8448
    %vm1432 = vcmp.lt.s32.totalorder %v1431, 14400
    %v1433 = vsel %vm1432, %v1428, %v14
    %s1434 = scalar_lea.vmem [#allocation10], 66
    %v1435 = vpack.c.bf16 0.0, %v1433
    %1437 = vst [vmem:[%s1434] sm:$0x1] %v1435
    %s1438 = scalar_lea.vmem %s6, 67
    %s1440 = sor.u32 3, 1
    %s1441 = sand.u32 %s1440, 1
    %v1442 = vld [vmem:[%s1438] sm:%s1441]
    %v1443 = vunpack.c.l.bf16 %v1442
    %v1444 = vunpack.c.h.bf16 %v1442
    %v1445 = vlaneseq
    %v1446 = vshrl.u32 %v1445, 7
    %vm1448 = vcmp.lt.s32.totalorder %v1446, 2
    %v1449 = vsel %vm1448, %v1443, %v14
    %v1450 = vlaneseq
    %v1451 = vand.u32 %v1450, 127
    %v1452 = vadd.s32 %v1451, 8576
    %vm1453 = vcmp.lt.s32.totalorder %v1452, 14400
    %v1454 = vsel %vm1453, %v1449, %v14
    %s1455 = scalar_lea.vmem [#allocation10], 67
    %v1456 = vpack.c.bf16 0.0, %v1454
    %1458 = vst [vmem:[%s1455] sm:$0x1] %v1456
    %s1459 = scalar_lea.vmem %s6, 68
    %s1461 = sor.u32 3, 1
    %s1462 = sand.u32 %s1461, 1
    %v1463 = vld [vmem:[%s1459] sm:%s1462]
    %v1464 = vunpack.c.l.bf16 %v1463
    %v1465 = vunpack.c.h.bf16 %v1463
    %v1466 = vlaneseq
    %v1467 = vshrl.u32 %v1466, 7
    %vm1469 = vcmp.lt.s32.totalorder %v1467, 2
    %v1470 = vsel %vm1469, %v1464, %v14
    %v1471 = vlaneseq
    %v1472 = vand.u32 %v1471, 127
    %v1473 = vadd.s32 %v1472, 8704
    %vm1474 = vcmp.lt.s32.totalorder %v1473, 14400
    %v1475 = vsel %vm1474, %v1470, %v14
    %s1476 = scalar_lea.vmem [#allocation10], 68
    %v1477 = vpack.c.bf16 0.0, %v1475
    %1479 = vst [vmem:[%s1476] sm:$0x1] %v1477
    %s1480 = scalar_lea.vmem %s6, 69
    %s1482 = sor.u32 3, 1
    %s1483 = sand.u32 %s1482, 1
    %v1484 = vld [vmem:[%s1480] sm:%s1483]
    %v1485 = vunpack.c.l.bf16 %v1484
    %v1486 = vunpack.c.h.bf16 %v1484
    %v1487 = vlaneseq
    %v1488 = vshrl.u32 %v1487, 7
    %vm1490 = vcmp.lt.s32.totalorder %v1488, 2
    %v1491 = vsel %vm1490, %v1485, %v14
    %v1492 = vlaneseq
    %v1493 = vand.u32 %v1492, 127
    %v1494 = vadd.s32 %v1493, 8832
    %vm1495 = vcmp.lt.s32.totalorder %v1494, 14400
    %v1496 = vsel %vm1495, %v1491, %v14
    %s1497 = scalar_lea.vmem [#allocation10], 69
    %v1498 = vpack.c.bf16 0.0, %v1496
    %1500 = vst [vmem:[%s1497] sm:$0x1] %v1498
    %s1501 = scalar_lea.vmem %s6, 70
    %s1503 = sor.u32 3, 1
    %s1504 = sand.u32 %s1503, 1
    %v1505 = vld [vmem:[%s1501] sm:%s1504]
    %v1506 = vunpack.c.l.bf16 %v1505
    %v1507 = vunpack.c.h.bf16 %v1505
    %v1508 = vlaneseq
    %v1509 = vshrl.u32 %v1508, 7
    %vm1511 = vcmp.lt.s32.totalorder %v1509, 2
    %v1512 = vsel %vm1511, %v1506, %v14
    %v1513 = vlaneseq
    %v1514 = vand.u32 %v1513, 127
    %v1515 = vadd.s32 %v1514, 8960
    %vm1516 = vcmp.lt.s32.totalorder %v1515, 14400
    %v1517 = vsel %vm1516, %v1512, %v14
    %s1518 = scalar_lea.vmem [#allocation10], 70
    %v1519 = vpack.c.bf16 0.0, %v1517
    %1521 = vst [vmem:[%s1518] sm:$0x1] %v1519
    %s1522 = scalar_lea.vmem %s6, 71
    %s1524 = sor.u32 3, 1
    %s1525 = sand.u32 %s1524, 1
    %v1526 = vld [vmem:[%s1522] sm:%s1525]
    %v1527 = vunpack.c.l.bf16 %v1526
    %v1528 = vunpack.c.h.bf16 %v1526
    %v1529 = vlaneseq
    %v1530 = vshrl.u32 %v1529, 7
    %vm1532 = vcmp.lt.s32.totalorder %v1530, 2
    %v1533 = vsel %vm1532, %v1527, %v14
    %v1534 = vlaneseq
    %v1535 = vand.u32 %v1534, 127
    %v1536 = vadd.s32 %v1535, 9088
    %vm1537 = vcmp.lt.s32.totalorder %v1536, 14400
    %v1538 = vsel %vm1537, %v1533, %v14
    %s1539 = scalar_lea.vmem [#allocation10], 71
    %v1540 = vpack.c.bf16 0.0, %v1538
    %1542 = vst [vmem:[%s1539] sm:$0x1] %v1540
    %s1543 = scalar_lea.vmem %s6, 72
    %s1545 = sor.u32 3, 1
    %s1546 = sand.u32 %s1545, 1
    %v1547 = vld [vmem:[%s1543] sm:%s1546]
    %v1548 = vunpack.c.l.bf16 %v1547
    %v1549 = vunpack.c.h.bf16 %v1547
    %v1550 = vlaneseq
    %v1551 = vshrl.u32 %v1550, 7
    %vm1553 = vcmp.lt.s32.totalorder %v1551, 2
    %v1554 = vsel %vm1553, %v1548, %v14
    %v1555 = vlaneseq
    %v1556 = vand.u32 %v1555, 127
    %v1557 = vadd.s32 %v1556, 9216
    %vm1558 = vcmp.lt.s32.totalorder %v1557, 14400
    %v1559 = vsel %vm1558, %v1554, %v14
    %s1560 = scalar_lea.vmem [#allocation10], 72
    %v1561 = vpack.c.bf16 0.0, %v1559
    %1563 = vst [vmem:[%s1560] sm:$0x1] %v1561
    %s1564 = scalar_lea.vmem %s6, 73
    %s1566 = sor.u32 3, 1
    %s1567 = sand.u32 %s1566, 1
    %v1568 = vld [vmem:[%s1564] sm:%s1567]
    %v1569 = vunpack.c.l.bf16 %v1568
    %v1570 = vunpack.c.h.bf16 %v1568
    %v1571 = vlaneseq
    %v1572 = vshrl.u32 %v1571, 7
    %vm1574 = vcmp.lt.s32.totalorder %v1572, 2
    %v1575 = vsel %vm1574, %v1569, %v14
    %v1576 = vlaneseq
    %v1577 = vand.u32 %v1576, 127
    %v1578 = vadd.s32 %v1577, 9344
    %vm1579 = vcmp.lt.s32.totalorder %v1578, 14400
    %v1580 = vsel %vm1579, %v1575, %v14
    %s1581 = scalar_lea.vmem [#allocation10], 73
    %v1582 = vpack.c.bf16 0.0, %v1580
    %1584 = vst [vmem:[%s1581] sm:$0x1] %v1582
    %s1585 = scalar_lea.vmem %s6, 74
    %s1587 = sor.u32 3, 1
    %s1588 = sand.u32 %s1587, 1
    %v1589 = vld [vmem:[%s1585] sm:%s1588]
    %v1590 = vunpack.c.l.bf16 %v1589
    %v1591 = vunpack.c.h.bf16 %v1589
    %v1592 = vlaneseq
    %v1593 = vshrl.u32 %v1592, 7
    %vm1595 = vcmp.lt.s32.totalorder %v1593, 2
    %v1596 = vsel %vm1595, %v1590, %v14
    %v1597 = vlaneseq
    %v1598 = vand.u32 %v1597, 127
    %v1599 = vadd.s32 %v1598, 9472
    %vm1600 = vcmp.lt.s32.totalorder %v1599, 14400
    %v1601 = vsel %vm1600, %v1596, %v14
    %s1602 = scalar_lea.vmem [#allocation10], 74
    %v1603 = vpack.c.bf16 0.0, %v1601
    %1605 = vst [vmem:[%s1602] sm:$0x1] %v1603
    %s1606 = scalar_lea.vmem %s6, 75
    %s1608 = sor.u32 3, 1
    %s1609 = sand.u32 %s1608, 1
    %v1610 = vld [vmem:[%s1606] sm:%s1609]
    %v1611 = vunpack.c.l.bf16 %v1610
    %v1612 = vunpack.c.h.bf16 %v1610
    %v1613 = vlaneseq
    %v1614 = vshrl.u32 %v1613, 7
    %vm1616 = vcmp.lt.s32.totalorder %v1614, 2
    %v1617 = vsel %vm1616, %v1611, %v14
    %v1618 = vlaneseq
    %v1619 = vand.u32 %v1618, 127
    %v1620 = vadd.s32 %v1619, 9600
    %vm1621 = vcmp.lt.s32.totalorder %v1620, 14400
    %v1622 = vsel %vm1621, %v1617, %v14
    %s1623 = scalar_lea.vmem [#allocation10], 75
    %v1624 = vpack.c.bf16 0.0, %v1622
    %1626 = vst [vmem:[%s1623] sm:$0x1] %v1624
    %s1627 = scalar_lea.vmem %s6, 76
    %s1629 = sor.u32 3, 1
    %s1630 = sand.u32 %s1629, 1
    %v1631 = vld [vmem:[%s1627] sm:%s1630]
    %v1632 = vunpack.c.l.bf16 %v1631
    %v1633 = vunpack.c.h.bf16 %v1631
    %v1634 = vlaneseq
    %v1635 = vshrl.u32 %v1634, 7
    %vm1637 = vcmp.lt.s32.totalorder %v1635, 2
    %v1638 = vsel %vm1637, %v1632, %v14
    %v1639 = vlaneseq
    %v1640 = vand.u32 %v1639, 127
    %v1641 = vadd.s32 %v1640, 9728
    %vm1642 = vcmp.lt.s32.totalorder %v1641, 14400
    %v1643 = vsel %vm1642, %v1638, %v14
    %s1644 = scalar_lea.vmem [#allocation10], 76
    %v1645 = vpack.c.bf16 0.0, %v1643
    %1647 = vst [vmem:[%s1644] sm:$0x1] %v1645
    %s1648 = scalar_lea.vmem %s6, 77
    %s1650 = sor.u32 3, 1
    %s1651 = sand.u32 %s1650, 1
    %v1652 = vld [vmem:[%s1648] sm:%s1651]
    %v1653 = vunpack.c.l.bf16 %v1652
    %v1654 = vunpack.c.h.bf16 %v1652
    %v1655 = vlaneseq
    %v1656 = vshrl.u32 %v1655, 7
    %vm1658 = vcmp.lt.s32.totalorder %v1656, 2
    %v1659 = vsel %vm1658, %v1653, %v14
    %v1660 = vlaneseq
    %v1661 = vand.u32 %v1660, 127
    %v1662 = vadd.s32 %v1661, 9856
    %vm1663 = vcmp.lt.s32.totalorder %v1662, 14400
    %v1664 = vsel %vm1663, %v1659, %v14
    %s1665 = scalar_lea.vmem [#allocation10], 77
    %v1666 = vpack.c.bf16 0.0, %v1664
    %1668 = vst [vmem:[%s1665] sm:$0x1] %v1666
    %s1669 = scalar_lea.vmem %s6, 78
    %s1671 = sor.u32 3, 1
    %s1672 = sand.u32 %s1671, 1
    %v1673 = vld [vmem:[%s1669] sm:%s1672]
    %v1674 = vunpack.c.l.bf16 %v1673
    %v1675 = vunpack.c.h.bf16 %v1673
    %v1676 = vlaneseq
    %v1677 = vshrl.u32 %v1676, 7
    %vm1679 = vcmp.lt.s32.totalorder %v1677, 2
    %v1680 = vsel %vm1679, %v1674, %v14
    %v1681 = vlaneseq
    %v1682 = vand.u32 %v1681, 127
    %v1683 = vadd.s32 %v1682, 9984
    %vm1684 = vcmp.lt.s32.totalorder %v1683, 14400
    %v1685 = vsel %vm1684, %v1680, %v14
    %s1686 = scalar_lea.vmem [#allocation10], 78
    %v1687 = vpack.c.bf16 0.0, %v1685
    %1689 = vst [vmem:[%s1686] sm:$0x1] %v1687
    %s1690 = scalar_lea.vmem %s6, 79
    %s1692 = sor.u32 3, 1
    %s1693 = sand.u32 %s1692, 1
    %v1694 = vld [vmem:[%s1690] sm:%s1693]
    %v1695 = vunpack.c.l.bf16 %v1694
    %v1696 = vunpack.c.h.bf16 %v1694
    %v1697 = vlaneseq
    %v1698 = vshrl.u32 %v1697, 7
    %vm1700 = vcmp.lt.s32.totalorder %v1698, 2
    %v1701 = vsel %vm1700, %v1695, %v14
    %v1702 = vlaneseq
    %v1703 = vand.u32 %v1702, 127
    %v1704 = vadd.s32 %v1703, 10112
    %vm1705 = vcmp.lt.s32.totalorder %v1704, 14400
    %v1706 = vsel %vm1705, %v1701, %v14
    %s1707 = scalar_lea.vmem [#allocation10], 79
    %v1708 = vpack.c.bf16 0.0, %v1706
    %1710 = vst [vmem:[%s1707] sm:$0x1] %v1708
    %s1711 = scalar_lea.vmem %s6, 80
    %s1713 = sor.u32 3, 1
    %s1714 = sand.u32 %s1713, 1
    %v1715 = vld [vmem:[%s1711] sm:%s1714]
    %v1716 = vunpack.c.l.bf16 %v1715
    %v1717 = vunpack.c.h.bf16 %v1715
    %v1718 = vlaneseq
    %v1719 = vshrl.u32 %v1718, 7
    %vm1721 = vcmp.lt.s32.totalorder %v1719, 2
    %v1722 = vsel %vm1721, %v1716, %v14
    %v1723 = vlaneseq
    %v1724 = vand.u32 %v1723, 127
    %v1725 = vadd.s32 %v1724, 10240
    %vm1726 = vcmp.lt.s32.totalorder %v1725, 14400
    %v1727 = vsel %vm1726, %v1722, %v14
    %s1728 = scalar_lea.vmem [#allocation10], 80
    %v1729 = vpack.c.bf16 0.0, %v1727
    %1731 = vst [vmem:[%s1728] sm:$0x1] %v1729
    %s1732 = scalar_lea.vmem %s6, 81
    %s1734 = sor.u32 3, 1
    %s1735 = sand.u32 %s1734, 1
    %v1736 = vld [vmem:[%s1732] sm:%s1735]
    %v1737 = vunpack.c.l.bf16 %v1736
    %v1738 = vunpack.c.h.bf16 %v1736
    %v1739 = vlaneseq
    %v1740 = vshrl.u32 %v1739, 7
    %vm1742 = vcmp.lt.s32.totalorder %v1740, 2
    %v1743 = vsel %vm1742, %v1737, %v14
    %v1744 = vlaneseq
    %v1745 = vand.u32 %v1744, 127
    %v1746 = vadd.s32 %v1745, 10368
    %vm1747 = vcmp.lt.s32.totalorder %v1746, 14400
    %v1748 = vsel %vm1747, %v1743, %v14
    %s1749 = scalar_lea.vmem [#allocation10], 81
    %v1750 = vpack.c.bf16 0.0, %v1748
    %1752 = vst [vmem:[%s1749] sm:$0x1] %v1750
    %s1753 = scalar_lea.vmem %s6, 82
    %s1755 = sor.u32 3, 1
    %s1756 = sand.u32 %s1755, 1
    %v1757 = vld [vmem:[%s1753] sm:%s1756]
    %v1758 = vunpack.c.l.bf16 %v1757
    %v1759 = vunpack.c.h.bf16 %v1757
    %v1760 = vlaneseq
    %v1761 = vshrl.u32 %v1760, 7
    %vm1763 = vcmp.lt.s32.totalorder %v1761, 2
    %v1764 = vsel %vm1763, %v1758, %v14
    %v1765 = vlaneseq
    %v1766 = vand.u32 %v1765, 127
    %v1767 = vadd.s32 %v1766, 10496
    %vm1768 = vcmp.lt.s32.totalorder %v1767, 14400
    %v1769 = vsel %vm1768, %v1764, %v14
    %s1770 = scalar_lea.vmem [#allocation10], 82
    %v1771 = vpack.c.bf16 0.0, %v1769
    %1773 = vst [vmem:[%s1770] sm:$0x1] %v1771
    %s1774 = scalar_lea.vmem %s6, 83
    %s1776 = sor.u32 3, 1
    %s1777 = sand.u32 %s1776, 1
    %v1778 = vld [vmem:[%s1774] sm:%s1777]
    %v1779 = vunpack.c.l.bf16 %v1778
    %v1780 = vunpack.c.h.bf16 %v1778
    %v1781 = vlaneseq
    %v1782 = vshrl.u32 %v1781, 7
    %vm1784 = vcmp.lt.s32.totalorder %v1782, 2
    %v1785 = vsel %vm1784, %v1779, %v14
    %v1786 = vlaneseq
    %v1787 = vand.u32 %v1786, 127
    %v1788 = vadd.s32 %v1787, 10624
    %vm1789 = vcmp.lt.s32.totalorder %v1788, 14400
    %v1790 = vsel %vm1789, %v1785, %v14
    %s1791 = scalar_lea.vmem [#allocation10], 83
    %v1792 = vpack.c.bf16 0.0, %v1790
    %1794 = vst [vmem:[%s1791] sm:$0x1] %v1792
    %s1795 = scalar_lea.vmem %s6, 84
    %s1797 = sor.u32 3, 1
    %s1798 = sand.u32 %s1797, 1
    %v1799 = vld [vmem:[%s1795] sm:%s1798]
    %v1800 = vunpack.c.l.bf16 %v1799
    %v1801 = vunpack.c.h.bf16 %v1799
    %v1802 = vlaneseq
    %v1803 = vshrl.u32 %v1802, 7
    %vm1805 = vcmp.lt.s32.totalorder %v1803, 2
    %v1806 = vsel %vm1805, %v1800, %v14
    %v1807 = vlaneseq
    %v1808 = vand.u32 %v1807, 127
    %v1809 = vadd.s32 %v1808, 10752
    %vm1810 = vcmp.lt.s32.totalorder %v1809, 14400
    %v1811 = vsel %vm1810, %v1806, %v14
    %s1812 = scalar_lea.vmem [#allocation10], 84
    %v1813 = vpack.c.bf16 0.0, %v1811
    %1815 = vst [vmem:[%s1812] sm:$0x1] %v1813
    %s1816 = scalar_lea.vmem %s6, 85
    %s1818 = sor.u32 3, 1
    %s1819 = sand.u32 %s1818, 1
    %v1820 = vld [vmem:[%s1816] sm:%s1819]
    %v1821 = vunpack.c.l.bf16 %v1820
    %v1822 = vunpack.c.h.bf16 %v1820
    %v1823 = vlaneseq
    %v1824 = vshrl.u32 %v1823, 7
    %vm1826 = vcmp.lt.s32.totalorder %v1824, 2
    %v1827 = vsel %vm1826, %v1821, %v14
    %v1828 = vlaneseq
    %v1829 = vand.u32 %v1828, 127
    %v1830 = vadd.s32 %v1829, 10880
    %vm1831 = vcmp.lt.s32.totalorder %v1830, 14400
    %v1832 = vsel %vm1831, %v1827, %v14
    %s1833 = scalar_lea.vmem [#allocation10], 85
    %v1834 = vpack.c.bf16 0.0, %v1832
    %1836 = vst [vmem:[%s1833] sm:$0x1] %v1834
    %s1837 = scalar_lea.vmem %s6, 86
    %s1839 = sor.u32 3, 1
    %s1840 = sand.u32 %s1839, 1
    %v1841 = vld [vmem:[%s1837] sm:%s1840]
    %v1842 = vunpack.c.l.bf16 %v1841
    %v1843 = vunpack.c.h.bf16 %v1841
    %v1844 = vlaneseq
    %v1845 = vshrl.u32 %v1844, 7
    %vm1847 = vcmp.lt.s32.totalorder %v1845, 2
    %v1848 = vsel %vm1847, %v1842, %v14
    %v1849 = vlaneseq
    %v1850 = vand.u32 %v1849, 127
    %v1851 = vadd.s32 %v1850, 11008
    %vm1852 = vcmp.lt.s32.totalorder %v1851, 14400
    %v1853 = vsel %vm1852, %v1848, %v14
    %s1854 = scalar_lea.vmem [#allocation10], 86
    %v1855 = vpack.c.bf16 0.0, %v1853
    %1857 = vst [vmem:[%s1854] sm:$0x1] %v1855
    %s1858 = scalar_lea.vmem %s6, 87
    %s1860 = sor.u32 3, 1
    %s1861 = sand.u32 %s1860, 1
    %v1862 = vld [vmem:[%s1858] sm:%s1861]
    %v1863 = vunpack.c.l.bf16 %v1862
    %v1864 = vunpack.c.h.bf16 %v1862
    %v1865 = vlaneseq
    %v1866 = vshrl.u32 %v1865, 7
    %vm1868 = vcmp.lt.s32.totalorder %v1866, 2
    %v1869 = vsel %vm1868, %v1863, %v14
    %v1870 = vlaneseq
    %v1871 = vand.u32 %v1870, 127
    %v1872 = vadd.s32 %v1871, 11136
    %vm1873 = vcmp.lt.s32.totalorder %v1872, 14400
    %v1874 = vsel %vm1873, %v1869, %v14
    %s1875 = scalar_lea.vmem [#allocation10], 87
    %v1876 = vpack.c.bf16 0.0, %v1874
    %1878 = vst [vmem:[%s1875] sm:$0x1] %v1876
    %s1879 = scalar_lea.vmem %s6, 88
    %s1881 = sor.u32 3, 1
    %s1882 = sand.u32 %s1881, 1
    %v1883 = vld [vmem:[%s1879] sm:%s1882]
    %v1884 = vunpack.c.l.bf16 %v1883
    %v1885 = vunpack.c.h.bf16 %v1883
    %v1886 = vlaneseq
    %v1887 = vshrl.u32 %v1886, 7
    %vm1889 = vcmp.lt.s32.totalorder %v1887, 2
    %v1890 = vsel %vm1889, %v1884, %v14
    %v1891 = vlaneseq
    %v1892 = vand.u32 %v1891, 127
    %v1893 = vadd.s32 %v1892, 11264
    %vm1894 = vcmp.lt.s32.totalorder %v1893, 14400
    %v1895 = vsel %vm1894, %v1890, %v14
    %s1896 = scalar_lea.vmem [#allocation10], 88
    %v1897 = vpack.c.bf16 0.0, %v1895
    %1899 = vst [vmem:[%s1896] sm:$0x1] %v1897
    %s1900 = scalar_lea.vmem %s6, 89
    %s1902 = sor.u32 3, 1
    %s1903 = sand.u32 %s1902, 1
    %v1904 = vld [vmem:[%s1900] sm:%s1903]
    %v1905 = vunpack.c.l.bf16 %v1904
    %v1906 = vunpack.c.h.bf16 %v1904
    %v1907 = vlaneseq
    %v1908 = vshrl.u32 %v1907, 7
    %vm1910 = vcmp.lt.s32.totalorder %v1908, 2
    %v1911 = vsel %vm1910, %v1905, %v14
    %v1912 = vlaneseq
    %v1913 = vand.u32 %v1912, 127
    %v1914 = vadd.s32 %v1913, 11392
    %vm1915 = vcmp.lt.s32.totalorder %v1914, 14400
    %v1916 = vsel %vm1915, %v1911, %v14
    %s1917 = scalar_lea.vmem [#allocation10], 89
    %v1918 = vpack.c.bf16 0.0, %v1916
    %1920 = vst [vmem:[%s1917] sm:$0x1] %v1918
    %s1921 = scalar_lea.vmem %s6, 90
    %s1923 = sor.u32 3, 1
    %s1924 = sand.u32 %s1923, 1
    %v1925 = vld [vmem:[%s1921] sm:%s1924]
    %v1926 = vunpack.c.l.bf16 %v1925
    %v1927 = vunpack.c.h.bf16 %v1925
    %v1928 = vlaneseq
    %v1929 = vshrl.u32 %v1928, 7
    %vm1931 = vcmp.lt.s32.totalorder %v1929, 2
    %v1932 = vsel %vm1931, %v1926, %v14
    %v1933 = vlaneseq
    %v1934 = vand.u32 %v1933, 127
    %v1935 = vadd.s32 %v1934, 11520
    %vm1936 = vcmp.lt.s32.totalorder %v1935, 14400
    %v1937 = vsel %vm1936, %v1932, %v14
    %s1938 = scalar_lea.vmem [#allocation10], 90
    %v1939 = vpack.c.bf16 0.0, %v1937
    %1941 = vst [vmem:[%s1938] sm:$0x1] %v1939
    %s1942 = scalar_lea.vmem %s6, 91
    %s1944 = sor.u32 3, 1
    %s1945 = sand.u32 %s1944, 1
    %v1946 = vld [vmem:[%s1942] sm:%s1945]
    %v1947 = vunpack.c.l.bf16 %v1946
    %v1948 = vunpack.c.h.bf16 %v1946
    %v1949 = vlaneseq
    %v1950 = vshrl.u32 %v1949, 7
    %vm1952 = vcmp.lt.s32.totalorder %v1950, 2
    %v1953 = vsel %vm1952, %v1947, %v14
    %v1954 = vlaneseq
    %v1955 = vand.u32 %v1954, 127
    %v1956 = vadd.s32 %v1955, 11648
    %vm1957 = vcmp.lt.s32.totalorder %v1956, 14400
    %v1958 = vsel %vm1957, %v1953, %v14
    %s1959 = scalar_lea.vmem [#allocation10], 91
    %v1960 = vpack.c.bf16 0.0, %v1958
    %1962 = vst [vmem:[%s1959] sm:$0x1] %v1960
    %s1963 = scalar_lea.vmem %s6, 92
    %s1965 = sor.u32 3, 1
    %s1966 = sand.u32 %s1965, 1
    %v1967 = vld [vmem:[%s1963] sm:%s1966]
    %v1968 = vunpack.c.l.bf16 %v1967
    %v1969 = vunpack.c.h.bf16 %v1967
    %v1970 = vlaneseq
    %v1971 = vshrl.u32 %v1970, 7
    %vm1973 = vcmp.lt.s32.totalorder %v1971, 2
    %v1974 = vsel %vm1973, %v1968, %v14
    %v1975 = vlaneseq
    %v1976 = vand.u32 %v1975, 127
    %v1977 = vadd.s32 %v1976, 11776
    %vm1978 = vcmp.lt.s32.totalorder %v1977, 14400
    %v1979 = vsel %vm1978, %v1974, %v14
    %s1980 = scalar_lea.vmem [#allocation10], 92
    %v1981 = vpack.c.bf16 0.0, %v1979
    %1983 = vst [vmem:[%s1980] sm:$0x1] %v1981
    %s1984 = scalar_lea.vmem %s6, 93
    %s1986 = sor.u32 3, 1
    %s1987 = sand.u32 %s1986, 1
    %v1988 = vld [vmem:[%s1984] sm:%s1987]
    %v1989 = vunpack.c.l.bf16 %v1988
    %v1990 = vunpack.c.h.bf16 %v1988
    %v1991 = vlaneseq
    %v1992 = vshrl.u32 %v1991, 7
    %vm1994 = vcmp.lt.s32.totalorder %v1992, 2
    %v1995 = vsel %vm1994, %v1989, %v14
    %v1996 = vlaneseq
    %v1997 = vand.u32 %v1996, 127
    %v1998 = vadd.s32 %v1997, 11904
    %vm1999 = vcmp.lt.s32.totalorder %v1998, 14400
    %v2000 = vsel %vm1999, %v1995, %v14
    %s2001 = scalar_lea.vmem [#allocation10], 93
    %v2002 = vpack.c.bf16 0.0, %v2000
    %2004 = vst [vmem:[%s2001] sm:$0x1] %v2002
    %s2005 = scalar_lea.vmem %s6, 94
    %s2007 = sor.u32 3, 1
    %s2008 = sand.u32 %s2007, 1
    %v2009 = vld [vmem:[%s2005] sm:%s2008]
    %v2010 = vunpack.c.l.bf16 %v2009
    %v2011 = vunpack.c.h.bf16 %v2009
    %v2012 = vlaneseq
    %v2013 = vshrl.u32 %v2012, 7
    %vm2015 = vcmp.lt.s32.totalorder %v2013, 2
    %v2016 = vsel %vm2015, %v2010, %v14
    %v2017 = vlaneseq
    %v2018 = vand.u32 %v2017, 127
    %v2019 = vadd.s32 %v2018, 12032
    %vm2020 = vcmp.lt.s32.totalorder %v2019, 14400
    %v2021 = vsel %vm2020, %v2016, %v14
    %s2022 = scalar_lea.vmem [#allocation10], 94
    %v2023 = vpack.c.bf16 0.0, %v2021
    %2025 = vst [vmem:[%s2022] sm:$0x1] %v2023
    %s2026 = scalar_lea.vmem %s6, 95
    %s2028 = sor.u32 3, 1
    %s2029 = sand.u32 %s2028, 1
    %v2030 = vld [vmem:[%s2026] sm:%s2029]
    %v2031 = vunpack.c.l.bf16 %v2030
    %v2032 = vunpack.c.h.bf16 %v2030
    %v2033 = vlaneseq
    %v2034 = vshrl.u32 %v2033, 7
    %vm2036 = vcmp.lt.s32.totalorder %v2034, 2
    %v2037 = vsel %vm2036, %v2031, %v14
    %v2038 = vlaneseq
    %v2039 = vand.u32 %v2038, 127
    %v2040 = vadd.s32 %v2039, 12160
    %vm2041 = vcmp.lt.s32.totalorder %v2040, 14400
    %v2042 = vsel %vm2041, %v2037, %v14
    %s2043 = scalar_lea.vmem [#allocation10], 95
    %v2044 = vpack.c.bf16 0.0, %v2042
    %2046 = vst [vmem:[%s2043] sm:$0x1] %v2044
    %s2047 = scalar_lea.vmem %s6, 96
    %s2049 = sor.u32 3, 1
    %s2050 = sand.u32 %s2049, 1
    %v2051 = vld [vmem:[%s2047] sm:%s2050]
    %v2052 = vunpack.c.l.bf16 %v2051
    %v2053 = vunpack.c.h.bf16 %v2051
    %v2054 = vlaneseq
    %v2055 = vshrl.u32 %v2054, 7
    %vm2057 = vcmp.lt.s32.totalorder %v2055, 2
    %v2058 = vsel %vm2057, %v2052, %v14
    %v2059 = vlaneseq
    %v2060 = vand.u32 %v2059, 127
    %v2061 = vadd.s32 %v2060, 12288
    %vm2062 = vcmp.lt.s32.totalorder %v2061, 14400
    %v2063 = vsel %vm2062, %v2058, %v14
    %s2064 = scalar_lea.vmem [#allocation10], 96
    %v2065 = vpack.c.bf16 0.0, %v2063
    %2067 = vst [vmem:[%s2064] sm:$0x1] %v2065
    %s2068 = scalar_lea.vmem %s6, 97
    %s2070 = sor.u32 3, 1
    %s2071 = sand.u32 %s2070, 1
    %v2072 = vld [vmem:[%s2068] sm:%s2071]
    %v2073 = vunpack.c.l.bf16 %v2072
    %v2074 = vunpack.c.h.bf16 %v2072
    %v2075 = vlaneseq
    %v2076 = vshrl.u32 %v2075, 7
    %vm2078 = vcmp.lt.s32.totalorder %v2076, 2
    %v2079 = vsel %vm2078, %v2073, %v14
    %v2080 = vlaneseq
    %v2081 = vand.u32 %v2080, 127
    %v2082 = vadd.s32 %v2081, 12416
    %vm2083 = vcmp.lt.s32.totalorder %v2082, 14400
    %v2084 = vsel %vm2083, %v2079, %v14
    %s2085 = scalar_lea.vmem [#allocation10], 97
    %v2086 = vpack.c.bf16 0.0, %v2084
    %2088 = vst [vmem:[%s2085] sm:$0x1] %v2086
    %s2089 = scalar_lea.vmem %s6, 98
    %s2091 = sor.u32 3, 1
    %s2092 = sand.u32 %s2091, 1
    %v2093 = vld [vmem:[%s2089] sm:%s2092]
    %v2094 = vunpack.c.l.bf16 %v2093
    %v2095 = vunpack.c.h.bf16 %v2093
    %v2096 = vlaneseq
    %v2097 = vshrl.u32 %v2096, 7
    %vm2099 = vcmp.lt.s32.totalorder %v2097, 2
    %v2100 = vsel %vm2099, %v2094, %v14
    %v2101 = vlaneseq
    %v2102 = vand.u32 %v2101, 127
    %v2103 = vadd.s32 %v2102, 12544
    %vm2104 = vcmp.lt.s32.totalorder %v2103, 14400
    %v2105 = vsel %vm2104, %v2100, %v14
    %s2106 = scalar_lea.vmem [#allocation10], 98
    %v2107 = vpack.c.bf16 0.0, %v2105
    %2109 = vst [vmem:[%s2106] sm:$0x1] %v2107
    %s2110 = scalar_lea.vmem %s6, 99
    %s2112 = sor.u32 3, 1
    %s2113 = sand.u32 %s2112, 1
    %v2114 = vld [vmem:[%s2110] sm:%s2113]
    %v2115 = vunpack.c.l.bf16 %v2114
    %v2116 = vunpack.c.h.bf16 %v2114
    %v2117 = vlaneseq
    %v2118 = vshrl.u32 %v2117, 7
    %vm2120 = vcmp.lt.s32.totalorder %v2118, 2
    %v2121 = vsel %vm2120, %v2115, %v14
    %v2122 = vlaneseq
    %v2123 = vand.u32 %v2122, 127
    %v2124 = vadd.s32 %v2123, 12672
    %vm2125 = vcmp.lt.s32.totalorder %v2124, 14400
    %v2126 = vsel %vm2125, %v2121, %v14
    %s2127 = scalar_lea.vmem [#allocation10], 99
    %v2128 = vpack.c.bf16 0.0, %v2126
    %2130 = vst [vmem:[%s2127] sm:$0x1] %v2128
    %s2131 = scalar_lea.vmem %s6, 100
    %s2133 = sor.u32 3, 1
    %s2134 = sand.u32 %s2133, 1
    %v2135 = vld [vmem:[%s2131] sm:%s2134]
    %v2136 = vunpack.c.l.bf16 %v2135
    %v2137 = vunpack.c.h.bf16 %v2135
    %v2138 = vlaneseq
    %v2139 = vshrl.u32 %v2138, 7
    %vm2141 = vcmp.lt.s32.totalorder %v2139, 2
    %v2142 = vsel %vm2141, %v2136, %v14
    %v2143 = vlaneseq
    %v2144 = vand.u32 %v2143, 127
    %v2145 = vadd.s32 %v2144, 12800
    %vm2146 = vcmp.lt.s32.totalorder %v2145, 14400
    %v2147 = vsel %vm2146, %v2142, %v14
    %s2148 = scalar_lea.vmem [#allocation10], 100
    %v2149 = vpack.c.bf16 0.0, %v2147
    %2151 = vst [vmem:[%s2148] sm:$0x1] %v2149
    %s2152 = scalar_lea.vmem %s6, 101
    %s2154 = sor.u32 3, 1
    %s2155 = sand.u32 %s2154, 1
    %v2156 = vld [vmem:[%s2152] sm:%s2155]
    %v2157 = vunpack.c.l.bf16 %v2156
    %v2158 = vunpack.c.h.bf16 %v2156
    %v2159 = vlaneseq
    %v2160 = vshrl.u32 %v2159, 7
    %vm2162 = vcmp.lt.s32.totalorder %v2160, 2
    %v2163 = vsel %vm2162, %v2157, %v14
    %v2164 = vlaneseq
    %v2165 = vand.u32 %v2164, 127
    %v2166 = vadd.s32 %v2165, 12928
    %vm2167 = vcmp.lt.s32.totalorder %v2166, 14400
    %v2168 = vsel %vm2167, %v2163, %v14
    %s2169 = scalar_lea.vmem [#allocation10], 101
    %v2170 = vpack.c.bf16 0.0, %v2168
    %2172 = vst [vmem:[%s2169] sm:$0x1] %v2170
    %s2173 = scalar_lea.vmem %s6, 102
    %s2175 = sor.u32 3, 1
    %s2176 = sand.u32 %s2175, 1
    %v2177 = vld [vmem:[%s2173] sm:%s2176]
    %v2178 = vunpack.c.l.bf16 %v2177
    %v2179 = vunpack.c.h.bf16 %v2177
    %v2180 = vlaneseq
    %v2181 = vshrl.u32 %v2180, 7
    %vm2183 = vcmp.lt.s32.totalorder %v2181, 2
    %v2184 = vsel %vm2183, %v2178, %v14
    %v2185 = vlaneseq
    %v2186 = vand.u32 %v2185, 127
    %v2187 = vadd.s32 %v2186, 13056
    %vm2188 = vcmp.lt.s32.totalorder %v2187, 14400
    %v2189 = vsel %vm2188, %v2184, %v14
    %s2190 = scalar_lea.vmem [#allocation10], 102
    %v2191 = vpack.c.bf16 0.0, %v2189
    %2193 = vst [vmem:[%s2190] sm:$0x1] %v2191
    %s2194 = scalar_lea.vmem %s6, 103
    %s2196 = sor.u32 3, 1
    %s2197 = sand.u32 %s2196, 1
    %v2198 = vld [vmem:[%s2194] sm:%s2197]
    %v2199 = vunpack.c.l.bf16 %v2198
    %v2200 = vunpack.c.h.bf16 %v2198
    %v2201 = vlaneseq
    %v2202 = vshrl.u32 %v2201, 7
    %vm2204 = vcmp.lt.s32.totalorder %v2202, 2
    %v2205 = vsel %vm2204, %v2199, %v14
    %v2206 = vlaneseq
    %v2207 = vand.u32 %v2206, 127
    %v2208 = vadd.s32 %v2207, 13184
    %vm2209 = vcmp.lt.s32.totalorder %v2208, 14400
    %v2210 = vsel %vm2209, %v2205, %v14
    %s2211 = scalar_lea.vmem [#allocation10], 103
    %v2212 = vpack.c.bf16 0.0, %v2210
    %2214 = vst [vmem:[%s2211] sm:$0x1] %v2212
    %s2215 = scalar_lea.vmem %s6, 104
    %s2217 = sor.u32 3, 1
    %s2218 = sand.u32 %s2217, 1
    %v2219 = vld [vmem:[%s2215] sm:%s2218]
    %v2220 = vunpack.c.l.bf16 %v2219
    %v2221 = vunpack.c.h.bf16 %v2219
    %v2222 = vlaneseq
    %v2223 = vshrl.u32 %v2222, 7
    %vm2225 = vcmp.lt.s32.totalorder %v2223, 2
    %v2226 = vsel %vm2225, %v2220, %v14
    %v2227 = vlaneseq
    %v2228 = vand.u32 %v2227, 127
    %v2229 = vadd.s32 %v2228, 13312
    %vm2230 = vcmp.lt.s32.totalorder %v2229, 14400
    %v2231 = vsel %vm2230, %v2226, %v14
    %s2232 = scalar_lea.vmem [#allocation10], 104
    %v2233 = vpack.c.bf16 0.0, %v2231
    %2235 = vst [vmem:[%s2232] sm:$0x1] %v2233
    %s2236 = scalar_lea.vmem %s6, 105
    %s2238 = sor.u32 3, 1
    %s2239 = sand.u32 %s2238, 1
    %v2240 = vld [vmem:[%s2236] sm:%s2239]
    %v2241 = vunpack.c.l.bf16 %v2240
    %v2242 = vunpack.c.h.bf16 %v2240
    %v2243 = vlaneseq
    %v2244 = vshrl.u32 %v2243, 7
    %vm2246 = vcmp.lt.s32.totalorder %v2244, 2
    %v2247 = vsel %vm2246, %v2241, %v14
    %v2248 = vlaneseq
    %v2249 = vand.u32 %v2248, 127
    %v2250 = vadd.s32 %v2249, 13440
    %vm2251 = vcmp.lt.s32.totalorder %v2250, 14400
    %v2252 = vsel %vm2251, %v2247, %v14
    %s2253 = scalar_lea.vmem [#allocation10], 105
    %v2254 = vpack.c.bf16 0.0, %v2252
    %2256 = vst [vmem:[%s2253] sm:$0x1] %v2254
    %s2257 = scalar_lea.vmem %s6, 106
    %s2259 = sor.u32 3, 1
    %s2260 = sand.u32 %s2259, 1
    %v2261 = vld [vmem:[%s2257] sm:%s2260]
    %v2262 = vunpack.c.l.bf16 %v2261
    %v2263 = vunpack.c.h.bf16 %v2261
    %v2264 = vlaneseq
    %v2265 = vshrl.u32 %v2264, 7
    %vm2267 = vcmp.lt.s32.totalorder %v2265, 2
    %v2268 = vsel %vm2267, %v2262, %v14
    %v2269 = vlaneseq
    %v2270 = vand.u32 %v2269, 127
    %v2271 = vadd.s32 %v2270, 13568
    %vm2272 = vcmp.lt.s32.totalorder %v2271, 14400
    %v2273 = vsel %vm2272, %v2268, %v14
    %s2274 = scalar_lea.vmem [#allocation10], 106
    %v2275 = vpack.c.bf16 0.0, %v2273
    %2277 = vst [vmem:[%s2274] sm:$0x1] %v2275
    %s2278 = scalar_lea.vmem %s6, 107
    %s2280 = sor.u32 3, 1
    %s2281 = sand.u32 %s2280, 1
    %v2282 = vld [vmem:[%s2278] sm:%s2281]
    %v2283 = vunpack.c.l.bf16 %v2282
    %v2284 = vunpack.c.h.bf16 %v2282
    %v2285 = vlaneseq
    %v2286 = vshrl.u32 %v2285, 7
    %vm2288 = vcmp.lt.s32.totalorder %v2286, 2
    %v2289 = vsel %vm2288, %v2283, %v14
    %v2290 = vlaneseq
    %v2291 = vand.u32 %v2290, 127
    %v2292 = vadd.s32 %v2291, 13696
    %vm2293 = vcmp.lt.s32.totalorder %v2292, 14400
    %v2294 = vsel %vm2293, %v2289, %v14
    %s2295 = scalar_lea.vmem [#allocation10], 107
    %v2296 = vpack.c.bf16 0.0, %v2294
    %2298 = vst [vmem:[%s2295] sm:$0x1] %v2296
    %s2299 = scalar_lea.vmem %s6, 108
    %s2301 = sor.u32 3, 1
    %s2302 = sand.u32 %s2301, 1
    %v2303 = vld [vmem:[%s2299] sm:%s2302]
    %v2304 = vunpack.c.l.bf16 %v2303
    %v2305 = vunpack.c.h.bf16 %v2303
    %v2306 = vlaneseq
    %v2307 = vshrl.u32 %v2306, 7
    %vm2309 = vcmp.lt.s32.totalorder %v2307, 2
    %v2310 = vsel %vm2309, %v2304, %v14
    %v2311 = vlaneseq
    %v2312 = vand.u32 %v2311, 127
    %v2313 = vadd.s32 %v2312, 13824
    %vm2314 = vcmp.lt.s32.totalorder %v2313, 14400
    %v2315 = vsel %vm2314, %v2310, %v14
    %s2316 = scalar_lea.vmem [#allocation10], 108
    %v2317 = vpack.c.bf16 0.0, %v2315
    %2319 = vst [vmem:[%s2316] sm:$0x1] %v2317
    %s2320 = scalar_lea.vmem %s6, 109
    %s2322 = sor.u32 3, 1
    %s2323 = sand.u32 %s2322, 1
    %v2324 = vld [vmem:[%s2320] sm:%s2323]
    %v2325 = vunpack.c.l.bf16 %v2324
    %v2326 = vunpack.c.h.bf16 %v2324
    %v2327 = vlaneseq
    %v2328 = vshrl.u32 %v2327, 7
    %vm2330 = vcmp.lt.s32.totalorder %v2328, 2
    %v2331 = vsel %vm2330, %v2325, %v14
    %v2332 = vlaneseq
    %v2333 = vand.u32 %v2332, 127
    %v2334 = vadd.s32 %v2333, 13952
    %vm2335 = vcmp.lt.s32.totalorder %v2334, 14400
    %v2336 = vsel %vm2335, %v2331, %v14
    %s2337 = scalar_lea.vmem [#allocation10], 109
    %v2338 = vpack.c.bf16 0.0, %v2336
    %2340 = vst [vmem:[%s2337] sm:$0x1] %v2338
    %s2341 = scalar_lea.vmem %s6, 110
    %s2343 = sor.u32 3, 1
    %s2344 = sand.u32 %s2343, 1
    %v2345 = vld [vmem:[%s2341] sm:%s2344]
    %v2346 = vunpack.c.l.bf16 %v2345
    %v2347 = vunpack.c.h.bf16 %v2345
    %v2348 = vlaneseq
    %v2349 = vshrl.u32 %v2348, 7
    %vm2351 = vcmp.lt.s32.totalorder %v2349, 2
    %v2352 = vsel %vm2351, %v2346, %v14
    %v2353 = vlaneseq
    %v2354 = vand.u32 %v2353, 127
    %v2355 = vadd.s32 %v2354, 14080
    %vm2356 = vcmp.lt.s32.totalorder %v2355, 14400
    %v2357 = vsel %vm2356, %v2352, %v14
    %s2358 = scalar_lea.vmem [#allocation10], 110
    %v2359 = vpack.c.bf16 0.0, %v2357
    %2361 = vst [vmem:[%s2358] sm:$0x1] %v2359
    %s2362 = scalar_lea.vmem %s6, 111
    %s2364 = sor.u32 3, 1
    %s2365 = sand.u32 %s2364, 1
    %v2366 = vld [vmem:[%s2362] sm:%s2365]
    %v2367 = vunpack.c.l.bf16 %v2366
    %v2368 = vunpack.c.h.bf16 %v2366
    %v2369 = vlaneseq
    %v2370 = vshrl.u32 %v2369, 7
    %vm2372 = vcmp.lt.s32.totalorder %v2370, 2
    %v2373 = vsel %vm2372, %v2367, %v14
    %v2374 = vlaneseq
    %v2375 = vand.u32 %v2374, 127
    %v2376 = vadd.s32 %v2375, 14208
    %vm2377 = vcmp.lt.s32.totalorder %v2376, 14400
    %v2378 = vsel %vm2377, %v2373, %v14
    %s2379 = scalar_lea.vmem [#allocation10], 111
    %v2380 = vpack.c.bf16 0.0, %v2378
    %2382 = vst [vmem:[%s2379] sm:$0x1] %v2380
    %s2383 = scalar_lea.vmem %s6, 112
    %s2385 = sor.u32 3, 1
    %s2386 = sand.u32 %s2385, 1
    %v2387 = vld [vmem:[%s2383] sm:%s2386]
    %v2388 = vunpack.c.l.bf16 %v2387
    %v2389 = vunpack.c.h.bf16 %v2387
    %v2390 = vlaneseq
    %v2391 = vshrl.u32 %v2390, 7
    %vm2393 = vcmp.lt.s32.totalorder %v2391, 2
    %v2394 = vsel %vm2393, %v2388, %v14
    %v2395 = vlaneseq
    %v2396 = vand.u32 %v2395, 127
    %v2397 = vadd.s32 %v2396, 14336
    %vm2398 = vcmp.lt.s32.totalorder %v2397, 14400
    %v2399 = vsel %vm2398, %v2394, %v14
    %s2400 = scalar_lea.vmem [#allocation10], 112
    %v2401 = vpack.c.bf16 0.0, %v2399
    %2403 = vst [vmem:[%s2400] sm:$0x1] %v2401
    %p2405 = scmp.eq.s32.totalorder 0, 0
    // Predicated region
    $region30: #{mio_forward.2} parent=1 // pred_check
      %p2406 = pneg %p2405
    $region31: #{mio_forward.2} parent=1 // pred_check_branch
      %2408 = sbr.rel (%p2406) target = $region33
    $region32: #{mio_forward.2} parent=1 // pred_region
      %vm2409 = vcmask 975872
      %2410 = vst.msk [vmem:[#allocation2] sm:$0x3] %vm2409, 0.0
    $region33: #{mio_forward.2} parent=1 // pred_fallthru
      _
    %v2411 = vld [vmem:[#allocation2] sm:$0x3]
    %v2412 = vld [vmem:[#allocation10] sm:$0xff]
    %v2413 = vld [vmem:[#allocation10 + $0x8] sm:$0xff]
    %v2414 = vld [vmem:[#allocation10 + $0x10] sm:$0xff]
    %v2415 = vld [vmem:[#allocation10 + $0x18] sm:$0xff]
    %v2416 = vld [vmem:[#allocation10 + $0x20] sm:$0xff]
    %v2417 = vld [vmem:[#allocation10 + $0x28] sm:$0xff]
    %v2418 = vld [vmem:[#allocation10 + $0x30] sm:$0xff]
    %v2419 = vld [vmem:[#allocation10 + $0x38] sm:$0xff]
    %v2420 = vld [vmem:[#allocation10 + $0x40] sm:$0xff]
    %v2421 = vld [vmem:[#allocation10 + $0x48] sm:$0xff]
    %v2422 = vld [vmem:[#allocation10 + $0x50] sm:$0xff]
    %v2423 = vld [vmem:[#allocation10 + $0x58] sm:$0xff]
    %v2424 = vld [vmem:[#allocation10 + $0x60] sm:$0xff]
    %v2425 = vld [vmem:[#allocation10 + $0x68] sm:$0xff]
    %v2426 = vld [vmem:[#allocation10 + $0x70] sm:$0x1]
    %v2427 = vld [vmem:[%s0] sm:$0xf]
    %v2428 = vld [vmem:[%s0 + $0x4] sm:$0xf]
    %v2429 = vld [vmem:[%s0 + $0x8] sm:$0xf]
    %v2430 = vld [vmem:[%s0 + $0xc] sm:$0xf]
    %v2431 = vld [vmem:[%s0 + $0x10] sm:$0xf]
    %v2432 = vld [vmem:[%s0 + $0x14] sm:$0xf]
    %v2433 = vld [vmem:[%s0 + $0x18] sm:$0xf]
    %v2434 = vld [vmem:[%s0 + $0x1c] sm:$0xf]
    %v2435 = vld [vmem:[%s0 + $0x20] sm:$0xf]
    %v2436 = vld [vmem:[%s0 + $0x24] sm:$0xf]
    %v2437 = vld [vmem:[%s0 + $0x28] sm:$0xf]
    %v2438 = vld [vmem:[%s0 + $0x2c] sm:$0xf]
    %v2439 = vld [vmem:[%s0 + $0x30] sm:$0xf]
    %v2440 = vld [vmem:[%s0 + $0x34] sm:$0xf]
    %v2441 = vld [vmem:[%s0 + $0x38] sm:$0xf]
    %v2442 = vld [vmem:[%s0 + $0x3c] sm:$0xf]
    %v2443 = vld [vmem:[%s0 + $0x40] sm:$0xf]
    %v2444 = vld [vmem:[%s0 + $0x44] sm:$0xf]
    %v2445 = vld [vmem:[%s0 + $0x48] sm:$0xf]
    %v2446 = vld [vmem:[%s0 + $0x4c] sm:$0xf]
    %v2447 = vld [vmem:[%s0 + $0x50] sm:$0xf]
    %v2448 = vld [vmem:[%s0 + $0x54] sm:$0xf]
    %v2449 = vld [vmem:[%s0 + $0x58] sm:$0xf]
    %v2450 = vld [vmem:[%s0 + $0x5c] sm:$0xf]
    %v2451 = vld [vmem:[%s0 + $0x60] sm:$0xf]
    %v2452 = vld [vmem:[%s0 + $0x64] sm:$0xf]
    %v2453 = vld [vmem:[%s0 + $0x68] sm:$0xf]
    %v2454 = vld [vmem:[%s0 + $0x6c] sm:$0xf]
    %v2455 = vld [vmem:[%s0 + $0x70] sm:$0xf]
    %v2456 = vld [vmem:[%s0 + $0x74] sm:$0xf]
    %v2457 = vld [vmem:[%s0 + $0x78] sm:$0xf]
    %v2458 = vld [vmem:[%s0 + $0x7c] sm:$0xf]
    %v2459 = vld [vmem:[%s0 + $0x80] sm:$0xf]
    %v2460 = vld [vmem:[%s0 + $0x84] sm:$0xf]
    %v2461 = vld [vmem:[%s0 + $0x88] sm:$0xf]
    %v2462 = vld [vmem:[%s0 + $0x8c] sm:$0xf]
    %v2463 = vld [vmem:[%s0 + $0x90] sm:$0xf]
    %v2464 = vld [vmem:[%s0 + $0x94] sm:$0xf]
    %v2465 = vld [vmem:[%s0 + $0x98] sm:$0xf]
    %v2466 = vld [vmem:[%s0 + $0x9c] sm:$0xf]
    %v2467 = vld [vmem:[%s0 + $0xa0] sm:$0xf]
    %v2468 = vld [vmem:[%s0 + $0xa4] sm:$0xf]
    %v2469 = vld [vmem:[%s0 + $0xa8] sm:$0xf]
    %v2470 = vld [vmem:[%s0 + $0xac] sm:$0xf]
    %v2471 = vld [vmem:[%s0 + $0xb0] sm:$0xf]
    %v2472 = vld [vmem:[%s0 + $0xb4] sm:$0xf]
    %v2473 = vld [vmem:[%s0 + $0xb8] sm:$0xf]
    %v2474 = vld [vmem:[%s0 + $0xbc] sm:$0xf]
    %v2475 = vld [vmem:[%s0 + $0xc0] sm:$0xf]
    %v2476 = vld [vmem:[%s0 + $0xc4] sm:$0xf]
    %v2477 = vld [vmem:[%s0 + $0xc8] sm:$0xf]
    %v2478 = vld [vmem:[%s0 + $0xcc] sm:$0xf]
    %v2479 = vld [vmem:[%s0 + $0xd0] sm:$0xf]
    %v2480 = vld [vmem:[%s0 + $0xd4] sm:$0xf]
    %v2481 = vld [vmem:[%s0 + $0xd8] sm:$0xf]
    %v2482 = vld [vmem:[%s0 + $0xdc] sm:$0xf]
    %v2483 = vld [vmem:[%s0 + $0xe0] sm:$0xf]
    %v2484 = vld [vmem:[%s0 + $0xe4] sm:$0xf]
    %v2485 = vld [vmem:[%s0 + $0xe8] sm:$0xf]
    %v2486 = vld [vmem:[%s0 + $0xec] sm:$0xf]
    %v2487 = vld [vmem:[%s0 + $0xf0] sm:$0xf]
    %v2488 = vld [vmem:[%s0 + $0xf4] sm:$0xf]
    %v2489 = vld [vmem:[%s0 + $0xf8] sm:$0xf]
    %v2490 = vld [vmem:[%s0 + $0xfc] sm:$0xf]
    %v2491 = vld [vmem:[%s0 + $0x100] sm:$0xf]
    %v2492 = vld [vmem:[%s0 + $0x104] sm:$0xf]
    %v2493 = vld [vmem:[%s0 + $0x108] sm:$0xf]
    %v2494 = vld [vmem:[%s0 + $0x10c] sm:$0xf]
    %v2495 = vld [vmem:[%s0 + $0x110] sm:$0xf]
    %v2496 = vld [vmem:[%s0 + $0x114] sm:$0xf]
    %v2497 = vld [vmem:[%s0 + $0x118] sm:$0xf]
    %v2498 = vld [vmem:[%s0 + $0x11c] sm:$0xf]
    %v2499 = vld [vmem:[%s0 + $0x120] sm:$0xf]
    %v2500 = vld [vmem:[%s0 + $0x124] sm:$0xf]
    %v2501 = vld [vmem:[%s0 + $0x128] sm:$0xf]
    %v2502 = vld [vmem:[%s0 + $0x12c] sm:$0xf]
    %v2503 = vld [vmem:[%s0 + $0x130] sm:$0xf]
    %v2504 = vld [vmem:[%s0 + $0x134] sm:$0xf]
    %v2505 = vld [vmem:[%s0 + $0x138] sm:$0xf]
    %v2506 = vld [vmem:[%s0 + $0x13c] sm:$0xf]
    %v2507 = vld [vmem:[%s0 + $0x140] sm:$0xf]
    %v2508 = vld [vmem:[%s0 + $0x144] sm:$0xf]
    %v2509 = vld [vmem:[%s0 + $0x148] sm:$0xf]
    %v2510 = vld [vmem:[%s0 + $0x14c] sm:$0xf]
    %v2511 = vld [vmem:[%s0 + $0x150] sm:$0xf]
    %v2512 = vld [vmem:[%s0 + $0x154] sm:$0xf]
    %v2513 = vld [vmem:[%s0 + $0x158] sm:$0xf]
    %v2514 = vld [vmem:[%s0 + $0x15c] sm:$0xf]
    %v2515 = vld [vmem:[%s0 + $0x160] sm:$0xf]
    %v2516 = vld [vmem:[%s0 + $0x164] sm:$0xf]
    %v2517 = vld [vmem:[%s0 + $0x168] sm:$0xf]
    %v2518 = vld [vmem:[%s0 + $0x16c] sm:$0xf]
    %v2519 = vld [vmem:[%s0 + $0x170] sm:$0xf]
    %v2520 = vld [vmem:[%s0 + $0x174] sm:$0xf]
    %v2521 = vld [vmem:[%s0 + $0x178] sm:$0xf]
    %v2522 = vld [vmem:[%s0 + $0x17c] sm:$0xf]
    %v2523 = vld [vmem:[%s0 + $0x180] sm:$0xf]
    %v2524 = vld [vmem:[%s0 + $0x184] sm:$0xf]
    %v2525 = vld [vmem:[%s0 + $0x188] sm:$0xf]
    %v2526 = vld [vmem:[%s0 + $0x18c] sm:$0xf]
    %v2527 = vld [vmem:[%s0 + $0x190] sm:$0xf]
    %v2528 = vld [vmem:[%s0 + $0x194] sm:$0xf]
    %v2529 = vld [vmem:[%s0 + $0x198] sm:$0xf]
    %v2530 = vld [vmem:[%s0 + $0x19c] sm:$0xf]
    %v2531 = vld [vmem:[%s0 + $0x1a0] sm:$0xf]
    %v2532 = vld [vmem:[%s0 + $0x1a4] sm:$0xf]
    %v2533 = vld [vmem:[%s0 + $0x1a8] sm:$0xf]
    %v2534 = vld [vmem:[%s0 + $0x1ac] sm:$0xf]
    %v2535 = vld [vmem:[%s0 + $0x1b0] sm:$0xf]
    %v2536 = vld [vmem:[%s0 + $0x1b4] sm:$0xf]
    %v2537 = vld [vmem:[%s0 + $0x1b8] sm:$0xf]
    %v2538 = vld [vmem:[%s0 + $0x1bc] sm:$0xf]
    %v2539 = vld [vmem:[%s0 + $0x1c0] sm:$0xf]
    %v2540 = vld [vmem:[%s0 + $0x1c4] sm:$0xf]
    %v2541 = vld [vmem:[%s0 + $0x1c8] sm:$0xf]
    %v2542 = vld [vmem:[%s0 + $0x1cc] sm:$0xf]
    %v2543 = vld [vmem:[%s0 + $0x1d0] sm:$0xf]
    %v2544 = vld [vmem:[%s0 + $0x1d4] sm:$0xf]
    %v2545 = vld [vmem:[%s0 + $0x1d8] sm:$0xf]
    %v2546 = vld [vmem:[%s0 + $0x1dc] sm:$0xf]
    %v2547 = vld [vmem:[%s0 + $0x1e0] sm:$0xf]
    %v2548 = vld [vmem:[%s0 + $0x1e4] sm:$0xf]
    %v2549 = vld [vmem:[%s0 + $0x1e8] sm:$0xf]
    %v2550 = vld [vmem:[%s0 + $0x1ec] sm:$0xf]
    %v2551 = vld [vmem:[%s0 + $0x1f0] sm:$0xf]
    %v2552 = vld [vmem:[%s0 + $0x1f4] sm:$0xf]
    %v2553 = vld [vmem:[%s0 + $0x1f8] sm:$0xf]
    %v2554 = vld [vmem:[%s0 + $0x1fc] sm:$0xf]
    %v2555 = vld [vmem:[%s0 + $0x200] sm:$0xf]
    %v2556 = vld [vmem:[%s0 + $0x204] sm:$0xf]
    %v2557 = vld [vmem:[%s0 + $0x208] sm:$0xf]
    %v2558 = vld [vmem:[%s0 + $0x20c] sm:$0xf]
    %v2559 = vld [vmem:[%s0 + $0x210] sm:$0xf]
    %v2560 = vld [vmem:[%s0 + $0x214] sm:$0xf]
    %v2561 = vld [vmem:[%s0 + $0x218] sm:$0xf]
    %v2562 = vld [vmem:[%s0 + $0x21c] sm:$0xf]
    %v2563 = vld [vmem:[%s0 + $0x220] sm:$0xf]
    %v2564 = vld [vmem:[%s0 + $0x224] sm:$0xf]
    %v2565 = vld [vmem:[%s0 + $0x228] sm:$0xf]
    %v2566 = vld [vmem:[%s0 + $0x22c] sm:$0xf]
    %v2567 = vld [vmem:[%s0 + $0x230] sm:$0xf]
    %v2568 = vld [vmem:[%s0 + $0x234] sm:$0xf]
    %v2569 = vld [vmem:[%s0 + $0x238] sm:$0xf]
    %v2570 = vld [vmem:[%s0 + $0x23c] sm:$0xf]
    %v2571 = vld [vmem:[%s0 + $0x240] sm:$0xf]
    %v2572 = vld [vmem:[%s0 + $0x244] sm:$0xf]
    %v2573 = vld [vmem:[%s0 + $0x248] sm:$0xf]
    %v2574 = vld [vmem:[%s0 + $0x24c] sm:$0xf]
    %v2575 = vld [vmem:[%s0 + $0x250] sm:$0xf]
    %v2576 = vld [vmem:[%s0 + $0x254] sm:$0xf]
    %v2577 = vld [vmem:[%s0 + $0x258] sm:$0xf]
    %v2578 = vld [vmem:[%s0 + $0x25c] sm:$0xf]
    %v2579 = vld [vmem:[%s0 + $0x260] sm:$0xf]
    %v2580 = vld [vmem:[%s0 + $0x264] sm:$0xf]
    %v2581 = vld [vmem:[%s0 + $0x268] sm:$0xf]
    %v2582 = vld [vmem:[%s0 + $0x26c] sm:$0xf]
    %v2583 = vld [vmem:[%s0 + $0x270] sm:$0xf]
    %v2584 = vld [vmem:[%s0 + $0x274] sm:$0xf]
    %v2585 = vld [vmem:[%s0 + $0x278] sm:$0xf]
    %v2586 = vld [vmem:[%s0 + $0x27c] sm:$0xf]
    %v2587 = vld [vmem:[%s0 + $0x280] sm:$0xf]
    %v2588 = vld [vmem:[%s0 + $0x284] sm:$0xf]
    %v2589 = vld [vmem:[%s0 + $0x288] sm:$0xf]
    %v2590 = vld [vmem:[%s0 + $0x28c] sm:$0xf]
    %v2591 = vld [vmem:[%s0 + $0x290] sm:$0xf]
    %v2592 = vld [vmem:[%s0 + $0x294] sm:$0xf]
    %v2593 = vld [vmem:[%s0 + $0x298] sm:$0xf]
    %v2594 = vld [vmem:[%s0 + $0x29c] sm:$0xf]
    %v2595 = vld [vmem:[%s0 + $0x2a0] sm:$0xf]
    %v2596 = vld [vmem:[%s0 + $0x2a4] sm:$0xf]
    %v2597 = vld [vmem:[%s0 + $0x2a8] sm:$0xf]
    %v2598 = vld [vmem:[%s0 + $0x2ac] sm:$0xf]
    %v2599 = vld [vmem:[%s0 + $0x2b0] sm:$0xf]
    %v2600 = vld [vmem:[%s0 + $0x2b4] sm:$0xf]
    %v2601 = vld [vmem:[%s0 + $0x2b8] sm:$0xf]
    %v2602 = vld [vmem:[%s0 + $0x2bc] sm:$0xf]
    %v2603 = vld [vmem:[%s0 + $0x2c0] sm:$0xf]
    %v2604 = vld [vmem:[%s0 + $0x2c4] sm:$0xf]
    %v2605 = vld [vmem:[%s0 + $0x2c8] sm:$0xf]
    %v2606 = vld [vmem:[%s0 + $0x2cc] sm:$0xf]
    %v2607 = vld [vmem:[%s0 + $0x2d0] sm:$0xf]
    %v2608 = vld [vmem:[%s0 + $0x2d4] sm:$0xf]
    %v2609 = vld [vmem:[%s0 + $0x2d8] sm:$0xf]
    %v2610 = vld [vmem:[%s0 + $0x2dc] sm:$0xf]
    %v2611 = vld [vmem:[%s0 + $0x2e0] sm:$0xf]
    %v2612 = vld [vmem:[%s0 + $0x2e4] sm:$0xf]
    %v2613 = vld [vmem:[%s0 + $0x2e8] sm:$0xf]
    %v2614 = vld [vmem:[%s0 + $0x2ec] sm:$0xf]
    %v2615 = vld [vmem:[%s0 + $0x2f0] sm:$0xf]
    %v2616 = vld [vmem:[%s0 + $0x2f4] sm:$0xf]
    %v2617 = vld [vmem:[%s0 + $0x2f8] sm:$0xf]
    %v2618 = vld [vmem:[%s0 + $0x2fc] sm:$0xf]
    %v2619 = vld [vmem:[%s0 + $0x300] sm:$0xf]
    %v2620 = vld [vmem:[%s0 + $0x304] sm:$0xf]
    %v2621 = vld [vmem:[%s0 + $0x308] sm:$0xf]
    %v2622 = vld [vmem:[%s0 + $0x30c] sm:$0xf]
    %v2623 = vld [vmem:[%s0 + $0x310] sm:$0xf]
    %v2624 = vld [vmem:[%s0 + $0x314] sm:$0xf]
    %v2625 = vld [vmem:[%s0 + $0x318] sm:$0xf]
    %v2626 = vld [vmem:[%s0 + $0x31c] sm:$0xf]
    %v2627 = vld [vmem:[%s0 + $0x320] sm:$0xf]
    %v2628 = vld [vmem:[%s0 + $0x324] sm:$0xf]
    %v2629 = vld [vmem:[%s0 + $0x328] sm:$0xf]
    %v2630 = vld [vmem:[%s0 + $0x32c] sm:$0xf]
    %v2631 = vld [vmem:[%s0 + $0x330] sm:$0xf]
    %v2632 = vld [vmem:[%s0 + $0x334] sm:$0xf]
    %v2633 = vld [vmem:[%s0 + $0x338] sm:$0xf]
    %v2634 = vld [vmem:[%s0 + $0x33c] sm:$0xf]
    %v2635 = vld [vmem:[%s0 + $0x340] sm:$0xf]
    %v2636 = vld [vmem:[%s0 + $0x344] sm:$0xf]
    %v2637 = vld [vmem:[%s0 + $0x348] sm:$0xf]
    %v2638 = vld [vmem:[%s0 + $0x34c] sm:$0xf]
    %v2639 = vld [vmem:[%s0 + $0x350] sm:$0xf]
    %v2640 = vld [vmem:[%s0 + $0x354] sm:$0xf]
    %v2641 = vld [vmem:[%s0 + $0x358] sm:$0xf]
    %v2642 = vld [vmem:[%s0 + $0x35c] sm:$0xf]
    %v2643 = vld [vmem:[%s0 + $0x360] sm:$0xf]
    %v2644 = vld [vmem:[%s0 + $0x364] sm:$0xf]
    %v2645 = vld [vmem:[%s0 + $0x368] sm:$0xf]
    %v2646 = vld [vmem:[%s0 + $0x36c] sm:$0xf]
    %v2647 = vld [vmem:[%s0 + $0x370] sm:$0xf]
    %v2648 = vld [vmem:[%s0 + $0x374] sm:$0xf]
    %v2649 = vld [vmem:[%s0 + $0x378] sm:$0xf]
    %v2650 = vld [vmem:[%s0 + $0x37c] sm:$0xf]
    %v2651 = vld [vmem:[%s0 + $0x380] sm:$0xf]
    %v2652 = vld [vmem:[%s0 + $0x384] sm:$0xf]
    %v2653 = vld [vmem:[%s0 + $0x388] sm:$0xf]
    %v2654 = vld [vmem:[%s0 + $0x38c] sm:$0xf]
    %v2655 = vld [vmem:[%s0 + $0x390] sm:$0xf]
    %v2656 = vld [vmem:[%s0 + $0x394] sm:$0xf]
    %v2657 = vld [vmem:[%s0 + $0x398] sm:$0xf]
    %v2658 = vld [vmem:[%s0 + $0x39c] sm:$0xf]
    %v2659 = vld [vmem:[%s0 + $0x3a0] sm:$0xf]
    %v2660 = vld [vmem:[%s0 + $0x3a4] sm:$0xf]
    %v2661 = vld [vmem:[%s0 + $0x3a8] sm:$0xf]
    %v2662 = vld [vmem:[%s0 + $0x3ac] sm:$0xf]
    %v2663 = vld [vmem:[%s0 + $0x3b0] sm:$0xf]
    %v2664 = vld [vmem:[%s0 + $0x3b4] sm:$0xf]
    %v2665 = vld [vmem:[%s0 + $0x3b8] sm:$0xf]
    %v2666 = vld [vmem:[%s0 + $0x3bc] sm:$0xf]
    %v2667 = vld [vmem:[%s0 + $0x3c0] sm:$0xf]
    %v2668 = vld [vmem:[%s0 + $0x3c4] sm:$0xf]
    %v2669 = vld [vmem:[%s0 + $0x3c8] sm:$0xf]
    %v2670 = vld [vmem:[%s0 + $0x3cc] sm:$0xf]
    %v2671 = vld [vmem:[%s0 + $0x3d0] sm:$0xf]
    %v2672 = vld [vmem:[%s0 + $0x3d4] sm:$0xf]
    %v2673 = vld [vmem:[%s0 + $0x3d8] sm:$0xf]
    %v2674 = vld [vmem:[%s0 + $0x3dc] sm:$0xf]
    %v2675 = vld [vmem:[%s0 + $0x3e0] sm:$0xf]
    %v2676 = vld [vmem:[%s0 + $0x3e4] sm:$0xf]
    %v2677 = vld [vmem:[%s0 + $0x3e8] sm:$0xf]
    %v2678 = vld [vmem:[%s0 + $0x3ec] sm:$0xf]
    %v2679 = vld [vmem:[%s0 + $0x3f0] sm:$0xf]
    %v2680 = vld [vmem:[%s0 + $0x3f4] sm:$0xf]
    %v2681 = vld [vmem:[%s0 + $0x3f8] sm:$0xf]
    %v2682 = vld [vmem:[%s0 + $0x3fc] sm:$0xf]
    %v2683 = vld [vmem:[%s0 + $0x400] sm:$0xf]
    %v2684 = vld [vmem:[%s0 + $0x404] sm:$0xf]
    %v2685 = vld [vmem:[%s0 + $0x408] sm:$0xf]
    %v2686 = vld [vmem:[%s0 + $0x40c] sm:$0xf]
    %v2687 = vld [vmem:[%s0 + $0x410] sm:$0xf]
    %v2688 = vld [vmem:[%s0 + $0x414] sm:$0xf]
    %v2689 = vld [vmem:[%s0 + $0x418] sm:$0xf]
    %v2690 = vld [vmem:[%s0 + $0x41c] sm:$0xf]
    %v2691 = vld [vmem:[%s0 + $0x420] sm:$0xf]
    %v2692 = vld [vmem:[%s0 + $0x424] sm:$0xf]
    %v2693 = vld [vmem:[%s0 + $0x428] sm:$0xf]
    %v2694 = vld [vmem:[%s0 + $0x42c] sm:$0xf]
    %v2695 = vld [vmem:[%s0 + $0x430] sm:$0xf]
    %v2696 = vld [vmem:[%s0 + $0x434] sm:$0xf]
    %v2697 = vld [vmem:[%s0 + $0x438] sm:$0xf]
    %v2698 = vld [vmem:[%s0 + $0x43c] sm:$0xf]
    %v2699 = vld [vmem:[%s0 + $0x440] sm:$0xf]
    %v2700 = vld [vmem:[%s0 + $0x444] sm:$0xf]
    %v2701 = vld [vmem:[%s0 + $0x448] sm:$0xf]
    %v2702 = vld [vmem:[%s0 + $0x44c] sm:$0xf]
    %v2703 = vld [vmem:[%s0 + $0x450] sm:$0xf]
    %v2704 = vld [vmem:[%s0 + $0x454] sm:$0xf]
    %v2705 = vld [vmem:[%s0 + $0x458] sm:$0xf]
    %v2706 = vld [vmem:[%s0 + $0x45c] sm:$0xf]
    %v2707 = vld [vmem:[%s0 + $0x460] sm:$0xf]
    %v2708 = vld [vmem:[%s0 + $0x464] sm:$0xf]
    %v2709 = vld [vmem:[%s0 + $0x468] sm:$0xf]
    %v2710 = vld [vmem:[%s0 + $0x46c] sm:$0xf]
    %v2711 = vld [vmem:[%s0 + $0x470] sm:$0xf]
    %v2712 = vld [vmem:[%s0 + $0x474] sm:$0xf]
    %v2713 = vld [vmem:[%s0 + $0x478] sm:$0xf]
    %v2714 = vld [vmem:[%s0 + $0x47c] sm:$0xf]
    %v2715 = vld [vmem:[%s0 + $0x480] sm:$0xf]
    %v2716 = vld [vmem:[%s0 + $0x484] sm:$0xf]
    %v2717 = vld [vmem:[%s0 + $0x488] sm:$0xf]
    %v2718 = vld [vmem:[%s0 + $0x48c] sm:$0xf]
    %v2719 = vld [vmem:[%s0 + $0x490] sm:$0xf]
    %v2720 = vld [vmem:[%s0 + $0x494] sm:$0xf]
    %v2721 = vld [vmem:[%s0 + $0x498] sm:$0xf]
    %v2722 = vld [vmem:[%s0 + $0x49c] sm:$0xf]
    %v2723 = vld [vmem:[%s0 + $0x4a0] sm:$0xf]
    %v2724 = vld [vmem:[%s0 + $0x4a4] sm:$0xf]
    %v2725 = vld [vmem:[%s0 + $0x4a8] sm:$0xf]
    %v2726 = vld [vmem:[%s0 + $0x4ac] sm:$0xf]
    %v2727 = vld [vmem:[%s0 + $0x4b0] sm:$0xf]
    %v2728 = vld [vmem:[%s0 + $0x4b4] sm:$0xf]
    %v2729 = vld [vmem:[%s0 + $0x4b8] sm:$0xf]
    %v2730 = vld [vmem:[%s0 + $0x4bc] sm:$0xf]
    %v2731 = vld [vmem:[%s0 + $0x4c0] sm:$0xf]
    %v2732 = vld [vmem:[%s0 + $0x4c4] sm:$0xf]
    %v2733 = vld [vmem:[%s0 + $0x4c8] sm:$0xf]
    %v2734 = vld [vmem:[%s0 + $0x4cc] sm:$0xf]
    %v2735 = vld [vmem:[%s0 + $0x4d0] sm:$0xf]
    %v2736 = vld [vmem:[%s0 + $0x4d4] sm:$0xf]
    %v2737 = vld [vmem:[%s0 + $0x4d8] sm:$0xf]
    %v2738 = vld [vmem:[%s0 + $0x4dc] sm:$0xf]
    %v2739 = vld [vmem:[%s0 + $0x4e0] sm:$0xf]
    %v2740 = vld [vmem:[%s0 + $0x4e4] sm:$0xf]
    %v2741 = vld [vmem:[%s0 + $0x4e8] sm:$0xf]
    %v2742 = vld [vmem:[%s0 + $0x4ec] sm:$0xf]
    %v2743 = vld [vmem:[%s0 + $0x4f0] sm:$0xf]
    %v2744 = vld [vmem:[%s0 + $0x4f4] sm:$0xf]
    %v2745 = vld [vmem:[%s0 + $0x4f8] sm:$0xf]
    %v2746 = vld [vmem:[%s0 + $0x4fc] sm:$0xf]
    %v2747 = vld [vmem:[%s0 + $0x500] sm:$0xf]
    %v2748 = vld [vmem:[%s0 + $0x504] sm:$0xf]
    %v2749 = vld [vmem:[%s0 + $0x508] sm:$0xf]
    %v2750 = vld [vmem:[%s0 + $0x50c] sm:$0xf]
    %v2751 = vld [vmem:[%s0 + $0x510] sm:$0xf]
    %v2752 = vld [vmem:[%s0 + $0x514] sm:$0xf]
    %v2753 = vld [vmem:[%s0 + $0x518] sm:$0xf]
    %v2754 = vld [vmem:[%s0 + $0x51c] sm:$0xf]
    %v2755 = vld [vmem:[%s0 + $0x520] sm:$0xf]
    %v2756 = vld [vmem:[%s0 + $0x524] sm:$0xf]
    %v2757 = vld [vmem:[%s0 + $0x528] sm:$0xf]
    %v2758 = vld [vmem:[%s0 + $0x52c] sm:$0xf]
    %v2759 = vld [vmem:[%s0 + $0x530] sm:$0xf]
    %v2760 = vld [vmem:[%s0 + $0x534] sm:$0xf]
    %v2761 = vld [vmem:[%s0 + $0x538] sm:$0xf]
    %v2762 = vld [vmem:[%s0 + $0x53c] sm:$0xf]
    %v2763 = vld [vmem:[%s0 + $0x540] sm:$0xf]
    %v2764 = vld [vmem:[%s0 + $0x544] sm:$0xf]
    %v2765 = vld [vmem:[%s0 + $0x548] sm:$0xf]
    %v2766 = vld [vmem:[%s0 + $0x54c] sm:$0xf]
    %v2767 = vld [vmem:[%s0 + $0x550] sm:$0xf]
    %v2768 = vld [vmem:[%s0 + $0x554] sm:$0xf]
    %v2769 = vld [vmem:[%s0 + $0x558] sm:$0xf]
    %v2770 = vld [vmem:[%s0 + $0x55c] sm:$0xf]
    %v2771 = vld [vmem:[%s0 + $0x560] sm:$0xf]
    %v2772 = vld [vmem:[%s0 + $0x564] sm:$0xf]
    %v2773 = vld [vmem:[%s0 + $0x568] sm:$0xf]
    %v2774 = vld [vmem:[%s0 + $0x56c] sm:$0xf]
    %v2775 = vld [vmem:[%s0 + $0x570] sm:$0xf]
    %v2776 = vld [vmem:[%s0 + $0x574] sm:$0xf]
    %v2777 = vld [vmem:[%s0 + $0x578] sm:$0xf]
    %v2778 = vld [vmem:[%s0 + $0x57c] sm:$0xf]
    %v2779 = vld [vmem:[%s0 + $0x580] sm:$0xf]
    %v2780 = vld [vmem:[%s0 + $0x584] sm:$0xf]
    %v2781 = vld [vmem:[%s0 + $0x588] sm:$0xf]
    %v2782 = vld [vmem:[%s0 + $0x58c] sm:$0xf]
    %v2783 = vld [vmem:[%s0 + $0x590] sm:$0xf]
    %v2784 = vld [vmem:[%s0 + $0x594] sm:$0xf]
    %v2785 = vld [vmem:[%s0 + $0x598] sm:$0xf]
    %v2786 = vld [vmem:[%s0 + $0x59c] sm:$0xf]
    %v2787 = vld [vmem:[%s0 + $0x5a0] sm:$0xf]
    %v2788 = vld [vmem:[%s0 + $0x5a4] sm:$0xf]
    %v2789 = vld [vmem:[%s0 + $0x5a8] sm:$0xf]
    %v2790 = vld [vmem:[%s0 + $0x5ac] sm:$0xf]
    %v2791 = vld [vmem:[%s0 + $0x5b0] sm:$0xf]
    %v2792 = vld [vmem:[%s0 + $0x5b4] sm:$0xf]
    %v2793 = vld [vmem:[%s0 + $0x5b8] sm:$0xf]
    %v2794 = vld [vmem:[%s0 + $0x5bc] sm:$0xf]
    %v2795 = vld [vmem:[%s0 + $0x5c0] sm:$0xf]
    %v2796 = vld [vmem:[%s0 + $0x5c4] sm:$0xf]
    %v2797 = vld [vmem:[%s0 + $0x5c8] sm:$0xf]
    %v2798 = vld [vmem:[%s0 + $0x5cc] sm:$0xf]
    %v2799 = vld [vmem:[%s0 + $0x5d0] sm:$0xf]
    %v2800 = vld [vmem:[%s0 + $0x5d4] sm:$0xf]
    %v2801 = vld [vmem:[%s0 + $0x5d8] sm:$0xf]
    %v2802 = vld [vmem:[%s0 + $0x5dc] sm:$0xf]
    %v2803 = vld [vmem:[%s0 + $0x5e0] sm:$0xf]
    %v2804 = vld [vmem:[%s0 + $0x5e4] sm:$0xf]
    %v2805 = vld [vmem:[%s0 + $0x5e8] sm:$0xf]
    %v2806 = vld [vmem:[%s0 + $0x5ec] sm:$0xf]
    %v2807 = vld [vmem:[%s0 + $0x5f0] sm:$0xf]
    %v2808 = vld [vmem:[%s0 + $0x5f4] sm:$0xf]
    %v2809 = vld [vmem:[%s0 + $0x5f8] sm:$0xf]
    %v2810 = vld [vmem:[%s0 + $0x5fc] sm:$0xf]
    %v2811 = vld [vmem:[%s0 + $0x600] sm:$0xf]
    %v2812 = vld [vmem:[%s0 + $0x604] sm:$0xf]
    %v2813 = vld [vmem:[%s0 + $0x608] sm:$0xf]
    %v2814 = vld [vmem:[%s0 + $0x60c] sm:$0xf]
    %v2815 = vld [vmem:[%s0 + $0x610] sm:$0xf]
    %v2816 = vld [vmem:[%s0 + $0x614] sm:$0xf]
    %v2817 = vld [vmem:[%s0 + $0x618] sm:$0xf]
    %v2818 = vld [vmem:[%s0 + $0x61c] sm:$0xf]
    %v2819 = vld [vmem:[%s0 + $0x620] sm:$0xf]
    %v2820 = vld [vmem:[%s0 + $0x624] sm:$0xf]
    %v2821 = vld [vmem:[%s0 + $0x628] sm:$0xf]
    %v2822 = vld [vmem:[%s0 + $0x62c] sm:$0xf]
    %v2823 = vld [vmem:[%s0 + $0x630] sm:$0xf]
    %v2824 = vld [vmem:[%s0 + $0x634] sm:$0xf]
    %v2825 = vld [vmem:[%s0 + $0x638] sm:$0xf]
    %v2826 = vld [vmem:[%s0 + $0x63c] sm:$0xf]
    %v2827 = vld [vmem:[%s0 + $0x640] sm:$0xf]
    %v2828 = vld [vmem:[%s0 + $0x644] sm:$0xf]
    %v2829 = vld [vmem:[%s0 + $0x648] sm:$0xf]
    %v2830 = vld [vmem:[%s0 + $0x64c] sm:$0xf]
    %v2831 = vld [vmem:[%s0 + $0x650] sm:$0xf]
    %v2832 = vld [vmem:[%s0 + $0x654] sm:$0xf]
    %v2833 = vld [vmem:[%s0 + $0x658] sm:$0xf]
    %v2834 = vld [vmem:[%s0 + $0x65c] sm:$0xf]
    %v2835 = vld [vmem:[%s0 + $0x660] sm:$0xf]
    %v2836 = vld [vmem:[%s0 + $0x664] sm:$0xf]
    %v2837 = vld [vmem:[%s0 + $0x668] sm:$0xf]
    %v2838 = vld [vmem:[%s0 + $0x66c] sm:$0xf]
    %v2839 = vld [vmem:[%s0 + $0x670] sm:$0xf]
    %v2840 = vld [vmem:[%s0 + $0x674] sm:$0xf]
    %v2841 = vld [vmem:[%s0 + $0x678] sm:$0xf]
    %v2842 = vld [vmem:[%s0 + $0x67c] sm:$0xf]
    %v2843 = vld [vmem:[%s0 + $0x680] sm:$0xf]
    %v2844 = vld [vmem:[%s0 + $0x684] sm:$0xf]
    %v2845 = vld [vmem:[%s0 + $0x688] sm:$0xf]
    %v2846 = vld [vmem:[%s0 + $0x68c] sm:$0xf]
    %v2847 = vld [vmem:[%s0 + $0x690] sm:$0xf]
    %v2848 = vld [vmem:[%s0 + $0x694] sm:$0xf]
    %v2849 = vld [vmem:[%s0 + $0x698] sm:$0xf]
    %v2850 = vld [vmem:[%s0 + $0x69c] sm:$0xf]
    %v2851 = vld [vmem:[%s0 + $0x6a0] sm:$0xf]
    %v2852 = vld [vmem:[%s0 + $0x6a4] sm:$0xf]
    %v2853 = vld [vmem:[%s0 + $0x6a8] sm:$0xf]
    %v2854 = vld [vmem:[%s0 + $0x6ac] sm:$0xf]
    %v2855 = vld [vmem:[%s0 + $0x6b0] sm:$0xf]
    %v2856 = vld [vmem:[%s0 + $0x6b4] sm:$0xf]
    %v2857 = vld [vmem:[%s0 + $0x6b8] sm:$0xf]
    %v2858 = vld [vmem:[%s0 + $0x6bc] sm:$0xf]
    %v2859 = vld [vmem:[%s0 + $0x6c0] sm:$0xf]
    %v2860 = vld [vmem:[%s0 + $0x6c4] sm:$0xf]
    %v2861 = vld [vmem:[%s0 + $0x6c8] sm:$0xf]
    %v2862 = vld [vmem:[%s0 + $0x6cc] sm:$0xf]
    %v2863 = vld [vmem:[%s0 + $0x6d0] sm:$0xf]
    %v2864 = vld [vmem:[%s0 + $0x6d4] sm:$0xf]
    %v2865 = vld [vmem:[%s0 + $0x6d8] sm:$0xf]
    %v2866 = vld [vmem:[%s0 + $0x6dc] sm:$0xf]
    %v2867 = vld [vmem:[%s0 + $0x6e0] sm:$0xf]
    %v2868 = vld [vmem:[%s0 + $0x6e4] sm:$0xf]
    %v2869 = vld [vmem:[%s0 + $0x6e8] sm:$0xf]
    %v2870 = vld [vmem:[%s0 + $0x6ec] sm:$0xf]
    %v2871 = vld [vmem:[%s0 + $0x6f0] sm:$0xf]
    %v2872 = vld [vmem:[%s0 + $0x6f4] sm:$0xf]
    %v2873 = vld [vmem:[%s0 + $0x6f8] sm:$0xf]
    %v2874 = vld [vmem:[%s0 + $0x6fc] sm:$0xf]
    %v2875 = vld [vmem:[%s0 + $0x700] sm:$0xf]
    %v2876 = vld [vmem:[%s0 + $0x704] sm:$0xf]
    %v2877 = vld [vmem:[%s0 + $0x708] sm:$0xf]
    %v2878 = vld [vmem:[%s0 + $0x70c] sm:$0xf]
    %v2879 = vld [vmem:[%s0 + $0x710] sm:$0xf]
    %v2880 = vld [vmem:[%s0 + $0x714] sm:$0xf]
    %v2881 = vld [vmem:[%s0 + $0x718] sm:$0xf]
    %v2882 = vld [vmem:[%s0 + $0x71c] sm:$0xf]
    %v2883 = vld [vmem:[%s0 + $0x720] sm:$0xf]
    %v2884 = vld [vmem:[%s0 + $0x724] sm:$0xf]
    %v2885 = vld [vmem:[%s0 + $0x728] sm:$0xf]
    %v2886 = vld [vmem:[%s0 + $0x72c] sm:$0xf]
    %v2887 = vld [vmem:[%s0 + $0x730] sm:$0xf]
    %v2888 = vld [vmem:[%s0 + $0x734] sm:$0xf]
    %v2889 = vld [vmem:[%s0 + $0x738] sm:$0xf]
    %v2890 = vld [vmem:[%s0 + $0x73c] sm:$0xf]
    %v2891 = vld [vmem:[%s0 + $0x740] sm:$0xf]
    %v2892 = vld [vmem:[%s0 + $0x744] sm:$0xf]
    %v2893 = vld [vmem:[%s0 + $0x748] sm:$0xf]
    %v2894 = vld [vmem:[%s0 + $0x74c] sm:$0xf]
    %v2895 = vld [vmem:[%s0 + $0x750] sm:$0xf]
    %v2896 = vld [vmem:[%s0 + $0x754] sm:$0xf]
    %v2897 = vld [vmem:[%s0 + $0x758] sm:$0xf]
    %v2898 = vld [vmem:[%s0 + $0x75c] sm:$0xf]
    %v2899 = vld [vmem:[%s0 + $0x760] sm:$0xf]
    %v2900 = vld [vmem:[%s0 + $0x764] sm:$0xf]
    %v2901 = vld [vmem:[%s0 + $0x768] sm:$0xf]
    %v2902 = vld [vmem:[%s0 + $0x76c] sm:$0xf]
    %v2903 = vld [vmem:[%s0 + $0x770] sm:$0xf]
    %v2904 = vld [vmem:[%s0 + $0x774] sm:$0xf]
    %v2905 = vld [vmem:[%s0 + $0x778] sm:$0xf]
    %v2906 = vld [vmem:[%s0 + $0x77c] sm:$0xf]
    %v2907 = vld [vmem:[%s0 + $0x780] sm:$0xf]
    %v2908 = vld [vmem:[%s0 + $0x784] sm:$0xf]
    %v2909 = vld [vmem:[%s0 + $0x788] sm:$0xf]
    %v2910 = vld [vmem:[%s0 + $0x78c] sm:$0xf]
    %v2911 = vld [vmem:[%s0 + $0x790] sm:$0xf]
    %v2912 = vld [vmem:[%s0 + $0x794] sm:$0xf]
    %v2913 = vld [vmem:[%s0 + $0x798] sm:$0xf]
    %v2914 = vld [vmem:[%s0 + $0x79c] sm:$0xf]
    %v2915 = vld [vmem:[%s0 + $0x7a0] sm:$0xf]
    %v2916 = vld [vmem:[%s0 + $0x7a4] sm:$0xf]
    %v2917 = vld [vmem:[%s0 + $0x7a8] sm:$0xf]
    %v2918 = vld [vmem:[%s0 + $0x7ac] sm:$0xf]
    %v2919 = vld [vmem:[%s0 + $0x7b0] sm:$0xf]
    %v2920 = vld [vmem:[%s0 + $0x7b4] sm:$0xf]
    %v2921 = vld [vmem:[%s0 + $0x7b8] sm:$0xf]
    %v2922 = vld [vmem:[%s0 + $0x7bc] sm:$0xf]
    %v2923 = vld [vmem:[%s0 + $0x7c0] sm:$0xf]
    %v2924 = vld [vmem:[%s0 + $0x7c4] sm:$0xf]
    %v2925 = vld [vmem:[%s0 + $0x7c8] sm:$0xf]
    %v2926 = vld [vmem:[%s0 + $0x7cc] sm:$0xf]
    %v2927 = vld [vmem:[%s0 + $0x7d0] sm:$0xf]
    %v2928 = vld [vmem:[%s0 + $0x7d4] sm:$0xf]
    %v2929 = vld [vmem:[%s0 + $0x7d8] sm:$0xf]
    %v2930 = vld [vmem:[%s0 + $0x7dc] sm:$0xf]
    %v2931 = vld [vmem:[%s0 + $0x7e0] sm:$0xf]
    %v2932 = vld [vmem:[%s0 + $0x7e4] sm:$0xf]
    %v2933 = vld [vmem:[%s0 + $0x7e8] sm:$0xf]
    %v2934 = vld [vmem:[%s0 + $0x7ec] sm:$0xf]
    %v2935 = vld [vmem:[%s0 + $0x7f0] sm:$0xf]
    %v2936 = vld [vmem:[%s0 + $0x7f4] sm:$0xf]
    %v2937 = vld [vmem:[%s0 + $0x7f8] sm:$0xf]
    %v2938 = vld [vmem:[%s0 + $0x7fc] sm:$0xf]
    %v2939 = vld [vmem:[%s0 + $0x800] sm:$0xf]
    %v2940 = vld [vmem:[%s0 + $0x804] sm:$0xf]
    %v2941 = vld [vmem:[%s0 + $0x808] sm:$0xf]
    %v2942 = vld [vmem:[%s0 + $0x80c] sm:$0xf]
    %v2943 = vld [vmem:[%s0 + $0x810] sm:$0xf]
    %v2944 = vld [vmem:[%s0 + $0x814] sm:$0xf]
    %v2945 = vld [vmem:[%s0 + $0x818] sm:$0xf]
    %v2946 = vld [vmem:[%s0 + $0x81c] sm:$0xf]
    %v2947 = vld [vmem:[%s0 + $0x820] sm:$0xf]
    %v2948 = vld [vmem:[%s0 + $0x824] sm:$0xf]
    %v2949 = vld [vmem:[%s0 + $0x828] sm:$0xf]
    %v2950 = vld [vmem:[%s0 + $0x82c] sm:$0xf]
    %v2951 = vld [vmem:[%s0 + $0x830] sm:$0xf]
    %v2952 = vld [vmem:[%s0 + $0x834] sm:$0xf]
    %v2953 = vld [vmem:[%s0 + $0x838] sm:$0xf]
    %v2954 = vld [vmem:[%s0 + $0x83c] sm:$0xf]
    %v2955 = vld [vmem:[%s0 + $0x840] sm:$0xf]
    %v2956 = vld [vmem:[%s0 + $0x844] sm:$0xf]
    %v2957 = vld [vmem:[%s0 + $0x848] sm:$0xf]
    %v2958 = vld [vmem:[%s0 + $0x84c] sm:$0xf]
    %v2959 = vld [vmem:[%s0 + $0x850] sm:$0xf]
    %v2960 = vld [vmem:[%s0 + $0x854] sm:$0xf]
    %v2961 = vld [vmem:[%s0 + $0x858] sm:$0xf]
    %v2962 = vld [vmem:[%s0 + $0x85c] sm:$0xf]
    %v2963 = vld [vmem:[%s0 + $0x860] sm:$0xf]
    %v2964 = vld [vmem:[%s0 + $0x864] sm:$0xf]
    %v2965 = vld [vmem:[%s0 + $0x868] sm:$0xf]
    %v2966 = vld [vmem:[%s0 + $0x86c] sm:$0xf]
    %v2967 = vld [vmem:[%s0 + $0x870] sm:$0xf]
    %v2968 = vld [vmem:[%s0 + $0x874] sm:$0xf]
    %v2969 = vld [vmem:[%s0 + $0x878] sm:$0xf]
    %v2970 = vld [vmem:[%s0 + $0x87c] sm:$0xf]
    %v2971 = vld [vmem:[%s0 + $0x880] sm:$0xf]
    %v2972 = vld [vmem:[%s0 + $0x884] sm:$0xf]
    %v2973 = vld [vmem:[%s0 + $0x888] sm:$0xf]
    %v2974 = vld [vmem:[%s0 + $0x88c] sm:$0xf]
    %v2975 = vld [vmem:[%s0 + $0x890] sm:$0xf]
    %v2976 = vld [vmem:[%s0 + $0x894] sm:$0xf]
    %v2977 = vld [vmem:[%s0 + $0x898] sm:$0xf]
    %v2978 = vld [vmem:[%s0 + $0x89c] sm:$0xf]
    %v2979 = vld [vmem:[%s0 + $0x8a0] sm:$0xf]
    %v2980 = vld [vmem:[%s0 + $0x8a4] sm:$0xf]
    %v2981 = vld [vmem:[%s0 + $0x8a8] sm:$0xf]
    %v2982 = vld [vmem:[%s0 + $0x8ac] sm:$0xf]
    %v2983 = vld [vmem:[%s0 + $0x8b0] sm:$0xf]
    %v2984 = vld [vmem:[%s0 + $0x8b4] sm:$0xf]
    %v2985 = vld [vmem:[%s0 + $0x8b8] sm:$0xf]
    %v2986 = vld [vmem:[%s0 + $0x8bc] sm:$0xf]
    %v2987 = vld [vmem:[%s0 + $0x8c0] sm:$0xf]
    %v2988 = vld [vmem:[%s0 + $0x8c4] sm:$0xf]
    %v2989 = vld [vmem:[%s0 + $0x8c8] sm:$0xf]
    %v2990 = vld [vmem:[%s0 + $0x8cc] sm:$0xf]
    %v2991 = vld [vmem:[%s0 + $0x8d0] sm:$0xf]
    %v2992 = vld [vmem:[%s0 + $0x8d4] sm:$0xf]
    %v2993 = vld [vmem:[%s0 + $0x8d8] sm:$0xf]
    %v2994 = vld [vmem:[%s0 + $0x8dc] sm:$0xf]
    %v2995 = vld [vmem:[%s0 + $0x8e0] sm:$0xf]
    %v2996 = vld [vmem:[%s0 + $0x8e4] sm:$0xf]
    %v2997 = vld [vmem:[%s0 + $0x8e8] sm:$0xf]
    %v2998 = vld [vmem:[%s0 + $0x8ec] sm:$0xf]
    %v2999 = vld [vmem:[%s0 + $0x8f0] sm:$0xf]
    %v3000 = vld [vmem:[%s0 + $0x8f4] sm:$0xf]
    %v3001 = vld [vmem:[%s0 + $0x8f8] sm:$0xf]
    %v3002 = vld [vmem:[%s0 + $0x8fc] sm:$0xf]
    %v3003 = vld [vmem:[%s0 + $0x900] sm:$0xf]
    %v3004 = vld [vmem:[%s0 + $0x904] sm:$0xf]
    %v3005 = vld [vmem:[%s0 + $0x908] sm:$0xf]
    %v3006 = vld [vmem:[%s0 + $0x90c] sm:$0xf]
    %v3007 = vld [vmem:[%s0 + $0x910] sm:$0xf]
    %v3008 = vld [vmem:[%s0 + $0x914] sm:$0xf]
    %v3009 = vld [vmem:[%s0 + $0x918] sm:$0xf]
    %v3010 = vld [vmem:[%s0 + $0x91c] sm:$0xf]
    %v3011 = vld [vmem:[%s0 + $0x920] sm:$0xf]
    %v3012 = vld [vmem:[%s0 + $0x924] sm:$0xf]
    %v3013 = vld [vmem:[%s0 + $0x928] sm:$0xf]
    %v3014 = vld [vmem:[%s0 + $0x92c] sm:$0xf]
    %v3015 = vld [vmem:[%s0 + $0x930] sm:$0xf]
    %v3016 = vld [vmem:[%s0 + $0x934] sm:$0xf]
    %v3017 = vld [vmem:[%s0 + $0x938] sm:$0xf]
    %v3018 = vld [vmem:[%s0 + $0x93c] sm:$0xf]
    %v3019 = vld [vmem:[%s0 + $0x940] sm:$0xf]
    %v3020 = vld [vmem:[%s0 + $0x944] sm:$0xf]
    %v3021 = vld [vmem:[%s0 + $0x948] sm:$0xf]
    %v3022 = vld [vmem:[%s0 + $0x94c] sm:$0xf]
    %v3023 = vld [vmem:[%s0 + $0x950] sm:$0xf]
    %v3024 = vld [vmem:[%s0 + $0x954] sm:$0xf]
    %v3025 = vld [vmem:[%s0 + $0x958] sm:$0xf]
    %v3026 = vld [vmem:[%s0 + $0x95c] sm:$0xf]
    %v3027 = vld [vmem:[%s0 + $0x960] sm:$0xf]
    %v3028 = vld [vmem:[%s0 + $0x964] sm:$0xf]
    %v3029 = vld [vmem:[%s0 + $0x968] sm:$0xf]
    %v3030 = vld [vmem:[%s0 + $0x96c] sm:$0xf]
    %v3031 = vld [vmem:[%s0 + $0x970] sm:$0xf]
    %v3032 = vld [vmem:[%s0 + $0x974] sm:$0xf]
    %v3033 = vld [vmem:[%s0 + $0x978] sm:$0xf]
    %v3034 = vld [vmem:[%s0 + $0x97c] sm:$0xf]
    %v3035 = vld [vmem:[%s0 + $0x980] sm:$0xf]
    %v3036 = vld [vmem:[%s0 + $0x984] sm:$0xf]
    %v3037 = vld [vmem:[%s0 + $0x988] sm:$0xf]
    %v3038 = vld [vmem:[%s0 + $0x98c] sm:$0xf]
    %v3039 = vld [vmem:[%s0 + $0x990] sm:$0xf]
    %v3040 = vld [vmem:[%s0 + $0x994] sm:$0xf]
    %v3041 = vld [vmem:[%s0 + $0x998] sm:$0xf]
    %v3042 = vld [vmem:[%s0 + $0x99c] sm:$0xf]
    %v3043 = vld [vmem:[%s0 + $0x9a0] sm:$0xf]
    %v3044 = vld [vmem:[%s0 + $0x9a4] sm:$0xf]
    %v3045 = vld [vmem:[%s0 + $0x9a8] sm:$0xf]
    %v3046 = vld [vmem:[%s0 + $0x9ac] sm:$0xf]
    %v3047 = vld [vmem:[%s0 + $0x9b0] sm:$0xf]
    %v3048 = vld [vmem:[%s0 + $0x9b4] sm:$0xf]
    %v3049 = vld [vmem:[%s0 + $0x9b8] sm:$0xf]
    %v3050 = vld [vmem:[%s0 + $0x9bc] sm:$0xf]
    %v3051 = vld [vmem:[%s0 + $0x9c0] sm:$0xf]
    %v3052 = vld [vmem:[%s0 + $0x9c4] sm:$0xf]
    %v3053 = vld [vmem:[%s0 + $0x9c8] sm:$0xf]
    %v3054 = vld [vmem:[%s0 + $0x9cc] sm:$0xf]
    %v3055 = vld [vmem:[%s0 + $0x9d0] sm:$0xf]
    %v3056 = vld [vmem:[%s0 + $0x9d4] sm:$0xf]
    %v3057 = vld [vmem:[%s0 + $0x9d8] sm:$0xf]
    %v3058 = vld [vmem:[%s0 + $0x9dc] sm:$0xf]
    %v3059 = vld [vmem:[%s0 + $0x9e0] sm:$0xf]
    %v3060 = vld [vmem:[%s0 + $0x9e4] sm:$0xf]
    %v3061 = vld [vmem:[%s0 + $0x9e8] sm:$0xf]
    %v3062 = vld [vmem:[%s0 + $0x9ec] sm:$0xf]
    %v3063 = vld [vmem:[%s0 + $0x9f0] sm:$0xf]
    %v3064 = vld [vmem:[%s0 + $0x9f4] sm:$0xf]
    %v3065 = vld [vmem:[%s0 + $0x9f8] sm:$0xf]
    %v3066 = vld [vmem:[%s0 + $0x9fc] sm:$0xf]
    %v3067 = vld [vmem:[%s0 + $0xa00] sm:$0xf]
    %v3068 = vld [vmem:[%s0 + $0xa04] sm:$0xf]
    %v3069 = vld [vmem:[%s0 + $0xa08] sm:$0xf]
    %v3070 = vld [vmem:[%s0 + $0xa0c] sm:$0xf]
    %v3071 = vld [vmem:[%s0 + $0xa10] sm:$0xf]
    %v3072 = vld [vmem:[%s0 + $0xa14] sm:$0xf]
    %v3073 = vld [vmem:[%s0 + $0xa18] sm:$0xf]
    %v3074 = vld [vmem:[%s0 + $0xa1c] sm:$0xf]
    %v3075 = vld [vmem:[%s0 + $0xa20] sm:$0xf]
    %v3076 = vld [vmem:[%s0 + $0xa24] sm:$0xf]
    %v3077 = vld [vmem:[%s0 + $0xa28] sm:$0xf]
    %v3078 = vld [vmem:[%s0 + $0xa2c] sm:$0xf]
    %v3079 = vld [vmem:[%s0 + $0xa30] sm:$0xf]
    %v3080 = vld [vmem:[%s0 + $0xa34] sm:$0xf]
    %v3081 = vld [vmem:[%s0 + $0xa38] sm:$0xf]
    %v3082 = vld [vmem:[%s0 + $0xa3c] sm:$0xf]
    %v3083 = vld [vmem:[%s0 + $0xa40] sm:$0xf]
    %v3084 = vld [vmem:[%s0 + $0xa44] sm:$0xf]
    %v3085 = vld [vmem:[%s0 + $0xa48] sm:$0xf]
    %v3086 = vld [vmem:[%s0 + $0xa4c] sm:$0xf]
    %v3087 = vld [vmem:[%s0 + $0xa50] sm:$0xf]
    %v3088 = vld [vmem:[%s0 + $0xa54] sm:$0xf]
    %v3089 = vld [vmem:[%s0 + $0xa58] sm:$0xf]
    %v3090 = vld [vmem:[%s0 + $0xa5c] sm:$0xf]
    %v3091 = vld [vmem:[%s0 + $0xa60] sm:$0xf]
    %v3092 = vld [vmem:[%s0 + $0xa64] sm:$0xf]
    %v3093 = vld [vmem:[%s0 + $0xa68] sm:$0xf]
    %v3094 = vld [vmem:[%s0 + $0xa6c] sm:$0xf]
    %v3095 = vld [vmem:[%s0 + $0xa70] sm:$0xf]
    %v3096 = vld [vmem:[%s0 + $0xa74] sm:$0xf]
    %v3097 = vld [vmem:[%s0 + $0xa78] sm:$0xf]
    %v3098 = vld [vmem:[%s0 + $0xa7c] sm:$0xf]
    %v3099 = vld [vmem:[%s0 + $0xa80] sm:$0xf]
    %v3100 = vld [vmem:[%s0 + $0xa84] sm:$0xf]
    %v3101 = vld [vmem:[%s0 + $0xa88] sm:$0xf]
    %v3102 = vld [vmem:[%s0 + $0xa8c] sm:$0xf]
    %v3103 = vld [vmem:[%s0 + $0xa90] sm:$0xf]
    %v3104 = vld [vmem:[%s0 + $0xa94] sm:$0xf]
    %v3105 = vld [vmem:[%s0 + $0xa98] sm:$0xf]
    %v3106 = vld [vmem:[%s0 + $0xa9c] sm:$0xf]
    %v3107 = vld [vmem:[%s0 + $0xaa0] sm:$0xf]
    %v3108 = vld [vmem:[%s0 + $0xaa4] sm:$0xf]
    %v3109 = vld [vmem:[%s0 + $0xaa8] sm:$0xf]
    %v3110 = vld [vmem:[%s0 + $0xaac] sm:$0xf]
    %v3111 = vld [vmem:[%s0 + $0xab0] sm:$0xf]
    %v3112 = vld [vmem:[%s0 + $0xab4] sm:$0xf]
    %v3113 = vld [vmem:[%s0 + $0xab8] sm:$0xf]
    %v3114 = vld [vmem:[%s0 + $0xabc] sm:$0xf]
    %v3115 = vld [vmem:[%s0 + $0xac0] sm:$0xf]
    %v3116 = vld [vmem:[%s0 + $0xac4] sm:$0xf]
    %v3117 = vld [vmem:[%s0 + $0xac8] sm:$0xf]
    %v3118 = vld [vmem:[%s0 + $0xacc] sm:$0xf]
    %v3119 = vld [vmem:[%s0 + $0xad0] sm:$0xf]
    %v3120 = vld [vmem:[%s0 + $0xad4] sm:$0xf]
    %v3121 = vld [vmem:[%s0 + $0xad8] sm:$0xf]
    %v3122 = vld [vmem:[%s0 + $0xadc] sm:$0xf]
    %v3123 = vld [vmem:[%s0 + $0xae0] sm:$0xf]
    %v3124 = vld [vmem:[%s0 + $0xae4] sm:$0xf]
    %v3125 = vld [vmem:[%s0 + $0xae8] sm:$0xf]
    %v3126 = vld [vmem:[%s0 + $0xaec] sm:$0xf]
    %v3127 = vld [vmem:[%s0 + $0xaf0] sm:$0xf]
    %v3128 = vld [vmem:[%s0 + $0xaf4] sm:$0xf]
    %v3129 = vld [vmem:[%s0 + $0xaf8] sm:$0xf]
    %v3130 = vld [vmem:[%s0 + $0xafc] sm:$0xf]
    %v3131 = vld [vmem:[%s0 + $0xb00] sm:$0xf]
    %v3132 = vld [vmem:[%s0 + $0xb04] sm:$0xf]
    %v3133 = vld [vmem:[%s0 + $0xb08] sm:$0xf]
    %v3134 = vld [vmem:[%s0 + $0xb0c] sm:$0xf]
    %v3135 = vld [vmem:[%s0 + $0xb10] sm:$0xf]
    %v3136 = vld [vmem:[%s0 + $0xb14] sm:$0xf]
    %v3137 = vld [vmem:[%s0 + $0xb18] sm:$0xf]
    %v3138 = vld [vmem:[%s0 + $0xb1c] sm:$0xf]
    %v3139 = vld [vmem:[%s0 + $0xb20] sm:$0xf]
    %v3140 = vld [vmem:[%s0 + $0xb24] sm:$0xf]
    %v3141 = vld [vmem:[%s0 + $0xb28] sm:$0xf]
    %v3142 = vld [vmem:[%s0 + $0xb2c] sm:$0xf]
    %v3143 = vld [vmem:[%s0 + $0xb30] sm:$0xf]
    %v3144 = vld [vmem:[%s0 + $0xb34] sm:$0xf]
    %v3145 = vld [vmem:[%s0 + $0xb38] sm:$0xf]
    %v3146 = vld [vmem:[%s0 + $0xb3c] sm:$0xf]
    %v3147 = vld [vmem:[%s0 + $0xb40] sm:$0xf]
    %v3148 = vld [vmem:[%s0 + $0xb44] sm:$0xf]
    %v3149 = vld [vmem:[%s0 + $0xb48] sm:$0xf]
    %v3150 = vld [vmem:[%s0 + $0xb4c] sm:$0xf]
    %v3151 = vld [vmem:[%s0 + $0xb50] sm:$0xf]
    %v3152 = vld [vmem:[%s0 + $0xb54] sm:$0xf]
    %v3153 = vld [vmem:[%s0 + $0xb58] sm:$0xf]
    %v3154 = vld [vmem:[%s0 + $0xb5c] sm:$0xf]
    %v3155 = vld [vmem:[%s0 + $0xb60] sm:$0xf]
    %v3156 = vld [vmem:[%s0 + $0xb64] sm:$0xf]
    %v3157 = vld [vmem:[%s0 + $0xb68] sm:$0xf]
    %v3158 = vld [vmem:[%s0 + $0xb6c] sm:$0xf]
    %v3159 = vld [vmem:[%s0 + $0xb70] sm:$0xf]
    %v3160 = vld [vmem:[%s0 + $0xb74] sm:$0xf]
    %v3161 = vld [vmem:[%s0 + $0xb78] sm:$0xf]
    %v3162 = vld [vmem:[%s0 + $0xb7c] sm:$0xf]
    %v3163 = vld [vmem:[%s0 + $0xb80] sm:$0xf]
    %v3164 = vld [vmem:[%s0 + $0xb84] sm:$0xf]
    %v3165 = vld [vmem:[%s0 + $0xb88] sm:$0xf]
    %v3166 = vld [vmem:[%s0 + $0xb8c] sm:$0xf]
    %v3167 = vld [vmem:[%s0 + $0xb90] sm:$0xf]
    %v3168 = vld [vmem:[%s0 + $0xb94] sm:$0xf]
    %v3169 = vld [vmem:[%s0 + $0xb98] sm:$0xf]
    %v3170 = vld [vmem:[%s0 + $0xb9c] sm:$0xf]
    %v3171 = vld [vmem:[%s0 + $0xba0] sm:$0xf]
    %v3172 = vld [vmem:[%s0 + $0xba4] sm:$0xf]
    %v3173 = vld [vmem:[%s0 + $0xba8] sm:$0xf]
    %v3174 = vld [vmem:[%s0 + $0xbac] sm:$0xf]
    %v3175 = vld [vmem:[%s0 + $0xbb0] sm:$0xf]
    %v3176 = vld [vmem:[%s0 + $0xbb4] sm:$0xf]
    %v3177 = vld [vmem:[%s0 + $0xbb8] sm:$0xf]
    %v3178 = vld [vmem:[%s0 + $0xbbc] sm:$0xf]
    %v3179 = vld [vmem:[%s0 + $0xbc0] sm:$0xf]
    %v3180 = vld [vmem:[%s0 + $0xbc4] sm:$0xf]
    %v3181 = vld [vmem:[%s0 + $0xbc8] sm:$0xf]
    %v3182 = vld [vmem:[%s0 + $0xbcc] sm:$0xf]
    %v3183 = vld [vmem:[%s0 + $0xbd0] sm:$0xf]
    %v3184 = vld [vmem:[%s0 + $0xbd4] sm:$0xf]
    %v3185 = vld [vmem:[%s0 + $0xbd8] sm:$0xf]
    %v3186 = vld [vmem:[%s0 + $0xbdc] sm:$0xf]
    %v3187 = vld [vmem:[%s0 + $0xbe0] sm:$0xf]
    %v3188 = vld [vmem:[%s0 + $0xbe4] sm:$0xf]
    %v3189 = vld [vmem:[%s0 + $0xbe8] sm:$0xf]
    %v3190 = vld [vmem:[%s0 + $0xbec] sm:$0xf]
    %v3191 = vld [vmem:[%s0 + $0xbf0] sm:$0xf]
    %v3192 = vld [vmem:[%s0 + $0xbf4] sm:$0xf]
    %v3193 = vld [vmem:[%s0 + $0xbf8] sm:$0xf]
    %v3194 = vld [vmem:[%s0 + $0xbfc] sm:$0xf]
    %v3195 = vld [vmem:[%s0 + $0xc00] sm:$0xf]
    %v3196 = vld [vmem:[%s0 + $0xc04] sm:$0xf]
    %v3197 = vld [vmem:[%s0 + $0xc08] sm:$0xf]
    %v3198 = vld [vmem:[%s0 + $0xc0c] sm:$0xf]
    %v3199 = vld [vmem:[%s0 + $0xc10] sm:$0xf]
    %v3200 = vld [vmem:[%s0 + $0xc14] sm:$0xf]
    %v3201 = vld [vmem:[%s0 + $0xc18] sm:$0xf]
    %v3202 = vld [vmem:[%s0 + $0xc1c] sm:$0xf]
    %v3203 = vld [vmem:[%s0 + $0xc20] sm:$0xf]
    %v3204 = vld [vmem:[%s0 + $0xc24] sm:$0xf]
    %v3205 = vld [vmem:[%s0 + $0xc28] sm:$0xf]
    %v3206 = vld [vmem:[%s0 + $0xc2c] sm:$0xf]
    %v3207 = vld [vmem:[%s0 + $0xc30] sm:$0xf]
    %v3208 = vld [vmem:[%s0 + $0xc34] sm:$0xf]
    %v3209 = vld [vmem:[%s0 + $0xc38] sm:$0xf]
    %v3210 = vld [vmem:[%s0 + $0xc3c] sm:$0xf]
    %v3211 = vld [vmem:[%s0 + $0xc40] sm:$0xf]
    %v3212 = vld [vmem:[%s0 + $0xc44] sm:$0xf]
    %v3213 = vld [vmem:[%s0 + $0xc48] sm:$0xf]
    %v3214 = vld [vmem:[%s0 + $0xc4c] sm:$0xf]
    %v3215 = vld [vmem:[%s0 + $0xc50] sm:$0xf]
    %v3216 = vld [vmem:[%s0 + $0xc54] sm:$0xf]
    %v3217 = vld [vmem:[%s0 + $0xc58] sm:$0xf]
    %v3218 = vld [vmem:[%s0 + $0xc5c] sm:$0xf]
    %v3219 = vld [vmem:[%s0 + $0xc60] sm:$0xf]
    %v3220 = vld [vmem:[%s0 + $0xc64] sm:$0xf]
    %v3221 = vld [vmem:[%s0 + $0xc68] sm:$0xf]
    %v3222 = vld [vmem:[%s0 + $0xc6c] sm:$0xf]
    %v3223 = vld [vmem:[%s0 + $0xc70] sm:$0xf]
    %v3224 = vld [vmem:[%s0 + $0xc74] sm:$0xf]
    %v3225 = vld [vmem:[%s0 + $0xc78] sm:$0xf]
    %v3226 = vld [vmem:[%s0 + $0xc7c] sm:$0xf]
    %v3227 = vld [vmem:[%s0 + $0xc80] sm:$0xf]
    %v3228 = vld [vmem:[%s0 + $0xc84] sm:$0xf]
    %v3229 = vld [vmem:[%s0 + $0xc88] sm:$0xf]
    %v3230 = vld [vmem:[%s0 + $0xc8c] sm:$0xf]
    %v3231 = vld [vmem:[%s0 + $0xc90] sm:$0xf]
    %v3232 = vld [vmem:[%s0 + $0xc94] sm:$0xf]
    %v3233 = vld [vmem:[%s0 + $0xc98] sm:$0xf]
    %v3234 = vld [vmem:[%s0 + $0xc9c] sm:$0xf]
    %v3235 = vld [vmem:[%s0 + $0xca0] sm:$0xf]
    %v3236 = vld [vmem:[%s0 + $0xca4] sm:$0xf]
    %v3237 = vld [vmem:[%s0 + $0xca8] sm:$0xf]
    %v3238 = vld [vmem:[%s0 + $0xcac] sm:$0xf]
    %v3239 = vld [vmem:[%s0 + $0xcb0] sm:$0xf]
    %v3240 = vld [vmem:[%s0 + $0xcb4] sm:$0xf]
    %v3241 = vld [vmem:[%s0 + $0xcb8] sm:$0xf]
    %v3242 = vld [vmem:[%s0 + $0xcbc] sm:$0xf]
    %v3243 = vld [vmem:[%s0 + $0xcc0] sm:$0xf]
    %v3244 = vld [vmem:[%s0 + $0xcc4] sm:$0xf]
    %v3245 = vld [vmem:[%s0 + $0xcc8] sm:$0xf]
    %v3246 = vld [vmem:[%s0 + $0xccc] sm:$0xf]
    %v3247 = vld [vmem:[%s0 + $0xcd0] sm:$0xf]
    %v3248 = vld [vmem:[%s0 + $0xcd4] sm:$0xf]
    %v3249 = vld [vmem:[%s0 + $0xcd8] sm:$0xf]
    %v3250 = vld [vmem:[%s0 + $0xcdc] sm:$0xf]
    %v3251 = vld [vmem:[%s0 + $0xce0] sm:$0xf]
    %v3252 = vld [vmem:[%s0 + $0xce4] sm:$0xf]
    %v3253 = vld [vmem:[%s0 + $0xce8] sm:$0xf]
    %v3254 = vld [vmem:[%s0 + $0xcec] sm:$0xf]
    %v3255 = vld [vmem:[%s0 + $0xcf0] sm:$0xf]
    %v3256 = vld [vmem:[%s0 + $0xcf4] sm:$0xf]
    %v3257 = vld [vmem:[%s0 + $0xcf8] sm:$0xf]
    %v3258 = vld [vmem:[%s0 + $0xcfc] sm:$0xf]
    %v3259 = vld [vmem:[%s0 + $0xd00] sm:$0xf]
    %v3260 = vld [vmem:[%s0 + $0xd04] sm:$0xf]
    %v3261 = vld [vmem:[%s0 + $0xd08] sm:$0xf]
    %v3262 = vld [vmem:[%s0 + $0xd0c] sm:$0xf]
    %v3263 = vld [vmem:[%s0 + $0xd10] sm:$0xf]
    %v3264 = vld [vmem:[%s0 + $0xd14] sm:$0xf]
    %v3265 = vld [vmem:[%s0 + $0xd18] sm:$0xf]
    %v3266 = vld [vmem:[%s0 + $0xd1c] sm:$0xf]
    %v3267 = vld [vmem:[%s0 + $0xd20] sm:$0xf]
    %v3268 = vld [vmem:[%s0 + $0xd24] sm:$0xf]
    %v3269 = vld [vmem:[%s0 + $0xd28] sm:$0xf]
    %v3270 = vld [vmem:[%s0 + $0xd2c] sm:$0xf]
    %v3271 = vld [vmem:[%s0 + $0xd30] sm:$0xf]
    %v3272 = vld [vmem:[%s0 + $0xd34] sm:$0xf]
    %v3273 = vld [vmem:[%s0 + $0xd38] sm:$0xf]
    %v3274 = vld [vmem:[%s0 + $0xd3c] sm:$0xf]
    %v3275 = vld [vmem:[%s0 + $0xd40] sm:$0xf]
    %v3276 = vld [vmem:[%s0 + $0xd44] sm:$0xf]
    %v3277 = vld [vmem:[%s0 + $0xd48] sm:$0xf]
    %v3278 = vld [vmem:[%s0 + $0xd4c] sm:$0xf]
    %v3279 = vld [vmem:[%s0 + $0xd50] sm:$0xf]
    %v3280 = vld [vmem:[%s0 + $0xd54] sm:$0xf]
    %v3281 = vld [vmem:[%s0 + $0xd58] sm:$0xf]
    %v3282 = vld [vmem:[%s0 + $0xd5c] sm:$0xf]
    %v3283 = vld [vmem:[%s0 + $0xd60] sm:$0xf]
    %v3284 = vld [vmem:[%s0 + $0xd64] sm:$0xf]
    %v3285 = vld [vmem:[%s0 + $0xd68] sm:$0xf]
    %v3286 = vld [vmem:[%s0 + $0xd6c] sm:$0xf]
    %v3287 = vld [vmem:[%s0 + $0xd70] sm:$0xf]
    %v3288 = vld [vmem:[%s0 + $0xd74] sm:$0xf]
    %v3289 = vld [vmem:[%s0 + $0xd78] sm:$0xf]
    %v3290 = vld [vmem:[%s0 + $0xd7c] sm:$0xf]
    %v3291 = vld [vmem:[%s0 + $0xd80] sm:$0xf]
    %v3292 = vld [vmem:[%s0 + $0xd84] sm:$0xf]
    %v3293 = vld [vmem:[%s0 + $0xd88] sm:$0xf]
    %v3294 = vld [vmem:[%s0 + $0xd8c] sm:$0xf]
    %v3295 = vld [vmem:[%s0 + $0xd90] sm:$0xf]
    %v3296 = vld [vmem:[%s0 + $0xd94] sm:$0xf]
    %v3297 = vld [vmem:[%s0 + $0xd98] sm:$0xf]
    %v3298 = vld [vmem:[%s0 + $0xd9c] sm:$0xf]
    %v3299 = vld [vmem:[%s0 + $0xda0] sm:$0xf]
    %v3300 = vld [vmem:[%s0 + $0xda4] sm:$0xf]
    %v3301 = vld [vmem:[%s0 + $0xda8] sm:$0xf]
    %v3302 = vld [vmem:[%s0 + $0xdac] sm:$0xf]
    %v3303 = vld [vmem:[%s0 + $0xdb0] sm:$0xf]
    %v3304 = vld [vmem:[%s0 + $0xdb4] sm:$0xf]
    %v3305 = vld [vmem:[%s0 + $0xdb8] sm:$0xf]
    %v3306 = vld [vmem:[%s0 + $0xdbc] sm:$0xf]
    %v3307 = vld [vmem:[%s0 + $0xdc0] sm:$0xf]
    %v3308 = vld [vmem:[%s0 + $0xdc4] sm:$0xf]
    %v3309 = vld [vmem:[%s0 + $0xdc8] sm:$0xf]
    %v3310 = vld [vmem:[%s0 + $0xdcc] sm:$0xf]
    %v3311 = vld [vmem:[%s0 + $0xdd0] sm:$0xf]
    %v3312 = vld [vmem:[%s0 + $0xdd4] sm:$0xf]
    %v3313 = vld [vmem:[%s0 + $0xdd8] sm:$0xf]
    %v3314 = vld [vmem:[%s0 + $0xddc] sm:$0xf]
    %v3315 = vld [vmem:[%s0 + $0xde0] sm:$0xf]
    %v3316 = vld [vmem:[%s0 + $0xde4] sm:$0xf]
    %v3317 = vld [vmem:[%s0 + $0xde8] sm:$0xf]
    %v3318 = vld [vmem:[%s0 + $0xdec] sm:$0xf]
    %v3319 = vld [vmem:[%s0 + $0xdf0] sm:$0xf]
    %v3320 = vld [vmem:[%s0 + $0xdf4] sm:$0xf]
    %v3321 = vld [vmem:[%s0 + $0xdf8] sm:$0xf]
    %v3322 = vld [vmem:[%s0 + $0xdfc] sm:$0xf]
    %v3323 = vld [vmem:[%s0 + $0xe00] sm:$0xf]
    %v3324 = vld [vmem:[%s0 + $0xe04] sm:$0xf]
    %v3325 = vld [vmem:[%s0 + $0xe08] sm:$0xf]
    %v3326 = vld [vmem:[%s0 + $0xe0c] sm:$0xf]
    %v3327 = vld [vmem:[%s0 + $0xe10] sm:$0xf]
    %v3328 = vld [vmem:[%s0 + $0xe14] sm:$0xf]
    %v3329 = vld [vmem:[%s0 + $0xe18] sm:$0xf]
    %v3330 = vld [vmem:[%s0 + $0xe1c] sm:$0xf]
    %v3331 = vld [vmem:[%s0 + $0xe20] sm:$0xf]
    %v3332 = vld [vmem:[%s0 + $0xe24] sm:$0xf]
    %v3333 = vld [vmem:[%s0 + $0xe28] sm:$0xf]
    %v3334 = vld [vmem:[%s0 + $0xe2c] sm:$0xf]
    %v3335 = vld [vmem:[%s0 + $0xe30] sm:$0xf]
    %v3336 = vld [vmem:[%s0 + $0xe34] sm:$0xf]
    %v3337 = vld [vmem:[%s0 + $0xe38] sm:$0xf]
    %v3338 = vld [vmem:[%s0 + $0xe3c] sm:$0xf]
    %v3339 = vld [vmem:[%s0 + $0xe40] sm:$0xf]
    %v3340 = vld [vmem:[%s0 + $0xe44] sm:$0xf]
    %v3341 = vld [vmem:[%s0 + $0xe48] sm:$0xf]
    %v3342 = vld [vmem:[%s0 + $0xe4c] sm:$0xf]
    %v3343 = vld [vmem:[%s0 + $0xe50] sm:$0xf]
    %v3344 = vld [vmem:[%s0 + $0xe54] sm:$0xf]
    %v3345 = vld [vmem:[%s0 + $0xe58] sm:$0xf]
    %v3346 = vld [vmem:[%s0 + $0xe5c] sm:$0xf]
    %v3347 = vld [vmem:[%s0 + $0xe60] sm:$0xf]
    %v3348 = vld [vmem:[%s0 + $0xe64] sm:$0xf]
    %v3349 = vld [vmem:[%s0 + $0xe68] sm:$0xf]
    %v3350 = vld [vmem:[%s0 + $0xe6c] sm:$0xf]
    %v3351 = vld [vmem:[%s0 + $0xe70] sm:$0xf]
    %v3352 = vld [vmem:[%s0 + $0xe74] sm:$0xf]
    %v3353 = vld [vmem:[%s0 + $0xe78] sm:$0xf]
    %v3354 = vld [vmem:[%s0 + $0xe7c] sm:$0xf]
    %v3355 = vld [vmem:[%s0 + $0xe80] sm:$0xf]
    %v3356 = vld [vmem:[%s0 + $0xe84] sm:$0xf]
    %v3357 = vld [vmem:[%s0 + $0xe88] sm:$0xf]
    %v3358 = vld [vmem:[%s0 + $0xe8c] sm:$0xf]
    %v3359 = vld [vmem:[%s0 + $0xe90] sm:$0xf]
    %v3360 = vld [vmem:[%s0 + $0xe94] sm:$0xf]
    %v3361 = vld [vmem:[%s0 + $0xe98] sm:$0xf]
    %v3362 = vld [vmem:[%s0 + $0xe9c] sm:$0xf]
    %v3363 = vld [vmem:[%s0 + $0xea0] sm:$0xf]
    %v3364 = vld [vmem:[%s0 + $0xea4] sm:$0xf]
    %v3365 = vld [vmem:[%s0 + $0xea8] sm:$0xf]
    %v3366 = vld [vmem:[%s0 + $0xeac] sm:$0xf]
    %v3367 = vld [vmem:[%s0 + $0xeb0] sm:$0xf]
    %v3368 = vld [vmem:[%s0 + $0xeb4] sm:$0xf]
    %v3369 = vld [vmem:[%s0 + $0xeb8] sm:$0xf]
    %v3370 = vld [vmem:[%s0 + $0xebc] sm:$0xf]
    %v3371 = vld [vmem:[%s0 + $0xec0] sm:$0xf]
    %v3372 = vld [vmem:[%s0 + $0xec4] sm:$0xf]
    %v3373 = vld [vmem:[%s0 + $0xec8] sm:$0xf]
    %v3374 = vld [vmem:[%s0 + $0xecc] sm:$0xf]
    %v3375 = vld [vmem:[%s0 + $0xed0] sm:$0xf]
    %v3376 = vld [vmem:[%s0 + $0xed4] sm:$0xf]
    %v3377 = vld [vmem:[%s0 + $0xed8] sm:$0xf]
    %v3378 = vld [vmem:[%s0 + $0xedc] sm:$0xf]
    %v3379 = vld [vmem:[%s0 + $0xee0] sm:$0xf]
    %v3380 = vld [vmem:[%s0 + $0xee4] sm:$0xf]
    %v3381 = vld [vmem:[%s0 + $0xee8] sm:$0xf]
    %v3382 = vld [vmem:[%s0 + $0xeec] sm:$0xf]
    %v3383 = vld [vmem:[%s0 + $0xef0] sm:$0xf]
    %v3384 = vld [vmem:[%s0 + $0xef4] sm:$0xf]
    %v3385 = vld [vmem:[%s0 + $0xef8] sm:$0xf]
    %v3386 = vld [vmem:[%s0 + $0xefc] sm:$0xf]
    %v3387 = vld [vmem:[%s0 + $0xf00] sm:$0xf]
    %v3388 = vld [vmem:[%s0 + $0xf04] sm:$0xf]
    %v3389 = vld [vmem:[%s0 + $0xf08] sm:$0xf]
    %v3390 = vld [vmem:[%s0 + $0xf0c] sm:$0xf]
    %v3391 = vld [vmem:[%s0 + $0xf10] sm:$0xf]
    %v3392 = vld [vmem:[%s0 + $0xf14] sm:$0xf]
    %v3393 = vld [vmem:[%s0 + $0xf18] sm:$0xf]
    %v3394 = vld [vmem:[%s0 + $0xf1c] sm:$0xf]
    %v3395 = vld [vmem:[%s0 + $0xf20] sm:$0xf]
    %v3396 = vld [vmem:[%s0 + $0xf24] sm:$0xf]
    %v3397 = vld [vmem:[%s0 + $0xf28] sm:$0xf]
    %v3398 = vld [vmem:[%s0 + $0xf2c] sm:$0xf]
    %v3399 = vld [vmem:[%s0 + $0xf30] sm:$0xf]
    %v3400 = vld [vmem:[%s0 + $0xf34] sm:$0xf]
    %v3401 = vld [vmem:[%s0 + $0xf38] sm:$0xf]
    %v3402 = vld [vmem:[%s0 + $0xf3c] sm:$0xf]
    %v3403 = vld [vmem:[%s0 + $0xf40] sm:$0xf]
    %v3404 = vld [vmem:[%s0 + $0xf44] sm:$0xf]
    %v3405 = vld [vmem:[%s0 + $0xf48] sm:$0xf]
    %v3406 = vld [vmem:[%s0 + $0xf4c] sm:$0xf]
    %v3407 = vld [vmem:[%s0 + $0xf50] sm:$0xf]
    %v3408 = vld [vmem:[%s0 + $0xf54] sm:$0xf]
    %v3409 = vld [vmem:[%s0 + $0xf58] sm:$0xf]
    %v3410 = vld [vmem:[%s0 + $0xf5c] sm:$0xf]
    %v3411 = vld [vmem:[%s0 + $0xf60] sm:$0xf]
    %v3412 = vld [vmem:[%s0 + $0xf64] sm:$0xf]
    %v3413 = vld [vmem:[%s0 + $0xf68] sm:$0xf]
    %v3414 = vld [vmem:[%s0 + $0xf6c] sm:$0xf]
    %v3415 = vld [vmem:[%s0 + $0xf70] sm:$0xf]
    %v3416 = vld [vmem:[%s0 + $0xf74] sm:$0xf]
    %v3417 = vld [vmem:[%s0 + $0xf78] sm:$0xf]
    %v3418 = vld [vmem:[%s0 + $0xf7c] sm:$0xf]
    %v3419 = vld [vmem:[%s0 + $0xf80] sm:$0xf]
    %v3420 = vld [vmem:[%s0 + $0xf84] sm:$0xf]
    %v3421 = vld [vmem:[%s0 + $0xf88] sm:$0xf]
    %v3422 = vld [vmem:[%s0 + $0xf8c] sm:$0xf]
    %v3423 = vld [vmem:[%s0 + $0xf90] sm:$0xf]
    %v3424 = vld [vmem:[%s0 + $0xf94] sm:$0xf]
    %v3425 = vld [vmem:[%s0 + $0xf98] sm:$0xf]
    %v3426 = vld [vmem:[%s0 + $0xf9c] sm:$0xf]
    %v3427 = vld [vmem:[%s0 + $0xfa0] sm:$0xf]
    %v3428 = vld [vmem:[%s0 + $0xfa4] sm:$0xf]
    %v3429 = vld [vmem:[%s0 + $0xfa8] sm:$0xf]
    %v3430 = vld [vmem:[%s0 + $0xfac] sm:$0xf]
    %v3431 = vld [vmem:[%s0 + $0xfb0] sm:$0xf]
    %v3432 = vld [vmem:[%s0 + $0xfb4] sm:$0xf]
    %v3433 = vld [vmem:[%s0 + $0xfb8] sm:$0xf]
    %v3434 = vld [vmem:[%s0 + $0xfbc] sm:$0xf]
    %v3435 = vld [vmem:[%s0 + $0xfc0] sm:$0xf]
    %v3436 = vld [vmem:[%s0 + $0xfc4] sm:$0xf]
    %v3437 = vld [vmem:[%s0 + $0xfc8] sm:$0xf]
    %v3438 = vld [vmem:[%s0 + $0xfcc] sm:$0xf]
    %v3439 = vld [vmem:[%s0 + $0xfd0] sm:$0xf]
    %v3440 = vld [vmem:[%s0 + $0xfd4] sm:$0xf]
    %v3441 = vld [vmem:[%s0 + $0xfd8] sm:$0xf]
    %v3442 = vld [vmem:[%s0 + $0xfdc] sm:$0xf]
    %v3443 = vld [vmem:[%s0 + $0xfe0] sm:$0xf]
    %v3444 = vld [vmem:[%s0 + $0xfe4] sm:$0xf]
    %v3445 = vld [vmem:[%s0 + $0xfe8] sm:$0xf]
    %v3446 = vld [vmem:[%s0 + $0xfec] sm:$0xf]
    %v3447 = vld [vmem:[%s0 + $0xff0] sm:$0xf]
    %v3448 = vld [vmem:[%s0 + $0xff4] sm:$0xf]
    %v3449 = vld [vmem:[%s0 + $0xff8] sm:$0xf]
    %v3450 = vld [vmem:[%s0 + $0xffc] sm:$0xf]
    %v3451 = vld [vmem:[%s0 + $0x1000] sm:$0xf]
    %v3452 = vld [vmem:[%s0 + $0x1004] sm:$0xf]
    %v3453 = vld [vmem:[%s0 + $0x1008] sm:$0xf]
    %v3454 = vld [vmem:[%s0 + $0x100c] sm:$0xf]
    %v3455 = vld [vmem:[%s0 + $0x1010] sm:$0xf]
    %v3456 = vld [vmem:[%s0 + $0x1014] sm:$0xf]
    %v3457 = vld [vmem:[%s0 + $0x1018] sm:$0xf]
    %v3458 = vld [vmem:[%s0 + $0x101c] sm:$0xf]
    %v3459 = vld [vmem:[%s0 + $0x1020] sm:$0xf]
    %v3460 = vld [vmem:[%s0 + $0x1024] sm:$0xf]
    %v3461 = vld [vmem:[%s0 + $0x1028] sm:$0xf]
    %v3462 = vld [vmem:[%s0 + $0x102c] sm:$0xf]
    %v3463 = vld [vmem:[%s0 + $0x1030] sm:$0xf]
    %v3464 = vld [vmem:[%s0 + $0x1034] sm:$0xf]
    %v3465 = vld [vmem:[%s0 + $0x1038] sm:$0xf]
    %v3466 = vld [vmem:[%s0 + $0x103c] sm:$0xf]
    %v3467 = vld [vmem:[%s0 + $0x1040] sm:$0xf]
    %v3468 = vld [vmem:[%s0 + $0x1044] sm:$0xf]
    %v3469 = vld [vmem:[%s0 + $0x1048] sm:$0xf]
    %v3470 = vld [vmem:[%s0 + $0x104c] sm:$0xf]
    %v3471 = vld [vmem:[%s0 + $0x1050] sm:$0xf]
    %v3472 = vld [vmem:[%s0 + $0x1054] sm:$0xf]
    %v3473 = vld [vmem:[%s0 + $0x1058] sm:$0xf]
    %v3474 = vld [vmem:[%s0 + $0x105c] sm:$0xf]
    %v3475 = vld [vmem:[%s0 + $0x1060] sm:$0xf]
    %v3476 = vld [vmem:[%s0 + $0x1064] sm:$0xf]
    %v3477 = vld [vmem:[%s0 + $0x1068] sm:$0xf]
    %v3478 = vld [vmem:[%s0 + $0x106c] sm:$0xf]
    %v3479 = vld [vmem:[%s0 + $0x1070] sm:$0xf]
    %v3480 = vld [vmem:[%s0 + $0x1074] sm:$0xf]
    %v3481 = vld [vmem:[%s0 + $0x1078] sm:$0xf]
    %v3482 = vld [vmem:[%s0 + $0x107c] sm:$0xf]
    %v3483 = vld [vmem:[%s0 + $0x1080] sm:$0xf]
    %v3484 = vld [vmem:[%s0 + $0x1084] sm:$0xf]
    %v3485 = vld [vmem:[%s0 + $0x1088] sm:$0xf]
    %v3486 = vld [vmem:[%s0 + $0x108c] sm:$0xf]
    %v3487 = vld [vmem:[%s0 + $0x1090] sm:$0xf]
    %v3488 = vld [vmem:[%s0 + $0x1094] sm:$0xf]
    %v3489 = vld [vmem:[%s0 + $0x1098] sm:$0xf]
    %v3490 = vld [vmem:[%s0 + $0x109c] sm:$0xf]
    %v3491 = vld [vmem:[%s0 + $0x10a0] sm:$0xf]
    %v3492 = vld [vmem:[%s0 + $0x10a4] sm:$0xf]
    %v3493 = vld [vmem:[%s0 + $0x10a8] sm:$0xf]
    %v3494 = vld [vmem:[%s0 + $0x10ac] sm:$0xf]
    %v3495 = vld [vmem:[%s0 + $0x10b0] sm:$0xf]
    %v3496 = vld [vmem:[%s0 + $0x10b4] sm:$0xf]
    %v3497 = vld [vmem:[%s0 + $0x10b8] sm:$0xf]
    %v3498 = vld [vmem:[%s0 + $0x10bc] sm:$0xf]
    %v3499 = vld [vmem:[%s0 + $0x10c0] sm:$0xf]
    %v3500 = vld [vmem:[%s0 + $0x10c4] sm:$0xf]
    %v3501 = vld [vmem:[%s0 + $0x10c8] sm:$0xf]
    %v3502 = vld [vmem:[%s0 + $0x10cc] sm:$0xf]
    %v3503 = vld [vmem:[%s0 + $0x10d0] sm:$0xf]
    %v3504 = vld [vmem:[%s0 + $0x10d4] sm:$0xf]
    %v3505 = vld [vmem:[%s0 + $0x10d8] sm:$0xf]
    %v3506 = vld [vmem:[%s0 + $0x10dc] sm:$0xf]
    %v3507 = vld [vmem:[%s0 + $0x10e0] sm:$0xf]
    %v3508 = vld [vmem:[%s0 + $0x10e4] sm:$0xf]
    %v3509 = vld [vmem:[%s0 + $0x10e8] sm:$0xf]
    %v3510 = vld [vmem:[%s0 + $0x10ec] sm:$0xf]
    %v3511 = vld [vmem:[%s0 + $0x10f0] sm:$0xf]
    %v3512 = vld [vmem:[%s0 + $0x10f4] sm:$0xf]
    %v3513 = vld [vmem:[%s0 + $0x10f8] sm:$0xf]
    %v3514 = vld [vmem:[%s0 + $0x10fc] sm:$0xf]
    %v3515 = vld [vmem:[%s0 + $0x1100] sm:$0xf]
    %v3516 = vld [vmem:[%s0 + $0x1104] sm:$0xf]
    %v3517 = vld [vmem:[%s0 + $0x1108] sm:$0xf]
    %v3518 = vld [vmem:[%s0 + $0x110c] sm:$0xf]
    %v3519 = vld [vmem:[%s0 + $0x1110] sm:$0xf]
    %v3520 = vld [vmem:[%s0 + $0x1114] sm:$0xf]
    %v3521 = vld [vmem:[%s0 + $0x1118] sm:$0xf]
    %v3522 = vld [vmem:[%s0 + $0x111c] sm:$0xf]
    %v3523 = vld [vmem:[%s0 + $0x1120] sm:$0xf]
    %v3524 = vld [vmem:[%s0 + $0x1124] sm:$0xf]
    %v3525 = vld [vmem:[%s0 + $0x1128] sm:$0xf]
    %v3526 = vld [vmem:[%s0 + $0x112c] sm:$0xf]
    %v3527 = vld [vmem:[%s0 + $0x1130] sm:$0xf]
    %v3528 = vld [vmem:[%s0 + $0x1134] sm:$0xf]
    %v3529 = vld [vmem:[%s0 + $0x1138] sm:$0xf]
    %v3530 = vld [vmem:[%s0 + $0x113c] sm:$0xf]
    %v3531 = vld [vmem:[%s0 + $0x1140] sm:$0xf]
    %v3532 = vld [vmem:[%s0 + $0x1144] sm:$0xf]
    %v3533 = vld [vmem:[%s0 + $0x1148] sm:$0xf]
    %v3534 = vld [vmem:[%s0 + $0x114c] sm:$0xf]
    %v3535 = vld [vmem:[%s0 + $0x1150] sm:$0xf]
    %v3536 = vld [vmem:[%s0 + $0x1154] sm:$0xf]
    %v3537 = vld [vmem:[%s0 + $0x1158] sm:$0xf]
    %v3538 = vld [vmem:[%s0 + $0x115c] sm:$0xf]
    %v3539 = vld [vmem:[%s0 + $0x1160] sm:$0xf]
    %v3540 = vld [vmem:[%s0 + $0x1164] sm:$0xf]
    %v3541 = vld [vmem:[%s0 + $0x1168] sm:$0xf]
    %v3542 = vld [vmem:[%s0 + $0x116c] sm:$0xf]
    %v3543 = vld [vmem:[%s0 + $0x1170] sm:$0xf]
    %v3544 = vld [vmem:[%s0 + $0x1174] sm:$0xf]
    %v3545 = vld [vmem:[%s0 + $0x1178] sm:$0xf]
    %v3546 = vld [vmem:[%s0 + $0x117c] sm:$0xf]
    %v3547 = vld [vmem:[%s0 + $0x1180] sm:$0xf]
    %v3548 = vld [vmem:[%s0 + $0x1184] sm:$0xf]
    %v3549 = vld [vmem:[%s0 + $0x1188] sm:$0xf]
    %v3550 = vld [vmem:[%s0 + $0x118c] sm:$0xf]
    %v3551 = vld [vmem:[%s0 + $0x1190] sm:$0xf]
    %v3552 = vld [vmem:[%s0 + $0x1194] sm:$0xf]
    %v3553 = vld [vmem:[%s0 + $0x1198] sm:$0xf]
    %v3554 = vld [vmem:[%s0 + $0x119c] sm:$0xf]
    %v3555 = vld [vmem:[%s0 + $0x11a0] sm:$0xf]
    %v3556 = vld [vmem:[%s0 + $0x11a4] sm:$0xf]
    %v3557 = vld [vmem:[%s0 + $0x11a8] sm:$0xf]
    %v3558 = vld [vmem:[%s0 + $0x11ac] sm:$0xf]
    %v3559 = vld [vmem:[%s0 + $0x11b0] sm:$0xf]
    %v3560 = vld [vmem:[%s0 + $0x11b4] sm:$0xf]
    %v3561 = vld [vmem:[%s0 + $0x11b8] sm:$0xf]
    %v3562 = vld [vmem:[%s0 + $0x11bc] sm:$0xf]
    %v3563 = vld [vmem:[%s0 + $0x11c0] sm:$0xf]
    %v3564 = vld [vmem:[%s0 + $0x11c4] sm:$0xf]
    %v3565 = vld [vmem:[%s0 + $0x11c8] sm:$0xf]
    %v3566 = vld [vmem:[%s0 + $0x11cc] sm:$0xf]
    %v3567 = vld [vmem:[%s0 + $0x11d0] sm:$0xf]
    %v3568 = vld [vmem:[%s0 + $0x11d4] sm:$0xf]
    %v3569 = vld [vmem:[%s0 + $0x11d8] sm:$0xf]
    %v3570 = vld [vmem:[%s0 + $0x11dc] sm:$0xf]
    %v3571 = vld [vmem:[%s0 + $0x11e0] sm:$0xf]
    %v3572 = vld [vmem:[%s0 + $0x11e4] sm:$0xf]
    %v3573 = vld [vmem:[%s0 + $0x11e8] sm:$0xf]
    %v3574 = vld [vmem:[%s0 + $0x11ec] sm:$0xf]
    %v3575 = vld [vmem:[%s0 + $0x11f0] sm:$0xf]
    %v3576 = vld [vmem:[%s0 + $0x11f4] sm:$0xf]
    %v3577 = vld [vmem:[%s0 + $0x11f8] sm:$0xf]
    %v3578 = vld [vmem:[%s0 + $0x11fc] sm:$0xf]
    %v3579 = vld [vmem:[%s0 + $0x1200] sm:$0xf]
    %v3580 = vld [vmem:[%s0 + $0x1204] sm:$0xf]
    %v3581 = vld [vmem:[%s0 + $0x1208] sm:$0xf]
    %v3582 = vld [vmem:[%s0 + $0x120c] sm:$0xf]
    %v3583 = vld [vmem:[%s0 + $0x1210] sm:$0xf]
    %v3584 = vld [vmem:[%s0 + $0x1214] sm:$0xf]
    %v3585 = vld [vmem:[%s0 + $0x1218] sm:$0xf]
    %v3586 = vld [vmem:[%s0 + $0x121c] sm:$0xf]
    %v3587 = vld [vmem:[%s0 + $0x1220] sm:$0xf]
    %v3588 = vld [vmem:[%s0 + $0x1224] sm:$0xf]
    %v3589 = vld [vmem:[%s0 + $0x1228] sm:$0xf]
    %v3590 = vld [vmem:[%s0 + $0x122c] sm:$0xf]
    %v3591 = vld [vmem:[%s0 + $0x1230] sm:$0xf]
    %v3592 = vld [vmem:[%s0 + $0x1234] sm:$0xf]
    %v3593 = vld [vmem:[%s0 + $0x1238] sm:$0xf]
    %v3594 = vld [vmem:[%s0 + $0x123c] sm:$0xf]
    %v3595 = vld [vmem:[%s0 + $0x1240] sm:$0xf]
    %v3596 = vld [vmem:[%s0 + $0x1244] sm:$0xf]
    %v3597 = vld [vmem:[%s0 + $0x1248] sm:$0xf]
    %v3598 = vld [vmem:[%s0 + $0x124c] sm:$0xf]
    %v3599 = vld [vmem:[%s0 + $0x1250] sm:$0xf]
    %v3600 = vld [vmem:[%s0 + $0x1254] sm:$0xf]
    %v3601 = vld [vmem:[%s0 + $0x1258] sm:$0xf]
    %v3602 = vld [vmem:[%s0 + $0x125c] sm:$0xf]
    %v3603 = vld [vmem:[%s0 + $0x1260] sm:$0xf]
    %v3604 = vld [vmem:[%s0 + $0x1264] sm:$0xf]
    %v3605 = vld [vmem:[%s0 + $0x1268] sm:$0xf]
    %v3606 = vld [vmem:[%s0 + $0x126c] sm:$0xf]
    %v3607 = vld [vmem:[%s0 + $0x1270] sm:$0xf]
    %v3608 = vld [vmem:[%s0 + $0x1274] sm:$0xf]
    %v3609 = vld [vmem:[%s0 + $0x1278] sm:$0xf]
    %v3610 = vld [vmem:[%s0 + $0x127c] sm:$0xf]
    %v3611 = vld [vmem:[%s0 + $0x1280] sm:$0xf]
    %v3612 = vld [vmem:[%s0 + $0x1284] sm:$0xf]
    %v3613 = vld [vmem:[%s0 + $0x1288] sm:$0xf]
    %v3614 = vld [vmem:[%s0 + $0x128c] sm:$0xf]
    %v3615 = vld [vmem:[%s0 + $0x1290] sm:$0xf]
    %v3616 = vld [vmem:[%s0 + $0x1294] sm:$0xf]
    %v3617 = vld [vmem:[%s0 + $0x1298] sm:$0xf]
    %v3618 = vld [vmem:[%s0 + $0x129c] sm:$0xf]
    %v3619 = vld [vmem:[%s0 + $0x12a0] sm:$0xf]
    %v3620 = vld [vmem:[%s0 + $0x12a4] sm:$0xf]
    %v3621 = vld [vmem:[%s0 + $0x12a8] sm:$0xf]
    %v3622 = vld [vmem:[%s0 + $0x12ac] sm:$0xf]
    %v3623 = vld [vmem:[%s0 + $0x12b0] sm:$0xf]
    %v3624 = vld [vmem:[%s0 + $0x12b4] sm:$0xf]
    %v3625 = vld [vmem:[%s0 + $0x12b8] sm:$0xf]
    %v3626 = vld [vmem:[%s0 + $0x12bc] sm:$0xf]
    %v3627 = vld [vmem:[%s0 + $0x12c0] sm:$0xf]
    %v3628 = vld [vmem:[%s0 + $0x12c4] sm:$0xf]
    %v3629 = vld [vmem:[%s0 + $0x12c8] sm:$0xf]
    %v3630 = vld [vmem:[%s0 + $0x12cc] sm:$0xf]
    %v3631 = vld [vmem:[%s0 + $0x12d0] sm:$0xf]
    %v3632 = vld [vmem:[%s0 + $0x12d4] sm:$0xf]
    %v3633 = vld [vmem:[%s0 + $0x12d8] sm:$0xf]
    %v3634 = vld [vmem:[%s0 + $0x12dc] sm:$0xf]
    %v3635 = vld [vmem:[%s0 + $0x12e0] sm:$0xf]
    %v3636 = vld [vmem:[%s0 + $0x12e4] sm:$0xf]
    %v3637 = vld [vmem:[%s0 + $0x12e8] sm:$0xf]
    %v3638 = vld [vmem:[%s0 + $0x12ec] sm:$0xf]
    %v3639 = vld [vmem:[%s0 + $0x12f0] sm:$0xf]
    %v3640 = vld [vmem:[%s0 + $0x12f4] sm:$0xf]
    %v3641 = vld [vmem:[%s0 + $0x12f8] sm:$0xf]
    %v3642 = vld [vmem:[%s0 + $0x12fc] sm:$0xf]
    %v3643 = vld [vmem:[%s0 + $0x1300] sm:$0xf]
    %v3644 = vld [vmem:[%s0 + $0x1304] sm:$0xf]
    %v3645 = vld [vmem:[%s0 + $0x1308] sm:$0xf]
    %v3646 = vld [vmem:[%s0 + $0x130c] sm:$0xf]
    %v3647 = vld [vmem:[%s0 + $0x1310] sm:$0xf]
    %v3648 = vld [vmem:[%s0 + $0x1314] sm:$0xf]
    %v3649 = vld [vmem:[%s0 + $0x1318] sm:$0xf]
    %v3650 = vld [vmem:[%s0 + $0x131c] sm:$0xf]
    %v3651 = vld [vmem:[%s0 + $0x1320] sm:$0xf]
    %v3652 = vld [vmem:[%s0 + $0x1324] sm:$0xf]
    %v3653 = vld [vmem:[%s0 + $0x1328] sm:$0xf]
    %v3654 = vld [vmem:[%s0 + $0x132c] sm:$0xf]
    %v3655 = vld [vmem:[%s0 + $0x1330] sm:$0xf]
    %v3656 = vld [vmem:[%s0 + $0x1334] sm:$0xf]
    %v3657 = vld [vmem:[%s0 + $0x1338] sm:$0xf]
    %v3658 = vld [vmem:[%s0 + $0x133c] sm:$0xf]
    %v3659 = vld [vmem:[%s0 + $0x1340] sm:$0xf]
    %v3660 = vld [vmem:[%s0 + $0x1344] sm:$0xf]
    %v3661 = vld [vmem:[%s0 + $0x1348] sm:$0xf]
    %v3662 = vld [vmem:[%s0 + $0x134c] sm:$0xf]
    %v3663 = vld [vmem:[%s0 + $0x1350] sm:$0xf]
    %v3664 = vld [vmem:[%s0 + $0x1354] sm:$0xf]
    %v3665 = vld [vmem:[%s0 + $0x1358] sm:$0xf]
    %v3666 = vld [vmem:[%s0 + $0x135c] sm:$0xf]
    %v3667 = vld [vmem:[%s0 + $0x1360] sm:$0xf]
    %v3668 = vld [vmem:[%s0 + $0x1364] sm:$0xf]
    %v3669 = vld [vmem:[%s0 + $0x1368] sm:$0xf]
    %v3670 = vld [vmem:[%s0 + $0x136c] sm:$0xf]
    %v3671 = vld [vmem:[%s0 + $0x1370] sm:$0xf]
    %v3672 = vld [vmem:[%s0 + $0x1374] sm:$0xf]
    %v3673 = vld [vmem:[%s0 + $0x1378] sm:$0xf]
    %v3674 = vld [vmem:[%s0 + $0x137c] sm:$0xf]
    %v3675 = vld [vmem:[%s0 + $0x1380] sm:$0xf]
    %v3676 = vld [vmem:[%s0 + $0x1384] sm:$0xf]
    %v3677 = vld [vmem:[%s0 + $0x1388] sm:$0xf]
    %v3678 = vld [vmem:[%s0 + $0x138c] sm:$0xf]
    %v3679 = vld [vmem:[%s0 + $0x1390] sm:$0xf]
    %v3680 = vld [vmem:[%s0 + $0x1394] sm:$0xf]
    %v3681 = vld [vmem:[%s0 + $0x1398] sm:$0xf]
    %v3682 = vld [vmem:[%s0 + $0x139c] sm:$0xf]
    %v3683 = vld [vmem:[%s0 + $0x13a0] sm:$0xf]
    %v3684 = vld [vmem:[%s0 + $0x13a4] sm:$0xf]
    %v3685 = vld [vmem:[%s0 + $0x13a8] sm:$0xf]
    %v3686 = vld [vmem:[%s0 + $0x13ac] sm:$0xf]
    %v3687 = vld [vmem:[%s0 + $0x13b0] sm:$0xf]
    %v3688 = vld [vmem:[%s0 + $0x13b4] sm:$0xf]
    %v3689 = vld [vmem:[%s0 + $0x13b8] sm:$0xf]
    %v3690 = vld [vmem:[%s0 + $0x13bc] sm:$0xf]
    %v3691 = vld [vmem:[%s0 + $0x13c0] sm:$0xf]
    %v3692 = vld [vmem:[%s0 + $0x13c4] sm:$0xf]
    %v3693 = vld [vmem:[%s0 + $0x13c8] sm:$0xf]
    %v3694 = vld [vmem:[%s0 + $0x13cc] sm:$0xf]
    %v3695 = vld [vmem:[%s0 + $0x13d0] sm:$0xf]
    %v3696 = vld [vmem:[%s0 + $0x13d4] sm:$0xf]
    %v3697 = vld [vmem:[%s0 + $0x13d8] sm:$0xf]
    %v3698 = vld [vmem:[%s0 + $0x13dc] sm:$0xf]
    %v3699 = vld [vmem:[%s0 + $0x13e0] sm:$0xf]
    %v3700 = vld [vmem:[%s0 + $0x13e4] sm:$0xf]
    %v3701 = vld [vmem:[%s0 + $0x13e8] sm:$0xf]
    %v3702 = vld [vmem:[%s0 + $0x13ec] sm:$0xf]
    %v3703 = vld [vmem:[%s0 + $0x13f0] sm:$0xf]
    %v3704 = vld [vmem:[%s0 + $0x13f4] sm:$0xf]
    %v3705 = vld [vmem:[%s0 + $0x13f8] sm:$0xf]
    %v3706 = vld [vmem:[%s0 + $0x13fc] sm:$0xf]
    %v3707 = vld [vmem:[%s0 + $0x1400] sm:$0xf]
    %v3708 = vld [vmem:[%s0 + $0x1404] sm:$0xf]
    %v3709 = vld [vmem:[%s0 + $0x1408] sm:$0xf]
    %v3710 = vld [vmem:[%s0 + $0x140c] sm:$0xf]
    %v3711 = vld [vmem:[%s0 + $0x1410] sm:$0xf]
    %v3712 = vld [vmem:[%s0 + $0x1414] sm:$0xf]
    %v3713 = vld [vmem:[%s0 + $0x1418] sm:$0xf]
    %v3714 = vld [vmem:[%s0 + $0x141c] sm:$0xf]
    %v3715 = vld [vmem:[%s0 + $0x1420] sm:$0xf]
    %v3716 = vld [vmem:[%s0 + $0x1424] sm:$0xf]
    %v3717 = vld [vmem:[%s0 + $0x1428] sm:$0xf]
    %v3718 = vld [vmem:[%s0 + $0x142c] sm:$0xf]
    %v3719 = vld [vmem:[%s0 + $0x1430] sm:$0xf]
    %v3720 = vld [vmem:[%s0 + $0x1434] sm:$0xf]
    %v3721 = vld [vmem:[%s0 + $0x1438] sm:$0xf]
    %v3722 = vld [vmem:[%s0 + $0x143c] sm:$0xf]
    %v3723 = vld [vmem:[%s0 + $0x1440] sm:$0xf]
    %v3724 = vld [vmem:[%s0 + $0x1444] sm:$0xf]
    %v3725 = vld [vmem:[%s0 + $0x1448] sm:$0xf]
    %v3726 = vld [vmem:[%s0 + $0x144c] sm:$0xf]
    %v3727 = vld [vmem:[%s0 + $0x1450] sm:$0xf]
    %v3728 = vld [vmem:[%s0 + $0x1454] sm:$0xf]
    %v3729 = vld [vmem:[%s0 + $0x1458] sm:$0xf]
    %v3730 = vld [vmem:[%s0 + $0x145c] sm:$0xf]
    %v3731 = vld [vmem:[%s0 + $0x1460] sm:$0xf]
    %v3732 = vld [vmem:[%s0 + $0x1464] sm:$0xf]
    %v3733 = vld [vmem:[%s0 + $0x1468] sm:$0xf]
    %v3734 = vld [vmem:[%s0 + $0x146c] sm:$0xf]
    %v3735 = vld [vmem:[%s0 + $0x1470] sm:$0xf]
    %v3736 = vld [vmem:[%s0 + $0x1474] sm:$0xf]
    %v3737 = vld [vmem:[%s0 + $0x1478] sm:$0xf]
    %v3738 = vld [vmem:[%s0 + $0x147c] sm:$0xf]
    %v3739 = vld [vmem:[%s0 + $0x1480] sm:$0xf]
    %v3740 = vld [vmem:[%s0 + $0x1484] sm:$0xf]
    %v3741 = vld [vmem:[%s0 + $0x1488] sm:$0xf]
    %v3742 = vld [vmem:[%s0 + $0x148c] sm:$0xf]
    %v3743 = vld [vmem:[%s0 + $0x1490] sm:$0xf]
    %v3744 = vld [vmem:[%s0 + $0x1494] sm:$0xf]
    %v3745 = vld [vmem:[%s0 + $0x1498] sm:$0xf]
    %v3746 = vld [vmem:[%s0 + $0x149c] sm:$0xf]
    %v3747 = vld [vmem:[%s0 + $0x14a0] sm:$0xf]
    %v3748 = vld [vmem:[%s0 + $0x14a4] sm:$0xf]
    %v3749 = vld [vmem:[%s0 + $0x14a8] sm:$0xf]
    %v3750 = vld [vmem:[%s0 + $0x14ac] sm:$0xf]
    %v3751 = vld [vmem:[%s0 + $0x14b0] sm:$0xf]
    %v3752 = vld [vmem:[%s0 + $0x14b4] sm:$0xf]
    %v3753 = vld [vmem:[%s0 + $0x14b8] sm:$0xf]
    %v3754 = vld [vmem:[%s0 + $0x14bc] sm:$0xf]
    %v3755 = vld [vmem:[%s0 + $0x14c0] sm:$0xf]
    %v3756 = vld [vmem:[%s0 + $0x14c4] sm:$0xf]
    %v3757 = vld [vmem:[%s0 + $0x14c8] sm:$0xf]
    %v3758 = vld [vmem:[%s0 + $0x14cc] sm:$0xf]
    %v3759 = vld [vmem:[%s0 + $0x14d0] sm:$0xf]
    %v3760 = vld [vmem:[%s0 + $0x14d4] sm:$0xf]
    %v3761 = vld [vmem:[%s0 + $0x14d8] sm:$0xf]
    %v3762 = vld [vmem:[%s0 + $0x14dc] sm:$0xf]
    %v3763 = vld [vmem:[%s0 + $0x14e0] sm:$0xf]
    %v3764 = vld [vmem:[%s0 + $0x14e4] sm:$0xf]
    %v3765 = vld [vmem:[%s0 + $0x14e8] sm:$0xf]
    %v3766 = vld [vmem:[%s0 + $0x14ec] sm:$0xf]
    %v3767 = vld [vmem:[%s0 + $0x14f0] sm:$0xf]
    %v3768 = vld [vmem:[%s0 + $0x14f4] sm:$0xf]
    %v3769 = vld [vmem:[%s0 + $0x14f8] sm:$0xf]
    %v3770 = vld [vmem:[%s0 + $0x14fc] sm:$0xf]
    %v3771 = vld [vmem:[%s0 + $0x1500] sm:$0xf]
    %v3772 = vld [vmem:[%s0 + $0x1504] sm:$0xf]
    %v3773 = vld [vmem:[%s0 + $0x1508] sm:$0xf]
    %v3774 = vld [vmem:[%s0 + $0x150c] sm:$0xf]
    %v3775 = vld [vmem:[%s0 + $0x1510] sm:$0xf]
    %v3776 = vld [vmem:[%s0 + $0x1514] sm:$0xf]
    %v3777 = vld [vmem:[%s0 + $0x1518] sm:$0xf]
    %v3778 = vld [vmem:[%s0 + $0x151c] sm:$0xf]
    %v3779 = vld [vmem:[%s0 + $0x1520] sm:$0xf]
    %v3780 = vld [vmem:[%s0 + $0x1524] sm:$0xf]
    %v3781 = vld [vmem:[%s0 + $0x1528] sm:$0xf]
    %v3782 = vld [vmem:[%s0 + $0x152c] sm:$0xf]
    %v3783 = vld [vmem:[%s0 + $0x1530] sm:$0xf]
    %v3784 = vld [vmem:[%s0 + $0x1534] sm:$0xf]
    %v3785 = vld [vmem:[%s0 + $0x1538] sm:$0xf]
    %v3786 = vld [vmem:[%s0 + $0x153c] sm:$0xf]
    %v3787 = vld [vmem:[%s0 + $0x1540] sm:$0xf]
    %v3788 = vld [vmem:[%s0 + $0x1544] sm:$0xf]
    %v3789 = vld [vmem:[%s0 + $0x1548] sm:$0xf]
    %v3790 = vld [vmem:[%s0 + $0x154c] sm:$0xf]
    %v3791 = vld [vmem:[%s0 + $0x1550] sm:$0xf]
    %v3792 = vld [vmem:[%s0 + $0x1554] sm:$0xf]
    %v3793 = vld [vmem:[%s0 + $0x1558] sm:$0xf]
    %v3794 = vld [vmem:[%s0 + $0x155c] sm:$0xf]
    %v3795 = vld [vmem:[%s0 + $0x1560] sm:$0xf]
    %v3796 = vld [vmem:[%s0 + $0x1564] sm:$0xf]
    %v3797 = vld [vmem:[%s0 + $0x1568] sm:$0xf]
    %v3798 = vld [vmem:[%s0 + $0x156c] sm:$0xf]
    %v3799 = vld [vmem:[%s0 + $0x1570] sm:$0xf]
    %v3800 = vld [vmem:[%s0 + $0x1574] sm:$0xf]
    %v3801 = vld [vmem:[%s0 + $0x1578] sm:$0xf]
    %v3802 = vld [vmem:[%s0 + $0x157c] sm:$0xf]
    %v3803 = vld [vmem:[%s0 + $0x1580] sm:$0xf]
    %v3804 = vld [vmem:[%s0 + $0x1584] sm:$0xf]
    %v3805 = vld [vmem:[%s0 + $0x1588] sm:$0xf]
    %v3806 = vld [vmem:[%s0 + $0x158c] sm:$0xf]
    %v3807 = vld [vmem:[%s0 + $0x1590] sm:$0xf]
    %v3808 = vld [vmem:[%s0 + $0x1594] sm:$0xf]
    %v3809 = vld [vmem:[%s0 + $0x1598] sm:$0xf]
    %v3810 = vld [vmem:[%s0 + $0x159c] sm:$0xf]
    %v3811 = vld [vmem:[%s0 + $0x15a0] sm:$0xf]
    %v3812 = vld [vmem:[%s0 + $0x15a4] sm:$0xf]
    %v3813 = vld [vmem:[%s0 + $0x15a8] sm:$0xf]
    %v3814 = vld [vmem:[%s0 + $0x15ac] sm:$0xf]
    %v3815 = vld [vmem:[%s0 + $0x15b0] sm:$0xf]
    %v3816 = vld [vmem:[%s0 + $0x15b4] sm:$0xf]
    %v3817 = vld [vmem:[%s0 + $0x15b8] sm:$0xf]
    %v3818 = vld [vmem:[%s0 + $0x15bc] sm:$0xf]
    %v3819 = vld [vmem:[%s0 + $0x15c0] sm:$0xf]
    %v3820 = vld [vmem:[%s0 + $0x15c4] sm:$0xf]
    %v3821 = vld [vmem:[%s0 + $0x15c8] sm:$0xf]
    %v3822 = vld [vmem:[%s0 + $0x15cc] sm:$0xf]
    %v3823 = vld [vmem:[%s0 + $0x15d0] sm:$0xf]
    %v3824 = vld [vmem:[%s0 + $0x15d4] sm:$0xf]
    %v3825 = vld [vmem:[%s0 + $0x15d8] sm:$0xf]
    %v3826 = vld [vmem:[%s0 + $0x15dc] sm:$0xf]
    %v3827 = vld [vmem:[%s0 + $0x15e0] sm:$0xf]
    %v3828 = vld [vmem:[%s0 + $0x15e4] sm:$0xf]
    %v3829 = vld [vmem:[%s0 + $0x15e8] sm:$0xf]
    %v3830 = vld [vmem:[%s0 + $0x15ec] sm:$0xf]
    %v3831 = vld [vmem:[%s0 + $0x15f0] sm:$0xf]
    %v3832 = vld [vmem:[%s0 + $0x15f4] sm:$0xf]
    %v3833 = vld [vmem:[%s0 + $0x15f8] sm:$0xf]
    %v3834 = vld [vmem:[%s0 + $0x15fc] sm:$0xf]
    %v3835 = vld [vmem:[%s0 + $0x1600] sm:$0xf]
    %v3836 = vld [vmem:[%s0 + $0x1604] sm:$0xf]
    %v3837 = vld [vmem:[%s0 + $0x1608] sm:$0xf]
    %v3838 = vld [vmem:[%s0 + $0x160c] sm:$0xf]
    %v3839 = vld [vmem:[%s0 + $0x1610] sm:$0xf]
    %v3840 = vld [vmem:[%s0 + $0x1614] sm:$0xf]
    %v3841 = vld [vmem:[%s0 + $0x1618] sm:$0xf]
    %v3842 = vld [vmem:[%s0 + $0x161c] sm:$0xf]
    %v3843 = vld [vmem:[%s0 + $0x1620] sm:$0xf]
    %v3844 = vld [vmem:[%s0 + $0x1624] sm:$0xf]
    %v3845 = vld [vmem:[%s0 + $0x1628] sm:$0xf]
    %v3846 = vld [vmem:[%s0 + $0x162c] sm:$0xf]
    %v3847 = vld [vmem:[%s0 + $0x1630] sm:$0xf]
    %v3848 = vld [vmem:[%s0 + $0x1634] sm:$0xf]
    %v3849 = vld [vmem:[%s0 + $0x1638] sm:$0xf]
    %v3850 = vld [vmem:[%s0 + $0x163c] sm:$0xf]
    %v3851 = vld [vmem:[%s0 + $0x1640] sm:$0xf]
    %v3852 = vld [vmem:[%s0 + $0x1644] sm:$0xf]
    %v3853 = vld [vmem:[%s0 + $0x1648] sm:$0xf]
    %v3854 = vld [vmem:[%s0 + $0x164c] sm:$0xf]
    %v3855 = vld [vmem:[%s0 + $0x1650] sm:$0xf]
    %v3856 = vld [vmem:[%s0 + $0x1654] sm:$0xf]
    %v3857 = vld [vmem:[%s0 + $0x1658] sm:$0xf]
    %v3858 = vld [vmem:[%s0 + $0x165c] sm:$0xf]
    %v3859 = vld [vmem:[%s0 + $0x1660] sm:$0xf]
    %v3860 = vld [vmem:[%s0 + $0x1664] sm:$0xf]
    %v3861 = vld [vmem:[%s0 + $0x1668] sm:$0xf]
    %v3862 = vld [vmem:[%s0 + $0x166c] sm:$0xf]
    %v3863 = vld [vmem:[%s0 + $0x1670] sm:$0xf]
    %v3864 = vld [vmem:[%s0 + $0x1674] sm:$0xf]
    %v3865 = vld [vmem:[%s0 + $0x1678] sm:$0xf]
    %v3866 = vld [vmem:[%s0 + $0x167c] sm:$0xf]
    %v3867 = vld [vmem:[%s0 + $0x1680] sm:$0xf]
    %v3868 = vld [vmem:[%s0 + $0x1684] sm:$0xf]
    %v3869 = vld [vmem:[%s0 + $0x1688] sm:$0xf]
    %v3870 = vld [vmem:[%s0 + $0x168c] sm:$0xf]
    %v3871 = vld [vmem:[%s0 + $0x1690] sm:$0xf]
    %v3872 = vld [vmem:[%s0 + $0x1694] sm:$0xf]
    %v3873 = vld [vmem:[%s0 + $0x1698] sm:$0xf]
    %v3874 = vld [vmem:[%s0 + $0x169c] sm:$0xf]
    %v3875 = vld [vmem:[%s0 + $0x16a0] sm:$0xf]
    %v3876 = vld [vmem:[%s0 + $0x16a4] sm:$0xf]
    %v3877 = vld [vmem:[%s0 + $0x16a8] sm:$0xf]
    %v3878 = vld [vmem:[%s0 + $0x16ac] sm:$0xf]
    %v3879 = vld [vmem:[%s0 + $0x16b0] sm:$0xf]
    %v3880 = vld [vmem:[%s0 + $0x16b4] sm:$0xf]
    %v3881 = vld [vmem:[%s0 + $0x16b8] sm:$0xf]
    %v3882 = vld [vmem:[%s0 + $0x16bc] sm:$0xf]
    %v3883 = vld [vmem:[%s0 + $0x16c0] sm:$0xf]
    %v3884 = vld [vmem:[%s0 + $0x16c4] sm:$0xf]
    %v3885 = vld [vmem:[%s0 + $0x16c8] sm:$0xf]
    %v3886 = vld [vmem:[%s0 + $0x16cc] sm:$0xf]
    %v3887 = vld [vmem:[%s0 + $0x16d0] sm:$0xf]
    %v3888 = vld [vmem:[%s0 + $0x16d4] sm:$0xf]
    %v3889 = vld [vmem:[%s0 + $0x16d8] sm:$0xf]
    %v3890 = vld [vmem:[%s0 + $0x16dc] sm:$0xf]
    %v3891 = vld [vmem:[%s0 + $0x16e0] sm:$0xf]
    %v3892 = vld [vmem:[%s0 + $0x16e4] sm:$0xf]
    %v3893 = vld [vmem:[%s0 + $0x16e8] sm:$0xf]
    %v3894 = vld [vmem:[%s0 + $0x16ec] sm:$0xf]
    %v3895 = vld [vmem:[%s0 + $0x16f0] sm:$0xf]
    %v3896 = vld [vmem:[%s0 + $0x16f4] sm:$0xf]
    %v3897 = vld [vmem:[%s0 + $0x16f8] sm:$0xf]
    %v3898 = vld [vmem:[%s0 + $0x16fc] sm:$0xf]
    %v3899 = vld [vmem:[%s0 + $0x1700] sm:$0xf]
    %v3900 = vld [vmem:[%s0 + $0x1704] sm:$0xf]
    %v3901 = vld [vmem:[%s0 + $0x1708] sm:$0xf]
    %v3902 = vld [vmem:[%s0 + $0x170c] sm:$0xf]
    %v3903 = vld [vmem:[%s0 + $0x1710] sm:$0xf]
    %v3904 = vld [vmem:[%s0 + $0x1714] sm:$0xf]
    %v3905 = vld [vmem:[%s0 + $0x1718] sm:$0xf]
    %v3906 = vld [vmem:[%s0 + $0x171c] sm:$0xf]
    %v3907 = vld [vmem:[%s0 + $0x1720] sm:$0xf]
    %v3908 = vld [vmem:[%s0 + $0x1724] sm:$0xf]
    %v3909 = vld [vmem:[%s0 + $0x1728] sm:$0xf]
    %v3910 = vld [vmem:[%s0 + $0x172c] sm:$0xf]
    %v3911 = vld [vmem:[%s0 + $0x1730] sm:$0xf]
    %v3912 = vld [vmem:[%s0 + $0x1734] sm:$0xf]
    %v3913 = vld [vmem:[%s0 + $0x1738] sm:$0xf]
    %v3914 = vld [vmem:[%s0 + $0x173c] sm:$0xf]
    %v3915 = vld [vmem:[%s0 + $0x1740] sm:$0xf]
    %v3916 = vld [vmem:[%s0 + $0x1744] sm:$0xf]
    %v3917 = vld [vmem:[%s0 + $0x1748] sm:$0xf]
    %v3918 = vld [vmem:[%s0 + $0x174c] sm:$0xf]
    %v3919 = vld [vmem:[%s0 + $0x1750] sm:$0xf]
    %v3920 = vld [vmem:[%s0 + $0x1754] sm:$0xf]
    %v3921 = vld [vmem:[%s0 + $0x1758] sm:$0xf]
    %v3922 = vld [vmem:[%s0 + $0x175c] sm:$0xf]
    %v3923 = vld [vmem:[%s0 + $0x1760] sm:$0xf]
    %v3924 = vld [vmem:[%s0 + $0x1764] sm:$0xf]
    %v3925 = vld [vmem:[%s0 + $0x1768] sm:$0xf]
    %v3926 = vld [vmem:[%s0 + $0x176c] sm:$0xf]
    %v3927 = vld [vmem:[%s0 + $0x1770] sm:$0xf]
    %v3928 = vld [vmem:[%s0 + $0x1774] sm:$0xf]
    %v3929 = vld [vmem:[%s0 + $0x1778] sm:$0xf]
    %v3930 = vld [vmem:[%s0 + $0x177c] sm:$0xf]
    %v3931 = vld [vmem:[%s0 + $0x1780] sm:$0xf]
    %v3932 = vld [vmem:[%s0 + $0x1784] sm:$0xf]
    %v3933 = vld [vmem:[%s0 + $0x1788] sm:$0xf]
    %v3934 = vld [vmem:[%s0 + $0x178c] sm:$0xf]
    %v3935 = vld [vmem:[%s0 + $0x1790] sm:$0xf]
    %v3936 = vld [vmem:[%s0 + $0x1794] sm:$0xf]
    %v3937 = vld [vmem:[%s0 + $0x1798] sm:$0xf]
    %v3938 = vld [vmem:[%s0 + $0x179c] sm:$0xf]
    %v3939 = vld [vmem:[%s0 + $0x17a0] sm:$0xf]
    %v3940 = vld [vmem:[%s0 + $0x17a4] sm:$0xf]
    %v3941 = vld [vmem:[%s0 + $0x17a8] sm:$0xf]
    %v3942 = vld [vmem:[%s0 + $0x17ac] sm:$0xf]
    %v3943 = vld [vmem:[%s0 + $0x17b0] sm:$0xf]
    %v3944 = vld [vmem:[%s0 + $0x17b4] sm:$0xf]
    %v3945 = vld [vmem:[%s0 + $0x17b8] sm:$0xf]
    %v3946 = vld [vmem:[%s0 + $0x17bc] sm:$0xf]
    %v3947 = vld [vmem:[%s0 + $0x17c0] sm:$0xf]
    %v3948 = vld [vmem:[%s0 + $0x17c4] sm:$0xf]
    %v3949 = vld [vmem:[%s0 + $0x17c8] sm:$0xf]
    %v3950 = vld [vmem:[%s0 + $0x17cc] sm:$0xf]
    %v3951 = vld [vmem:[%s0 + $0x17d0] sm:$0xf]
    %v3952 = vld [vmem:[%s0 + $0x17d4] sm:$0xf]
    %v3953 = vld [vmem:[%s0 + $0x17d8] sm:$0xf]
    %v3954 = vld [vmem:[%s0 + $0x17dc] sm:$0xf]
    %v3955 = vld [vmem:[%s0 + $0x17e0] sm:$0xf]
    %v3956 = vld [vmem:[%s0 + $0x17e4] sm:$0xf]
    %v3957 = vld [vmem:[%s0 + $0x17e8] sm:$0xf]
    %v3958 = vld [vmem:[%s0 + $0x17ec] sm:$0xf]
    %v3959 = vld [vmem:[%s0 + $0x17f0] sm:$0xf]
    %v3960 = vld [vmem:[%s0 + $0x17f4] sm:$0xf]
    %v3961 = vld [vmem:[%s0 + $0x17f8] sm:$0xf]
    %v3962 = vld [vmem:[%s0 + $0x17fc] sm:$0xf]
    %v3963 = vld [vmem:[%s0 + $0x1800] sm:$0xf]
    %v3964 = vld [vmem:[%s0 + $0x1804] sm:$0xf]
    %v3965 = vld [vmem:[%s0 + $0x1808] sm:$0xf]
    %v3966 = vld [vmem:[%s0 + $0x180c] sm:$0xf]
    %v3967 = vld [vmem:[%s0 + $0x1810] sm:$0xf]
    %v3968 = vld [vmem:[%s0 + $0x1814] sm:$0xf]
    %v3969 = vld [vmem:[%s0 + $0x1818] sm:$0xf]
    %v3970 = vld [vmem:[%s0 + $0x181c] sm:$0xf]
    %v3971 = vld [vmem:[%s0 + $0x1820] sm:$0xf]
    %v3972 = vld [vmem:[%s0 + $0x1824] sm:$0xf]
    %v3973 = vld [vmem:[%s0 + $0x1828] sm:$0xf]
    %v3974 = vld [vmem:[%s0 + $0x182c] sm:$0xf]
    %v3975 = vld [vmem:[%s0 + $0x1830] sm:$0xf]
    %v3976 = vld [vmem:[%s0 + $0x1834] sm:$0xf]
    %v3977 = vld [vmem:[%s0 + $0x1838] sm:$0xf]
    %v3978 = vld [vmem:[%s0 + $0x183c] sm:$0xf]
    %v3979 = vld [vmem:[%s0 + $0x1840] sm:$0xf]
    %v3980 = vld [vmem:[%s0 + $0x1844] sm:$0xf]
    %v3981 = vld [vmem:[%s0 + $0x1848] sm:$0xf]
    %v3982 = vld [vmem:[%s0 + $0x184c] sm:$0xf]
    %v3983 = vld [vmem:[%s0 + $0x1850] sm:$0xf]
    %v3984 = vld [vmem:[%s0 + $0x1854] sm:$0xf]
    %v3985 = vld [vmem:[%s0 + $0x1858] sm:$0xf]
    %v3986 = vld [vmem:[%s0 + $0x185c] sm:$0xf]
    %v3987 = vld [vmem:[%s0 + $0x1860] sm:$0xf]
    %v3988 = vld [vmem:[%s0 + $0x1864] sm:$0xf]
    %v3989 = vld [vmem:[%s0 + $0x1868] sm:$0xf]
    %v3990 = vld [vmem:[%s0 + $0x186c] sm:$0xf]
    %v3991 = vld [vmem:[%s0 + $0x1870] sm:$0xf]
    %v3992 = vld [vmem:[%s0 + $0x1874] sm:$0xf]
    %v3993 = vld [vmem:[%s0 + $0x1878] sm:$0xf]
    %v3994 = vld [vmem:[%s0 + $0x187c] sm:$0xf]
    %v3995 = vld [vmem:[%s0 + $0x1880] sm:$0xf]
    %v3996 = vld [vmem:[%s0 + $0x1884] sm:$0xf]
    %v3997 = vld [vmem:[%s0 + $0x1888] sm:$0xf]
    %v3998 = vld [vmem:[%s0 + $0x188c] sm:$0xf]
    %v3999 = vld [vmem:[%s0 + $0x1890] sm:$0xf]
    %v4000 = vld [vmem:[%s0 + $0x1894] sm:$0xf]
    %v4001 = vld [vmem:[%s0 + $0x1898] sm:$0xf]
    %v4002 = vld [vmem:[%s0 + $0x189c] sm:$0xf]
    %v4003 = vld [vmem:[%s0 + $0x18a0] sm:$0xf]
    %v4004 = vld [vmem:[%s0 + $0x18a4] sm:$0xf]
    %v4005 = vld [vmem:[%s0 + $0x18a8] sm:$0xf]
    %v4006 = vld [vmem:[%s0 + $0x18ac] sm:$0xf]
    %v4007 = vld [vmem:[%s0 + $0x18b0] sm:$0xf]
    %v4008 = vld [vmem:[%s0 + $0x18b4] sm:$0xf]
    %v4009 = vld [vmem:[%s0 + $0x18b8] sm:$0xf]
    %v4010 = vld [vmem:[%s0 + $0x18bc] sm:$0xf]
    %v4011 = vld [vmem:[%s0 + $0x18c0] sm:$0xf]
    %v4012 = vld [vmem:[%s0 + $0x18c4] sm:$0xf]
    %v4013 = vld [vmem:[%s0 + $0x18c8] sm:$0xf]
    %v4014 = vld [vmem:[%s0 + $0x18cc] sm:$0xf]
    %v4015 = vld [vmem:[%s0 + $0x18d0] sm:$0xf]
    %v4016 = vld [vmem:[%s0 + $0x18d4] sm:$0xf]
    %v4017 = vld [vmem:[%s0 + $0x18d8] sm:$0xf]
    %v4018 = vld [vmem:[%s0 + $0x18dc] sm:$0xf]
    %v4019 = vld [vmem:[%s0 + $0x18e0] sm:$0xf]
    %v4020 = vld [vmem:[%s0 + $0x18e4] sm:$0xf]
    %v4021 = vld [vmem:[%s0 + $0x18e8] sm:$0xf]
    %v4022 = vld [vmem:[%s0 + $0x18ec] sm:$0xf]
    %v4023 = vld [vmem:[%s0 + $0x18f0] sm:$0xf]
    %v4024 = vld [vmem:[%s0 + $0x18f4] sm:$0xf]
    %v4025 = vld [vmem:[%s0 + $0x18f8] sm:$0xf]
    %v4026 = vld [vmem:[%s0 + $0x18fc] sm:$0xf]
    %v4027 = vld [vmem:[%s0 + $0x1900] sm:$0xf]
    %v4028 = vld [vmem:[%s0 + $0x1904] sm:$0xf]
    %v4029 = vld [vmem:[%s0 + $0x1908] sm:$0xf]
    %v4030 = vld [vmem:[%s0 + $0x190c] sm:$0xf]
    %v4031 = vld [vmem:[%s0 + $0x1910] sm:$0xf]
    %v4032 = vld [vmem:[%s0 + $0x1914] sm:$0xf]
    %v4033 = vld [vmem:[%s0 + $0x1918] sm:$0xf]
    %v4034 = vld [vmem:[%s0 + $0x191c] sm:$0xf]
    %v4035 = vld [vmem:[%s0 + $0x1920] sm:$0xf]
    %v4036 = vld [vmem:[%s0 + $0x1924] sm:$0xf]
    %v4037 = vld [vmem:[%s0 + $0x1928] sm:$0xf]
    %v4038 = vld [vmem:[%s0 + $0x192c] sm:$0xf]
    %v4039 = vld [vmem:[%s0 + $0x1930] sm:$0xf]
    %v4040 = vld [vmem:[%s0 + $0x1934] sm:$0xf]
    %v4041 = vld [vmem:[%s0 + $0x1938] sm:$0xf]
    %v4042 = vld [vmem:[%s0 + $0x193c] sm:$0xf]
    %v4043 = vld [vmem:[%s0 + $0x1940] sm:$0xf]
    %v4044 = vld [vmem:[%s0 + $0x1944] sm:$0xf]
    %v4045 = vld [vmem:[%s0 + $0x1948] sm:$0xf]
    %v4046 = vld [vmem:[%s0 + $0x194c] sm:$0xf]
    %v4047 = vld [vmem:[%s0 + $0x1950] sm:$0xf]
    %v4048 = vld [vmem:[%s0 + $0x1954] sm:$0xf]
    %v4049 = vld [vmem:[%s0 + $0x1958] sm:$0xf]
    %v4050 = vld [vmem:[%s0 + $0x195c] sm:$0xf]
    %v4051 = vld [vmem:[%s0 + $0x1960] sm:$0xf]
    %v4052 = vld [vmem:[%s0 + $0x1964] sm:$0xf]
    %v4053 = vld [vmem:[%s0 + $0x1968] sm:$0xf]
    %v4054 = vld [vmem:[%s0 + $0x196c] sm:$0xf]
    %v4055 = vld [vmem:[%s0 + $0x1970] sm:$0xf]
    %v4056 = vld [vmem:[%s0 + $0x1974] sm:$0xf]
    %v4057 = vld [vmem:[%s0 + $0x1978] sm:$0xf]
    %v4058 = vld [vmem:[%s0 + $0x197c] sm:$0xf]
    %v4059 = vld [vmem:[%s0 + $0x1980] sm:$0xf]
    %v4060 = vld [vmem:[%s0 + $0x1984] sm:$0xf]
    %v4061 = vld [vmem:[%s0 + $0x1988] sm:$0xf]
    %v4062 = vld [vmem:[%s0 + $0x198c] sm:$0xf]
    %v4063 = vld [vmem:[%s0 + $0x1990] sm:$0xf]
    %v4064 = vld [vmem:[%s0 + $0x1994] sm:$0xf]
    %v4065 = vld [vmem:[%s0 + $0x1998] sm:$0xf]
    %v4066 = vld [vmem:[%s0 + $0x199c] sm:$0xf]
    %v4067 = vld [vmem:[%s0 + $0x19a0] sm:$0xf]
    %v4068 = vld [vmem:[%s0 + $0x19a4] sm:$0xf]
    %v4069 = vld [vmem:[%s0 + $0x19a8] sm:$0xf]
    %v4070 = vld [vmem:[%s0 + $0x19ac] sm:$0xf]
    %v4071 = vld [vmem:[%s0 + $0x19b0] sm:$0xf]
    %v4072 = vld [vmem:[%s0 + $0x19b4] sm:$0xf]
    %v4073 = vld [vmem:[%s0 + $0x19b8] sm:$0xf]
    %v4074 = vld [vmem:[%s0 + $0x19bc] sm:$0xf]
    %v4075 = vld [vmem:[%s0 + $0x19c0] sm:$0xf]
    %v4076 = vld [vmem:[%s0 + $0x19c4] sm:$0xf]
    %v4077 = vld [vmem:[%s0 + $0x19c8] sm:$0xf]
    %v4078 = vld [vmem:[%s0 + $0x19cc] sm:$0xf]
    %v4079 = vld [vmem:[%s0 + $0x19d0] sm:$0xf]
    %v4080 = vld [vmem:[%s0 + $0x19d4] sm:$0xf]
    %v4081 = vld [vmem:[%s0 + $0x19d8] sm:$0xf]
    %v4082 = vld [vmem:[%s0 + $0x19dc] sm:$0xf]
    %v4083 = vld [vmem:[%s0 + $0x19e0] sm:$0xf]
    %v4084 = vld [vmem:[%s0 + $0x19e4] sm:$0xf]
    %v4085 = vld [vmem:[%s0 + $0x19e8] sm:$0xf]
    %v4086 = vld [vmem:[%s0 + $0x19ec] sm:$0xf]
    %v4087 = vld [vmem:[%s0 + $0x19f0] sm:$0xf]
    %v4088 = vld [vmem:[%s0 + $0x19f4] sm:$0xf]
    %v4089 = vld [vmem:[%s0 + $0x19f8] sm:$0xf]
    %v4090 = vld [vmem:[%s0 + $0x19fc] sm:$0xf]
    %v4091 = vld [vmem:[%s0 + $0x1a00] sm:$0xf]
    %v4092 = vld [vmem:[%s0 + $0x1a04] sm:$0xf]
    %v4093 = vld [vmem:[%s0 + $0x1a08] sm:$0xf]
    %v4094 = vld [vmem:[%s0 + $0x1a0c] sm:$0xf]
    %v4095 = vld [vmem:[%s0 + $0x1a10] sm:$0xf]
    %v4096 = vld [vmem:[%s0 + $0x1a14] sm:$0xf]
    %v4097 = vld [vmem:[%s0 + $0x1a18] sm:$0xf]
    %v4098 = vld [vmem:[%s0 + $0x1a1c] sm:$0xf]
    %v4099 = vld [vmem:[%s0 + $0x1a20] sm:$0xf]
    %v4100 = vld [vmem:[%s0 + $0x1a24] sm:$0xf]
    %v4101 = vld [vmem:[%s0 + $0x1a28] sm:$0xf]
    %v4102 = vld [vmem:[%s0 + $0x1a2c] sm:$0xf]
    %v4103 = vld [vmem:[%s0 + $0x1a30] sm:$0xf]
    %v4104 = vld [vmem:[%s0 + $0x1a34] sm:$0xf]
    %v4105 = vld [vmem:[%s0 + $0x1a38] sm:$0xf]
    %v4106 = vld [vmem:[%s0 + $0x1a3c] sm:$0xf]
    %v4107 = vld [vmem:[%s0 + $0x1a40] sm:$0xf]
    %v4108 = vld [vmem:[%s0 + $0x1a44] sm:$0xf]
    %v4109 = vld [vmem:[%s0 + $0x1a48] sm:$0xf]
    %v4110 = vld [vmem:[%s0 + $0x1a4c] sm:$0xf]
    %v4111 = vld [vmem:[%s0 + $0x1a50] sm:$0xf]
    %v4112 = vld [vmem:[%s0 + $0x1a54] sm:$0xf]
    %v4113 = vld [vmem:[%s0 + $0x1a58] sm:$0xf]
    %v4114 = vld [vmem:[%s0 + $0x1a5c] sm:$0xf]
    %v4115 = vld [vmem:[%s0 + $0x1a60] sm:$0xf]
    %v4116 = vld [vmem:[%s0 + $0x1a64] sm:$0xf]
    %v4117 = vld [vmem:[%s0 + $0x1a68] sm:$0xf]
    %v4118 = vld [vmem:[%s0 + $0x1a6c] sm:$0xf]
    %v4119 = vld [vmem:[%s0 + $0x1a70] sm:$0xf]
    %v4120 = vld [vmem:[%s0 + $0x1a74] sm:$0xf]
    %v4121 = vld [vmem:[%s0 + $0x1a78] sm:$0xf]
    %v4122 = vld [vmem:[%s0 + $0x1a7c] sm:$0xf]
    %v4123 = vld [vmem:[%s0 + $0x1a80] sm:$0xf]
    %v4124 = vld [vmem:[%s0 + $0x1a84] sm:$0xf]
    %v4125 = vld [vmem:[%s0 + $0x1a88] sm:$0xf]
    %v4126 = vld [vmem:[%s0 + $0x1a8c] sm:$0xf]
    %v4127 = vld [vmem:[%s0 + $0x1a90] sm:$0xf]
    %v4128 = vld [vmem:[%s0 + $0x1a94] sm:$0xf]
    %v4129 = vld [vmem:[%s0 + $0x1a98] sm:$0xf]
    %v4130 = vld [vmem:[%s0 + $0x1a9c] sm:$0xf]
    %v4131 = vld [vmem:[%s0 + $0x1aa0] sm:$0xf]
    %v4132 = vld [vmem:[%s0 + $0x1aa4] sm:$0xf]
    %v4133 = vld [vmem:[%s0 + $0x1aa8] sm:$0xf]
    %v4134 = vld [vmem:[%s0 + $0x1aac] sm:$0xf]
    %v4135 = vld [vmem:[%s0 + $0x1ab0] sm:$0xf]
    %v4136 = vld [vmem:[%s0 + $0x1ab4] sm:$0xf]
    %v4137 = vld [vmem:[%s0 + $0x1ab8] sm:$0xf]
    %v4138 = vld [vmem:[%s0 + $0x1abc] sm:$0xf]
    %v4139 = vld [vmem:[%s0 + $0x1ac0] sm:$0xf]
    %v4140 = vld [vmem:[%s0 + $0x1ac4] sm:$0xf]
    %v4141 = vld [vmem:[%s0 + $0x1ac8] sm:$0xf]
    %v4142 = vld [vmem:[%s0 + $0x1acc] sm:$0xf]
    %v4143 = vld [vmem:[%s0 + $0x1ad0] sm:$0xf]
    %v4144 = vld [vmem:[%s0 + $0x1ad4] sm:$0xf]
    %v4145 = vld [vmem:[%s0 + $0x1ad8] sm:$0xf]
    %v4146 = vld [vmem:[%s0 + $0x1adc] sm:$0xf]
    %v4147 = vld [vmem:[%s0 + $0x1ae0] sm:$0xf]
    %v4148 = vld [vmem:[%s0 + $0x1ae4] sm:$0xf]
    %v4149 = vld [vmem:[%s0 + $0x1ae8] sm:$0xf]
    %v4150 = vld [vmem:[%s0 + $0x1aec] sm:$0xf]
    %v4151 = vld [vmem:[%s0 + $0x1af0] sm:$0xf]
    %v4152 = vld [vmem:[%s0 + $0x1af4] sm:$0xf]
    %v4153 = vld [vmem:[%s0 + $0x1af8] sm:$0xf]
    %v4154 = vld [vmem:[%s0 + $0x1afc] sm:$0xf]
    %v4155 = vld [vmem:[%s0 + $0x1b00] sm:$0xf]
    %v4156 = vld [vmem:[%s0 + $0x1b04] sm:$0xf]
    %v4157 = vld [vmem:[%s0 + $0x1b08] sm:$0xf]
    %v4158 = vld [vmem:[%s0 + $0x1b0c] sm:$0xf]
    %v4159 = vld [vmem:[%s0 + $0x1b10] sm:$0xf]
    %v4160 = vld [vmem:[%s0 + $0x1b14] sm:$0xf]
    %v4161 = vld [vmem:[%s0 + $0x1b18] sm:$0xf]
    %v4162 = vld [vmem:[%s0 + $0x1b1c] sm:$0xf]
    %v4163 = vld [vmem:[%s0 + $0x1b20] sm:$0xf]
    %v4164 = vld [vmem:[%s0 + $0x1b24] sm:$0xf]
    %v4165 = vld [vmem:[%s0 + $0x1b28] sm:$0xf]
    %v4166 = vld [vmem:[%s0 + $0x1b2c] sm:$0xf]
    %v4167 = vld [vmem:[%s0 + $0x1b30] sm:$0xf]
    %v4168 = vld [vmem:[%s0 + $0x1b34] sm:$0xf]
    %v4169 = vld [vmem:[%s0 + $0x1b38] sm:$0xf]
    %v4170 = vld [vmem:[%s0 + $0x1b3c] sm:$0xf]
    %v4171 = vld [vmem:[%s0 + $0x1b40] sm:$0xf]
    %v4172 = vld [vmem:[%s0 + $0x1b44] sm:$0xf]
    %v4173 = vld [vmem:[%s0 + $0x1b48] sm:$0xf]
    %v4174 = vld [vmem:[%s0 + $0x1b4c] sm:$0xf]
    %v4175 = vld [vmem:[%s0 + $0x1b50] sm:$0xf]
    %v4176 = vld [vmem:[%s0 + $0x1b54] sm:$0xf]
    %v4177 = vld [vmem:[%s0 + $0x1b58] sm:$0xf]
    %v4178 = vld [vmem:[%s0 + $0x1b5c] sm:$0xf]
    %v4179 = vld [vmem:[%s0 + $0x1b60] sm:$0xf]
    %v4180 = vld [vmem:[%s0 + $0x1b64] sm:$0xf]
    %v4181 = vld [vmem:[%s0 + $0x1b68] sm:$0xf]
    %v4182 = vld [vmem:[%s0 + $0x1b6c] sm:$0xf]
    %v4183 = vld [vmem:[%s0 + $0x1b70] sm:$0xf]
    %v4184 = vld [vmem:[%s0 + $0x1b74] sm:$0xf]
    %v4185 = vld [vmem:[%s0 + $0x1b78] sm:$0xf]
    %v4186 = vld [vmem:[%s0 + $0x1b7c] sm:$0xf]
    %v4187 = vld [vmem:[%s0 + $0x1b80] sm:$0xf]
    %v4188 = vld [vmem:[%s0 + $0x1b84] sm:$0xf]
    %v4189 = vld [vmem:[%s0 + $0x1b88] sm:$0xf]
    %v4190 = vld [vmem:[%s0 + $0x1b8c] sm:$0xf]
    %v4191 = vld [vmem:[%s0 + $0x1b90] sm:$0xf]
    %v4192 = vld [vmem:[%s0 + $0x1b94] sm:$0xf]
    %v4193 = vld [vmem:[%s0 + $0x1b98] sm:$0xf]
    %v4194 = vld [vmem:[%s0 + $0x1b9c] sm:$0xf]
    %v4195 = vld [vmem:[%s0 + $0x1ba0] sm:$0xf]
    %v4196 = vld [vmem:[%s0 + $0x1ba4] sm:$0xf]
    %v4197 = vld [vmem:[%s0 + $0x1ba8] sm:$0xf]
    %v4198 = vld [vmem:[%s0 + $0x1bac] sm:$0xf]
    %v4199 = vld [vmem:[%s0 + $0x1bb0] sm:$0xf]
    %v4200 = vld [vmem:[%s0 + $0x1bb4] sm:$0xf]
    %v4201 = vld [vmem:[%s0 + $0x1bb8] sm:$0xf]
    %v4202 = vld [vmem:[%s0 + $0x1bbc] sm:$0xf]
    %v4203 = vld [vmem:[%s0 + $0x1bc0] sm:$0xf]
    %v4204 = vld [vmem:[%s0 + $0x1bc4] sm:$0xf]
    %v4205 = vld [vmem:[%s0 + $0x1bc8] sm:$0xf]
    %v4206 = vld [vmem:[%s0 + $0x1bcc] sm:$0xf]
    %v4207 = vld [vmem:[%s0 + $0x1bd0] sm:$0xf]
    %v4208 = vld [vmem:[%s0 + $0x1bd4] sm:$0xf]
    %v4209 = vld [vmem:[%s0 + $0x1bd8] sm:$0xf]
    %v4210 = vld [vmem:[%s0 + $0x1bdc] sm:$0xf]
    %v4211 = vld [vmem:[%s0 + $0x1be0] sm:$0xf]
    %v4212 = vld [vmem:[%s0 + $0x1be4] sm:$0xf]
    %v4213 = vld [vmem:[%s0 + $0x1be8] sm:$0xf]
    %v4214 = vld [vmem:[%s0 + $0x1bec] sm:$0xf]
    %v4215 = vld [vmem:[%s0 + $0x1bf0] sm:$0xf]
    %v4216 = vld [vmem:[%s0 + $0x1bf4] sm:$0xf]
    %v4217 = vld [vmem:[%s0 + $0x1bf8] sm:$0xf]
    %v4218 = vld [vmem:[%s0 + $0x1bfc] sm:$0xf]
    %v4219 = vld [vmem:[%s0 + $0x1c00] sm:$0xf]
    %v4220 = vld [vmem:[%s0 + $0x1c04] sm:$0xf]
    %v4221 = vld [vmem:[%s0 + $0x1c08] sm:$0xf]
    %v4222 = vld [vmem:[%s0 + $0x1c0c] sm:$0xf]
    %v4223 = vld [vmem:[%s0 + $0x1c10] sm:$0xf]
    %v4224 = vld [vmem:[%s0 + $0x1c14] sm:$0xf]
    %v4225 = vld [vmem:[%s0 + $0x1c18] sm:$0xf]
    %v4226 = vld [vmem:[%s0 + $0x1c1c] sm:$0xf]
    %v4227 = vld [vmem:[%s0 + $0x1c20] sm:$0xf]
    %v4228 = vld [vmem:[%s0 + $0x1c24] sm:$0xf]
    %v4229 = vld [vmem:[%s0 + $0x1c28] sm:$0xf]
    %v4230 = vld [vmem:[%s0 + $0x1c2c] sm:$0xf]
    %v4231 = vld [vmem:[%s0 + $0x1c30] sm:$0xf]
    %v4232 = vld [vmem:[%s0 + $0x1c34] sm:$0xf]
    %v4233 = vld [vmem:[%s0 + $0x1c38] sm:$0xf]
    %v4234 = vld [vmem:[%s0 + $0x1c3c] sm:$0xf]
    %v4250 = vcombine.high %v2412, %v2412
    %v4252 = vunpack.c.l.s4 1966171168
    %v4253 = vunpack.c.0.s8 %v4252
    %v4254 = vlaneseq
    %v4255 = vshrl.u32 %v4254, 7
    %v4256 = vsub.s32 %v4253, %v4255
    %v4257 = vrot.slane %v2412, %v4256
    %v4259 = vunpack.c.l.s4 1966171168
    %v4260 = vunpack.c.0.s8 %v4259
    %v4261 = vlaneseq
    %v4262 = vshrl.u32 %v4261, 7
    %v4263 = vsub.s32 %v4260, %v4262
    %v4264 = vrot.slane %v4250, %v4263
    %v4265 = vcombine.high %v4257, %v4257
    %v4266 = vcombine.high %v4264, %v4264
    %v4268 = vunpack.c.l.s4 1966171168
    %v4269 = vunpack.c.0.s8 %v4268
    %v4270 = vlaneseq
    %v4271 = vshrl.u32 %v4270, 7
    %v4272 = vsub.s32 %v4269, %v4271
    %v4273 = vrot.slane %v4257, %v4272
    %v4275 = vunpack.c.l.s4 1966171168
    %v4276 = vunpack.c.0.s8 %v4275
    %v4277 = vlaneseq
    %v4278 = vshrl.u32 %v4277, 7
    %v4279 = vsub.s32 %v4276, %v4278
    %v4280 = vrot.slane %v4264, %v4279
    %v4282 = vunpack.c.l.s4 1966171168
    %v4283 = vunpack.c.0.s8 %v4282
    %v4284 = vlaneseq
    %v4285 = vshrl.u32 %v4284, 7
    %v4286 = vsub.s32 %v4283, %v4285
    %v4287 = vrot.slane %v4265, %v4286
    %v4289 = vunpack.c.l.s4 1966171168
    %v4290 = vunpack.c.0.s8 %v4289
    %v4291 = vlaneseq
    %v4292 = vshrl.u32 %v4291, 7
    %v4293 = vsub.s32 %v4290, %v4292
    %v4294 = vrot.slane %v4266, %v4293
    %v4295 = vcombine.high %v4273, %v4273
    %v4296 = vcombine.high %v4280, %v4280
    %v4297 = vcombine.high %v4287, %v4287
    %v4298 = vcombine.high %v4294, %v4294
    %v4299 = vcombine.high %v2413, %v2413
    %v4301 = vunpack.c.l.s4 1966171168
    %v4302 = vunpack.c.0.s8 %v4301
    %v4303 = vlaneseq
    %v4304 = vshrl.u32 %v4303, 7
    %v4305 = vsub.s32 %v4302, %v4304
    %v4306 = vrot.slane %v2413, %v4305
    %v4308 = vunpack.c.l.s4 1966171168
    %v4309 = vunpack.c.0.s8 %v4308
    %v4310 = vlaneseq
    %v4311 = vshrl.u32 %v4310, 7
    %v4312 = vsub.s32 %v4309, %v4311
    %v4313 = vrot.slane %v4299, %v4312
    %v4314 = vcombine.high %v4306, %v4306
    %v4315 = vcombine.high %v4313, %v4313
    %v4317 = vunpack.c.l.s4 1966171168
    %v4318 = vunpack.c.0.s8 %v4317
    %v4319 = vlaneseq
    %v4320 = vshrl.u32 %v4319, 7
    %v4321 = vsub.s32 %v4318, %v4320
    %v4322 = vrot.slane %v4306, %v4321
    %v4324 = vunpack.c.l.s4 1966171168
    %v4325 = vunpack.c.0.s8 %v4324
    %v4326 = vlaneseq
    %v4327 = vshrl.u32 %v4326, 7
    %v4328 = vsub.s32 %v4325, %v4327
    %v4329 = vrot.slane %v4313, %v4328
    %v4331 = vunpack.c.l.s4 1966171168
    %v4332 = vunpack.c.0.s8 %v4331
    %v4333 = vlaneseq
    %v4334 = vshrl.u32 %v4333, 7
    %v4335 = vsub.s32 %v4332, %v4334
    %v4336 = vrot.slane %v4314, %v4335
    %v4338 = vunpack.c.l.s4 1966171168
    %v4339 = vunpack.c.0.s8 %v4338
    %v4340 = vlaneseq
    %v4341 = vshrl.u32 %v4340, 7
    %v4342 = vsub.s32 %v4339, %v4341
    %v4343 = vrot.slane %v4315, %v4342
    %v4344 = vcombine.high %v4322, %v4322
    %v4345 = vcombine.high %v4329, %v4329
    %v4346 = vcombine.high %v4336, %v4336
    %v4347 = vcombine.high %v4343, %v4343
    %v4348 = vcombine.high %v2414, %v2414
    %v4350 = vunpack.c.l.s4 1966171168
    %v4351 = vunpack.c.0.s8 %v4350
    %v4352 = vlaneseq
    %v4353 = vshrl.u32 %v4352, 7
    %v4354 = vsub.s32 %v4351, %v4353
    %v4355 = vrot.slane %v2414, %v4354
    %v4357 = vunpack.c.l.s4 1966171168
    %v4358 = vunpack.c.0.s8 %v4357
    %v4359 = vlaneseq
    %v4360 = vshrl.u32 %v4359, 7
    %v4361 = vsub.s32 %v4358, %v4360
    %v4362 = vrot.slane %v4348, %v4361
    %v4363 = vcombine.high %v4355, %v4355
    %v4364 = vcombine.high %v4362, %v4362
    %v4366 = vunpack.c.l.s4 1966171168
    %v4367 = vunpack.c.0.s8 %v4366
    %v4368 = vlaneseq
    %v4369 = vshrl.u32 %v4368, 7
    %v4370 = vsub.s32 %v4367, %v4369
    %v4371 = vrot.slane %v4355, %v4370
    %v4373 = vunpack.c.l.s4 1966171168
    %v4374 = vunpack.c.0.s8 %v4373
    %v4375 = vlaneseq
    %v4376 = vshrl.u32 %v4375, 7
    %v4377 = vsub.s32 %v4374, %v4376
    %v4378 = vrot.slane %v4362, %v4377
    %v4380 = vunpack.c.l.s4 1966171168
    %v4381 = vunpack.c.0.s8 %v4380
    %v4382 = vlaneseq
    %v4383 = vshrl.u32 %v4382, 7
    %v4384 = vsub.s32 %v4381, %v4383
    %v4385 = vrot.slane %v4363, %v4384
    %v4387 = vunpack.c.l.s4 1966171168
    %v4388 = vunpack.c.0.s8 %v4387
    %v4389 = vlaneseq
    %v4390 = vshrl.u32 %v4389, 7
    %v4391 = vsub.s32 %v4388, %v4390
    %v4392 = vrot.slane %v4364, %v4391
    %v4393 = vcombine.high %v4371, %v4371
    %v4394 = vcombine.high %v4378, %v4378
    %v4395 = vcombine.high %v4385, %v4385
    %v4396 = vcombine.high %v4392, %v4392
    %v4397 = vcombine.high %v2415, %v2415
    %v4399 = vunpack.c.l.s4 1966171168
    %v4400 = vunpack.c.0.s8 %v4399
    %v4401 = vlaneseq
    %v4402 = vshrl.u32 %v4401, 7
    %v4403 = vsub.s32 %v4400, %v4402
    %v4404 = vrot.slane %v2415, %v4403
    %v4406 = vunpack.c.l.s4 1966171168
    %v4407 = vunpack.c.0.s8 %v4406
    %v4408 = vlaneseq
    %v4409 = vshrl.u32 %v4408, 7
    %v4410 = vsub.s32 %v4407, %v4409
    %v4411 = vrot.slane %v4397, %v4410
    %v4412 = vcombine.high %v4404, %v4404
    %v4413 = vcombine.high %v4411, %v4411
    %v4415 = vunpack.c.l.s4 1966171168
    %v4416 = vunpack.c.0.s8 %v4415
    %v4417 = vlaneseq
    %v4418 = vshrl.u32 %v4417, 7
    %v4419 = vsub.s32 %v4416, %v4418
    %v4420 = vrot.slane %v4404, %v4419
    %v4422 = vunpack.c.l.s4 1966171168
    %v4423 = vunpack.c.0.s8 %v4422
    %v4424 = vlaneseq
    %v4425 = vshrl.u32 %v4424, 7
    %v4426 = vsub.s32 %v4423, %v4425
    %v4427 = vrot.slane %v4411, %v4426
    %v4429 = vunpack.c.l.s4 1966171168
    %v4430 = vunpack.c.0.s8 %v4429
    %v4431 = vlaneseq
    %v4432 = vshrl.u32 %v4431, 7
    %v4433 = vsub.s32 %v4430, %v4432
    %v4434 = vrot.slane %v4412, %v4433
    %v4436 = vunpack.c.l.s4 1966171168
    %v4437 = vunpack.c.0.s8 %v4436
    %v4438 = vlaneseq
    %v4439 = vshrl.u32 %v4438, 7
    %v4440 = vsub.s32 %v4437, %v4439
    %v4441 = vrot.slane %v4413, %v4440
    %v4442 = vcombine.high %v4420, %v4420
    %v4443 = vcombine.high %v4427, %v4427
    %v4444 = vcombine.high %v4434, %v4434
    %v4445 = vcombine.high %v4441, %v4441
    %v4446 = vcombine.high %v2416, %v2416
    %v4448 = vunpack.c.l.s4 1966171168
    %v4449 = vunpack.c.0.s8 %v4448
    %v4450 = vlaneseq
    %v4451 = vshrl.u32 %v4450, 7
    %v4452 = vsub.s32 %v4449, %v4451
    %v4453 = vrot.slane %v2416, %v4452
    %v4455 = vunpack.c.l.s4 1966171168
    %v4456 = vunpack.c.0.s8 %v4455
    %v4457 = vlaneseq
    %v4458 = vshrl.u32 %v4457, 7
    %v4459 = vsub.s32 %v4456, %v4458
    %v4460 = vrot.slane %v4446, %v4459
    %v4461 = vcombine.high %v4453, %v4453
    %v4462 = vcombine.high %v4460, %v4460
    %v4464 = vunpack.c.l.s4 1966171168
    %v4465 = vunpack.c.0.s8 %v4464
    %v4466 = vlaneseq
    %v4467 = vshrl.u32 %v4466, 7
    %v4468 = vsub.s32 %v4465, %v4467
    %v4469 = vrot.slane %v4453, %v4468
    %v4471 = vunpack.c.l.s4 1966171168
    %v4472 = vunpack.c.0.s8 %v4471
    %v4473 = vlaneseq
    %v4474 = vshrl.u32 %v4473, 7
    %v4475 = vsub.s32 %v4472, %v4474
    %v4476 = vrot.slane %v4460, %v4475
    %v4478 = vunpack.c.l.s4 1966171168
    %v4479 = vunpack.c.0.s8 %v4478
    %v4480 = vlaneseq
    %v4481 = vshrl.u32 %v4480, 7
    %v4482 = vsub.s32 %v4479, %v4481
    %v4483 = vrot.slane %v4461, %v4482
    %v4485 = vunpack.c.l.s4 1966171168
    %v4486 = vunpack.c.0.s8 %v4485
    %v4487 = vlaneseq
    %v4488 = vshrl.u32 %v4487, 7
    %v4489 = vsub.s32 %v4486, %v4488
    %v4490 = vrot.slane %v4462, %v4489
    %v4491 = vcombine.high %v4469, %v4469
    %v4492 = vcombine.high %v4476, %v4476
    %v4493 = vcombine.high %v4483, %v4483
    %v4494 = vcombine.high %v4490, %v4490
    %v4495 = vcombine.high %v2417, %v2417
    %v4497 = vunpack.c.l.s4 1966171168
    %v4498 = vunpack.c.0.s8 %v4497
    %v4499 = vlaneseq
    %v4500 = vshrl.u32 %v4499, 7
    %v4501 = vsub.s32 %v4498, %v4500
    %v4502 = vrot.slane %v2417, %v4501
    %v4504 = vunpack.c.l.s4 1966171168
    %v4505 = vunpack.c.0.s8 %v4504
    %v4506 = vlaneseq
    %v4507 = vshrl.u32 %v4506, 7
    %v4508 = vsub.s32 %v4505, %v4507
    %v4509 = vrot.slane %v4495, %v4508
    %v4510 = vcombine.high %v4502, %v4502
    %v4511 = vcombine.high %v4509, %v4509
    %v4513 = vunpack.c.l.s4 1966171168
    %v4514 = vunpack.c.0.s8 %v4513
    %v4515 = vlaneseq
    %v4516 = vshrl.u32 %v4515, 7
    %v4517 = vsub.s32 %v4514, %v4516
    %v4518 = vrot.slane %v4502, %v4517
    %v4520 = vunpack.c.l.s4 1966171168
    %v4521 = vunpack.c.0.s8 %v4520
    %v4522 = vlaneseq
    %v4523 = vshrl.u32 %v4522, 7
    %v4524 = vsub.s32 %v4521, %v4523
    %v4525 = vrot.slane %v4509, %v4524
    %v4527 = vunpack.c.l.s4 1966171168
    %v4528 = vunpack.c.0.s8 %v4527
    %v4529 = vlaneseq
    %v4530 = vshrl.u32 %v4529, 7
    %v4531 = vsub.s32 %v4528, %v4530
    %v4532 = vrot.slane %v4510, %v4531
    %v4534 = vunpack.c.l.s4 1966171168
    %v4535 = vunpack.c.0.s8 %v4534
    %v4536 = vlaneseq
    %v4537 = vshrl.u32 %v4536, 7
    %v4538 = vsub.s32 %v4535, %v4537
    %v4539 = vrot.slane %v4511, %v4538
    %v4540 = vcombine.high %v4518, %v4518
    %v4541 = vcombine.high %v4525, %v4525
    %v4542 = vcombine.high %v4532, %v4532
    %v4543 = vcombine.high %v4539, %v4539
    %v4544 = vcombine.high %v2418, %v2418
    %v4546 = vunpack.c.l.s4 1966171168
    %v4547 = vunpack.c.0.s8 %v4546
    %v4548 = vlaneseq
    %v4549 = vshrl.u32 %v4548, 7
    %v4550 = vsub.s32 %v4547, %v4549
    %v4551 = vrot.slane %v2418, %v4550
    %v4553 = vunpack.c.l.s4 1966171168
    %v4554 = vunpack.c.0.s8 %v4553
    %v4555 = vlaneseq
    %v4556 = vshrl.u32 %v4555, 7
    %v4557 = vsub.s32 %v4554, %v4556
    %v4558 = vrot.slane %v4544, %v4557
    %v4559 = vcombine.high %v4551, %v4551
    %v4560 = vcombine.high %v4558, %v4558
    %v4562 = vunpack.c.l.s4 1966171168
    %v4563 = vunpack.c.0.s8 %v4562
    %v4564 = vlaneseq
    %v4565 = vshrl.u32 %v4564, 7
    %v4566 = vsub.s32 %v4563, %v4565
    %v4567 = vrot.slane %v4551, %v4566
    %v4569 = vunpack.c.l.s4 1966171168
    %v4570 = vunpack.c.0.s8 %v4569
    %v4571 = vlaneseq
    %v4572 = vshrl.u32 %v4571, 7
    %v4573 = vsub.s32 %v4570, %v4572
    %v4574 = vrot.slane %v4558, %v4573
    %v4576 = vunpack.c.l.s4 1966171168
    %v4577 = vunpack.c.0.s8 %v4576
    %v4578 = vlaneseq
    %v4579 = vshrl.u32 %v4578, 7
    %v4580 = vsub.s32 %v4577, %v4579
    %v4581 = vrot.slane %v4559, %v4580
    %v4583 = vunpack.c.l.s4 1966171168
    %v4584 = vunpack.c.0.s8 %v4583
    %v4585 = vlaneseq
    %v4586 = vshrl.u32 %v4585, 7
    %v4587 = vsub.s32 %v4584, %v4586
    %v4588 = vrot.slane %v4560, %v4587
    %v4589 = vcombine.high %v4567, %v4567
    %v4590 = vcombine.high %v4574, %v4574
    %v4591 = vcombine.high %v4581, %v4581
    %v4592 = vcombine.high %v4588, %v4588
    %v4593 = vcombine.high %v2419, %v2419
    %v4595 = vunpack.c.l.s4 1966171168
    %v4596 = vunpack.c.0.s8 %v4595
    %v4597 = vlaneseq
    %v4598 = vshrl.u32 %v4597, 7
    %v4599 = vsub.s32 %v4596, %v4598
    %v4600 = vrot.slane %v2419, %v4599
    %v4602 = vunpack.c.l.s4 1966171168
    %v4603 = vunpack.c.0.s8 %v4602
    %v4604 = vlaneseq
    %v4605 = vshrl.u32 %v4604, 7
    %v4606 = vsub.s32 %v4603, %v4605
    %v4607 = vrot.slane %v4593, %v4606
    %v4608 = vcombine.high %v4600, %v4600
    %v4609 = vcombine.high %v4607, %v4607
    %v4611 = vunpack.c.l.s4 1966171168
    %v4612 = vunpack.c.0.s8 %v4611
    %v4613 = vlaneseq
    %v4614 = vshrl.u32 %v4613, 7
    %v4615 = vsub.s32 %v4612, %v4614
    %v4616 = vrot.slane %v4600, %v4615
    %v4618 = vunpack.c.l.s4 1966171168
    %v4619 = vunpack.c.0.s8 %v4618
    %v4620 = vlaneseq
    %v4621 = vshrl.u32 %v4620, 7
    %v4622 = vsub.s32 %v4619, %v4621
    %v4623 = vrot.slane %v4607, %v4622
    %v4625 = vunpack.c.l.s4 1966171168
    %v4626 = vunpack.c.0.s8 %v4625
    %v4627 = vlaneseq
    %v4628 = vshrl.u32 %v4627, 7
    %v4629 = vsub.s32 %v4626, %v4628
    %v4630 = vrot.slane %v4608, %v4629
    %v4632 = vunpack.c.l.s4 1966171168
    %v4633 = vunpack.c.0.s8 %v4632
    %v4634 = vlaneseq
    %v4635 = vshrl.u32 %v4634, 7
    %v4636 = vsub.s32 %v4633, %v4635
    %v4637 = vrot.slane %v4609, %v4636
    %v4638 = vcombine.high %v4616, %v4616
    %v4639 = vcombine.high %v4623, %v4623
    %v4640 = vcombine.high %v4630, %v4630
    %v4641 = vcombine.high %v4637, %v4637
    %v4642 = vcombine.high %v2420, %v2420
    %v4644 = vunpack.c.l.s4 1966171168
    %v4645 = vunpack.c.0.s8 %v4644
    %v4646 = vlaneseq
    %v4647 = vshrl.u32 %v4646, 7
    %v4648 = vsub.s32 %v4645, %v4647
    %v4649 = vrot.slane %v2420, %v4648
    %v4651 = vunpack.c.l.s4 1966171168
    %v4652 = vunpack.c.0.s8 %v4651
    %v4653 = vlaneseq
    %v4654 = vshrl.u32 %v4653, 7
    %v4655 = vsub.s32 %v4652, %v4654
    %v4656 = vrot.slane %v4642, %v4655
    %v4657 = vcombine.high %v4649, %v4649
    %v4658 = vcombine.high %v4656, %v4656
    %v4660 = vunpack.c.l.s4 1966171168
    %v4661 = vunpack.c.0.s8 %v4660
    %v4662 = vlaneseq
    %v4663 = vshrl.u32 %v4662, 7
    %v4664 = vsub.s32 %v4661, %v4663
    %v4665 = vrot.slane %v4649, %v4664
    %v4667 = vunpack.c.l.s4 1966171168
    %v4668 = vunpack.c.0.s8 %v4667
    %v4669 = vlaneseq
    %v4670 = vshrl.u32 %v4669, 7
    %v4671 = vsub.s32 %v4668, %v4670
    %v4672 = vrot.slane %v4656, %v4671
    %v4674 = vunpack.c.l.s4 1966171168
    %v4675 = vunpack.c.0.s8 %v4674
    %v4676 = vlaneseq
    %v4677 = vshrl.u32 %v4676, 7
    %v4678 = vsub.s32 %v4675, %v4677
    %v4679 = vrot.slane %v4657, %v4678
    %v4681 = vunpack.c.l.s4 1966171168
    %v4682 = vunpack.c.0.s8 %v4681
    %v4683 = vlaneseq
    %v4684 = vshrl.u32 %v4683, 7
    %v4685 = vsub.s32 %v4682, %v4684
    %v4686 = vrot.slane %v4658, %v4685
    %v4687 = vcombine.high %v4665, %v4665
    %v4688 = vcombine.high %v4672, %v4672
    %v4689 = vcombine.high %v4679, %v4679
    %v4690 = vcombine.high %v4686, %v4686
    %v4691 = vcombine.high %v2421, %v2421
    %v4693 = vunpack.c.l.s4 1966171168
    %v4694 = vunpack.c.0.s8 %v4693
    %v4695 = vlaneseq
    %v4696 = vshrl.u32 %v4695, 7
    %v4697 = vsub.s32 %v4694, %v4696
    %v4698 = vrot.slane %v2421, %v4697
    %v4700 = vunpack.c.l.s4 1966171168
    %v4701 = vunpack.c.0.s8 %v4700
    %v4702 = vlaneseq
    %v4703 = vshrl.u32 %v4702, 7
    %v4704 = vsub.s32 %v4701, %v4703
    %v4705 = vrot.slane %v4691, %v4704
    %v4706 = vcombine.high %v4698, %v4698
    %v4707 = vcombine.high %v4705, %v4705
    %v4709 = vunpack.c.l.s4 1966171168
    %v4710 = vunpack.c.0.s8 %v4709
    %v4711 = vlaneseq
    %v4712 = vshrl.u32 %v4711, 7
    %v4713 = vsub.s32 %v4710, %v4712
    %v4714 = vrot.slane %v4698, %v4713
    %v4716 = vunpack.c.l.s4 1966171168
    %v4717 = vunpack.c.0.s8 %v4716
    %v4718 = vlaneseq
    %v4719 = vshrl.u32 %v4718, 7
    %v4720 = vsub.s32 %v4717, %v4719
    %v4721 = vrot.slane %v4705, %v4720
    %v4723 = vunpack.c.l.s4 1966171168
    %v4724 = vunpack.c.0.s8 %v4723
    %v4725 = vlaneseq
    %v4726 = vshrl.u32 %v4725, 7
    %v4727 = vsub.s32 %v4724, %v4726
    %v4728 = vrot.slane %v4706, %v4727
    %v4730 = vunpack.c.l.s4 1966171168
    %v4731 = vunpack.c.0.s8 %v4730
    %v4732 = vlaneseq
    %v4733 = vshrl.u32 %v4732, 7
    %v4734 = vsub.s32 %v4731, %v4733
    %v4735 = vrot.slane %v4707, %v4734
    %v4736 = vcombine.high %v4714, %v4714
    %v4737 = vcombine.high %v4721, %v4721
    %v4738 = vcombine.high %v4728, %v4728
    %v4739 = vcombine.high %v4735, %v4735
    %v4740 = vcombine.high %v2422, %v2422
    %v4742 = vunpack.c.l.s4 1966171168
    %v4743 = vunpack.c.0.s8 %v4742
    %v4744 = vlaneseq
    %v4745 = vshrl.u32 %v4744, 7
    %v4746 = vsub.s32 %v4743, %v4745
    %v4747 = vrot.slane %v2422, %v4746
    %v4749 = vunpack.c.l.s4 1966171168
    %v4750 = vunpack.c.0.s8 %v4749
    %v4751 = vlaneseq
    %v4752 = vshrl.u32 %v4751, 7
    %v4753 = vsub.s32 %v4750, %v4752
    %v4754 = vrot.slane %v4740, %v4753
    %v4755 = vcombine.high %v4747, %v4747
    %v4756 = vcombine.high %v4754, %v4754
    %v4758 = vunpack.c.l.s4 1966171168
    %v4759 = vunpack.c.0.s8 %v4758
    %v4760 = vlaneseq
    %v4761 = vshrl.u32 %v4760, 7
    %v4762 = vsub.s32 %v4759, %v4761
    %v4763 = vrot.slane %v4747, %v4762
    %v4765 = vunpack.c.l.s4 1966171168
    %v4766 = vunpack.c.0.s8 %v4765
    %v4767 = vlaneseq
    %v4768 = vshrl.u32 %v4767, 7
    %v4769 = vsub.s32 %v4766, %v4768
    %v4770 = vrot.slane %v4754, %v4769
    %v4772 = vunpack.c.l.s4 1966171168
    %v4773 = vunpack.c.0.s8 %v4772
    %v4774 = vlaneseq
    %v4775 = vshrl.u32 %v4774, 7
    %v4776 = vsub.s32 %v4773, %v4775
    %v4777 = vrot.slane %v4755, %v4776
    %v4779 = vunpack.c.l.s4 1966171168
    %v4780 = vunpack.c.0.s8 %v4779
    %v4781 = vlaneseq
    %v4782 = vshrl.u32 %v4781, 7
    %v4783 = vsub.s32 %v4780, %v4782
    %v4784 = vrot.slane %v4756, %v4783
    %v4785 = vcombine.high %v4763, %v4763
    %v4786 = vcombine.high %v4770, %v4770
    %v4787 = vcombine.high %v4777, %v4777
    %v4788 = vcombine.high %v4784, %v4784
    %v4789 = vcombine.high %v2423, %v2423
    %v4791 = vunpack.c.l.s4 1966171168
    %v4792 = vunpack.c.0.s8 %v4791
    %v4793 = vlaneseq
    %v4794 = vshrl.u32 %v4793, 7
    %v4795 = vsub.s32 %v4792, %v4794
    %v4796 = vrot.slane %v2423, %v4795
    %v4798 = vunpack.c.l.s4 1966171168
    %v4799 = vunpack.c.0.s8 %v4798
    %v4800 = vlaneseq
    %v4801 = vshrl.u32 %v4800, 7
    %v4802 = vsub.s32 %v4799, %v4801
    %v4803 = vrot.slane %v4789, %v4802
    %v4804 = vcombine.high %v4796, %v4796
    %v4805 = vcombine.high %v4803, %v4803
    %v4807 = vunpack.c.l.s4 1966171168
    %v4808 = vunpack.c.0.s8 %v4807
    %v4809 = vlaneseq
    %v4810 = vshrl.u32 %v4809, 7
    %v4811 = vsub.s32 %v4808, %v4810
    %v4812 = vrot.slane %v4796, %v4811
    %v4814 = vunpack.c.l.s4 1966171168
    %v4815 = vunpack.c.0.s8 %v4814
    %v4816 = vlaneseq
    %v4817 = vshrl.u32 %v4816, 7
    %v4818 = vsub.s32 %v4815, %v4817
    %v4819 = vrot.slane %v4803, %v4818
    %v4821 = vunpack.c.l.s4 1966171168
    %v4822 = vunpack.c.0.s8 %v4821
    %v4823 = vlaneseq
    %v4824 = vshrl.u32 %v4823, 7
    %v4825 = vsub.s32 %v4822, %v4824
    %v4826 = vrot.slane %v4804, %v4825
    %v4828 = vunpack.c.l.s4 1966171168
    %v4829 = vunpack.c.0.s8 %v4828
    %v4830 = vlaneseq
    %v4831 = vshrl.u32 %v4830, 7
    %v4832 = vsub.s32 %v4829, %v4831
    %v4833 = vrot.slane %v4805, %v4832
    %v4834 = vcombine.high %v4812, %v4812
    %v4835 = vcombine.high %v4819, %v4819
    %v4836 = vcombine.high %v4826, %v4826
    %v4837 = vcombine.high %v4833, %v4833
    %v4838 = vcombine.high %v2424, %v2424
    %v4840 = vunpack.c.l.s4 1966171168
    %v4841 = vunpack.c.0.s8 %v4840
    %v4842 = vlaneseq
    %v4843 = vshrl.u32 %v4842, 7
    %v4844 = vsub.s32 %v4841, %v4843
    %v4845 = vrot.slane %v2424, %v4844
    %v4847 = vunpack.c.l.s4 1966171168
    %v4848 = vunpack.c.0.s8 %v4847
    %v4849 = vlaneseq
    %v4850 = vshrl.u32 %v4849, 7
    %v4851 = vsub.s32 %v4848, %v4850
    %v4852 = vrot.slane %v4838, %v4851
    %v4853 = vcombine.high %v4845, %v4845
    %v4854 = vcombine.high %v4852, %v4852
    %v4856 = vunpack.c.l.s4 1966171168
    %v4857 = vunpack.c.0.s8 %v4856
    %v4858 = vlaneseq
    %v4859 = vshrl.u32 %v4858, 7
    %v4860 = vsub.s32 %v4857, %v4859
    %v4861 = vrot.slane %v4845, %v4860
    %v4863 = vunpack.c.l.s4 1966171168
    %v4864 = vunpack.c.0.s8 %v4863
    %v4865 = vlaneseq
    %v4866 = vshrl.u32 %v4865, 7
    %v4867 = vsub.s32 %v4864, %v4866
    %v4868 = vrot.slane %v4852, %v4867
    %v4870 = vunpack.c.l.s4 1966171168
    %v4871 = vunpack.c.0.s8 %v4870
    %v4872 = vlaneseq
    %v4873 = vshrl.u32 %v4872, 7
    %v4874 = vsub.s32 %v4871, %v4873
    %v4875 = vrot.slane %v4853, %v4874
    %v4877 = vunpack.c.l.s4 1966171168
    %v4878 = vunpack.c.0.s8 %v4877
    %v4879 = vlaneseq
    %v4880 = vshrl.u32 %v4879, 7
    %v4881 = vsub.s32 %v4878, %v4880
    %v4882 = vrot.slane %v4854, %v4881
    %v4883 = vcombine.high %v4861, %v4861
    %v4884 = vcombine.high %v4868, %v4868
    %v4885 = vcombine.high %v4875, %v4875
    %v4886 = vcombine.high %v4882, %v4882
    %v4887 = vcombine.high %v2425, %v2425
    %v4889 = vunpack.c.l.s4 1966171168
    %v4890 = vunpack.c.0.s8 %v4889
    %v4891 = vlaneseq
    %v4892 = vshrl.u32 %v4891, 7
    %v4893 = vsub.s32 %v4890, %v4892
    %v4894 = vrot.slane %v2425, %v4893
    %v4896 = vunpack.c.l.s4 1966171168
    %v4897 = vunpack.c.0.s8 %v4896
    %v4898 = vlaneseq
    %v4899 = vshrl.u32 %v4898, 7
    %v4900 = vsub.s32 %v4897, %v4899
    %v4901 = vrot.slane %v4887, %v4900
    %v4902 = vcombine.high %v4894, %v4894
    %v4903 = vcombine.high %v4901, %v4901
    %v4905 = vunpack.c.l.s4 1966171168
    %v4906 = vunpack.c.0.s8 %v4905
    %v4907 = vlaneseq
    %v4908 = vshrl.u32 %v4907, 7
    %v4909 = vsub.s32 %v4906, %v4908
    %v4910 = vrot.slane %v4894, %v4909
    %v4912 = vunpack.c.l.s4 1966171168
    %v4913 = vunpack.c.0.s8 %v4912
    %v4914 = vlaneseq
    %v4915 = vshrl.u32 %v4914, 7
    %v4916 = vsub.s32 %v4913, %v4915
    %v4917 = vrot.slane %v4901, %v4916
    %v4919 = vunpack.c.l.s4 1966171168
    %v4920 = vunpack.c.0.s8 %v4919
    %v4921 = vlaneseq
    %v4922 = vshrl.u32 %v4921, 7
    %v4923 = vsub.s32 %v4920, %v4922
    %v4924 = vrot.slane %v4902, %v4923
    %v4926 = vunpack.c.l.s4 1966171168
    %v4927 = vunpack.c.0.s8 %v4926
    %v4928 = vlaneseq
    %v4929 = vshrl.u32 %v4928, 7
    %v4930 = vsub.s32 %v4927, %v4929
    %v4931 = vrot.slane %v4903, %v4930
    %v4932 = vcombine.high %v4910, %v4910
    %v4933 = vcombine.high %v4917, %v4917
    %v4934 = vcombine.high %v4924, %v4924
    %v4935 = vcombine.high %v4931, %v4931
    %v4937 = vunpack.c.l.s4 1966171168
    %v4938 = vunpack.c.0.s8 %v4937
    %v4939 = vlaneseq
    %v4940 = vshrl.u32 %v4939, 7
    %v4941 = vsub.s32 %v4938, %v4940
    %v4942 = vrot.slane %v2426, %v4941
    %v4944 = vunpack.c.l.s4 1966171168
    %v4945 = vunpack.c.0.s8 %v4944
    %v4946 = vlaneseq
    %v4947 = vshrl.u32 %v4946, 7
    %v4948 = vsub.s32 %v4945, %v4947
    %v4949 = vrot.slane %v4942, %v4948
    %v6871 = vunpack.c.l.b16 %v2427
    %v6872 = vunpack.c.l.b16 %v2428
    %v6873 = vunpack.c.l.b16 %v2429
    %v6874 = vunpack.c.l.b16 %v2430
    %v6875 = vunpack.c.l.b16 %v2431
    %v6876 = vunpack.c.l.b16 %v2432
    %v6877 = vunpack.c.l.b16 %v2433
    %v6878 = vunpack.c.l.b16 %v2434
    %v6879 = vunpack.c.l.b16 %v2435
    %v6880 = vunpack.c.l.b16 %v2436
    %v6881 = vunpack.c.l.b16 %v2437
    %v6882 = vunpack.c.l.b16 %v2438
    %v6883 = vunpack.c.l.b16 %v2439
    %v6884 = vunpack.c.l.b16 %v2440
    %v6885 = vunpack.c.l.b16 %v2441
    %v6886 = vunpack.c.l.b16 %v2442
    %v6887 = vunpack.c.l.b16 %v2443
    %v6888 = vunpack.c.l.b16 %v2444
    %v6889 = vunpack.c.l.b16 %v2445
    %v6890 = vunpack.c.l.b16 %v2446
    %v6891 = vunpack.c.l.b16 %v2447
    %v6892 = vunpack.c.l.b16 %v2448
    %v6893 = vunpack.c.l.b16 %v2449
    %v6894 = vunpack.c.l.b16 %v2450
    %v6895 = vunpack.c.l.b16 %v2451
    %v6896 = vunpack.c.l.b16 %v2452
    %v6897 = vunpack.c.l.b16 %v2453
    %v6898 = vunpack.c.l.b16 %v2454
    %v6899 = vunpack.c.l.b16 %v2455
    %v6900 = vunpack.c.l.b16 %v2456
    %v6901 = vunpack.c.l.b16 %v2457
    %v6902 = vunpack.c.l.b16 %v2458
    %v6903 = vunpack.c.l.b16 %v2459
    %v6904 = vunpack.c.l.b16 %v2460
    %v6905 = vunpack.c.l.b16 %v2461
    %v6906 = vunpack.c.l.b16 %v2462
    %v6907 = vunpack.c.l.b16 %v2463
    %v6908 = vunpack.c.l.b16 %v2464
    %v6909 = vunpack.c.l.b16 %v2465
    %v6910 = vunpack.c.l.b16 %v2466
    %v6911 = vunpack.c.l.b16 %v2467
    %v6912 = vunpack.c.l.b16 %v2468
    %v6913 = vunpack.c.l.b16 %v2469
    %v6914 = vunpack.c.l.b16 %v2470
    %v6915 = vunpack.c.l.b16 %v2471
    %v6916 = vunpack.c.l.b16 %v2472
    %v6917 = vunpack.c.l.b16 %v2473
    %v6918 = vunpack.c.l.b16 %v2474
    %v6919 = vunpack.c.l.b16 %v2475
    %v6920 = vunpack.c.l.b16 %v2476
    %v6921 = vunpack.c.l.b16 %v2477
    %v6922 = vunpack.c.l.b16 %v2478
    %v6923 = vunpack.c.l.b16 %v2479
    %v6924 = vunpack.c.l.b16 %v2480
    %v6925 = vunpack.c.l.b16 %v2481
    %v6926 = vunpack.c.l.b16 %v2482
    %v6927 = vunpack.c.l.b16 %v2483
    %v6928 = vunpack.c.l.b16 %v2484
    %v6929 = vunpack.c.l.b16 %v2485
    %v6930 = vunpack.c.l.b16 %v2486
    %v6931 = vunpack.c.l.b16 %v2487
    %v6932 = vunpack.c.l.b16 %v2488
    %v6933 = vunpack.c.l.b16 %v2489
    %v6934 = vunpack.c.l.b16 %v2490
    %v6935 = vunpack.c.l.b16 %v2491
    %v6936 = vunpack.c.l.b16 %v2492
    %v6937 = vunpack.c.l.b16 %v2493
    %v6938 = vunpack.c.l.b16 %v2494
    %v6939 = vunpack.c.l.b16 %v2495
    %v6940 = vunpack.c.l.b16 %v2496
    %v6941 = vunpack.c.l.b16 %v2497
    %v6942 = vunpack.c.l.b16 %v2498
    %v6943 = vunpack.c.l.b16 %v2499
    %v6944 = vunpack.c.l.b16 %v2500
    %v6945 = vunpack.c.l.b16 %v2501
    %v6946 = vunpack.c.l.b16 %v2502
    %v6947 = vunpack.c.l.b16 %v2503
    %v6948 = vunpack.c.l.b16 %v2504
    %v6949 = vunpack.c.l.b16 %v2505
    %v6950 = vunpack.c.l.b16 %v2506
    %v6951 = vunpack.c.l.b16 %v2507
    %v6952 = vunpack.c.l.b16 %v2508
    %v6953 = vunpack.c.l.b16 %v2509
    %v6954 = vunpack.c.l.b16 %v2510
    %v6955 = vunpack.c.l.b16 %v2511
    %v6956 = vunpack.c.l.b16 %v2512
    %v6957 = vunpack.c.l.b16 %v2513
    %v6958 = vunpack.c.l.b16 %v2514
    %v6959 = vunpack.c.l.b16 %v2515
    %v6960 = vunpack.c.l.b16 %v2516
    %v6961 = vunpack.c.l.b16 %v2517
    %v6962 = vunpack.c.l.b16 %v2518
    %v6963 = vunpack.c.l.b16 %v2519
    %v6964 = vunpack.c.l.b16 %v2520
    %v6965 = vunpack.c.l.b16 %v2521
    %v6966 = vunpack.c.l.b16 %v2522
    %v6967 = vunpack.c.l.b16 %v2523
    %v6968 = vunpack.c.l.b16 %v2524
    %v6969 = vunpack.c.l.b16 %v2525
    %v6970 = vunpack.c.l.b16 %v2526
    %v6971 = vunpack.c.l.b16 %v2527
    %v6972 = vunpack.c.l.b16 %v2528
    %v6973 = vunpack.c.l.b16 %v2529
    %v6974 = vunpack.c.l.b16 %v2530
    %v6975 = vunpack.c.l.b16 %v2531
    %v6976 = vunpack.c.l.b16 %v2532
    %v6977 = vunpack.c.l.b16 %v2533
    %v6978 = vunpack.c.l.b16 %v2534
    %v6979 = vunpack.c.l.b16 %v2535
    %v6980 = vunpack.c.l.b16 %v2536
    %v6981 = vunpack.c.l.b16 %v2537
    %v6982 = vunpack.c.l.b16 %v2538
    %v6983 = vunpack.c.l.b16 %v2539
    %v6984 = vunpack.c.l.b16 %v2540
    %v6985 = vunpack.c.l.b16 %v2541
    %v6986 = vunpack.c.l.b16 %v2542
    %v6987 = vunpack.c.l.b16 %v2543
    %v6988 = vunpack.c.l.b16 %v2544
    %v6989 = vunpack.c.l.b16 %v2545
    %v6990 = vunpack.c.l.b16 %v2546
    %v6991 = vunpack.c.l.b16 %v2547
    %v6992 = vunpack.c.l.b16 %v2548
    %v6993 = vunpack.c.l.b16 %v2549
    %v6994 = vunpack.c.l.b16 %v2550
    %v6995 = vunpack.c.l.b16 %v2551
    %v6996 = vunpack.c.l.b16 %v2552
    %v6997 = vunpack.c.l.b16 %v2553
    %v6998 = vunpack.c.l.b16 %v2554
    %v6999 = vunpack.c.l.b16 %v2555
    %v7000 = vunpack.c.l.b16 %v2556
    %v7001 = vunpack.c.l.b16 %v2557
    %v7002 = vunpack.c.l.b16 %v2558
    %v7003 = vunpack.c.l.b16 %v2559
    %v7004 = vunpack.c.l.b16 %v2560
    %v7005 = vunpack.c.l.b16 %v2561
    %v7006 = vunpack.c.l.b16 %v2562
    %v7007 = vunpack.c.l.b16 %v2563
    %v7008 = vunpack.c.l.b16 %v2564
    %v7009 = vunpack.c.l.b16 %v2565
    %v7010 = vunpack.c.l.b16 %v2566
    %v7011 = vunpack.c.l.b16 %v2567
    %v7012 = vunpack.c.l.b16 %v2568
    %v7013 = vunpack.c.l.b16 %v2569
    %v7014 = vunpack.c.l.b16 %v2570
    %v7015 = vunpack.c.l.b16 %v2571
    %v7016 = vunpack.c.l.b16 %v2572
    %v7017 = vunpack.c.l.b16 %v2573
    %v7018 = vunpack.c.l.b16 %v2574
    %v7019 = vunpack.c.l.b16 %v2575
    %v7020 = vunpack.c.l.b16 %v2576
    %v7021 = vunpack.c.l.b16 %v2577
    %v7022 = vunpack.c.l.b16 %v2578
    %v7023 = vunpack.c.l.b16 %v2579
    %v7024 = vunpack.c.l.b16 %v2580
    %v7025 = vunpack.c.l.b16 %v2581
    %v7026 = vunpack.c.l.b16 %v2582
    %v7027 = vunpack.c.l.b16 %v2583
    %v7028 = vunpack.c.l.b16 %v2584
    %v7029 = vunpack.c.l.b16 %v2585
    %v7030 = vunpack.c.l.b16 %v2586
    %v7031 = vunpack.c.l.b16 %v2587
    %v7032 = vunpack.c.l.b16 %v2588
    %v7033 = vunpack.c.l.b16 %v2589
    %v7034 = vunpack.c.l.b16 %v2590
    %v7035 = vunpack.c.l.b16 %v2591
    %v7036 = vunpack.c.l.b16 %v2592
    %v7037 = vunpack.c.l.b16 %v2593
    %v7038 = vunpack.c.l.b16 %v2594
    %v7039 = vunpack.c.l.b16 %v2595
    %v7040 = vunpack.c.l.b16 %v2596
    %v7041 = vunpack.c.l.b16 %v2597
    %v7042 = vunpack.c.l.b16 %v2598
    %v7043 = vunpack.c.l.b16 %v2599
    %v7044 = vunpack.c.l.b16 %v2600
    %v7045 = vunpack.c.l.b16 %v2601
    %v7046 = vunpack.c.l.b16 %v2602
    %v7047 = vunpack.c.l.b16 %v2603
    %v7048 = vunpack.c.l.b16 %v2604
    %v7049 = vunpack.c.l.b16 %v2605
    %v7050 = vunpack.c.l.b16 %v2606
    %v7051 = vunpack.c.l.b16 %v2607
    %v7052 = vunpack.c.l.b16 %v2608
    %v7053 = vunpack.c.l.b16 %v2609
    %v7054 = vunpack.c.l.b16 %v2610
    %v7055 = vunpack.c.l.b16 %v2611
    %v7056 = vunpack.c.l.b16 %v2612
    %v7057 = vunpack.c.l.b16 %v2613
    %v7058 = vunpack.c.l.b16 %v2614
    %v7059 = vunpack.c.l.b16 %v2615
    %v7060 = vunpack.c.l.b16 %v2616
    %v7061 = vunpack.c.l.b16 %v2617
    %v7062 = vunpack.c.l.b16 %v2618
    %v7063 = vunpack.c.l.b16 %v2619
    %v7064 = vunpack.c.l.b16 %v2620
    %v7065 = vunpack.c.l.b16 %v2621
    %v7066 = vunpack.c.l.b16 %v2622
    %v7067 = vunpack.c.l.b16 %v2623
    %v7068 = vunpack.c.l.b16 %v2624
    %v7069 = vunpack.c.l.b16 %v2625
    %v7070 = vunpack.c.l.b16 %v2626
    %v7071 = vunpack.c.l.b16 %v2627
    %v7072 = vunpack.c.l.b16 %v2628
    %v7073 = vunpack.c.l.b16 %v2629
    %v7074 = vunpack.c.l.b16 %v2630
    %v7075 = vunpack.c.l.b16 %v2631
    %v7076 = vunpack.c.l.b16 %v2632
    %v7077 = vunpack.c.l.b16 %v2633
    %v7078 = vunpack.c.l.b16 %v2634
    %v7079 = vunpack.c.l.b16 %v2635
    %v7080 = vunpack.c.l.b16 %v2636
    %v7081 = vunpack.c.l.b16 %v2637
    %v7082 = vunpack.c.l.b16 %v2638
    %v7083 = vunpack.c.l.b16 %v2639
    %v7084 = vunpack.c.l.b16 %v2640
    %v7085 = vunpack.c.l.b16 %v2641
    %v7086 = vunpack.c.l.b16 %v2642
    %v7087 = vunpack.c.l.b16 %v2643
    %v7088 = vunpack.c.l.b16 %v2644
    %v7089 = vunpack.c.l.b16 %v2645
    %v7090 = vunpack.c.l.b16 %v2646
    %v7091 = vunpack.c.l.b16 %v2647
    %v7092 = vunpack.c.l.b16 %v2648
    %v7093 = vunpack.c.l.b16 %v2649
    %v7094 = vunpack.c.l.b16 %v2650
    %v7095 = vunpack.c.l.b16 %v2651
    %v7096 = vunpack.c.l.b16 %v2652
    %v7097 = vunpack.c.l.b16 %v2653
    %v7098 = vunpack.c.l.b16 %v2654
    %v7099 = vunpack.c.l.b16 %v2655
    %v7100 = vunpack.c.l.b16 %v2656
    %v7101 = vunpack.c.l.b16 %v2657
    %v7102 = vunpack.c.l.b16 %v2658
    %v7103 = vunpack.c.l.b16 %v2659
    %v7104 = vunpack.c.l.b16 %v2660
    %v7105 = vunpack.c.l.b16 %v2661
    %v7106 = vunpack.c.l.b16 %v2662
    %v7107 = vunpack.c.l.b16 %v2663
    %v7108 = vunpack.c.l.b16 %v2664
    %v7109 = vunpack.c.l.b16 %v2665
    %v7110 = vunpack.c.l.b16 %v2666
    %v7111 = vunpack.c.l.b16 %v2667
    %v7112 = vunpack.c.l.b16 %v2668
    %v7113 = vunpack.c.l.b16 %v2669
    %v7114 = vunpack.c.l.b16 %v2670
    %v7115 = vunpack.c.l.b16 %v2671
    %v7116 = vunpack.c.l.b16 %v2672
    %v7117 = vunpack.c.l.b16 %v2673
    %v7118 = vunpack.c.l.b16 %v2674
    %v7119 = vunpack.c.l.b16 %v2675
    %v7120 = vunpack.c.l.b16 %v2676
    %v7121 = vunpack.c.l.b16 %v2677
    %v7122 = vunpack.c.l.b16 %v2678
    %v7123 = vunpack.c.l.b16 %v2679
    %v7124 = vunpack.c.l.b16 %v2680
    %v7125 = vunpack.c.l.b16 %v2681
    %v7126 = vunpack.c.l.b16 %v2682
    %v7127 = vunpack.c.l.b16 %v2683
    %v7128 = vunpack.c.l.b16 %v2684
    %v7129 = vunpack.c.l.b16 %v2685
    %v7130 = vunpack.c.l.b16 %v2686
    %v7131 = vunpack.c.l.b16 %v2687
    %v7132 = vunpack.c.l.b16 %v2688
    %v7133 = vunpack.c.l.b16 %v2689
    %v7134 = vunpack.c.l.b16 %v2690
    %v7135 = vunpack.c.l.b16 %v2691
    %v7136 = vunpack.c.l.b16 %v2692
    %v7137 = vunpack.c.l.b16 %v2693
    %v7138 = vunpack.c.l.b16 %v2694
    %v7139 = vunpack.c.l.b16 %v2695
    %v7140 = vunpack.c.l.b16 %v2696
    %v7141 = vunpack.c.l.b16 %v2697
    %v7142 = vunpack.c.l.b16 %v2698
    %v7143 = vunpack.c.l.b16 %v2699
    %v7144 = vunpack.c.l.b16 %v2700
    %v7145 = vunpack.c.l.b16 %v2701
    %v7146 = vunpack.c.l.b16 %v2702
    %v7147 = vunpack.c.l.b16 %v2703
    %v7148 = vunpack.c.l.b16 %v2704
    %v7149 = vunpack.c.l.b16 %v2705
    %v7150 = vunpack.c.l.b16 %v2706
    %v7151 = vunpack.c.l.b16 %v2707
    %v7152 = vunpack.c.l.b16 %v2708
    %v7153 = vunpack.c.l.b16 %v2709
    %v7154 = vunpack.c.l.b16 %v2710
    %v7155 = vunpack.c.l.b16 %v2711
    %v7156 = vunpack.c.l.b16 %v2712
    %v7157 = vunpack.c.l.b16 %v2713
    %v7158 = vunpack.c.l.b16 %v2714
    %v7159 = vunpack.c.l.b16 %v2715
    %v7160 = vunpack.c.l.b16 %v2716
    %v7161 = vunpack.c.l.b16 %v2717
    %v7162 = vunpack.c.l.b16 %v2718
    %v7163 = vunpack.c.l.b16 %v2719
    %v7164 = vunpack.c.l.b16 %v2720
    %v7165 = vunpack.c.l.b16 %v2721
    %v7166 = vunpack.c.l.b16 %v2722
    %v7167 = vunpack.c.l.b16 %v2723
    %v7168 = vunpack.c.l.b16 %v2724
    %v7169 = vunpack.c.l.b16 %v2725
    %v7170 = vunpack.c.l.b16 %v2726
    %v7171 = vunpack.c.l.b16 %v2727
    %v7172 = vunpack.c.l.b16 %v2728
    %v7173 = vunpack.c.l.b16 %v2729
    %v7174 = vunpack.c.l.b16 %v2730
    %v7175 = vunpack.c.l.b16 %v2731
    %v7176 = vunpack.c.l.b16 %v2732
    %v7177 = vunpack.c.l.b16 %v2733
    %v7178 = vunpack.c.l.b16 %v2734
    %v7179 = vunpack.c.l.b16 %v2735
    %v7180 = vunpack.c.l.b16 %v2736
    %v7181 = vunpack.c.l.b16 %v2737
    %v7182 = vunpack.c.l.b16 %v2738
    %v7183 = vunpack.c.l.b16 %v2739
    %v7184 = vunpack.c.l.b16 %v2740
    %v7185 = vunpack.c.l.b16 %v2741
    %v7186 = vunpack.c.l.b16 %v2742
    %v7187 = vunpack.c.l.b16 %v2743
    %v7188 = vunpack.c.l.b16 %v2744
    %v7189 = vunpack.c.l.b16 %v2745
    %v7190 = vunpack.c.l.b16 %v2746
    %v7191 = vunpack.c.l.b16 %v2747
    %v7192 = vunpack.c.l.b16 %v2748
    %v7193 = vunpack.c.l.b16 %v2749
    %v7194 = vunpack.c.l.b16 %v2750
    %v7195 = vunpack.c.l.b16 %v2751
    %v7196 = vunpack.c.l.b16 %v2752
    %v7197 = vunpack.c.l.b16 %v2753
    %v7198 = vunpack.c.l.b16 %v2754
    %v7199 = vunpack.c.l.b16 %v2755
    %v7200 = vunpack.c.l.b16 %v2756
    %v7201 = vunpack.c.l.b16 %v2757
    %v7202 = vunpack.c.l.b16 %v2758
    %v7203 = vunpack.c.l.b16 %v2759
    %v7204 = vunpack.c.l.b16 %v2760
    %v7205 = vunpack.c.l.b16 %v2761
    %v7206 = vunpack.c.l.b16 %v2762
    %v7207 = vunpack.c.l.b16 %v2763
    %v7208 = vunpack.c.l.b16 %v2764
    %v7209 = vunpack.c.l.b16 %v2765
    %v7210 = vunpack.c.l.b16 %v2766
    %v7211 = vunpack.c.l.b16 %v2767
    %v7212 = vunpack.c.l.b16 %v2768
    %v7213 = vunpack.c.l.b16 %v2769
    %v7214 = vunpack.c.l.b16 %v2770
    %v7215 = vunpack.c.l.b16 %v2771
    %v7216 = vunpack.c.l.b16 %v2772
    %v7217 = vunpack.c.l.b16 %v2773
    %v7218 = vunpack.c.l.b16 %v2774
    %v7219 = vunpack.c.l.b16 %v2775
    %v7220 = vunpack.c.l.b16 %v2776
    %v7221 = vunpack.c.l.b16 %v2777
    %v7222 = vunpack.c.l.b16 %v2778
    %v7223 = vunpack.c.l.b16 %v2779
    %v7224 = vunpack.c.l.b16 %v2780
    %v7225 = vunpack.c.l.b16 %v2781
    %v7226 = vunpack.c.l.b16 %v2782
    %v7227 = vunpack.c.l.b16 %v2783
    %v7228 = vunpack.c.l.b16 %v2784
    %v7229 = vunpack.c.l.b16 %v2785
    %v7230 = vunpack.c.l.b16 %v2786
    %v7231 = vunpack.c.l.b16 %v2787
    %v7232 = vunpack.c.l.b16 %v2788
    %v7233 = vunpack.c.l.b16 %v2789
    %v7234 = vunpack.c.l.b16 %v2790
    %v7235 = vunpack.c.l.b16 %v2791
    %v7236 = vunpack.c.l.b16 %v2792
    %v7237 = vunpack.c.l.b16 %v2793
    %v7238 = vunpack.c.l.b16 %v2794
    %v7239 = vunpack.c.l.b16 %v2795
    %v7240 = vunpack.c.l.b16 %v2796
    %v7241 = vunpack.c.l.b16 %v2797
    %v7242 = vunpack.c.l.b16 %v2798
    %v7243 = vunpack.c.l.b16 %v2799
    %v7244 = vunpack.c.l.b16 %v2800
    %v7245 = vunpack.c.l.b16 %v2801
    %v7246 = vunpack.c.l.b16 %v2802
    %v7247 = vunpack.c.l.b16 %v2803
    %v7248 = vunpack.c.l.b16 %v2804
    %v7249 = vunpack.c.l.b16 %v2805
    %v7250 = vunpack.c.l.b16 %v2806
    %v7251 = vunpack.c.l.b16 %v2807
    %v7252 = vunpack.c.l.b16 %v2808
    %v7253 = vunpack.c.l.b16 %v2809
    %v7254 = vunpack.c.l.b16 %v2810
    %v7255 = vunpack.c.l.b16 %v2811
    %v7256 = vunpack.c.l.b16 %v2812
    %v7257 = vunpack.c.l.b16 %v2813
    %v7258 = vunpack.c.l.b16 %v2814
    %v7259 = vunpack.c.l.b16 %v2815
    %v7260 = vunpack.c.l.b16 %v2816
    %v7261 = vunpack.c.l.b16 %v2817
    %v7262 = vunpack.c.l.b16 %v2818
    %v7263 = vunpack.c.l.b16 %v2819
    %v7264 = vunpack.c.l.b16 %v2820
    %v7265 = vunpack.c.l.b16 %v2821
    %v7266 = vunpack.c.l.b16 %v2822
    %v7267 = vunpack.c.l.b16 %v2823
    %v7268 = vunpack.c.l.b16 %v2824
    %v7269 = vunpack.c.l.b16 %v2825
    %v7270 = vunpack.c.l.b16 %v2826
    %v7271 = vunpack.c.l.b16 %v2827
    %v7272 = vunpack.c.l.b16 %v2828
    %v7273 = vunpack.c.l.b16 %v2829
    %v7274 = vunpack.c.l.b16 %v2830
    %v7275 = vunpack.c.l.b16 %v2831
    %v7276 = vunpack.c.l.b16 %v2832
    %v7277 = vunpack.c.l.b16 %v2833
    %v7278 = vunpack.c.l.b16 %v2834
    %v7279 = vunpack.c.l.b16 %v2835
    %v7280 = vunpack.c.l.b16 %v2836
    %v7281 = vunpack.c.l.b16 %v2837
    %v7282 = vunpack.c.l.b16 %v2838
    %v7283 = vunpack.c.l.b16 %v2839
    %v7284 = vunpack.c.l.b16 %v2840
    %v7285 = vunpack.c.l.b16 %v2841
    %v7286 = vunpack.c.l.b16 %v2842
    %v7287 = vunpack.c.l.b16 %v2843
    %v7288 = vunpack.c.l.b16 %v2844
    %v7289 = vunpack.c.l.b16 %v2845
    %v7290 = vunpack.c.l.b16 %v2846
    %v7291 = vunpack.c.l.b16 %v2847
    %v7292 = vunpack.c.l.b16 %v2848
    %v7293 = vunpack.c.l.b16 %v2849
    %v7294 = vunpack.c.l.b16 %v2850
    %v7295 = vunpack.c.l.b16 %v2851
    %v7296 = vunpack.c.l.b16 %v2852
    %v7297 = vunpack.c.l.b16 %v2853
    %v7298 = vunpack.c.l.b16 %v2854
    %v7299 = vunpack.c.l.b16 %v2855
    %v7300 = vunpack.c.l.b16 %v2856
    %v7301 = vunpack.c.l.b16 %v2857
    %v7302 = vunpack.c.l.b16 %v2858
    %v7303 = vunpack.c.l.b16 %v2859
    %v7304 = vunpack.c.l.b16 %v2860
    %v7305 = vunpack.c.l.b16 %v2861
    %v7306 = vunpack.c.l.b16 %v2862
    %v7307 = vunpack.c.l.b16 %v2863
    %v7308 = vunpack.c.l.b16 %v2864
    %v7309 = vunpack.c.l.b16 %v2865
    %v7310 = vunpack.c.l.b16 %v2866
    %v7311 = vunpack.c.l.b16 %v2867
    %v7312 = vunpack.c.l.b16 %v2868
    %v7313 = vunpack.c.l.b16 %v2869
    %v7314 = vunpack.c.l.b16 %v2870
    %v7315 = vunpack.c.l.b16 %v2871
    %v7316 = vunpack.c.l.b16 %v2872
    %v7317 = vunpack.c.l.b16 %v2873
    %v7318 = vunpack.c.l.b16 %v2874
    %v7319 = vunpack.c.l.b16 %v2875
    %v7320 = vunpack.c.l.b16 %v2876
    %v7321 = vunpack.c.l.b16 %v2877
    %v7322 = vunpack.c.l.b16 %v2878
    %v7323 = vunpack.c.l.b16 %v2879
    %v7324 = vunpack.c.l.b16 %v2880
    %v7325 = vunpack.c.l.b16 %v2881
    %v7326 = vunpack.c.l.b16 %v2882
    %v7327 = vunpack.c.l.b16 %v2883
    %v7328 = vunpack.c.l.b16 %v2884
    %v7329 = vunpack.c.l.b16 %v2885
    %v7330 = vunpack.c.l.b16 %v2886
    %v7331 = vunpack.c.l.b16 %v2887
    %v7332 = vunpack.c.l.b16 %v2888
    %v7333 = vunpack.c.l.b16 %v2889
    %v7334 = vunpack.c.l.b16 %v2890
    %v7335 = vunpack.c.l.b16 %v2891
    %v7336 = vunpack.c.l.b16 %v2892
    %v7337 = vunpack.c.l.b16 %v2893
    %v7338 = vunpack.c.l.b16 %v2894
    %v7339 = vunpack.c.l.b16 %v2895
    %v7340 = vunpack.c.l.b16 %v2896
    %v7341 = vunpack.c.l.b16 %v2897
    %v7342 = vunpack.c.l.b16 %v2898
    %v7343 = vunpack.c.l.b16 %v2899
    %v7344 = vunpack.c.l.b16 %v2900
    %v7345 = vunpack.c.l.b16 %v2901
    %v7346 = vunpack.c.l.b16 %v2902
    %v7347 = vunpack.c.l.b16 %v2903
    %v7348 = vunpack.c.l.b16 %v2904
    %v7349 = vunpack.c.l.b16 %v2905
    %v7350 = vunpack.c.l.b16 %v2906
    %v7351 = vunpack.c.l.b16 %v2907
    %v7352 = vunpack.c.l.b16 %v2908
    %v7353 = vunpack.c.l.b16 %v2909
    %v7354 = vunpack.c.l.b16 %v2910
    %v7355 = vunpack.c.l.b16 %v2911
    %v7356 = vunpack.c.l.b16 %v2912
    %v7357 = vunpack.c.l.b16 %v2913
    %v7358 = vunpack.c.l.b16 %v2914
    %v7359 = vunpack.c.l.b16 %v2915
    %v7360 = vunpack.c.l.b16 %v2916
    %v7361 = vunpack.c.l.b16 %v2917
    %v7362 = vunpack.c.l.b16 %v2918
    %v7363 = vunpack.c.l.b16 %v2919
    %v7364 = vunpack.c.l.b16 %v2920
    %v7365 = vunpack.c.l.b16 %v2921
    %v7366 = vunpack.c.l.b16 %v2922
    %v7367 = vunpack.c.l.b16 %v2923
    %v7368 = vunpack.c.l.b16 %v2924
    %v7369 = vunpack.c.l.b16 %v2925
    %v7370 = vunpack.c.l.b16 %v2926
    %v7371 = vunpack.c.l.b16 %v2927
    %v7372 = vunpack.c.l.b16 %v2928
    %v7373 = vunpack.c.l.b16 %v2929
    %v7374 = vunpack.c.l.b16 %v2930
    %v7375 = vunpack.c.l.b16 %v2931
    %v7376 = vunpack.c.l.b16 %v2932
    %v7377 = vunpack.c.l.b16 %v2933
    %v7378 = vunpack.c.l.b16 %v2934
    %v7379 = vunpack.c.l.b16 %v2935
    %v7380 = vunpack.c.l.b16 %v2936
    %v7381 = vunpack.c.l.b16 %v2937
    %v7382 = vunpack.c.l.b16 %v2938
    %v7383 = vunpack.c.l.b16 %v2939
    %v7384 = vunpack.c.l.b16 %v2940
    %v7385 = vunpack.c.l.b16 %v2941
    %v7386 = vunpack.c.l.b16 %v2942
    %v7387 = vunpack.c.l.b16 %v2943
    %v7388 = vunpack.c.l.b16 %v2944
    %v7389 = vunpack.c.l.b16 %v2945
    %v7390 = vunpack.c.l.b16 %v2946
    %v7391 = vunpack.c.l.b16 %v2947
    %v7392 = vunpack.c.l.b16 %v2948
    %v7393 = vunpack.c.l.b16 %v2949
    %v7394 = vunpack.c.l.b16 %v2950
    %v7395 = vunpack.c.l.b16 %v2951
    %v7396 = vunpack.c.l.b16 %v2952
    %v7397 = vunpack.c.l.b16 %v2953
    %v7398 = vunpack.c.l.b16 %v2954
    %v7399 = vunpack.c.l.b16 %v2955
    %v7400 = vunpack.c.l.b16 %v2956
    %v7401 = vunpack.c.l.b16 %v2957
    %v7402 = vunpack.c.l.b16 %v2958
    %v7403 = vunpack.c.l.b16 %v2959
    %v7404 = vunpack.c.l.b16 %v2960
    %v7405 = vunpack.c.l.b16 %v2961
    %v7406 = vunpack.c.l.b16 %v2962
    %v7407 = vunpack.c.l.b16 %v2963
    %v7408 = vunpack.c.l.b16 %v2964
    %v7409 = vunpack.c.l.b16 %v2965
    %v7410 = vunpack.c.l.b16 %v2966
    %v7411 = vunpack.c.l.b16 %v2967
    %v7412 = vunpack.c.l.b16 %v2968
    %v7413 = vunpack.c.l.b16 %v2969
    %v7414 = vunpack.c.l.b16 %v2970
    %v7415 = vunpack.c.l.b16 %v2971
    %v7416 = vunpack.c.l.b16 %v2972
    %v7417 = vunpack.c.l.b16 %v2973
    %v7418 = vunpack.c.l.b16 %v2974
    %v7419 = vunpack.c.l.b16 %v2975
    %v7420 = vunpack.c.l.b16 %v2976
    %v7421 = vunpack.c.l.b16 %v2977
    %v7422 = vunpack.c.l.b16 %v2978
    %v7423 = vunpack.c.l.b16 %v2979
    %v7424 = vunpack.c.l.b16 %v2980
    %v7425 = vunpack.c.l.b16 %v2981
    %v7426 = vunpack.c.l.b16 %v2982
    %v7427 = vunpack.c.l.b16 %v2983
    %v7428 = vunpack.c.l.b16 %v2984
    %v7429 = vunpack.c.l.b16 %v2985
    %v7430 = vunpack.c.l.b16 %v2986
    %v7431 = vunpack.c.l.b16 %v2987
    %v7432 = vunpack.c.l.b16 %v2988
    %v7433 = vunpack.c.l.b16 %v2989
    %v7434 = vunpack.c.l.b16 %v2990
    %v7435 = vunpack.c.l.b16 %v2991
    %v7436 = vunpack.c.l.b16 %v2992
    %v7437 = vunpack.c.l.b16 %v2993
    %v7438 = vunpack.c.l.b16 %v2994
    %v7439 = vunpack.c.l.b16 %v2995
    %v7440 = vunpack.c.l.b16 %v2996
    %v7441 = vunpack.c.l.b16 %v2997
    %v7442 = vunpack.c.l.b16 %v2998
    %v7443 = vunpack.c.l.b16 %v2999
    %v7444 = vunpack.c.l.b16 %v3000
    %v7445 = vunpack.c.l.b16 %v3001
    %v7446 = vunpack.c.l.b16 %v3002
    %v7447 = vunpack.c.l.b16 %v3003
    %v7448 = vunpack.c.l.b16 %v3004
    %v7449 = vunpack.c.l.b16 %v3005
    %v7450 = vunpack.c.l.b16 %v3006
    %v7451 = vunpack.c.l.b16 %v3007
    %v7452 = vunpack.c.l.b16 %v3008
    %v7453 = vunpack.c.l.b16 %v3009
    %v7454 = vunpack.c.l.b16 %v3010
    %v7455 = vunpack.c.l.b16 %v3011
    %v7456 = vunpack.c.l.b16 %v3012
    %v7457 = vunpack.c.l.b16 %v3013
    %v7458 = vunpack.c.l.b16 %v3014
    %v7459 = vunpack.c.l.b16 %v3015
    %v7460 = vunpack.c.l.b16 %v3016
    %v7461 = vunpack.c.l.b16 %v3017
    %v7462 = vunpack.c.l.b16 %v3018
    %v7463 = vunpack.c.l.b16 %v3019
    %v7464 = vunpack.c.l.b16 %v3020
    %v7465 = vunpack.c.l.b16 %v3021
    %v7466 = vunpack.c.l.b16 %v3022
    %v7467 = vunpack.c.l.b16 %v3023
    %v7468 = vunpack.c.l.b16 %v3024
    %v7469 = vunpack.c.l.b16 %v3025
    %v7470 = vunpack.c.l.b16 %v3026
    %v7471 = vunpack.c.l.b16 %v3027
    %v7472 = vunpack.c.l.b16 %v3028
    %v7473 = vunpack.c.l.b16 %v3029
    %v7474 = vunpack.c.l.b16 %v3030
    %v7475 = vunpack.c.l.b16 %v3031
    %v7476 = vunpack.c.l.b16 %v3032
    %v7477 = vunpack.c.l.b16 %v3033
    %v7478 = vunpack.c.l.b16 %v3034
    %v7479 = vunpack.c.l.b16 %v3035
    %v7480 = vunpack.c.l.b16 %v3036
    %v7481 = vunpack.c.l.b16 %v3037
    %v7482 = vunpack.c.l.b16 %v3038
    %v7483 = vunpack.c.l.b16 %v3039
    %v7484 = vunpack.c.l.b16 %v3040
    %v7485 = vunpack.c.l.b16 %v3041
    %v7486 = vunpack.c.l.b16 %v3042
    %v7487 = vunpack.c.l.b16 %v3043
    %v7488 = vunpack.c.l.b16 %v3044
    %v7489 = vunpack.c.l.b16 %v3045
    %v7490 = vunpack.c.l.b16 %v3046
    %v7491 = vunpack.c.l.b16 %v3047
    %v7492 = vunpack.c.l.b16 %v3048
    %v7493 = vunpack.c.l.b16 %v3049
    %v7494 = vunpack.c.l.b16 %v3050
    %v7495 = vunpack.c.l.b16 %v3051
    %v7496 = vunpack.c.l.b16 %v3052
    %v7497 = vunpack.c.l.b16 %v3053
    %v7498 = vunpack.c.l.b16 %v3054
    %v7499 = vunpack.c.l.b16 %v3055
    %v7500 = vunpack.c.l.b16 %v3056
    %v7501 = vunpack.c.l.b16 %v3057
    %v7502 = vunpack.c.l.b16 %v3058
    %v7503 = vunpack.c.l.b16 %v3059
    %v7504 = vunpack.c.l.b16 %v3060
    %v7505 = vunpack.c.l.b16 %v3061
    %v7506 = vunpack.c.l.b16 %v3062
    %v7507 = vunpack.c.l.b16 %v3063
    %v7508 = vunpack.c.l.b16 %v3064
    %v7509 = vunpack.c.l.b16 %v3065
    %v7510 = vunpack.c.l.b16 %v3066
    %v7511 = vunpack.c.l.b16 %v3067
    %v7512 = vunpack.c.l.b16 %v3068
    %v7513 = vunpack.c.l.b16 %v3069
    %v7514 = vunpack.c.l.b16 %v3070
    %v7515 = vunpack.c.l.b16 %v3071
    %v7516 = vunpack.c.l.b16 %v3072
    %v7517 = vunpack.c.l.b16 %v3073
    %v7518 = vunpack.c.l.b16 %v3074
    %v7519 = vunpack.c.l.b16 %v3075
    %v7520 = vunpack.c.l.b16 %v3076
    %v7521 = vunpack.c.l.b16 %v3077
    %v7522 = vunpack.c.l.b16 %v3078
    %v7523 = vunpack.c.l.b16 %v3079
    %v7524 = vunpack.c.l.b16 %v3080
    %v7525 = vunpack.c.l.b16 %v3081
    %v7526 = vunpack.c.l.b16 %v3082
    %v7527 = vunpack.c.l.b16 %v3083
    %v7528 = vunpack.c.l.b16 %v3084
    %v7529 = vunpack.c.l.b16 %v3085
    %v7530 = vunpack.c.l.b16 %v3086
    %v7531 = vunpack.c.l.b16 %v3087
    %v7532 = vunpack.c.l.b16 %v3088
    %v7533 = vunpack.c.l.b16 %v3089
    %v7534 = vunpack.c.l.b16 %v3090
    %v7535 = vunpack.c.l.b16 %v3091
    %v7536 = vunpack.c.l.b16 %v3092
    %v7537 = vunpack.c.l.b16 %v3093
    %v7538 = vunpack.c.l.b16 %v3094
    %v7539 = vunpack.c.l.b16 %v3095
    %v7540 = vunpack.c.l.b16 %v3096
    %v7541 = vunpack.c.l.b16 %v3097
    %v7542 = vunpack.c.l.b16 %v3098
    %v7543 = vunpack.c.l.b16 %v3099
    %v7544 = vunpack.c.l.b16 %v3100
    %v7545 = vunpack.c.l.b16 %v3101
    %v7546 = vunpack.c.l.b16 %v3102
    %v7547 = vunpack.c.l.b16 %v3103
    %v7548 = vunpack.c.l.b16 %v3104
    %v7549 = vunpack.c.l.b16 %v3105
    %v7550 = vunpack.c.l.b16 %v3106
    %v7551 = vunpack.c.l.b16 %v3107
    %v7552 = vunpack.c.l.b16 %v3108
    %v7553 = vunpack.c.l.b16 %v3109
    %v7554 = vunpack.c.l.b16 %v3110
    %v7555 = vunpack.c.l.b16 %v3111
    %v7556 = vunpack.c.l.b16 %v3112
    %v7557 = vunpack.c.l.b16 %v3113
    %v7558 = vunpack.c.l.b16 %v3114
    %v7559 = vunpack.c.l.b16 %v3115
    %v7560 = vunpack.c.l.b16 %v3116
    %v7561 = vunpack.c.l.b16 %v3117
    %v7562 = vunpack.c.l.b16 %v3118
    %v7563 = vunpack.c.l.b16 %v3119
    %v7564 = vunpack.c.l.b16 %v3120
    %v7565 = vunpack.c.l.b16 %v3121
    %v7566 = vunpack.c.l.b16 %v3122
    %v7567 = vunpack.c.l.b16 %v3123
    %v7568 = vunpack.c.l.b16 %v3124
    %v7569 = vunpack.c.l.b16 %v3125
    %v7570 = vunpack.c.l.b16 %v3126
    %v7571 = vunpack.c.l.b16 %v3127
    %v7572 = vunpack.c.l.b16 %v3128
    %v7573 = vunpack.c.l.b16 %v3129
    %v7574 = vunpack.c.l.b16 %v3130
    %v7575 = vunpack.c.l.b16 %v3131
    %v7576 = vunpack.c.l.b16 %v3132
    %v7577 = vunpack.c.l.b16 %v3133
    %v7578 = vunpack.c.l.b16 %v3134
    %v7579 = vunpack.c.l.b16 %v3135
    %v7580 = vunpack.c.l.b16 %v3136
    %v7581 = vunpack.c.l.b16 %v3137
    %v7582 = vunpack.c.l.b16 %v3138
    %v7583 = vunpack.c.l.b16 %v3139
    %v7584 = vunpack.c.l.b16 %v3140
    %v7585 = vunpack.c.l.b16 %v3141
    %v7586 = vunpack.c.l.b16 %v3142
    %v7587 = vunpack.c.l.b16 %v3143
    %v7588 = vunpack.c.l.b16 %v3144
    %v7589 = vunpack.c.l.b16 %v3145
    %v7590 = vunpack.c.l.b16 %v3146
    %v7591 = vunpack.c.l.b16 %v3147
    %v7592 = vunpack.c.l.b16 %v3148
    %v7593 = vunpack.c.l.b16 %v3149
    %v7594 = vunpack.c.l.b16 %v3150
    %v7595 = vunpack.c.l.b16 %v3151
    %v7596 = vunpack.c.l.b16 %v3152
    %v7597 = vunpack.c.l.b16 %v3153
    %v7598 = vunpack.c.l.b16 %v3154
    %v7599 = vunpack.c.l.b16 %v3155
    %v7600 = vunpack.c.l.b16 %v3156
    %v7601 = vunpack.c.l.b16 %v3157
    %v7602 = vunpack.c.l.b16 %v3158
    %v7603 = vunpack.c.l.b16 %v3159
    %v7604 = vunpack.c.l.b16 %v3160
    %v7605 = vunpack.c.l.b16 %v3161
    %v7606 = vunpack.c.l.b16 %v3162
    %v7607 = vunpack.c.l.b16 %v3163
    %v7608 = vunpack.c.l.b16 %v3164
    %v7609 = vunpack.c.l.b16 %v3165
    %v7610 = vunpack.c.l.b16 %v3166
    %v7611 = vunpack.c.l.b16 %v3167
    %v7612 = vunpack.c.l.b16 %v3168
    %v7613 = vunpack.c.l.b16 %v3169
    %v7614 = vunpack.c.l.b16 %v3170
    %v7615 = vunpack.c.l.b16 %v3171
    %v7616 = vunpack.c.l.b16 %v3172
    %v7617 = vunpack.c.l.b16 %v3173
    %v7618 = vunpack.c.l.b16 %v3174
    %v7619 = vunpack.c.l.b16 %v3175
    %v7620 = vunpack.c.l.b16 %v3176
    %v7621 = vunpack.c.l.b16 %v3177
    %v7622 = vunpack.c.l.b16 %v3178
    %v7623 = vunpack.c.l.b16 %v3179
    %v7624 = vunpack.c.l.b16 %v3180
    %v7625 = vunpack.c.l.b16 %v3181
    %v7626 = vunpack.c.l.b16 %v3182
    %v7627 = vunpack.c.l.b16 %v3183
    %v7628 = vunpack.c.l.b16 %v3184
    %v7629 = vunpack.c.l.b16 %v3185
    %v7630 = vunpack.c.l.b16 %v3186
    %v7631 = vunpack.c.l.b16 %v3187
    %v7632 = vunpack.c.l.b16 %v3188
    %v7633 = vunpack.c.l.b16 %v3189
    %v7634 = vunpack.c.l.b16 %v3190
    %v7635 = vunpack.c.l.b16 %v3191
    %v7636 = vunpack.c.l.b16 %v3192
    %v7637 = vunpack.c.l.b16 %v3193
    %v7638 = vunpack.c.l.b16 %v3194
    %v7639 = vunpack.c.l.b16 %v3195
    %v7640 = vunpack.c.l.b16 %v3196
    %v7641 = vunpack.c.l.b16 %v3197
    %v7642 = vunpack.c.l.b16 %v3198
    %v7643 = vunpack.c.l.b16 %v3199
    %v7644 = vunpack.c.l.b16 %v3200
    %v7645 = vunpack.c.l.b16 %v3201
    %v7646 = vunpack.c.l.b16 %v3202
    %v7647 = vunpack.c.l.b16 %v3203
    %v7648 = vunpack.c.l.b16 %v3204
    %v7649 = vunpack.c.l.b16 %v3205
    %v7650 = vunpack.c.l.b16 %v3206
    %v7651 = vunpack.c.l.b16 %v3207
    %v7652 = vunpack.c.l.b16 %v3208
    %v7653 = vunpack.c.l.b16 %v3209
    %v7654 = vunpack.c.l.b16 %v3210
    %v7655 = vunpack.c.l.b16 %v3211
    %v7656 = vunpack.c.l.b16 %v3212
    %v7657 = vunpack.c.l.b16 %v3213
    %v7658 = vunpack.c.l.b16 %v3214
    %v7659 = vunpack.c.l.b16 %v3215
    %v7660 = vunpack.c.l.b16 %v3216
    %v7661 = vunpack.c.l.b16 %v3217
    %v7662 = vunpack.c.l.b16 %v3218
    %v7663 = vunpack.c.l.b16 %v3219
    %v7664 = vunpack.c.l.b16 %v3220
    %v7665 = vunpack.c.l.b16 %v3221
    %v7666 = vunpack.c.l.b16 %v3222
    %v7667 = vunpack.c.l.b16 %v3223
    %v7668 = vunpack.c.l.b16 %v3224
    %v7669 = vunpack.c.l.b16 %v3225
    %v7670 = vunpack.c.l.b16 %v3226
    %v7671 = vunpack.c.l.b16 %v3227
    %v7672 = vunpack.c.l.b16 %v3228
    %v7673 = vunpack.c.l.b16 %v3229
    %v7674 = vunpack.c.l.b16 %v3230
    %v7675 = vunpack.c.l.b16 %v3231
    %v7676 = vunpack.c.l.b16 %v3232
    %v7677 = vunpack.c.l.b16 %v3233
    %v7678 = vunpack.c.l.b16 %v3234
    %v7679 = vunpack.c.l.b16 %v3235
    %v7680 = vunpack.c.l.b16 %v3236
    %v7681 = vunpack.c.l.b16 %v3237
    %v7682 = vunpack.c.l.b16 %v3238
    %v7683 = vunpack.c.l.b16 %v3239
    %v7684 = vunpack.c.l.b16 %v3240
    %v7685 = vunpack.c.l.b16 %v3241
    %v7686 = vunpack.c.l.b16 %v3242
    %v7687 = vunpack.c.l.b16 %v3243
    %v7688 = vunpack.c.l.b16 %v3244
    %v7689 = vunpack.c.l.b16 %v3245
    %v7690 = vunpack.c.l.b16 %v3246
    %v7691 = vunpack.c.l.b16 %v3247
    %v7692 = vunpack.c.l.b16 %v3248
    %v7693 = vunpack.c.l.b16 %v3249
    %v7694 = vunpack.c.l.b16 %v3250
    %v7695 = vunpack.c.l.b16 %v3251
    %v7696 = vunpack.c.l.b16 %v3252
    %v7697 = vunpack.c.l.b16 %v3253
    %v7698 = vunpack.c.l.b16 %v3254
    %v7699 = vunpack.c.l.b16 %v3255
    %v7700 = vunpack.c.l.b16 %v3256
    %v7701 = vunpack.c.l.b16 %v3257
    %v7702 = vunpack.c.l.b16 %v3258
    %v7703 = vunpack.c.l.b16 %v3259
    %v7704 = vunpack.c.l.b16 %v3260
    %v7705 = vunpack.c.l.b16 %v3261
    %v7706 = vunpack.c.l.b16 %v3262
    %v7707 = vunpack.c.l.b16 %v3263
    %v7708 = vunpack.c.l.b16 %v3264
    %v7709 = vunpack.c.l.b16 %v3265
    %v7710 = vunpack.c.l.b16 %v3266
    %v7711 = vunpack.c.l.b16 %v3267
    %v7712 = vunpack.c.l.b16 %v3268
    %v7713 = vunpack.c.l.b16 %v3269
    %v7714 = vunpack.c.l.b16 %v3270
    %v7715 = vunpack.c.l.b16 %v3271
    %v7716 = vunpack.c.l.b16 %v3272
    %v7717 = vunpack.c.l.b16 %v3273
    %v7718 = vunpack.c.l.b16 %v3274
    %v7719 = vunpack.c.l.b16 %v3275
    %v7720 = vunpack.c.l.b16 %v3276
    %v7721 = vunpack.c.l.b16 %v3277
    %v7722 = vunpack.c.l.b16 %v3278
    %v7723 = vunpack.c.l.b16 %v3279
    %v7724 = vunpack.c.l.b16 %v3280
    %v7725 = vunpack.c.l.b16 %v3281
    %v7726 = vunpack.c.l.b16 %v3282
    %v7727 = vunpack.c.l.b16 %v3283
    %v7728 = vunpack.c.l.b16 %v3284
    %v7729 = vunpack.c.l.b16 %v3285
    %v7730 = vunpack.c.l.b16 %v3286
    %v7731 = vunpack.c.l.b16 %v3287
    %v7732 = vunpack.c.l.b16 %v3288
    %v7733 = vunpack.c.l.b16 %v3289
    %v7734 = vunpack.c.l.b16 %v3290
    %v7735 = vunpack.c.l.b16 %v3291
    %v7736 = vunpack.c.l.b16 %v3292
    %v7737 = vunpack.c.l.b16 %v3293
    %v7738 = vunpack.c.l.b16 %v3294
    %v7739 = vunpack.c.l.b16 %v3295
    %v7740 = vunpack.c.l.b16 %v3296
    %v7741 = vunpack.c.l.b16 %v3297
    %v7742 = vunpack.c.l.b16 %v3298
    %v7743 = vunpack.c.l.b16 %v3299
    %v7744 = vunpack.c.l.b16 %v3300
    %v7745 = vunpack.c.l.b16 %v3301
    %v7746 = vunpack.c.l.b16 %v3302
    %v7747 = vunpack.c.l.b16 %v3303
    %v7748 = vunpack.c.l.b16 %v3304
    %v7749 = vunpack.c.l.b16 %v3305
    %v7750 = vunpack.c.l.b16 %v3306
    %v7751 = vunpack.c.l.b16 %v3307
    %v7752 = vunpack.c.l.b16 %v3308
    %v7753 = vunpack.c.l.b16 %v3309
    %v7754 = vunpack.c.l.b16 %v3310
    %v7755 = vunpack.c.l.b16 %v3311
    %v7756 = vunpack.c.l.b16 %v3312
    %v7757 = vunpack.c.l.b16 %v3313
    %v7758 = vunpack.c.l.b16 %v3314
    %v7759 = vunpack.c.l.b16 %v3315
    %v7760 = vunpack.c.l.b16 %v3316
    %v7761 = vunpack.c.l.b16 %v3317
    %v7762 = vunpack.c.l.b16 %v3318
    %v7763 = vunpack.c.l.b16 %v3319
    %v7764 = vunpack.c.l.b16 %v3320
    %v7765 = vunpack.c.l.b16 %v3321
    %v7766 = vunpack.c.l.b16 %v3322
    %v7767 = vunpack.c.l.b16 %v3323
    %v7768 = vunpack.c.l.b16 %v3324
    %v7769 = vunpack.c.l.b16 %v3325
    %v7770 = vunpack.c.l.b16 %v3326
    %v7771 = vunpack.c.l.b16 %v3327
    %v7772 = vunpack.c.l.b16 %v3328
    %v7773 = vunpack.c.l.b16 %v3329
    %v7774 = vunpack.c.l.b16 %v3330
    %v7775 = vunpack.c.l.b16 %v3331
    %v7776 = vunpack.c.l.b16 %v3332
    %v7777 = vunpack.c.l.b16 %v3333
    %v7778 = vunpack.c.l.b16 %v3334
    %v7779 = vunpack.c.l.b16 %v3335
    %v7780 = vunpack.c.l.b16 %v3336
    %v7781 = vunpack.c.l.b16 %v3337
    %v7782 = vunpack.c.l.b16 %v3338
    %v7783 = vunpack.c.l.b16 %v3339
    %v7784 = vunpack.c.l.b16 %v3340
    %v7785 = vunpack.c.l.b16 %v3341
    %v7786 = vunpack.c.l.b16 %v3342
    %v7787 = vunpack.c.l.b16 %v3343
    %v7788 = vunpack.c.l.b16 %v3344
    %v7789 = vunpack.c.l.b16 %v3345
    %v7790 = vunpack.c.l.b16 %v3346
    %v7791 = vunpack.c.l.b16 %v3347
    %v7792 = vunpack.c.l.b16 %v3348
    %v7793 = vunpack.c.l.b16 %v3349
    %v7794 = vunpack.c.l.b16 %v3350
    %v7795 = vunpack.c.l.b16 %v3351
    %v7796 = vunpack.c.l.b16 %v3352
    %v7797 = vunpack.c.l.b16 %v3353
    %v7798 = vunpack.c.l.b16 %v3354
    %v7799 = vunpack.c.l.b16 %v3355
    %v7800 = vunpack.c.l.b16 %v3356
    %v7801 = vunpack.c.l.b16 %v3357
    %v7802 = vunpack.c.l.b16 %v3358
    %v7803 = vunpack.c.l.b16 %v3359
    %v7804 = vunpack.c.l.b16 %v3360
    %v7805 = vunpack.c.l.b16 %v3361
    %v7806 = vunpack.c.l.b16 %v3362
    %v7807 = vunpack.c.l.b16 %v3363
    %v7808 = vunpack.c.l.b16 %v3364
    %v7809 = vunpack.c.l.b16 %v3365
    %v7810 = vunpack.c.l.b16 %v3366
    %v7811 = vunpack.c.l.b16 %v3367
    %v7812 = vunpack.c.l.b16 %v3368
    %v7813 = vunpack.c.l.b16 %v3369
    %v7814 = vunpack.c.l.b16 %v3370
    %v7815 = vunpack.c.l.b16 %v3371
    %v7816 = vunpack.c.l.b16 %v3372
    %v7817 = vunpack.c.l.b16 %v3373
    %v7818 = vunpack.c.l.b16 %v3374
    %v7819 = vunpack.c.l.b16 %v3375
    %v7820 = vunpack.c.l.b16 %v3376
    %v7821 = vunpack.c.l.b16 %v3377
    %v7822 = vunpack.c.l.b16 %v3378
    %v7823 = vunpack.c.l.b16 %v3379
    %v7824 = vunpack.c.l.b16 %v3380
    %v7825 = vunpack.c.l.b16 %v3381
    %v7826 = vunpack.c.l.b16 %v3382
    %v7827 = vunpack.c.l.b16 %v3383
    %v7828 = vunpack.c.l.b16 %v3384
    %v7829 = vunpack.c.l.b16 %v3385
    %v7830 = vunpack.c.l.b16 %v3386
    %v7831 = vunpack.c.l.b16 %v3387
    %v7832 = vunpack.c.l.b16 %v3388
    %v7833 = vunpack.c.l.b16 %v3389
    %v7834 = vunpack.c.l.b16 %v3390
    %v7835 = vunpack.c.l.b16 %v3391
    %v7836 = vunpack.c.l.b16 %v3392
    %v7837 = vunpack.c.l.b16 %v3393
    %v7838 = vunpack.c.l.b16 %v3394
    %v7839 = vunpack.c.l.b16 %v3395
    %v7840 = vunpack.c.l.b16 %v3396
    %v7841 = vunpack.c.l.b16 %v3397
    %v7842 = vunpack.c.l.b16 %v3398
    %v7843 = vunpack.c.l.b16 %v3399
    %v7844 = vunpack.c.l.b16 %v3400
    %v7845 = vunpack.c.l.b16 %v3401
    %v7846 = vunpack.c.l.b16 %v3402
    %v7847 = vunpack.c.l.b16 %v3403
    %v7848 = vunpack.c.l.b16 %v3404
    %v7849 = vunpack.c.l.b16 %v3405
    %v7850 = vunpack.c.l.b16 %v3406
    %v7851 = vunpack.c.l.b16 %v3407
    %v7852 = vunpack.c.l.b16 %v3408
    %v7853 = vunpack.c.l.b16 %v3409
    %v7854 = vunpack.c.l.b16 %v3410
    %v7855 = vunpack.c.l.b16 %v3411
    %v7856 = vunpack.c.l.b16 %v3412
    %v7857 = vunpack.c.l.b16 %v3413
    %v7858 = vunpack.c.l.b16 %v3414
    %v7859 = vunpack.c.l.b16 %v3415
    %v7860 = vunpack.c.l.b16 %v3416
    %v7861 = vunpack.c.l.b16 %v3417
    %v7862 = vunpack.c.l.b16 %v3418
    %v7863 = vunpack.c.l.b16 %v3419
    %v7864 = vunpack.c.l.b16 %v3420
    %v7865 = vunpack.c.l.b16 %v3421
    %v7866 = vunpack.c.l.b16 %v3422
    %v7867 = vunpack.c.l.b16 %v3423
    %v7868 = vunpack.c.l.b16 %v3424
    %v7869 = vunpack.c.l.b16 %v3425
    %v7870 = vunpack.c.l.b16 %v3426
    %v7871 = vunpack.c.l.b16 %v3427
    %v7872 = vunpack.c.l.b16 %v3428
    %v7873 = vunpack.c.l.b16 %v3429
    %v7874 = vunpack.c.l.b16 %v3430
    %v7875 = vunpack.c.l.b16 %v3431
    %v7876 = vunpack.c.l.b16 %v3432
    %v7877 = vunpack.c.l.b16 %v3433
    %v7878 = vunpack.c.l.b16 %v3434
    %v7879 = vunpack.c.l.b16 %v3435
    %v7880 = vunpack.c.l.b16 %v3436
    %v7881 = vunpack.c.l.b16 %v3437
    %v7882 = vunpack.c.l.b16 %v3438
    %v7883 = vunpack.c.l.b16 %v3439
    %v7884 = vunpack.c.l.b16 %v3440
    %v7885 = vunpack.c.l.b16 %v3441
    %v7886 = vunpack.c.l.b16 %v3442
    %v7887 = vunpack.c.l.b16 %v3443
    %v7888 = vunpack.c.l.b16 %v3444
    %v7889 = vunpack.c.l.b16 %v3445
    %v7890 = vunpack.c.l.b16 %v3446
    %v7891 = vunpack.c.l.b16 %v3447
    %v7892 = vunpack.c.l.b16 %v3448
    %v7893 = vunpack.c.l.b16 %v3449
    %v7894 = vunpack.c.l.b16 %v3450
    %v7895 = vunpack.c.l.b16 %v3451
    %v7896 = vunpack.c.l.b16 %v3452
    %v7897 = vunpack.c.l.b16 %v3453
    %v7898 = vunpack.c.l.b16 %v3454
    %v7899 = vunpack.c.l.b16 %v3455
    %v7900 = vunpack.c.l.b16 %v3456
    %v7901 = vunpack.c.l.b16 %v3457
    %v7902 = vunpack.c.l.b16 %v3458
    %v7903 = vunpack.c.l.b16 %v3459
    %v7904 = vunpack.c.l.b16 %v3460
    %v7905 = vunpack.c.l.b16 %v3461
    %v7906 = vunpack.c.l.b16 %v3462
    %v7907 = vunpack.c.l.b16 %v3463
    %v7908 = vunpack.c.l.b16 %v3464
    %v7909 = vunpack.c.l.b16 %v3465
    %v7910 = vunpack.c.l.b16 %v3466
    %v7911 = vunpack.c.l.b16 %v3467
    %v7912 = vunpack.c.l.b16 %v3468
    %v7913 = vunpack.c.l.b16 %v3469
    %v7914 = vunpack.c.l.b16 %v3470
    %v7915 = vunpack.c.l.b16 %v3471
    %v7916 = vunpack.c.l.b16 %v3472
    %v7917 = vunpack.c.l.b16 %v3473
    %v7918 = vunpack.c.l.b16 %v3474
    %v7919 = vunpack.c.l.b16 %v3475
    %v7920 = vunpack.c.l.b16 %v3476
    %v7921 = vunpack.c.l.b16 %v3477
    %v7922 = vunpack.c.l.b16 %v3478
    %v7923 = vunpack.c.l.b16 %v3479
    %v7924 = vunpack.c.l.b16 %v3480
    %v7925 = vunpack.c.l.b16 %v3481
    %v7926 = vunpack.c.l.b16 %v3482
    %v7927 = vunpack.c.l.b16 %v3483
    %v7928 = vunpack.c.l.b16 %v3484
    %v7929 = vunpack.c.l.b16 %v3485
    %v7930 = vunpack.c.l.b16 %v3486
    %v7931 = vunpack.c.l.b16 %v3487
    %v7932 = vunpack.c.l.b16 %v3488
    %v7933 = vunpack.c.l.b16 %v3489
    %v7934 = vunpack.c.l.b16 %v3490
    %v7935 = vunpack.c.l.b16 %v3491
    %v7936 = vunpack.c.l.b16 %v3492
    %v7937 = vunpack.c.l.b16 %v3493
    %v7938 = vunpack.c.l.b16 %v3494
    %v7939 = vunpack.c.l.b16 %v3495
    %v7940 = vunpack.c.l.b16 %v3496
    %v7941 = vunpack.c.l.b16 %v3497
    %v7942 = vunpack.c.l.b16 %v3498
    %v7943 = vunpack.c.l.b16 %v3499
    %v7944 = vunpack.c.l.b16 %v3500
    %v7945 = vunpack.c.l.b16 %v3501
    %v7946 = vunpack.c.l.b16 %v3502
    %v7947 = vunpack.c.l.b16 %v3503
    %v7948 = vunpack.c.l.b16 %v3504
    %v7949 = vunpack.c.l.b16 %v3505
    %v7950 = vunpack.c.l.b16 %v3506
    %v7951 = vunpack.c.l.b16 %v3507
    %v7952 = vunpack.c.l.b16 %v3508
    %v7953 = vunpack.c.l.b16 %v3509
    %v7954 = vunpack.c.l.b16 %v3510
    %v7955 = vunpack.c.l.b16 %v3511
    %v7956 = vunpack.c.l.b16 %v3512
    %v7957 = vunpack.c.l.b16 %v3513
    %v7958 = vunpack.c.l.b16 %v3514
    %v7959 = vunpack.c.l.b16 %v3515
    %v7960 = vunpack.c.l.b16 %v3516
    %v7961 = vunpack.c.l.b16 %v3517
    %v7962 = vunpack.c.l.b16 %v3518
    %v7963 = vunpack.c.l.b16 %v3519
    %v7964 = vunpack.c.l.b16 %v3520
    %v7965 = vunpack.c.l.b16 %v3521
    %v7966 = vunpack.c.l.b16 %v3522
    %v7967 = vunpack.c.l.b16 %v3523
    %v7968 = vunpack.c.l.b16 %v3524
    %v7969 = vunpack.c.l.b16 %v3525
    %v7970 = vunpack.c.l.b16 %v3526
    %v7971 = vunpack.c.l.b16 %v3527
    %v7972 = vunpack.c.l.b16 %v3528
    %v7973 = vunpack.c.l.b16 %v3529
    %v7974 = vunpack.c.l.b16 %v3530
    %v7975 = vunpack.c.l.b16 %v3531
    %v7976 = vunpack.c.l.b16 %v3532
    %v7977 = vunpack.c.l.b16 %v3533
    %v7978 = vunpack.c.l.b16 %v3534
    %v7979 = vunpack.c.l.b16 %v3535
    %v7980 = vunpack.c.l.b16 %v3536
    %v7981 = vunpack.c.l.b16 %v3537
    %v7982 = vunpack.c.l.b16 %v3538
    %v7983 = vunpack.c.l.b16 %v3539
    %v7984 = vunpack.c.l.b16 %v3540
    %v7985 = vunpack.c.l.b16 %v3541
    %v7986 = vunpack.c.l.b16 %v3542
    %v7987 = vunpack.c.l.b16 %v3543
    %v7988 = vunpack.c.l.b16 %v3544
    %v7989 = vunpack.c.l.b16 %v3545
    %v7990 = vunpack.c.l.b16 %v3546
    %v7991 = vunpack.c.l.b16 %v3547
    %v7992 = vunpack.c.l.b16 %v3548
    %v7993 = vunpack.c.l.b16 %v3549
    %v7994 = vunpack.c.l.b16 %v3550
    %v7995 = vunpack.c.l.b16 %v3551
    %v7996 = vunpack.c.l.b16 %v3552
    %v7997 = vunpack.c.l.b16 %v3553
    %v7998 = vunpack.c.l.b16 %v3554
    %v7999 = vunpack.c.l.b16 %v3555
    %v8000 = vunpack.c.l.b16 %v3556
    %v8001 = vunpack.c.l.b16 %v3557
    %v8002 = vunpack.c.l.b16 %v3558
    %v8003 = vunpack.c.l.b16 %v3559
    %v8004 = vunpack.c.l.b16 %v3560
    %v8005 = vunpack.c.l.b16 %v3561
    %v8006 = vunpack.c.l.b16 %v3562
    %v8007 = vunpack.c.l.b16 %v3563
    %v8008 = vunpack.c.l.b16 %v3564
    %v8009 = vunpack.c.l.b16 %v3565
    %v8010 = vunpack.c.l.b16 %v3566
    %v8011 = vunpack.c.l.b16 %v3567
    %v8012 = vunpack.c.l.b16 %v3568
    %v8013 = vunpack.c.l.b16 %v3569
    %v8014 = vunpack.c.l.b16 %v3570
    %v8015 = vunpack.c.l.b16 %v3571
    %v8016 = vunpack.c.l.b16 %v3572
    %v8017 = vunpack.c.l.b16 %v3573
    %v8018 = vunpack.c.l.b16 %v3574
    %v8019 = vunpack.c.l.b16 %v3575
    %v8020 = vunpack.c.l.b16 %v3576
    %v8021 = vunpack.c.l.b16 %v3577
    %v8022 = vunpack.c.l.b16 %v3578
    %v8023 = vunpack.c.l.b16 %v3579
    %v8024 = vunpack.c.l.b16 %v3580
    %v8025 = vunpack.c.l.b16 %v3581
    %v8026 = vunpack.c.l.b16 %v3582
    %v8027 = vunpack.c.l.b16 %v3583
    %v8028 = vunpack.c.l.b16 %v3584
    %v8029 = vunpack.c.l.b16 %v3585
    %v8030 = vunpack.c.l.b16 %v3586
    %v8031 = vunpack.c.l.b16 %v3587
    %v8032 = vunpack.c.l.b16 %v3588
    %v8033 = vunpack.c.l.b16 %v3589
    %v8034 = vunpack.c.l.b16 %v3590
    %v8035 = vunpack.c.l.b16 %v3591
    %v8036 = vunpack.c.l.b16 %v3592
    %v8037 = vunpack.c.l.b16 %v3593
    %v8038 = vunpack.c.l.b16 %v3594
    %v8039 = vunpack.c.l.b16 %v3595
    %v8040 = vunpack.c.l.b16 %v3596
    %v8041 = vunpack.c.l.b16 %v3597
    %v8042 = vunpack.c.l.b16 %v3598
    %v8043 = vunpack.c.l.b16 %v3599
    %v8044 = vunpack.c.l.b16 %v3600
    %v8045 = vunpack.c.l.b16 %v3601
    %v8046 = vunpack.c.l.b16 %v3602
    %v8047 = vunpack.c.l.b16 %v3603
    %v8048 = vunpack.c.l.b16 %v3604
    %v8049 = vunpack.c.l.b16 %v3605
    %v8050 = vunpack.c.l.b16 %v3606
    %v8051 = vunpack.c.l.b16 %v3607
    %v8052 = vunpack.c.l.b16 %v3608
    %v8053 = vunpack.c.l.b16 %v3609
    %v8054 = vunpack.c.l.b16 %v3610
    %v8055 = vunpack.c.l.b16 %v3611
    %v8056 = vunpack.c.l.b16 %v3612
    %v8057 = vunpack.c.l.b16 %v3613
    %v8058 = vunpack.c.l.b16 %v3614
    %v8059 = vunpack.c.l.b16 %v3615
    %v8060 = vunpack.c.l.b16 %v3616
    %v8061 = vunpack.c.l.b16 %v3617
    %v8062 = vunpack.c.l.b16 %v3618
    %v8063 = vunpack.c.l.b16 %v3619
    %v8064 = vunpack.c.l.b16 %v3620
    %v8065 = vunpack.c.l.b16 %v3621
    %v8066 = vunpack.c.l.b16 %v3622
    %v8067 = vunpack.c.l.b16 %v3623
    %v8068 = vunpack.c.l.b16 %v3624
    %v8069 = vunpack.c.l.b16 %v3625
    %v8070 = vunpack.c.l.b16 %v3626
    %v8071 = vunpack.c.l.b16 %v3627
    %v8072 = vunpack.c.l.b16 %v3628
    %v8073 = vunpack.c.l.b16 %v3629
    %v8074 = vunpack.c.l.b16 %v3630
    %v8075 = vunpack.c.l.b16 %v3631
    %v8076 = vunpack.c.l.b16 %v3632
    %v8077 = vunpack.c.l.b16 %v3633
    %v8078 = vunpack.c.l.b16 %v3634
    %v8079 = vunpack.c.l.b16 %v3635
    %v8080 = vunpack.c.l.b16 %v3636
    %v8081 = vunpack.c.l.b16 %v3637
    %v8082 = vunpack.c.l.b16 %v3638
    %v8083 = vunpack.c.l.b16 %v3639
    %v8084 = vunpack.c.l.b16 %v3640
    %v8085 = vunpack.c.l.b16 %v3641
    %v8086 = vunpack.c.l.b16 %v3642
    %v8087 = vunpack.c.l.b16 %v3643
    %v8088 = vunpack.c.l.b16 %v3644
    %v8089 = vunpack.c.l.b16 %v3645
    %v8090 = vunpack.c.l.b16 %v3646
    %v8091 = vunpack.c.l.b16 %v3647
    %v8092 = vunpack.c.l.b16 %v3648
    %v8093 = vunpack.c.l.b16 %v3649
    %v8094 = vunpack.c.l.b16 %v3650
    %v8095 = vunpack.c.l.b16 %v3651
    %v8096 = vunpack.c.l.b16 %v3652
    %v8097 = vunpack.c.l.b16 %v3653
    %v8098 = vunpack.c.l.b16 %v3654
    %v8099 = vunpack.c.l.b16 %v3655
    %v8100 = vunpack.c.l.b16 %v3656
    %v8101 = vunpack.c.l.b16 %v3657
    %v8102 = vunpack.c.l.b16 %v3658
    %v8103 = vunpack.c.l.b16 %v3659
    %v8104 = vunpack.c.l.b16 %v3660
    %v8105 = vunpack.c.l.b16 %v3661
    %v8106 = vunpack.c.l.b16 %v3662
    %v8107 = vunpack.c.l.b16 %v3663
    %v8108 = vunpack.c.l.b16 %v3664
    %v8109 = vunpack.c.l.b16 %v3665
    %v8110 = vunpack.c.l.b16 %v3666
    %v8111 = vunpack.c.l.b16 %v3667
    %v8112 = vunpack.c.l.b16 %v3668
    %v8113 = vunpack.c.l.b16 %v3669
    %v8114 = vunpack.c.l.b16 %v3670
    %v8115 = vunpack.c.l.b16 %v3671
    %v8116 = vunpack.c.l.b16 %v3672
    %v8117 = vunpack.c.l.b16 %v3673
    %v8118 = vunpack.c.l.b16 %v3674
    %v8119 = vunpack.c.l.b16 %v3675
    %v8120 = vunpack.c.l.b16 %v3676
    %v8121 = vunpack.c.l.b16 %v3677
    %v8122 = vunpack.c.l.b16 %v3678
    %v8123 = vunpack.c.l.b16 %v3679
    %v8124 = vunpack.c.l.b16 %v3680
    %v8125 = vunpack.c.l.b16 %v3681
    %v8126 = vunpack.c.l.b16 %v3682
    %v8127 = vunpack.c.l.b16 %v3683
    %v8128 = vunpack.c.l.b16 %v3684
    %v8129 = vunpack.c.l.b16 %v3685
    %v8130 = vunpack.c.l.b16 %v3686
    %v8131 = vunpack.c.l.b16 %v3687
    %v8132 = vunpack.c.l.b16 %v3688
    %v8133 = vunpack.c.l.b16 %v3689
    %v8134 = vunpack.c.l.b16 %v3690
    %v8135 = vunpack.c.l.b16 %v3691
    %v8136 = vunpack.c.l.b16 %v3692
    %v8137 = vunpack.c.l.b16 %v3693
    %v8138 = vunpack.c.l.b16 %v3694
    %v8139 = vunpack.c.l.b16 %v3695
    %v8140 = vunpack.c.l.b16 %v3696
    %v8141 = vunpack.c.l.b16 %v3697
    %v8142 = vunpack.c.l.b16 %v3698
    %v8143 = vunpack.c.l.b16 %v3699
    %v8144 = vunpack.c.l.b16 %v3700
    %v8145 = vunpack.c.l.b16 %v3701
    %v8146 = vunpack.c.l.b16 %v3702
    %v8147 = vunpack.c.l.b16 %v3703
    %v8148 = vunpack.c.l.b16 %v3704
    %v8149 = vunpack.c.l.b16 %v3705
    %v8150 = vunpack.c.l.b16 %v3706
    %v8151 = vunpack.c.l.b16 %v3707
    %v8152 = vunpack.c.l.b16 %v3708
    %v8153 = vunpack.c.l.b16 %v3709
    %v8154 = vunpack.c.l.b16 %v3710
    %v8155 = vunpack.c.l.b16 %v3711
    %v8156 = vunpack.c.l.b16 %v3712
    %v8157 = vunpack.c.l.b16 %v3713
    %v8158 = vunpack.c.l.b16 %v3714
    %v8159 = vunpack.c.l.b16 %v3715
    %v8160 = vunpack.c.l.b16 %v3716
    %v8161 = vunpack.c.l.b16 %v3717
    %v8162 = vunpack.c.l.b16 %v3718
    %v8163 = vunpack.c.l.b16 %v3719
    %v8164 = vunpack.c.l.b16 %v3720
    %v8165 = vunpack.c.l.b16 %v3721
    %v8166 = vunpack.c.l.b16 %v3722
    %v8167 = vunpack.c.l.b16 %v3723
    %v8168 = vunpack.c.l.b16 %v3724
    %v8169 = vunpack.c.l.b16 %v3725
    %v8170 = vunpack.c.l.b16 %v3726
    %v8171 = vunpack.c.l.b16 %v3727
    %v8172 = vunpack.c.l.b16 %v3728
    %v8173 = vunpack.c.l.b16 %v3729
    %v8174 = vunpack.c.l.b16 %v3730
    %v8175 = vunpack.c.l.b16 %v3731
    %v8176 = vunpack.c.l.b16 %v3732
    %v8177 = vunpack.c.l.b16 %v3733
    %v8178 = vunpack.c.l.b16 %v3734
    %v8179 = vunpack.c.l.b16 %v3735
    %v8180 = vunpack.c.l.b16 %v3736
    %v8181 = vunpack.c.l.b16 %v3737
    %v8182 = vunpack.c.l.b16 %v3738
    %v8183 = vunpack.c.l.b16 %v3739
    %v8184 = vunpack.c.l.b16 %v3740
    %v8185 = vunpack.c.l.b16 %v3741
    %v8186 = vunpack.c.l.b16 %v3742
    %v8187 = vunpack.c.l.b16 %v3743
    %v8188 = vunpack.c.l.b16 %v3744
    %v8189 = vunpack.c.l.b16 %v3745
    %v8190 = vunpack.c.l.b16 %v3746
    %v8191 = vunpack.c.l.b16 %v3747
    %v8192 = vunpack.c.l.b16 %v3748
    %v8193 = vunpack.c.l.b16 %v3749
    %v8194 = vunpack.c.l.b16 %v3750
    %v8195 = vunpack.c.l.b16 %v3751
    %v8196 = vunpack.c.l.b16 %v3752
    %v8197 = vunpack.c.l.b16 %v3753
    %v8198 = vunpack.c.l.b16 %v3754
    %v8199 = vunpack.c.l.b16 %v3755
    %v8200 = vunpack.c.l.b16 %v3756
    %v8201 = vunpack.c.l.b16 %v3757
    %v8202 = vunpack.c.l.b16 %v3758
    %v8203 = vunpack.c.l.b16 %v3759
    %v8204 = vunpack.c.l.b16 %v3760
    %v8205 = vunpack.c.l.b16 %v3761
    %v8206 = vunpack.c.l.b16 %v3762
    %v8207 = vunpack.c.l.b16 %v3763
    %v8208 = vunpack.c.l.b16 %v3764
    %v8209 = vunpack.c.l.b16 %v3765
    %v8210 = vunpack.c.l.b16 %v3766
    %v8211 = vunpack.c.l.b16 %v3767
    %v8212 = vunpack.c.l.b16 %v3768
    %v8213 = vunpack.c.l.b16 %v3769
    %v8214 = vunpack.c.l.b16 %v3770
    %v8215 = vunpack.c.l.b16 %v3771
    %v8216 = vunpack.c.l.b16 %v3772
    %v8217 = vunpack.c.l.b16 %v3773
    %v8218 = vunpack.c.l.b16 %v3774
    %v8219 = vunpack.c.l.b16 %v3775
    %v8220 = vunpack.c.l.b16 %v3776
    %v8221 = vunpack.c.l.b16 %v3777
    %v8222 = vunpack.c.l.b16 %v3778
    %v8223 = vunpack.c.l.b16 %v3779
    %v8224 = vunpack.c.l.b16 %v3780
    %v8225 = vunpack.c.l.b16 %v3781
    %v8226 = vunpack.c.l.b16 %v3782
    %v8227 = vunpack.c.l.b16 %v3783
    %v8228 = vunpack.c.l.b16 %v3784
    %v8229 = vunpack.c.l.b16 %v3785
    %v8230 = vunpack.c.l.b16 %v3786
    %v8231 = vunpack.c.l.b16 %v3787
    %v8232 = vunpack.c.l.b16 %v3788
    %v8233 = vunpack.c.l.b16 %v3789
    %v8234 = vunpack.c.l.b16 %v3790
    %v8235 = vunpack.c.l.b16 %v3791
    %v8236 = vunpack.c.l.b16 %v3792
    %v8237 = vunpack.c.l.b16 %v3793
    %v8238 = vunpack.c.l.b16 %v3794
    %v8239 = vunpack.c.l.b16 %v3795
    %v8240 = vunpack.c.l.b16 %v3796
    %v8241 = vunpack.c.l.b16 %v3797
    %v8242 = vunpack.c.l.b16 %v3798
    %v8243 = vunpack.c.l.b16 %v3799
    %v8244 = vunpack.c.l.b16 %v3800
    %v8245 = vunpack.c.l.b16 %v3801
    %v8246 = vunpack.c.l.b16 %v3802
    %v8247 = vunpack.c.l.b16 %v3803
    %v8248 = vunpack.c.l.b16 %v3804
    %v8249 = vunpack.c.l.b16 %v3805
    %v8250 = vunpack.c.l.b16 %v3806
    %v8251 = vunpack.c.l.b16 %v3807
    %v8252 = vunpack.c.l.b16 %v3808
    %v8253 = vunpack.c.l.b16 %v3809
    %v8254 = vunpack.c.l.b16 %v3810
    %v8255 = vunpack.c.l.b16 %v3811
    %v8256 = vunpack.c.l.b16 %v3812
    %v8257 = vunpack.c.l.b16 %v3813
    %v8258 = vunpack.c.l.b16 %v3814
    %v8259 = vunpack.c.l.b16 %v3815
    %v8260 = vunpack.c.l.b16 %v3816
    %v8261 = vunpack.c.l.b16 %v3817
    %v8262 = vunpack.c.l.b16 %v3818
    %v8263 = vunpack.c.l.b16 %v3819
    %v8264 = vunpack.c.l.b16 %v3820
    %v8265 = vunpack.c.l.b16 %v3821
    %v8266 = vunpack.c.l.b16 %v3822
    %v8267 = vunpack.c.l.b16 %v3823
    %v8268 = vunpack.c.l.b16 %v3824
    %v8269 = vunpack.c.l.b16 %v3825
    %v8270 = vunpack.c.l.b16 %v3826
    %v8271 = vunpack.c.l.b16 %v3827
    %v8272 = vunpack.c.l.b16 %v3828
    %v8273 = vunpack.c.l.b16 %v3829
    %v8274 = vunpack.c.l.b16 %v3830
    %v8275 = vunpack.c.l.b16 %v3831
    %v8276 = vunpack.c.l.b16 %v3832
    %v8277 = vunpack.c.l.b16 %v3833
    %v8278 = vunpack.c.l.b16 %v3834
    %v8279 = vunpack.c.l.b16 %v3835
    %v8280 = vunpack.c.l.b16 %v3836
    %v8281 = vunpack.c.l.b16 %v3837
    %v8282 = vunpack.c.l.b16 %v3838
    %v8283 = vunpack.c.l.b16 %v3839
    %v8284 = vunpack.c.l.b16 %v3840
    %v8285 = vunpack.c.l.b16 %v3841
    %v8286 = vunpack.c.l.b16 %v3842
    %v8287 = vunpack.c.l.b16 %v3843
    %v8288 = vunpack.c.l.b16 %v3844
    %v8289 = vunpack.c.l.b16 %v3845
    %v8290 = vunpack.c.l.b16 %v3846
    %v8291 = vunpack.c.l.b16 %v3847
    %v8292 = vunpack.c.l.b16 %v3848
    %v8293 = vunpack.c.l.b16 %v3849
    %v8294 = vunpack.c.l.b16 %v3850
    %v8295 = vunpack.c.l.b16 %v3851
    %v8296 = vunpack.c.l.b16 %v3852
    %v8297 = vunpack.c.l.b16 %v3853
    %v8298 = vunpack.c.l.b16 %v3854
    %v8299 = vunpack.c.l.b16 %v3855
    %v8300 = vunpack.c.l.b16 %v3856
    %v8301 = vunpack.c.l.b16 %v3857
    %v8302 = vunpack.c.l.b16 %v3858
    %v8303 = vunpack.c.l.b16 %v3859
    %v8304 = vunpack.c.l.b16 %v3860
    %v8305 = vunpack.c.l.b16 %v3861
    %v8306 = vunpack.c.l.b16 %v3862
    %v8307 = vunpack.c.l.b16 %v3863
    %v8308 = vunpack.c.l.b16 %v3864
    %v8309 = vunpack.c.l.b16 %v3865
    %v8310 = vunpack.c.l.b16 %v3866
    %v8311 = vunpack.c.l.b16 %v3867
    %v8312 = vunpack.c.l.b16 %v3868
    %v8313 = vunpack.c.l.b16 %v3869
    %v8314 = vunpack.c.l.b16 %v3870
    %v8315 = vunpack.c.l.b16 %v3871
    %v8316 = vunpack.c.l.b16 %v3872
    %v8317 = vunpack.c.l.b16 %v3873
    %v8318 = vunpack.c.l.b16 %v3874
    %v8319 = vunpack.c.l.b16 %v3875
    %v8320 = vunpack.c.l.b16 %v3876
    %v8321 = vunpack.c.l.b16 %v3877
    %v8322 = vunpack.c.l.b16 %v3878
    %v8323 = vunpack.c.l.b16 %v3879
    %v8324 = vunpack.c.l.b16 %v3880
    %v8325 = vunpack.c.l.b16 %v3881
    %v8326 = vunpack.c.l.b16 %v3882
    %v8327 = vunpack.c.l.b16 %v3883
    %v8328 = vunpack.c.l.b16 %v3884
    %v8329 = vunpack.c.l.b16 %v3885
    %v8330 = vunpack.c.l.b16 %v3886
    %v8331 = vunpack.c.l.b16 %v3887
    %v8332 = vunpack.c.l.b16 %v3888
    %v8333 = vunpack.c.l.b16 %v3889
    %v8334 = vunpack.c.l.b16 %v3890
    %v8335 = vunpack.c.l.b16 %v3891
    %v8336 = vunpack.c.l.b16 %v3892
    %v8337 = vunpack.c.l.b16 %v3893
    %v8338 = vunpack.c.l.b16 %v3894
    %v8339 = vunpack.c.l.b16 %v3895
    %v8340 = vunpack.c.l.b16 %v3896
    %v8341 = vunpack.c.l.b16 %v3897
    %v8342 = vunpack.c.l.b16 %v3898
    %v8343 = vunpack.c.l.b16 %v3899
    %v8344 = vunpack.c.l.b16 %v3900
    %v8345 = vunpack.c.l.b16 %v3901
    %v8346 = vunpack.c.l.b16 %v3902
    %v8347 = vunpack.c.l.b16 %v3903
    %v8348 = vunpack.c.l.b16 %v3904
    %v8349 = vunpack.c.l.b16 %v3905
    %v8350 = vunpack.c.l.b16 %v3906
    %v8351 = vunpack.c.l.b16 %v3907
    %v8352 = vunpack.c.l.b16 %v3908
    %v8353 = vunpack.c.l.b16 %v3909
    %v8354 = vunpack.c.l.b16 %v3910
    %v8355 = vunpack.c.l.b16 %v3911
    %v8356 = vunpack.c.l.b16 %v3912
    %v8357 = vunpack.c.l.b16 %v3913
    %v8358 = vunpack.c.l.b16 %v3914
    %v8359 = vunpack.c.l.b16 %v3915
    %v8360 = vunpack.c.l.b16 %v3916
    %v8361 = vunpack.c.l.b16 %v3917
    %v8362 = vunpack.c.l.b16 %v3918
    %v8363 = vunpack.c.l.b16 %v3919
    %v8364 = vunpack.c.l.b16 %v3920
    %v8365 = vunpack.c.l.b16 %v3921
    %v8366 = vunpack.c.l.b16 %v3922
    %v8367 = vunpack.c.l.b16 %v3923
    %v8368 = vunpack.c.l.b16 %v3924
    %v8369 = vunpack.c.l.b16 %v3925
    %v8370 = vunpack.c.l.b16 %v3926
    %v8371 = vunpack.c.l.b16 %v3927
    %v8372 = vunpack.c.l.b16 %v3928
    %v8373 = vunpack.c.l.b16 %v3929
    %v8374 = vunpack.c.l.b16 %v3930
    %v8375 = vunpack.c.l.b16 %v3931
    %v8376 = vunpack.c.l.b16 %v3932
    %v8377 = vunpack.c.l.b16 %v3933
    %v8378 = vunpack.c.l.b16 %v3934
    %v8379 = vunpack.c.l.b16 %v3935
    %v8380 = vunpack.c.l.b16 %v3936
    %v8381 = vunpack.c.l.b16 %v3937
    %v8382 = vunpack.c.l.b16 %v3938
    %v8383 = vunpack.c.l.b16 %v3939
    %v8384 = vunpack.c.l.b16 %v3940
    %v8385 = vunpack.c.l.b16 %v3941
    %v8386 = vunpack.c.l.b16 %v3942
    %v8387 = vunpack.c.l.b16 %v3943
    %v8388 = vunpack.c.l.b16 %v3944
    %v8389 = vunpack.c.l.b16 %v3945
    %v8390 = vunpack.c.l.b16 %v3946
    %v8391 = vunpack.c.l.b16 %v3947
    %v8392 = vunpack.c.l.b16 %v3948
    %v8393 = vunpack.c.l.b16 %v3949
    %v8394 = vunpack.c.l.b16 %v3950
    %v8395 = vunpack.c.l.b16 %v3951
    %v8396 = vunpack.c.l.b16 %v3952
    %v8397 = vunpack.c.l.b16 %v3953
    %v8398 = vunpack.c.l.b16 %v3954
    %v8399 = vunpack.c.l.b16 %v3955
    %v8400 = vunpack.c.l.b16 %v3956
    %v8401 = vunpack.c.l.b16 %v3957
    %v8402 = vunpack.c.l.b16 %v3958
    %v8403 = vunpack.c.l.b16 %v3959
    %v8404 = vunpack.c.l.b16 %v3960
    %v8405 = vunpack.c.l.b16 %v3961
    %v8406 = vunpack.c.l.b16 %v3962
    %v8407 = vunpack.c.l.b16 %v3963
    %v8408 = vunpack.c.l.b16 %v3964
    %v8409 = vunpack.c.l.b16 %v3965
    %v8410 = vunpack.c.l.b16 %v3966
    %v8411 = vunpack.c.l.b16 %v3967
    %v8412 = vunpack.c.l.b16 %v3968
    %v8413 = vunpack.c.l.b16 %v3969
    %v8414 = vunpack.c.l.b16 %v3970
    %v8415 = vunpack.c.l.b16 %v3971
    %v8416 = vunpack.c.l.b16 %v3972
    %v8417 = vunpack.c.l.b16 %v3973
    %v8418 = vunpack.c.l.b16 %v3974
    %v8419 = vunpack.c.l.b16 %v3975
    %v8420 = vunpack.c.l.b16 %v3976
    %v8421 = vunpack.c.l.b16 %v3977
    %v8422 = vunpack.c.l.b16 %v3978
    %v8423 = vunpack.c.l.b16 %v3979
    %v8424 = vunpack.c.l.b16 %v3980
    %v8425 = vunpack.c.l.b16 %v3981
    %v8426 = vunpack.c.l.b16 %v3982
    %v8427 = vunpack.c.l.b16 %v3983
    %v8428 = vunpack.c.l.b16 %v3984
    %v8429 = vunpack.c.l.b16 %v3985
    %v8430 = vunpack.c.l.b16 %v3986
    %v8431 = vunpack.c.l.b16 %v3987
    %v8432 = vunpack.c.l.b16 %v3988
    %v8433 = vunpack.c.l.b16 %v3989
    %v8434 = vunpack.c.l.b16 %v3990
    %v8435 = vunpack.c.l.b16 %v3991
    %v8436 = vunpack.c.l.b16 %v3992
    %v8437 = vunpack.c.l.b16 %v3993
    %v8438 = vunpack.c.l.b16 %v3994
    %v8439 = vunpack.c.l.b16 %v3995
    %v8440 = vunpack.c.l.b16 %v3996
    %v8441 = vunpack.c.l.b16 %v3997
    %v8442 = vunpack.c.l.b16 %v3998
    %v8443 = vunpack.c.l.b16 %v3999
    %v8444 = vunpack.c.l.b16 %v4000
    %v8445 = vunpack.c.l.b16 %v4001
    %v8446 = vunpack.c.l.b16 %v4002
    %v8447 = vunpack.c.l.b16 %v4003
    %v8448 = vunpack.c.l.b16 %v4004
    %v8449 = vunpack.c.l.b16 %v4005
    %v8450 = vunpack.c.l.b16 %v4006
    %v8451 = vunpack.c.l.b16 %v4007
    %v8452 = vunpack.c.l.b16 %v4008
    %v8453 = vunpack.c.l.b16 %v4009
    %v8454 = vunpack.c.l.b16 %v4010
    %v8455 = vunpack.c.l.b16 %v4011
    %v8456 = vunpack.c.l.b16 %v4012
    %v8457 = vunpack.c.l.b16 %v4013
    %v8458 = vunpack.c.l.b16 %v4014
    %v8459 = vunpack.c.l.b16 %v4015
    %v8460 = vunpack.c.l.b16 %v4016
    %v8461 = vunpack.c.l.b16 %v4017
    %v8462 = vunpack.c.l.b16 %v4018
    %v8463 = vunpack.c.l.b16 %v4019
    %v8464 = vunpack.c.l.b16 %v4020
    %v8465 = vunpack.c.l.b16 %v4021
    %v8466 = vunpack.c.l.b16 %v4022
    %v8467 = vunpack.c.l.b16 %v4023
    %v8468 = vunpack.c.l.b16 %v4024
    %v8469 = vunpack.c.l.b16 %v4025
    %v8470 = vunpack.c.l.b16 %v4026
    %v8471 = vunpack.c.l.b16 %v4027
    %v8472 = vunpack.c.l.b16 %v4028
    %v8473 = vunpack.c.l.b16 %v4029
    %v8474 = vunpack.c.l.b16 %v4030
    %v8475 = vunpack.c.l.b16 %v4031
    %v8476 = vunpack.c.l.b16 %v4032
    %v8477 = vunpack.c.l.b16 %v4033
    %v8478 = vunpack.c.l.b16 %v4034
    %v8479 = vunpack.c.l.b16 %v4035
    %v8480 = vunpack.c.l.b16 %v4036
    %v8481 = vunpack.c.l.b16 %v4037
    %v8482 = vunpack.c.l.b16 %v4038
    %v8483 = vunpack.c.l.b16 %v4039
    %v8484 = vunpack.c.l.b16 %v4040
    %v8485 = vunpack.c.l.b16 %v4041
    %v8486 = vunpack.c.l.b16 %v4042
    %v8487 = vunpack.c.l.b16 %v4043
    %v8488 = vunpack.c.l.b16 %v4044
    %v8489 = vunpack.c.l.b16 %v4045
    %v8490 = vunpack.c.l.b16 %v4046
    %v8491 = vunpack.c.l.b16 %v4047
    %v8492 = vunpack.c.l.b16 %v4048
    %v8493 = vunpack.c.l.b16 %v4049
    %v8494 = vunpack.c.l.b16 %v4050
    %v8495 = vunpack.c.l.b16 %v4051
    %v8496 = vunpack.c.l.b16 %v4052
    %v8497 = vunpack.c.l.b16 %v4053
    %v8498 = vunpack.c.l.b16 %v4054
    %v8499 = vunpack.c.l.b16 %v4055
    %v8500 = vunpack.c.l.b16 %v4056
    %v8501 = vunpack.c.l.b16 %v4057
    %v8502 = vunpack.c.l.b16 %v4058
    %v8503 = vunpack.c.l.b16 %v4059
    %v8504 = vunpack.c.l.b16 %v4060
    %v8505 = vunpack.c.l.b16 %v4061
    %v8506 = vunpack.c.l.b16 %v4062
    %v8507 = vunpack.c.l.b16 %v4063
    %v8508 = vunpack.c.l.b16 %v4064
    %v8509 = vunpack.c.l.b16 %v4065
    %v8510 = vunpack.c.l.b16 %v4066
    %v8511 = vunpack.c.l.b16 %v4067
    %v8512 = vunpack.c.l.b16 %v4068
    %v8513 = vunpack.c.l.b16 %v4069
    %v8514 = vunpack.c.l.b16 %v4070
    %v8515 = vunpack.c.l.b16 %v4071
    %v8516 = vunpack.c.l.b16 %v4072
    %v8517 = vunpack.c.l.b16 %v4073
    %v8518 = vunpack.c.l.b16 %v4074
    %v8519 = vunpack.c.l.b16 %v4075
    %v8520 = vunpack.c.l.b16 %v4076
    %v8521 = vunpack.c.l.b16 %v4077
    %v8522 = vunpack.c.l.b16 %v4078
    %v8523 = vunpack.c.l.b16 %v4079
    %v8524 = vunpack.c.l.b16 %v4080
    %v8525 = vunpack.c.l.b16 %v4081
    %v8526 = vunpack.c.l.b16 %v4082
    %v8527 = vunpack.c.l.b16 %v4083
    %v8528 = vunpack.c.l.b16 %v4084
    %v8529 = vunpack.c.l.b16 %v4085
    %v8530 = vunpack.c.l.b16 %v4086
    %v8531 = vunpack.c.l.b16 %v4087
    %v8532 = vunpack.c.l.b16 %v4088
    %v8533 = vunpack.c.l.b16 %v4089
    %v8534 = vunpack.c.l.b16 %v4090
    %v8535 = vunpack.c.l.b16 %v4091
    %v8536 = vunpack.c.l.b16 %v4092
    %v8537 = vunpack.c.l.b16 %v4093
    %v8538 = vunpack.c.l.b16 %v4094
    %v8539 = vunpack.c.l.b16 %v4095
    %v8540 = vunpack.c.l.b16 %v4096
    %v8541 = vunpack.c.l.b16 %v4097
    %v8542 = vunpack.c.l.b16 %v4098
    %v8543 = vunpack.c.l.b16 %v4099
    %v8544 = vunpack.c.l.b16 %v4100
    %v8545 = vunpack.c.l.b16 %v4101
    %v8546 = vunpack.c.l.b16 %v4102
    %v8547 = vunpack.c.l.b16 %v4103
    %v8548 = vunpack.c.l.b16 %v4104
    %v8549 = vunpack.c.l.b16 %v4105
    %v8550 = vunpack.c.l.b16 %v4106
    %v8551 = vunpack.c.l.b16 %v4107
    %v8552 = vunpack.c.l.b16 %v4108
    %v8553 = vunpack.c.l.b16 %v4109
    %v8554 = vunpack.c.l.b16 %v4110
    %v8555 = vunpack.c.l.b16 %v4111
    %v8556 = vunpack.c.l.b16 %v4112
    %v8557 = vunpack.c.l.b16 %v4113
    %v8558 = vunpack.c.l.b16 %v4114
    %v8559 = vunpack.c.l.b16 %v4115
    %v8560 = vunpack.c.l.b16 %v4116
    %v8561 = vunpack.c.l.b16 %v4117
    %v8562 = vunpack.c.l.b16 %v4118
    %v8563 = vunpack.c.l.b16 %v4119
    %v8564 = vunpack.c.l.b16 %v4120
    %v8565 = vunpack.c.l.b16 %v4121
    %v8566 = vunpack.c.l.b16 %v4122
    %v8567 = vunpack.c.l.b16 %v4123
    %v8568 = vunpack.c.l.b16 %v4124
    %v8569 = vunpack.c.l.b16 %v4125
    %v8570 = vunpack.c.l.b16 %v4126
    %v8571 = vunpack.c.l.b16 %v4127
    %v8572 = vunpack.c.l.b16 %v4128
    %v8573 = vunpack.c.l.b16 %v4129
    %v8574 = vunpack.c.l.b16 %v4130
    %v8575 = vunpack.c.l.b16 %v4131
    %v8576 = vunpack.c.l.b16 %v4132
    %v8577 = vunpack.c.l.b16 %v4133
    %v8578 = vunpack.c.l.b16 %v4134
    %v8579 = vunpack.c.l.b16 %v4135
    %v8580 = vunpack.c.l.b16 %v4136
    %v8581 = vunpack.c.l.b16 %v4137
    %v8582 = vunpack.c.l.b16 %v4138
    %v8583 = vunpack.c.l.b16 %v4139
    %v8584 = vunpack.c.l.b16 %v4140
    %v8585 = vunpack.c.l.b16 %v4141
    %v8586 = vunpack.c.l.b16 %v4142
    %v8587 = vunpack.c.l.b16 %v4143
    %v8588 = vunpack.c.l.b16 %v4144
    %v8589 = vunpack.c.l.b16 %v4145
    %v8590 = vunpack.c.l.b16 %v4146
    %v8591 = vunpack.c.l.b16 %v4147
    %v8592 = vunpack.c.l.b16 %v4148
    %v8593 = vunpack.c.l.b16 %v4149
    %v8594 = vunpack.c.l.b16 %v4150
    %v8595 = vunpack.c.l.b16 %v4151
    %v8596 = vunpack.c.l.b16 %v4152
    %v8597 = vunpack.c.l.b16 %v4153
    %v8598 = vunpack.c.l.b16 %v4154
    %v8599 = vunpack.c.l.b16 %v4155
    %v8600 = vunpack.c.l.b16 %v4156
    %v8601 = vunpack.c.l.b16 %v4157
    %v8602 = vunpack.c.l.b16 %v4158
    %v8603 = vunpack.c.l.b16 %v4159
    %v8604 = vunpack.c.l.b16 %v4160
    %v8605 = vunpack.c.l.b16 %v4161
    %v8606 = vunpack.c.l.b16 %v4162
    %v8607 = vunpack.c.l.b16 %v4163
    %v8608 = vunpack.c.l.b16 %v4164
    %v8609 = vunpack.c.l.b16 %v4165
    %v8610 = vunpack.c.l.b16 %v4166
    %v8611 = vunpack.c.l.b16 %v4167
    %v8612 = vunpack.c.l.b16 %v4168
    %v8613 = vunpack.c.l.b16 %v4169
    %v8614 = vunpack.c.l.b16 %v4170
    %v8615 = vunpack.c.l.b16 %v4171
    %v8616 = vunpack.c.l.b16 %v4172
    %v8617 = vunpack.c.l.b16 %v4173
    %v8618 = vunpack.c.l.b16 %v4174
    %v8619 = vunpack.c.l.b16 %v4175
    %v8620 = vunpack.c.l.b16 %v4176
    %v8621 = vunpack.c.l.b16 %v4177
    %v8622 = vunpack.c.l.b16 %v4178
    %v8623 = vunpack.c.l.b16 %v4179
    %v8624 = vunpack.c.l.b16 %v4180
    %v8625 = vunpack.c.l.b16 %v4181
    %v8626 = vunpack.c.l.b16 %v4182
    %v8627 = vunpack.c.l.b16 %v4183
    %v8628 = vunpack.c.l.b16 %v4184
    %v8629 = vunpack.c.l.b16 %v4185
    %v8630 = vunpack.c.l.b16 %v4186
    %v8631 = vunpack.c.l.b16 %v4187
    %v8632 = vunpack.c.l.b16 %v4188
    %v8633 = vunpack.c.l.b16 %v4189
    %v8634 = vunpack.c.l.b16 %v4190
    %v8635 = vunpack.c.l.b16 %v4191
    %v8636 = vunpack.c.l.b16 %v4192
    %v8637 = vunpack.c.l.b16 %v4193
    %v8638 = vunpack.c.l.b16 %v4194
    %v8639 = vunpack.c.l.b16 %v4195
    %v8640 = vunpack.c.l.b16 %v4196
    %v8641 = vunpack.c.l.b16 %v4197
    %v8642 = vunpack.c.l.b16 %v4198
    %v8643 = vunpack.c.l.b16 %v4199
    %v8644 = vunpack.c.l.b16 %v4200
    %v8645 = vunpack.c.l.b16 %v4201
    %v8646 = vunpack.c.l.b16 %v4202
    %v8647 = vunpack.c.l.b16 %v4203
    %v8648 = vunpack.c.l.b16 %v4204
    %v8649 = vunpack.c.l.b16 %v4205
    %v8650 = vunpack.c.l.b16 %v4206
    %v8651 = vunpack.c.l.b16 %v4207
    %v8652 = vunpack.c.l.b16 %v4208
    %v8653 = vunpack.c.l.b16 %v4209
    %v8654 = vunpack.c.l.b16 %v4210
    %v8655 = vunpack.c.l.b16 %v4211
    %v8656 = vunpack.c.l.b16 %v4212
    %v8657 = vunpack.c.l.b16 %v4213
    %v8658 = vunpack.c.l.b16 %v4214
    %v8659 = vunpack.c.l.b16 %v4215
    %v8660 = vunpack.c.l.b16 %v4216
    %v8661 = vunpack.c.l.b16 %v4217
    %v8662 = vunpack.c.l.b16 %v4218
    %v8663 = vunpack.c.l.b16 %v4219
    %v8664 = vunpack.c.l.b16 %v4220
    %v8665 = vunpack.c.l.b16 %v4221
    %v8666 = vunpack.c.l.b16 %v4222
    %v8667 = vunpack.c.l.b16 %v4223
    %v8668 = vunpack.c.l.b16 %v4224
    %v8669 = vunpack.c.l.b16 %v4225
    %v8670 = vunpack.c.l.b16 %v4226
    %v8671 = vunpack.c.l.b16 %v4227
    %v8672 = vunpack.c.l.b16 %v4228
    %v8673 = vunpack.c.l.b16 %v4229
    %v8674 = vunpack.c.l.b16 %v4230
    %v8675 = vunpack.c.l.b16 %v4231
    %v8676 = vunpack.c.l.b16 %v4232
    %v8677 = vunpack.c.l.b16 %v4233
    %v8678 = vunpack.c.l.b16 %v4234
    %v8679 = vpack.c.b16 %v6872, %v6871
    %v8680 = vpack.c.b16 %v6874, %v6873
    %v8681 = vpack.c.b16 %v6876, %v6875
    %v8682 = vpack.c.b16 %v6878, %v6877
    %v8683 = vpack.c.b16 %v6880, %v6879
    %v8684 = vpack.c.b16 %v6882, %v6881
    %v8685 = vpack.c.b16 %v6884, %v6883
    %v8686 = vpack.c.b16 %v6886, %v6885
    %v8687 = vpack.c.b16 %v6888, %v6887
    %v8688 = vpack.c.b16 %v6890, %v6889
    %v8689 = vpack.c.b16 %v6892, %v6891
    %v8690 = vpack.c.b16 %v6894, %v6893
    %v8691 = vpack.c.b16 %v6896, %v6895
    %v8692 = vpack.c.b16 %v6898, %v6897
    %v8693 = vpack.c.b16 %v6900, %v6899
    %v8694 = vpack.c.b16 %v6902, %v6901
    %v8695 = vpack.c.b16 %v6904, %v6903
    %v8696 = vpack.c.b16 %v6906, %v6905
    %v8697 = vpack.c.b16 %v6908, %v6907
    %v8698 = vpack.c.b16 %v6910, %v6909
    %v8699 = vpack.c.b16 %v6912, %v6911
    %v8700 = vpack.c.b16 %v6914, %v6913
    %v8701 = vpack.c.b16 %v6916, %v6915
    %v8702 = vpack.c.b16 %v6918, %v6917
    %v8703 = vpack.c.b16 %v6920, %v6919
    %v8704 = vpack.c.b16 %v6922, %v6921
    %v8705 = vpack.c.b16 %v6924, %v6923
    %v8706 = vpack.c.b16 %v6926, %v6925
    %v8707 = vpack.c.b16 %v6928, %v6927
    %v8708 = vpack.c.b16 %v6930, %v6929
    %v8709 = vpack.c.b16 %v6932, %v6931
    %v8710 = vpack.c.b16 %v6934, %v6933
    %v8711 = vpack.c.b16 %v6936, %v6935
    %v8712 = vpack.c.b16 %v6938, %v6937
    %v8713 = vpack.c.b16 %v6940, %v6939
    %v8714 = vpack.c.b16 %v6942, %v6941
    %v8715 = vpack.c.b16 %v6944, %v6943
    %v8716 = vpack.c.b16 %v6946, %v6945
    %v8717 = vpack.c.b16 %v6948, %v6947
    %v8718 = vpack.c.b16 %v6950, %v6949
    %v8719 = vpack.c.b16 %v6952, %v6951
    %v8720 = vpack.c.b16 %v6954, %v6953
    %v8721 = vpack.c.b16 %v6956, %v6955
    %v8722 = vpack.c.b16 %v6958, %v6957
    %v8723 = vpack.c.b16 %v6960, %v6959
    %v8724 = vpack.c.b16 %v6962, %v6961
    %v8725 = vpack.c.b16 %v6964, %v6963
    %v8726 = vpack.c.b16 %v6966, %v6965
    %v8727 = vpack.c.b16 %v6968, %v6967
    %v8728 = vpack.c.b16 %v6970, %v6969
    %v8729 = vpack.c.b16 %v6972, %v6971
    %v8730 = vpack.c.b16 %v6974, %v6973
    %v8731 = vpack.c.b16 %v6976, %v6975
    %v8732 = vpack.c.b16 %v6978, %v6977
    %v8733 = vpack.c.b16 %v6980, %v6979
    %v8734 = vpack.c.b16 %v6982, %v6981
    %v8735 = vpack.c.b16 %v6984, %v6983
    %v8736 = vpack.c.b16 %v6986, %v6985
    %v8737 = vpack.c.b16 %v6988, %v6987
    %v8738 = vpack.c.b16 %v6990, %v6989
    %v8739 = vpack.c.b16 %v6992, %v6991
    %v8740 = vpack.c.b16 %v6994, %v6993
    %v8741 = vpack.c.b16 %v6996, %v6995
    %v8742 = vpack.c.b16 %v6998, %v6997
    %v8743 = vpack.c.b16 %v7000, %v6999
    %v8744 = vpack.c.b16 %v7002, %v7001
    %v8745 = vpack.c.b16 %v7004, %v7003
    %v8746 = vpack.c.b16 %v7006, %v7005
    %v8747 = vpack.c.b16 %v7008, %v7007
    %v8748 = vpack.c.b16 %v7010, %v7009
    %v8749 = vpack.c.b16 %v7012, %v7011
    %v8750 = vpack.c.b16 %v7014, %v7013
    %v8751 = vpack.c.b16 %v7016, %v7015
    %v8752 = vpack.c.b16 %v7018, %v7017
    %v8753 = vpack.c.b16 %v7020, %v7019
    %v8754 = vpack.c.b16 %v7022, %v7021
    %v8755 = vpack.c.b16 %v7024, %v7023
    %v8756 = vpack.c.b16 %v7026, %v7025
    %v8757 = vpack.c.b16 %v7028, %v7027
    %v8758 = vpack.c.b16 %v7030, %v7029
    %v8759 = vpack.c.b16 %v7032, %v7031
    %v8760 = vpack.c.b16 %v7034, %v7033
    %v8761 = vpack.c.b16 %v7036, %v7035
    %v8762 = vpack.c.b16 %v7038, %v7037
    %v8763 = vpack.c.b16 %v7040, %v7039
    %v8764 = vpack.c.b16 %v7042, %v7041
    %v8765 = vpack.c.b16 %v7044, %v7043
    %v8766 = vpack.c.b16 %v7046, %v7045
    %v8767 = vpack.c.b16 %v7048, %v7047
    %v8768 = vpack.c.b16 %v7050, %v7049
    %v8769 = vpack.c.b16 %v7052, %v7051
    %v8770 = vpack.c.b16 %v7054, %v7053
    %v8771 = vpack.c.b16 %v7056, %v7055
    %v8772 = vpack.c.b16 %v7058, %v7057
    %v8773 = vpack.c.b16 %v7060, %v7059
    %v8774 = vpack.c.b16 %v7062, %v7061
    %v8775 = vpack.c.b16 %v7064, %v7063
    %v8776 = vpack.c.b16 %v7066, %v7065
    %v8777 = vpack.c.b16 %v7068, %v7067
    %v8778 = vpack.c.b16 %v7070, %v7069
    %v8779 = vpack.c.b16 %v7072, %v7071
    %v8780 = vpack.c.b16 %v7074, %v7073
    %v8781 = vpack.c.b16 %v7076, %v7075
    %v8782 = vpack.c.b16 %v7078, %v7077
    %v8783 = vpack.c.b16 %v7080, %v7079
    %v8784 = vpack.c.b16 %v7082, %v7081
    %v8785 = vpack.c.b16 %v7084, %v7083
    %v8786 = vpack.c.b16 %v7086, %v7085
    %v8787 = vpack.c.b16 %v7088, %v7087
    %v8788 = vpack.c.b16 %v7090, %v7089
    %v8789 = vpack.c.b16 %v7092, %v7091
    %v8790 = vpack.c.b16 %v7094, %v7093
    %v8791 = vpack.c.b16 %v7096, %v7095
    %v8792 = vpack.c.b16 %v7098, %v7097
    %v8793 = vpack.c.b16 %v7100, %v7099
    %v8794 = vpack.c.b16 %v7102, %v7101
    %v8795 = vpack.c.b16 %v7104, %v7103
    %v8796 = vpack.c.b16 %v7106, %v7105
    %v8797 = vpack.c.b16 %v7108, %v7107
    %v8798 = vpack.c.b16 %v7110, %v7109
    %v8799 = vpack.c.b16 %v7112, %v7111
    %v8800 = vpack.c.b16 %v7114, %v7113
    %v8801 = vpack.c.b16 %v7116, %v7115
    %v8802 = vpack.c.b16 %v7118, %v7117
    %v8803 = vpack.c.b16 %v7120, %v7119
    %v8804 = vpack.c.b16 %v7122, %v7121
    %v8805 = vpack.c.b16 %v7124, %v7123
    %v8806 = vpack.c.b16 %v7126, %v7125
    %v8807 = vpack.c.b16 %v7128, %v7127
    %v8808 = vpack.c.b16 %v7130, %v7129
    %v8809 = vpack.c.b16 %v7132, %v7131
    %v8810 = vpack.c.b16 %v7134, %v7133
    %v8811 = vpack.c.b16 %v7136, %v7135
    %v8812 = vpack.c.b16 %v7138, %v7137
    %v8813 = vpack.c.b16 %v7140, %v7139
    %v8814 = vpack.c.b16 %v7142, %v7141
    %v8815 = vpack.c.b16 %v7144, %v7143
    %v8816 = vpack.c.b16 %v7146, %v7145
    %v8817 = vpack.c.b16 %v7148, %v7147
    %v8818 = vpack.c.b16 %v7150, %v7149
    %v8819 = vpack.c.b16 %v7152, %v7151
    %v8820 = vpack.c.b16 %v7154, %v7153
    %v8821 = vpack.c.b16 %v7156, %v7155
    %v8822 = vpack.c.b16 %v7158, %v7157
    %v8823 = vpack.c.b16 %v7160, %v7159
    %v8824 = vpack.c.b16 %v7162, %v7161
    %v8825 = vpack.c.b16 %v7164, %v7163
    %v8826 = vpack.c.b16 %v7166, %v7165
    %v8827 = vpack.c.b16 %v7168, %v7167
    %v8828 = vpack.c.b16 %v7170, %v7169
    %v8829 = vpack.c.b16 %v7172, %v7171
    %v8830 = vpack.c.b16 %v7174, %v7173
    %v8831 = vpack.c.b16 %v7176, %v7175
    %v8832 = vpack.c.b16 %v7178, %v7177
    %v8833 = vpack.c.b16 %v7180, %v7179
    %v8834 = vpack.c.b16 %v7182, %v7181
    %v8835 = vpack.c.b16 %v7184, %v7183
    %v8836 = vpack.c.b16 %v7186, %v7185
    %v8837 = vpack.c.b16 %v7188, %v7187
    %v8838 = vpack.c.b16 %v7190, %v7189
    %v8839 = vpack.c.b16 %v7192, %v7191
    %v8840 = vpack.c.b16 %v7194, %v7193
    %v8841 = vpack.c.b16 %v7196, %v7195
    %v8842 = vpack.c.b16 %v7198, %v7197
    %v8843 = vpack.c.b16 %v7200, %v7199
    %v8844 = vpack.c.b16 %v7202, %v7201
    %v8845 = vpack.c.b16 %v7204, %v7203
    %v8846 = vpack.c.b16 %v7206, %v7205
    %v8847 = vpack.c.b16 %v7208, %v7207
    %v8848 = vpack.c.b16 %v7210, %v7209
    %v8849 = vpack.c.b16 %v7212, %v7211
    %v8850 = vpack.c.b16 %v7214, %v7213
    %v8851 = vpack.c.b16 %v7216, %v7215
    %v8852 = vpack.c.b16 %v7218, %v7217
    %v8853 = vpack.c.b16 %v7220, %v7219
    %v8854 = vpack.c.b16 %v7222, %v7221
    %v8855 = vpack.c.b16 %v7224, %v7223
    %v8856 = vpack.c.b16 %v7226, %v7225
    %v8857 = vpack.c.b16 %v7228, %v7227
    %v8858 = vpack.c.b16 %v7230, %v7229
    %v8859 = vpack.c.b16 %v7232, %v7231
    %v8860 = vpack.c.b16 %v7234, %v7233
    %v8861 = vpack.c.b16 %v7236, %v7235
    %v8862 = vpack.c.b16 %v7238, %v7237
    %v8863 = vpack.c.b16 %v7240, %v7239
    %v8864 = vpack.c.b16 %v7242, %v7241
    %v8865 = vpack.c.b16 %v7244, %v7243
    %v8866 = vpack.c.b16 %v7246, %v7245
    %v8867 = vpack.c.b16 %v7248, %v7247
    %v8868 = vpack.c.b16 %v7250, %v7249
    %v8869 = vpack.c.b16 %v7252, %v7251
    %v8870 = vpack.c.b16 %v7254, %v7253
    %v8871 = vpack.c.b16 %v7256, %v7255
    %v8872 = vpack.c.b16 %v7258, %v7257
    %v8873 = vpack.c.b16 %v7260, %v7259
    %v8874 = vpack.c.b16 %v7262, %v7261
    %v8875 = vpack.c.b16 %v7264, %v7263
    %v8876 = vpack.c.b16 %v7266, %v7265
    %v8877 = vpack.c.b16 %v7268, %v7267
    %v8878 = vpack.c.b16 %v7270, %v7269
    %v8879 = vpack.c.b16 %v7272, %v7271
    %v8880 = vpack.c.b16 %v7274, %v7273
    %v8881 = vpack.c.b16 %v7276, %v7275
    %v8882 = vpack.c.b16 %v7278, %v7277
    %v8883 = vpack.c.b16 %v7280, %v7279
    %v8884 = vpack.c.b16 %v7282, %v7281
    %v8885 = vpack.c.b16 %v7284, %v7283
    %v8886 = vpack.c.b16 %v7286, %v7285
    %v8887 = vpack.c.b16 %v7288, %v7287
    %v8888 = vpack.c.b16 %v7290, %v7289
    %v8889 = vpack.c.b16 %v7292, %v7291
    %v8890 = vpack.c.b16 %v7294, %v7293
    %v8891 = vpack.c.b16 %v7296, %v7295
    %v8892 = vpack.c.b16 %v7298, %v7297
    %v8893 = vpack.c.b16 %v7300, %v7299
    %v8894 = vpack.c.b16 %v7302, %v7301
    %v8895 = vpack.c.b16 %v7304, %v7303
    %v8896 = vpack.c.b16 %v7306, %v7305
    %v8897 = vpack.c.b16 %v7308, %v7307
    %v8898 = vpack.c.b16 %v7310, %v7309
    %v8899 = vpack.c.b16 %v7312, %v7311
    %v8900 = vpack.c.b16 %v7314, %v7313
    %v8901 = vpack.c.b16 %v7316, %v7315
    %v8902 = vpack.c.b16 %v7318, %v7317
    %v8903 = vpack.c.b16 %v7320, %v7319
    %v8904 = vpack.c.b16 %v7322, %v7321
    %v8905 = vpack.c.b16 %v7324, %v7323
    %v8906 = vpack.c.b16 %v7326, %v7325
    %v8907 = vpack.c.b16 %v7328, %v7327
    %v8908 = vpack.c.b16 %v7330, %v7329
    %v8909 = vpack.c.b16 %v7332, %v7331
    %v8910 = vpack.c.b16 %v7334, %v7333
    %v8911 = vpack.c.b16 %v7336, %v7335
    %v8912 = vpack.c.b16 %v7338, %v7337
    %v8913 = vpack.c.b16 %v7340, %v7339
    %v8914 = vpack.c.b16 %v7342, %v7341
    %v8915 = vpack.c.b16 %v7344, %v7343
    %v8916 = vpack.c.b16 %v7346, %v7345
    %v8917 = vpack.c.b16 %v7348, %v7347
    %v8918 = vpack.c.b16 %v7350, %v7349
    %v8919 = vpack.c.b16 %v7352, %v7351
    %v8920 = vpack.c.b16 %v7354, %v7353
    %v8921 = vpack.c.b16 %v7356, %v7355
    %v8922 = vpack.c.b16 %v7358, %v7357
    %v8923 = vpack.c.b16 %v7360, %v7359
    %v8924 = vpack.c.b16 %v7362, %v7361
    %v8925 = vpack.c.b16 %v7364, %v7363
    %v8926 = vpack.c.b16 %v7366, %v7365
    %v8927 = vpack.c.b16 %v7368, %v7367
    %v8928 = vpack.c.b16 %v7370, %v7369
    %v8929 = vpack.c.b16 %v7372, %v7371
    %v8930 = vpack.c.b16 %v7374, %v7373
    %v8931 = vpack.c.b16 %v7376, %v7375
    %v8932 = vpack.c.b16 %v7378, %v7377
    %v8933 = vpack.c.b16 %v7380, %v7379
    %v8934 = vpack.c.b16 %v7382, %v7381
    %v8935 = vpack.c.b16 %v7384, %v7383
    %v8936 = vpack.c.b16 %v7386, %v7385
    %v8937 = vpack.c.b16 %v7388, %v7387
    %v8938 = vpack.c.b16 %v7390, %v7389
    %v8939 = vpack.c.b16 %v7392, %v7391
    %v8940 = vpack.c.b16 %v7394, %v7393
    %v8941 = vpack.c.b16 %v7396, %v7395
    %v8942 = vpack.c.b16 %v7398, %v7397
    %v8943 = vpack.c.b16 %v7400, %v7399
    %v8944 = vpack.c.b16 %v7402, %v7401
    %v8945 = vpack.c.b16 %v7404, %v7403
    %v8946 = vpack.c.b16 %v7406, %v7405
    %v8947 = vpack.c.b16 %v7408, %v7407
    %v8948 = vpack.c.b16 %v7410, %v7409
    %v8949 = vpack.c.b16 %v7412, %v7411
    %v8950 = vpack.c.b16 %v7414, %v7413
    %v8951 = vpack.c.b16 %v7416, %v7415
    %v8952 = vpack.c.b16 %v7418, %v7417
    %v8953 = vpack.c.b16 %v7420, %v7419
    %v8954 = vpack.c.b16 %v7422, %v7421
    %v8955 = vpack.c.b16 %v7424, %v7423
    %v8956 = vpack.c.b16 %v7426, %v7425
    %v8957 = vpack.c.b16 %v7428, %v7427
    %v8958 = vpack.c.b16 %v7430, %v7429
    %v8959 = vpack.c.b16 %v7432, %v7431
    %v8960 = vpack.c.b16 %v7434, %v7433
    %v8961 = vpack.c.b16 %v7436, %v7435
    %v8962 = vpack.c.b16 %v7438, %v7437
    %v8963 = vpack.c.b16 %v7440, %v7439
    %v8964 = vpack.c.b16 %v7442, %v7441
    %v8965 = vpack.c.b16 %v7444, %v7443
    %v8966 = vpack.c.b16 %v7446, %v7445
    %v8967 = vpack.c.b16 %v7448, %v7447
    %v8968 = vpack.c.b16 %v7450, %v7449
    %v8969 = vpack.c.b16 %v7452, %v7451
    %v8970 = vpack.c.b16 %v7454, %v7453
    %v8971 = vpack.c.b16 %v7456, %v7455
    %v8972 = vpack.c.b16 %v7458, %v7457
    %v8973 = vpack.c.b16 %v7460, %v7459
    %v8974 = vpack.c.b16 %v7462, %v7461
    %v8975 = vpack.c.b16 %v7464, %v7463
    %v8976 = vpack.c.b16 %v7466, %v7465
    %v8977 = vpack.c.b16 %v7468, %v7467
    %v8978 = vpack.c.b16 %v7470, %v7469
    %v8979 = vpack.c.b16 %v7472, %v7471
    %v8980 = vpack.c.b16 %v7474, %v7473
    %v8981 = vpack.c.b16 %v7476, %v7475
    %v8982 = vpack.c.b16 %v7478, %v7477
    %v8983 = vpack.c.b16 %v7480, %v7479
    %v8984 = vpack.c.b16 %v7482, %v7481
    %v8985 = vpack.c.b16 %v7484, %v7483
    %v8986 = vpack.c.b16 %v7486, %v7485
    %v8987 = vpack.c.b16 %v7488, %v7487
    %v8988 = vpack.c.b16 %v7490, %v7489
    %v8989 = vpack.c.b16 %v7492, %v7491
    %v8990 = vpack.c.b16 %v7494, %v7493
    %v8991 = vpack.c.b16 %v7496, %v7495
    %v8992 = vpack.c.b16 %v7498, %v7497
    %v8993 = vpack.c.b16 %v7500, %v7499
    %v8994 = vpack.c.b16 %v7502, %v7501
    %v8995 = vpack.c.b16 %v7504, %v7503
    %v8996 = vpack.c.b16 %v7506, %v7505
    %v8997 = vpack.c.b16 %v7508, %v7507
    %v8998 = vpack.c.b16 %v7510, %v7509
    %v8999 = vpack.c.b16 %v7512, %v7511
    %v9000 = vpack.c.b16 %v7514, %v7513
    %v9001 = vpack.c.b16 %v7516, %v7515
    %v9002 = vpack.c.b16 %v7518, %v7517
    %v9003 = vpack.c.b16 %v7520, %v7519
    %v9004 = vpack.c.b16 %v7522, %v7521
    %v9005 = vpack.c.b16 %v7524, %v7523
    %v9006 = vpack.c.b16 %v7526, %v7525
    %v9007 = vpack.c.b16 %v7528, %v7527
    %v9008 = vpack.c.b16 %v7530, %v7529
    %v9009 = vpack.c.b16 %v7532, %v7531
    %v9010 = vpack.c.b16 %v7534, %v7533
    %v9011 = vpack.c.b16 %v7536, %v7535
    %v9012 = vpack.c.b16 %v7538, %v7537
    %v9013 = vpack.c.b16 %v7540, %v7539
    %v9014 = vpack.c.b16 %v7542, %v7541
    %v9015 = vpack.c.b16 %v7544, %v7543
    %v9016 = vpack.c.b16 %v7546, %v7545
    %v9017 = vpack.c.b16 %v7548, %v7547
    %v9018 = vpack.c.b16 %v7550, %v7549
    %v9019 = vpack.c.b16 %v7552, %v7551
    %v9020 = vpack.c.b16 %v7554, %v7553
    %v9021 = vpack.c.b16 %v7556, %v7555
    %v9022 = vpack.c.b16 %v7558, %v7557
    %v9023 = vpack.c.b16 %v7560, %v7559
    %v9024 = vpack.c.b16 %v7562, %v7561
    %v9025 = vpack.c.b16 %v7564, %v7563
    %v9026 = vpack.c.b16 %v7566, %v7565
    %v9027 = vpack.c.b16 %v7568, %v7567
    %v9028 = vpack.c.b16 %v7570, %v7569
    %v9029 = vpack.c.b16 %v7572, %v7571
    %v9030 = vpack.c.b16 %v7574, %v7573
    %v9031 = vpack.c.b16 %v7576, %v7575
    %v9032 = vpack.c.b16 %v7578, %v7577
    %v9033 = vpack.c.b16 %v7580, %v7579
    %v9034 = vpack.c.b16 %v7582, %v7581
    %v9035 = vpack.c.b16 %v7584, %v7583
    %v9036 = vpack.c.b16 %v7586, %v7585
    %v9037 = vpack.c.b16 %v7588, %v7587
    %v9038 = vpack.c.b16 %v7590, %v7589
    %v9039 = vpack.c.b16 %v7592, %v7591
    %v9040 = vpack.c.b16 %v7594, %v7593
    %v9041 = vpack.c.b16 %v7596, %v7595
    %v9042 = vpack.c.b16 %v7598, %v7597
    %v9043 = vpack.c.b16 %v7600, %v7599
    %v9044 = vpack.c.b16 %v7602, %v7601
    %v9045 = vpack.c.b16 %v7604, %v7603
    %v9046 = vpack.c.b16 %v7606, %v7605
    %v9047 = vpack.c.b16 %v7608, %v7607
    %v9048 = vpack.c.b16 %v7610, %v7609
    %v9049 = vpack.c.b16 %v7612, %v7611
    %v9050 = vpack.c.b16 %v7614, %v7613
    %v9051 = vpack.c.b16 %v7616, %v7615
    %v9052 = vpack.c.b16 %v7618, %v7617
    %v9053 = vpack.c.b16 %v7620, %v7619
    %v9054 = vpack.c.b16 %v7622, %v7621
    %v9055 = vpack.c.b16 %v7624, %v7623
    %v9056 = vpack.c.b16 %v7626, %v7625
    %v9057 = vpack.c.b16 %v7628, %v7627
    %v9058 = vpack.c.b16 %v7630, %v7629
    %v9059 = vpack.c.b16 %v7632, %v7631
    %v9060 = vpack.c.b16 %v7634, %v7633
    %v9061 = vpack.c.b16 %v7636, %v7635
    %v9062 = vpack.c.b16 %v7638, %v7637
    %v9063 = vpack.c.b16 %v7640, %v7639
    %v9064 = vpack.c.b16 %v7642, %v7641
    %v9065 = vpack.c.b16 %v7644, %v7643
    %v9066 = vpack.c.b16 %v7646, %v7645
    %v9067 = vpack.c.b16 %v7648, %v7647
    %v9068 = vpack.c.b16 %v7650, %v7649
    %v9069 = vpack.c.b16 %v7652, %v7651
    %v9070 = vpack.c.b16 %v7654, %v7653
    %v9071 = vpack.c.b16 %v7656, %v7655
    %v9072 = vpack.c.b16 %v7658, %v7657
    %v9073 = vpack.c.b16 %v7660, %v7659
    %v9074 = vpack.c.b16 %v7662, %v7661
    %v9075 = vpack.c.b16 %v7664, %v7663
    %v9076 = vpack.c.b16 %v7666, %v7665
    %v9077 = vpack.c.b16 %v7668, %v7667
    %v9078 = vpack.c.b16 %v7670, %v7669
    %v9079 = vpack.c.b16 %v7672, %v7671
    %v9080 = vpack.c.b16 %v7674, %v7673
    %v9081 = vpack.c.b16 %v7676, %v7675
    %v9082 = vpack.c.b16 %v7678, %v7677
    %v9083 = vpack.c.b16 %v7680, %v7679
    %v9084 = vpack.c.b16 %v7682, %v7681
    %v9085 = vpack.c.b16 %v7684, %v7683
    %v9086 = vpack.c.b16 %v7686, %v7685
    %v9087 = vpack.c.b16 %v7688, %v7687
    %v9088 = vpack.c.b16 %v7690, %v7689
    %v9089 = vpack.c.b16 %v7692, %v7691
    %v9090 = vpack.c.b16 %v7694, %v7693
    %v9091 = vpack.c.b16 %v7696, %v7695
    %v9092 = vpack.c.b16 %v7698, %v7697
    %v9093 = vpack.c.b16 %v7700, %v7699
    %v9094 = vpack.c.b16 %v7702, %v7701
    %v9095 = vpack.c.b16 %v7704, %v7703
    %v9096 = vpack.c.b16 %v7706, %v7705
    %v9097 = vpack.c.b16 %v7708, %v7707
    %v9098 = vpack.c.b16 %v7710, %v7709
    %v9099 = vpack.c.b16 %v7712, %v7711
    %v9100 = vpack.c.b16 %v7714, %v7713
    %v9101 = vpack.c.b16 %v7716, %v7715
    %v9102 = vpack.c.b16 %v7718, %v7717
    %v9103 = vpack.c.b16 %v7720, %v7719
    %v9104 = vpack.c.b16 %v7722, %v7721
    %v9105 = vpack.c.b16 %v7724, %v7723
    %v9106 = vpack.c.b16 %v7726, %v7725
    %v9107 = vpack.c.b16 %v7728, %v7727
    %v9108 = vpack.c.b16 %v7730, %v7729
    %v9109 = vpack.c.b16 %v7732, %v7731
    %v9110 = vpack.c.b16 %v7734, %v7733
    %v9111 = vpack.c.b16 %v7736, %v7735
    %v9112 = vpack.c.b16 %v7738, %v7737
    %v9113 = vpack.c.b16 %v7740, %v7739
    %v9114 = vpack.c.b16 %v7742, %v7741
    %v9115 = vpack.c.b16 %v7744, %v7743
    %v9116 = vpack.c.b16 %v7746, %v7745
    %v9117 = vpack.c.b16 %v7748, %v7747
    %v9118 = vpack.c.b16 %v7750, %v7749
    %v9119 = vpack.c.b16 %v7752, %v7751
    %v9120 = vpack.c.b16 %v7754, %v7753
    %v9121 = vpack.c.b16 %v7756, %v7755
    %v9122 = vpack.c.b16 %v7758, %v7757
    %v9123 = vpack.c.b16 %v7760, %v7759
    %v9124 = vpack.c.b16 %v7762, %v7761
    %v9125 = vpack.c.b16 %v7764, %v7763
    %v9126 = vpack.c.b16 %v7766, %v7765
    %v9127 = vpack.c.b16 %v7768, %v7767
    %v9128 = vpack.c.b16 %v7770, %v7769
    %v9129 = vpack.c.b16 %v7772, %v7771
    %v9130 = vpack.c.b16 %v7774, %v7773
    %v9131 = vpack.c.b16 %v7776, %v7775
    %v9132 = vpack.c.b16 %v7778, %v7777
    %v9133 = vpack.c.b16 %v7780, %v7779
    %v9134 = vpack.c.b16 %v7782, %v7781
    %v9135 = vpack.c.b16 %v7784, %v7783
    %v9136 = vpack.c.b16 %v7786, %v7785
    %v9137 = vpack.c.b16 %v7788, %v7787
    %v9138 = vpack.c.b16 %v7790, %v7789
    %v9139 = vpack.c.b16 %v7792, %v7791
    %v9140 = vpack.c.b16 %v7794, %v7793
    %v9141 = vpack.c.b16 %v7796, %v7795
    %v9142 = vpack.c.b16 %v7798, %v7797
    %v9143 = vpack.c.b16 %v7800, %v7799
    %v9144 = vpack.c.b16 %v7802, %v7801
    %v9145 = vpack.c.b16 %v7804, %v7803
    %v9146 = vpack.c.b16 %v7806, %v7805
    %v9147 = vpack.c.b16 %v7808, %v7807
    %v9148 = vpack.c.b16 %v7810, %v7809
    %v9149 = vpack.c.b16 %v7812, %v7811
    %v9150 = vpack.c.b16 %v7814, %v7813
    %v9151 = vpack.c.b16 %v7816, %v7815
    %v9152 = vpack.c.b16 %v7818, %v7817
    %v9153 = vpack.c.b16 %v7820, %v7819
    %v9154 = vpack.c.b16 %v7822, %v7821
    %v9155 = vpack.c.b16 %v7824, %v7823
    %v9156 = vpack.c.b16 %v7826, %v7825
    %v9157 = vpack.c.b16 %v7828, %v7827
    %v9158 = vpack.c.b16 %v7830, %v7829
    %v9159 = vpack.c.b16 %v7832, %v7831
    %v9160 = vpack.c.b16 %v7834, %v7833
    %v9161 = vpack.c.b16 %v7836, %v7835
    %v9162 = vpack.c.b16 %v7838, %v7837
    %v9163 = vpack.c.b16 %v7840, %v7839
    %v9164 = vpack.c.b16 %v7842, %v7841
    %v9165 = vpack.c.b16 %v7844, %v7843
    %v9166 = vpack.c.b16 %v7846, %v7845
    %v9167 = vpack.c.b16 %v7848, %v7847
    %v9168 = vpack.c.b16 %v7850, %v7849
    %v9169 = vpack.c.b16 %v7852, %v7851
    %v9170 = vpack.c.b16 %v7854, %v7853
    %v9171 = vpack.c.b16 %v7856, %v7855
    %v9172 = vpack.c.b16 %v7858, %v7857
    %v9173 = vpack.c.b16 %v7860, %v7859
    %v9174 = vpack.c.b16 %v7862, %v7861
    %v9175 = vpack.c.b16 %v7864, %v7863
    %v9176 = vpack.c.b16 %v7866, %v7865
    %v9177 = vpack.c.b16 %v7868, %v7867
    %v9178 = vpack.c.b16 %v7870, %v7869
    %v9179 = vpack.c.b16 %v7872, %v7871
    %v9180 = vpack.c.b16 %v7874, %v7873
    %v9181 = vpack.c.b16 %v7876, %v7875
    %v9182 = vpack.c.b16 %v7878, %v7877
    %v9183 = vpack.c.b16 %v7880, %v7879
    %v9184 = vpack.c.b16 %v7882, %v7881
    %v9185 = vpack.c.b16 %v7884, %v7883
    %v9186 = vpack.c.b16 %v7886, %v7885
    %v9187 = vpack.c.b16 %v7888, %v7887
    %v9188 = vpack.c.b16 %v7890, %v7889
    %v9189 = vpack.c.b16 %v7892, %v7891
    %v9190 = vpack.c.b16 %v7894, %v7893
    %v9191 = vpack.c.b16 %v7896, %v7895
    %v9192 = vpack.c.b16 %v7898, %v7897
    %v9193 = vpack.c.b16 %v7900, %v7899
    %v9194 = vpack.c.b16 %v7902, %v7901
    %v9195 = vpack.c.b16 %v7904, %v7903
    %v9196 = vpack.c.b16 %v7906, %v7905
    %v9197 = vpack.c.b16 %v7908, %v7907
    %v9198 = vpack.c.b16 %v7910, %v7909
    %v9199 = vpack.c.b16 %v7912, %v7911
    %v9200 = vpack.c.b16 %v7914, %v7913
    %v9201 = vpack.c.b16 %v7916, %v7915
    %v9202 = vpack.c.b16 %v7918, %v7917
    %v9203 = vpack.c.b16 %v7920, %v7919
    %v9204 = vpack.c.b16 %v7922, %v7921
    %v9205 = vpack.c.b16 %v7924, %v7923
    %v9206 = vpack.c.b16 %v7926, %v7925
    %v9207 = vpack.c.b16 %v7928, %v7927
    %v9208 = vpack.c.b16 %v7930, %v7929
    %v9209 = vpack.c.b16 %v7932, %v7931
    %v9210 = vpack.c.b16 %v7934, %v7933
    %v9211 = vpack.c.b16 %v7936, %v7935
    %v9212 = vpack.c.b16 %v7938, %v7937
    %v9213 = vpack.c.b16 %v7940, %v7939
    %v9214 = vpack.c.b16 %v7942, %v7941
    %v9215 = vpack.c.b16 %v7944, %v7943
    %v9216 = vpack.c.b16 %v7946, %v7945
    %v9217 = vpack.c.b16 %v7948, %v7947
    %v9218 = vpack.c.b16 %v7950, %v7949
    %v9219 = vpack.c.b16 %v7952, %v7951
    %v9220 = vpack.c.b16 %v7954, %v7953
    %v9221 = vpack.c.b16 %v7956, %v7955
    %v9222 = vpack.c.b16 %v7958, %v7957
    %v9223 = vpack.c.b16 %v7960, %v7959
    %v9224 = vpack.c.b16 %v7962, %v7961
    %v9225 = vpack.c.b16 %v7964, %v7963
    %v9226 = vpack.c.b16 %v7966, %v7965
    %v9227 = vpack.c.b16 %v7968, %v7967
    %v9228 = vpack.c.b16 %v7970, %v7969
    %v9229 = vpack.c.b16 %v7972, %v7971
    %v9230 = vpack.c.b16 %v7974, %v7973
    %v9231 = vpack.c.b16 %v7976, %v7975
    %v9232 = vpack.c.b16 %v7978, %v7977
    %v9233 = vpack.c.b16 %v7980, %v7979
    %v9234 = vpack.c.b16 %v7982, %v7981
    %v9235 = vpack.c.b16 %v7984, %v7983
    %v9236 = vpack.c.b16 %v7986, %v7985
    %v9237 = vpack.c.b16 %v7988, %v7987
    %v9238 = vpack.c.b16 %v7990, %v7989
    %v9239 = vpack.c.b16 %v7992, %v7991
    %v9240 = vpack.c.b16 %v7994, %v7993
    %v9241 = vpack.c.b16 %v7996, %v7995
    %v9242 = vpack.c.b16 %v7998, %v7997
    %v9243 = vpack.c.b16 %v8000, %v7999
    %v9244 = vpack.c.b16 %v8002, %v8001
    %v9245 = vpack.c.b16 %v8004, %v8003
    %v9246 = vpack.c.b16 %v8006, %v8005
    %v9247 = vpack.c.b16 %v8008, %v8007
    %v9248 = vpack.c.b16 %v8010, %v8009
    %v9249 = vpack.c.b16 %v8012, %v8011
    %v9250 = vpack.c.b16 %v8014, %v8013
    %v9251 = vpack.c.b16 %v8016, %v8015
    %v9252 = vpack.c.b16 %v8018, %v8017
    %v9253 = vpack.c.b16 %v8020, %v8019
    %v9254 = vpack.c.b16 %v8022, %v8021
    %v9255 = vpack.c.b16 %v8024, %v8023
    %v9256 = vpack.c.b16 %v8026, %v8025
    %v9257 = vpack.c.b16 %v8028, %v8027
    %v9258 = vpack.c.b16 %v8030, %v8029
    %v9259 = vpack.c.b16 %v8032, %v8031
    %v9260 = vpack.c.b16 %v8034, %v8033
    %v9261 = vpack.c.b16 %v8036, %v8035
    %v9262 = vpack.c.b16 %v8038, %v8037
    %v9263 = vpack.c.b16 %v8040, %v8039
    %v9264 = vpack.c.b16 %v8042, %v8041
    %v9265 = vpack.c.b16 %v8044, %v8043
    %v9266 = vpack.c.b16 %v8046, %v8045
    %v9267 = vpack.c.b16 %v8048, %v8047
    %v9268 = vpack.c.b16 %v8050, %v8049
    %v9269 = vpack.c.b16 %v8052, %v8051
    %v9270 = vpack.c.b16 %v8054, %v8053
    %v9271 = vpack.c.b16 %v8056, %v8055
    %v9272 = vpack.c.b16 %v8058, %v8057
    %v9273 = vpack.c.b16 %v8060, %v8059
    %v9274 = vpack.c.b16 %v8062, %v8061
    %v9275 = vpack.c.b16 %v8064, %v8063
    %v9276 = vpack.c.b16 %v8066, %v8065
    %v9277 = vpack.c.b16 %v8068, %v8067
    %v9278 = vpack.c.b16 %v8070, %v8069
    %v9279 = vpack.c.b16 %v8072, %v8071
    %v9280 = vpack.c.b16 %v8074, %v8073
    %v9281 = vpack.c.b16 %v8076, %v8075
    %v9282 = vpack.c.b16 %v8078, %v8077
    %v9283 = vpack.c.b16 %v8080, %v8079
    %v9284 = vpack.c.b16 %v8082, %v8081
    %v9285 = vpack.c.b16 %v8084, %v8083
    %v9286 = vpack.c.b16 %v8086, %v8085
    %v9287 = vpack.c.b16 %v8088, %v8087
    %v9288 = vpack.c.b16 %v8090, %v8089
    %v9289 = vpack.c.b16 %v8092, %v8091
    %v9290 = vpack.c.b16 %v8094, %v8093
    %v9291 = vpack.c.b16 %v8096, %v8095
    %v9292 = vpack.c.b16 %v8098, %v8097
    %v9293 = vpack.c.b16 %v8100, %v8099
    %v9294 = vpack.c.b16 %v8102, %v8101
    %v9295 = vpack.c.b16 %v8104, %v8103
    %v9296 = vpack.c.b16 %v8106, %v8105
    %v9297 = vpack.c.b16 %v8108, %v8107
    %v9298 = vpack.c.b16 %v8110, %v8109
    %v9299 = vpack.c.b16 %v8112, %v8111
    %v9300 = vpack.c.b16 %v8114, %v8113
    %v9301 = vpack.c.b16 %v8116, %v8115
    %v9302 = vpack.c.b16 %v8118, %v8117
    %v9303 = vpack.c.b16 %v8120, %v8119
    %v9304 = vpack.c.b16 %v8122, %v8121
    %v9305 = vpack.c.b16 %v8124, %v8123
    %v9306 = vpack.c.b16 %v8126, %v8125
    %v9307 = vpack.c.b16 %v8128, %v8127
    %v9308 = vpack.c.b16 %v8130, %v8129
    %v9309 = vpack.c.b16 %v8132, %v8131
    %v9310 = vpack.c.b16 %v8134, %v8133
    %v9311 = vpack.c.b16 %v8136, %v8135
    %v9312 = vpack.c.b16 %v8138, %v8137
    %v9313 = vpack.c.b16 %v8140, %v8139
    %v9314 = vpack.c.b16 %v8142, %v8141
    %v9315 = vpack.c.b16 %v8144, %v8143
    %v9316 = vpack.c.b16 %v8146, %v8145
    %v9317 = vpack.c.b16 %v8148, %v8147
    %v9318 = vpack.c.b16 %v8150, %v8149
    %v9319 = vpack.c.b16 %v8152, %v8151
    %v9320 = vpack.c.b16 %v8154, %v8153
    %v9321 = vpack.c.b16 %v8156, %v8155
    %v9322 = vpack.c.b16 %v8158, %v8157
    %v9323 = vpack.c.b16 %v8160, %v8159
    %v9324 = vpack.c.b16 %v8162, %v8161
    %v9325 = vpack.c.b16 %v8164, %v8163
    %v9326 = vpack.c.b16 %v8166, %v8165
    %v9327 = vpack.c.b16 %v8168, %v8167
    %v9328 = vpack.c.b16 %v8170, %v8169
    %v9329 = vpack.c.b16 %v8172, %v8171
    %v9330 = vpack.c.b16 %v8174, %v8173
    %v9331 = vpack.c.b16 %v8176, %v8175
    %v9332 = vpack.c.b16 %v8178, %v8177
    %v9333 = vpack.c.b16 %v8180, %v8179
    %v9334 = vpack.c.b16 %v8182, %v8181
    %v9335 = vpack.c.b16 %v8184, %v8183
    %v9336 = vpack.c.b16 %v8186, %v8185
    %v9337 = vpack.c.b16 %v8188, %v8187
    %v9338 = vpack.c.b16 %v8190, %v8189
    %v9339 = vpack.c.b16 %v8192, %v8191
    %v9340 = vpack.c.b16 %v8194, %v8193
    %v9341 = vpack.c.b16 %v8196, %v8195
    %v9342 = vpack.c.b16 %v8198, %v8197
    %v9343 = vpack.c.b16 %v8200, %v8199
    %v9344 = vpack.c.b16 %v8202, %v8201
    %v9345 = vpack.c.b16 %v8204, %v8203
    %v9346 = vpack.c.b16 %v8206, %v8205
    %v9347 = vpack.c.b16 %v8208, %v8207
    %v9348 = vpack.c.b16 %v8210, %v8209
    %v9349 = vpack.c.b16 %v8212, %v8211
    %v9350 = vpack.c.b16 %v8214, %v8213
    %v9351 = vpack.c.b16 %v8216, %v8215
    %v9352 = vpack.c.b16 %v8218, %v8217
    %v9353 = vpack.c.b16 %v8220, %v8219
    %v9354 = vpack.c.b16 %v8222, %v8221
    %v9355 = vpack.c.b16 %v8224, %v8223
    %v9356 = vpack.c.b16 %v8226, %v8225
    %v9357 = vpack.c.b16 %v8228, %v8227
    %v9358 = vpack.c.b16 %v8230, %v8229
    %v9359 = vpack.c.b16 %v8232, %v8231
    %v9360 = vpack.c.b16 %v8234, %v8233
    %v9361 = vpack.c.b16 %v8236, %v8235
    %v9362 = vpack.c.b16 %v8238, %v8237
    %v9363 = vpack.c.b16 %v8240, %v8239
    %v9364 = vpack.c.b16 %v8242, %v8241
    %v9365 = vpack.c.b16 %v8244, %v8243
    %v9366 = vpack.c.b16 %v8246, %v8245
    %v9367 = vpack.c.b16 %v8248, %v8247
    %v9368 = vpack.c.b16 %v8250, %v8249
    %v9369 = vpack.c.b16 %v8252, %v8251
    %v9370 = vpack.c.b16 %v8254, %v8253
    %v9371 = vpack.c.b16 %v8256, %v8255
    %v9372 = vpack.c.b16 %v8258, %v8257
    %v9373 = vpack.c.b16 %v8260, %v8259
    %v9374 = vpack.c.b16 %v8262, %v8261
    %v9375 = vpack.c.b16 %v8264, %v8263
    %v9376 = vpack.c.b16 %v8266, %v8265
    %v9377 = vpack.c.b16 %v8268, %v8267
    %v9378 = vpack.c.b16 %v8270, %v8269
    %v9379 = vpack.c.b16 %v8272, %v8271
    %v9380 = vpack.c.b16 %v8274, %v8273
    %v9381 = vpack.c.b16 %v8276, %v8275
    %v9382 = vpack.c.b16 %v8278, %v8277
    %v9383 = vpack.c.b16 %v8280, %v8279
    %v9384 = vpack.c.b16 %v8282, %v8281
    %v9385 = vpack.c.b16 %v8284, %v8283
    %v9386 = vpack.c.b16 %v8286, %v8285
    %v9387 = vpack.c.b16 %v8288, %v8287
    %v9388 = vpack.c.b16 %v8290, %v8289
    %v9389 = vpack.c.b16 %v8292, %v8291
    %v9390 = vpack.c.b16 %v8294, %v8293
    %v9391 = vpack.c.b16 %v8296, %v8295
    %v9392 = vpack.c.b16 %v8298, %v8297
    %v9393 = vpack.c.b16 %v8300, %v8299
    %v9394 = vpack.c.b16 %v8302, %v8301
    %v9395 = vpack.c.b16 %v8304, %v8303
    %v9396 = vpack.c.b16 %v8306, %v8305
    %v9397 = vpack.c.b16 %v8308, %v8307
    %v9398 = vpack.c.b16 %v8310, %v8309
    %v9399 = vpack.c.b16 %v8312, %v8311
    %v9400 = vpack.c.b16 %v8314, %v8313
    %v9401 = vpack.c.b16 %v8316, %v8315
    %v9402 = vpack.c.b16 %v8318, %v8317
    %v9403 = vpack.c.b16 %v8320, %v8319
    %v9404 = vpack.c.b16 %v8322, %v8321
    %v9405 = vpack.c.b16 %v8324, %v8323
    %v9406 = vpack.c.b16 %v8326, %v8325
    %v9407 = vpack.c.b16 %v8328, %v8327
    %v9408 = vpack.c.b16 %v8330, %v8329
    %v9409 = vpack.c.b16 %v8332, %v8331
    %v9410 = vpack.c.b16 %v8334, %v8333
    %v9411 = vpack.c.b16 %v8336, %v8335
    %v9412 = vpack.c.b16 %v8338, %v8337
    %v9413 = vpack.c.b16 %v8340, %v8339
    %v9414 = vpack.c.b16 %v8342, %v8341
    %v9415 = vpack.c.b16 %v8344, %v8343
    %v9416 = vpack.c.b16 %v8346, %v8345
    %v9417 = vpack.c.b16 %v8348, %v8347
    %v9418 = vpack.c.b16 %v8350, %v8349
    %v9419 = vpack.c.b16 %v8352, %v8351
    %v9420 = vpack.c.b16 %v8354, %v8353
    %v9421 = vpack.c.b16 %v8356, %v8355
    %v9422 = vpack.c.b16 %v8358, %v8357
    %v9423 = vpack.c.b16 %v8360, %v8359
    %v9424 = vpack.c.b16 %v8362, %v8361
    %v9425 = vpack.c.b16 %v8364, %v8363
    %v9426 = vpack.c.b16 %v8366, %v8365
    %v9427 = vpack.c.b16 %v8368, %v8367
    %v9428 = vpack.c.b16 %v8370, %v8369
    %v9429 = vpack.c.b16 %v8372, %v8371
    %v9430 = vpack.c.b16 %v8374, %v8373
    %v9431 = vpack.c.b16 %v8376, %v8375
    %v9432 = vpack.c.b16 %v8378, %v8377
    %v9433 = vpack.c.b16 %v8380, %v8379
    %v9434 = vpack.c.b16 %v8382, %v8381
    %v9435 = vpack.c.b16 %v8384, %v8383
    %v9436 = vpack.c.b16 %v8386, %v8385
    %v9437 = vpack.c.b16 %v8388, %v8387
    %v9438 = vpack.c.b16 %v8390, %v8389
    %v9439 = vpack.c.b16 %v8392, %v8391
    %v9440 = vpack.c.b16 %v8394, %v8393
    %v9441 = vpack.c.b16 %v8396, %v8395
    %v9442 = vpack.c.b16 %v8398, %v8397
    %v9443 = vpack.c.b16 %v8400, %v8399
    %v9444 = vpack.c.b16 %v8402, %v8401
    %v9445 = vpack.c.b16 %v8404, %v8403
    %v9446 = vpack.c.b16 %v8406, %v8405
    %v9447 = vpack.c.b16 %v8408, %v8407
    %v9448 = vpack.c.b16 %v8410, %v8409
    %v9449 = vpack.c.b16 %v8412, %v8411
    %v9450 = vpack.c.b16 %v8414, %v8413
    %v9451 = vpack.c.b16 %v8416, %v8415
    %v9452 = vpack.c.b16 %v8418, %v8417
    %v9453 = vpack.c.b16 %v8420, %v8419
    %v9454 = vpack.c.b16 %v8422, %v8421
    %v9455 = vpack.c.b16 %v8424, %v8423
    %v9456 = vpack.c.b16 %v8426, %v8425
    %v9457 = vpack.c.b16 %v8428, %v8427
    %v9458 = vpack.c.b16 %v8430, %v8429
    %v9459 = vpack.c.b16 %v8432, %v8431
    %v9460 = vpack.c.b16 %v8434, %v8433
    %v9461 = vpack.c.b16 %v8436, %v8435
    %v9462 = vpack.c.b16 %v8438, %v8437
    %v9463 = vpack.c.b16 %v8440, %v8439
    %v9464 = vpack.c.b16 %v8442, %v8441
    %v9465 = vpack.c.b16 %v8444, %v8443
    %v9466 = vpack.c.b16 %v8446, %v8445
    %v9467 = vpack.c.b16 %v8448, %v8447
    %v9468 = vpack.c.b16 %v8450, %v8449
    %v9469 = vpack.c.b16 %v8452, %v8451
    %v9470 = vpack.c.b16 %v8454, %v8453
    %v9471 = vpack.c.b16 %v8456, %v8455
    %v9472 = vpack.c.b16 %v8458, %v8457
    %v9473 = vpack.c.b16 %v8460, %v8459
    %v9474 = vpack.c.b16 %v8462, %v8461
    %v9475 = vpack.c.b16 %v8464, %v8463
    %v9476 = vpack.c.b16 %v8466, %v8465
    %v9477 = vpack.c.b16 %v8468, %v8467
    %v9478 = vpack.c.b16 %v8470, %v8469
    %v9479 = vpack.c.b16 %v8472, %v8471
    %v9480 = vpack.c.b16 %v8474, %v8473
    %v9481 = vpack.c.b16 %v8476, %v8475
    %v9482 = vpack.c.b16 %v8478, %v8477
    %v9483 = vpack.c.b16 %v8480, %v8479
    %v9484 = vpack.c.b16 %v8482, %v8481
    %v9485 = vpack.c.b16 %v8484, %v8483
    %v9486 = vpack.c.b16 %v8486, %v8485
    %v9487 = vpack.c.b16 %v8488, %v8487
    %v9488 = vpack.c.b16 %v8490, %v8489
    %v9489 = vpack.c.b16 %v8492, %v8491
    %v9490 = vpack.c.b16 %v8494, %v8493
    %v9491 = vpack.c.b16 %v8496, %v8495
    %v9492 = vpack.c.b16 %v8498, %v8497
    %v9493 = vpack.c.b16 %v8500, %v8499
    %v9494 = vpack.c.b16 %v8502, %v8501
    %v9495 = vpack.c.b16 %v8504, %v8503
    %v9496 = vpack.c.b16 %v8506, %v8505
    %v9497 = vpack.c.b16 %v8508, %v8507
    %v9498 = vpack.c.b16 %v8510, %v8509
    %v9499 = vpack.c.b16 %v8512, %v8511
    %v9500 = vpack.c.b16 %v8514, %v8513
    %v9501 = vpack.c.b16 %v8516, %v8515
    %v9502 = vpack.c.b16 %v8518, %v8517
    %v9503 = vpack.c.b16 %v8520, %v8519
    %v9504 = vpack.c.b16 %v8522, %v8521
    %v9505 = vpack.c.b16 %v8524, %v8523
    %v9506 = vpack.c.b16 %v8526, %v8525
    %v9507 = vpack.c.b16 %v8528, %v8527
    %v9508 = vpack.c.b16 %v8530, %v8529
    %v9509 = vpack.c.b16 %v8532, %v8531
    %v9510 = vpack.c.b16 %v8534, %v8533
    %v9511 = vpack.c.b16 %v8536, %v8535
    %v9512 = vpack.c.b16 %v8538, %v8537
    %v9513 = vpack.c.b16 %v8540, %v8539
    %v9514 = vpack.c.b16 %v8542, %v8541
    %v9515 = vpack.c.b16 %v8544, %v8543
    %v9516 = vpack.c.b16 %v8546, %v8545
    %v9517 = vpack.c.b16 %v8548, %v8547
    %v9518 = vpack.c.b16 %v8550, %v8549
    %v9519 = vpack.c.b16 %v8552, %v8551
    %v9520 = vpack.c.b16 %v8554, %v8553
    %v9521 = vpack.c.b16 %v8556, %v8555
    %v9522 = vpack.c.b16 %v8558, %v8557
    %v9523 = vpack.c.b16 %v8560, %v8559
    %v9524 = vpack.c.b16 %v8562, %v8561
    %v9525 = vpack.c.b16 %v8564, %v8563
    %v9526 = vpack.c.b16 %v8566, %v8565
    %v9527 = vpack.c.b16 %v8568, %v8567
    %v9528 = vpack.c.b16 %v8570, %v8569
    %v9529 = vpack.c.b16 %v8572, %v8571
    %v9530 = vpack.c.b16 %v8574, %v8573
    %v9531 = vpack.c.b16 %v8576, %v8575
    %v9532 = vpack.c.b16 %v8578, %v8577
    %v9533 = vpack.c.b16 %v8580, %v8579
    %v9534 = vpack.c.b16 %v8582, %v8581
    %v9535 = vpack.c.b16 %v8584, %v8583
    %v9536 = vpack.c.b16 %v8586, %v8585
    %v9537 = vpack.c.b16 %v8588, %v8587
    %v9538 = vpack.c.b16 %v8590, %v8589
    %v9539 = vpack.c.b16 %v8592, %v8591
    %v9540 = vpack.c.b16 %v8594, %v8593
    %v9541 = vpack.c.b16 %v8596, %v8595
    %v9542 = vpack.c.b16 %v8598, %v8597
    %v9543 = vpack.c.b16 %v8600, %v8599
    %v9544 = vpack.c.b16 %v8602, %v8601
    %v9545 = vpack.c.b16 %v8604, %v8603
    %v9546 = vpack.c.b16 %v8606, %v8605
    %v9547 = vpack.c.b16 %v8608, %v8607
    %v9548 = vpack.c.b16 %v8610, %v8609
    %v9549 = vpack.c.b16 %v8612, %v8611
    %v9550 = vpack.c.b16 %v8614, %v8613
    %v9551 = vpack.c.b16 %v8616, %v8615
    %v9552 = vpack.c.b16 %v8618, %v8617
    %v9553 = vpack.c.b16 %v8620, %v8619
    %v9554 = vpack.c.b16 %v8622, %v8621
    %v9555 = vpack.c.b16 %v8624, %v8623
    %v9556 = vpack.c.b16 %v8626, %v8625
    %v9557 = vpack.c.b16 %v8628, %v8627
    %v9558 = vpack.c.b16 %v8630, %v8629
    %v9559 = vpack.c.b16 %v8632, %v8631
    %v9560 = vpack.c.b16 %v8634, %v8633
    %v9561 = vpack.c.b16 %v8636, %v8635
    %v9562 = vpack.c.b16 %v8638, %v8637
    %v9563 = vpack.c.b16 %v8640, %v8639
    %v9564 = vpack.c.b16 %v8642, %v8641
    %v9565 = vpack.c.b16 %v8644, %v8643
    %v9566 = vpack.c.b16 %v8646, %v8645
    %v9567 = vpack.c.b16 %v8648, %v8647
    %v9568 = vpack.c.b16 %v8650, %v8649
    %v9569 = vpack.c.b16 %v8652, %v8651
    %v9570 = vpack.c.b16 %v8654, %v8653
    %v9571 = vpack.c.b16 %v8656, %v8655
    %v9572 = vpack.c.b16 %v8658, %v8657
    %v9573 = vpack.c.b16 %v8660, %v8659
    %v9574 = vpack.c.b16 %v8662, %v8661
    %v9575 = vpack.c.b16 %v8664, %v8663
    %v9576 = vpack.c.b16 %v8666, %v8665
    %v9577 = vpack.c.b16 %v8668, %v8667
    %v9578 = vpack.c.b16 %v8670, %v8669
    %v9579 = vpack.c.b16 %v8672, %v8671
    %v9580 = vpack.c.b16 %v8674, %v8673
    %v9581 = vpack.c.b16 %v8676, %v8675
    %v9582 = vpack.c.b16 %v8678, %v8677
    %10487 = vmatprep.subr.bf16.mxu0 0
    %10488 = vmatpush1.bf16.msra.mxu0 %v8679
    %10489 = vmatprep.subr.bf16.mxu0 0
    %10490 = vmatpush1.bf16.msra.mxu0 %v8680
    %10491 = vmatprep.subr.bf16.mxu0 0
    %10492 = vmatpush1.bf16.msra.mxu0 %v8681
    %10493 = vmatprep.subr.bf16.mxu0 0
    %10494 = vmatpush1.bf16.msra.mxu0 %v8682
    %10495 = vmatprep.subr.bf16.mxu0 0
    %10496 = vmatpush1.bf16.msra.mxu0 %v8683
    %10497 = vmatprep.subr.bf16.mxu0 0
    %10498 = vmatpush1.bf16.msra.mxu0 %v8684
    %10499 = vmatprep.subr.bf16.mxu0 0
    %10500 = vmatpush1.bf16.msra.mxu0 %v8685
    %10501 = vmatprep.subr.bf16.mxu0 0
    %10502 = vmatpush1.bf16.msra.mxu0 %v8686
    %10503 = vmatprep.subr.bf16.mxu0 0
    %10504 = vmatpush1.bf16.msra.mxu0 %v8687
    %10505 = vmatprep.subr.bf16.mxu0 0
    %10506 = vmatpush1.bf16.msra.mxu0 %v8688
    %10507 = vmatprep.subr.bf16.mxu0 0
    %10508 = vmatpush1.bf16.msra.mxu0 %v8689
    %10509 = vmatprep.subr.bf16.mxu0 0
    %10510 = vmatpush1.bf16.msra.mxu0 %v8690
    %10511 = vmatprep.subr.bf16.mxu0 0
    %10512 = vmatpush1.bf16.msra.mxu0 %v8691
    %10513 = vmatprep.subr.bf16.mxu0 0
    %10514 = vmatpush1.bf16.msra.mxu0 %v8692
    %10515 = vmatprep.subr.bf16.mxu0 0
    %10516 = vmatpush1.bf16.msra.mxu0 %v8693
    %10517 = vmatprep.subr.bf16.mxu0 0
    %10518 = vmatpush1.bf16.msra.mxu0 %v8694
    %10519 = vmatprep.mubr.bf16.mxu0 %v4287
    %10520 = vmatmul.mubr.bf16.gmra.mrb[0].mxu0 %v4273
    %v10521 = vpop.f32.mrb[0].mxu0
    %v10522 = vadd.f32 0.0, %v10521
    %v10523 = vpop.f32.mrb[0].mxu0
    %v10524 = vpop.f32.mrb[0].mxu0
    %v10525 = vpop.f32.mrb[0].mxu0
    %10526 = vdwg.mxu0
    %10527 = vmatprep.subr.bf16.mxu0 0
    %10528 = vmatpush1.bf16.msra.mxu0 %v8695
    %10529 = vmatprep.subr.bf16.mxu0 0
    %10530 = vmatpush1.bf16.msra.mxu0 %v8696
    %10531 = vmatprep.subr.bf16.mxu0 0
    %10532 = vmatpush1.bf16.msra.mxu0 %v8697
    %10533 = vmatprep.subr.bf16.mxu0 0
    %10534 = vmatpush1.bf16.msra.mxu0 %v8698
    %10535 = vmatprep.subr.bf16.mxu0 0
    %10536 = vmatpush1.bf16.msra.mxu0 %v8699
    %10537 = vmatprep.subr.bf16.mxu0 0
    %10538 = vmatpush1.bf16.msra.mxu0 %v8700
    %10539 = vmatprep.subr.bf16.mxu0 0
    %10540 = vmatpush1.bf16.msra.mxu0 %v8701
    %10541 = vmatprep.subr.bf16.mxu0 0
    %10542 = vmatpush1.bf16.msra.mxu0 %v8702
    %10543 = vmatprep.subr.bf16.mxu0 0
    %10544 = vmatpush1.bf16.msra.mxu0 %v8703
    %10545 = vmatprep.subr.bf16.mxu0 0
    %10546 = vmatpush1.bf16.msra.mxu0 %v8704
    %10547 = vmatprep.subr.bf16.mxu0 0
    %10548 = vmatpush1.bf16.msra.mxu0 %v8705
    %10549 = vmatprep.subr.bf16.mxu0 0
    %10550 = vmatpush1.bf16.msra.mxu0 %v8706
    %10551 = vmatprep.subr.bf16.mxu0 0
    %10552 = vmatpush1.bf16.msra.mxu0 %v8707
    %10553 = vmatprep.subr.bf16.mxu0 0
    %10554 = vmatpush1.bf16.msra.mxu0 %v8708
    %10555 = vmatprep.subr.bf16.mxu0 0
    %10556 = vmatpush1.bf16.msra.mxu0 %v8709
    %10557 = vmatprep.subr.bf16.mxu0 0
    %10558 = vmatpush1.bf16.msra.mxu0 %v8710
    %10559 = vmatprep.mubr.bf16.mxu0 %v4297
    %10560 = vmatmul.mubr.bf16.gmra.mrb[0].mxu0 %v4295
    %v10561 = vpop.f32.mrb[0].mxu0
    %v10562 = vadd.f32 %v10522, %v10561
    %v10563 = vpop.f32.mrb[0].mxu0
    %v10564 = vpop.f32.mrb[0].mxu0
    %v10565 = vpop.f32.mrb[0].mxu0
    %10566 = vdwg.mxu0
    %10567 = vmatprep.subr.bf16.mxu0 0
    %10568 = vmatpush1.bf16.msra.mxu0 %v8711
    %10569 = vmatprep.subr.bf16.mxu0 0
    %10570 = vmatpush1.bf16.msra.mxu0 %v8712
    %10571 = vmatprep.subr.bf16.mxu0 0
    %10572 = vmatpush1.bf16.msra.mxu0 %v8713
    %10573 = vmatprep.subr.bf16.mxu0 0
    %10574 = vmatpush1.bf16.msra.mxu0 %v8714
    %10575 = vmatprep.subr.bf16.mxu0 0
    %10576 = vmatpush1.bf16.msra.mxu0 %v8715
    %10577 = vmatprep.subr.bf16.mxu0 0
    %10578 = vmatpush1.bf16.msra.mxu0 %v8716
    %10579 = vmatprep.subr.bf16.mxu0 0
    %10580 = vmatpush1.bf16.msra.mxu0 %v8717
    %10581 = vmatprep.subr.bf16.mxu0 0
    %10582 = vmatpush1.bf16.msra.mxu0 %v8718
    %10583 = vmatprep.subr.bf16.mxu0 0
    %10584 = vmatpush1.bf16.msra.mxu0 %v8719
    %10585 = vmatprep.subr.bf16.mxu0 0
    %10586 = vmatpush1.bf16.msra.mxu0 %v8720
    %10587 = vmatprep.subr.bf16.mxu0 0
    %10588 = vmatpush1.bf16.msra.mxu0 %v8721
    %10589 = vmatprep.subr.bf16.mxu0 0
    %10590 = vmatpush1.bf16.msra.mxu0 %v8722
    %10591 = vmatprep.subr.bf16.mxu0 0
    %10592 = vmatpush1.bf16.msra.mxu0 %v8723
    %10593 = vmatprep.subr.bf16.mxu0 0
    %10594 = vmatpush1.bf16.msra.mxu0 %v8724
    %10595 = vmatprep.subr.bf16.mxu0 0
    %10596 = vmatpush1.bf16.msra.mxu0 %v8725
    %10597 = vmatprep.subr.bf16.mxu0 0
    %10598 = vmatpush1.bf16.msra.mxu0 %v8726
    %10599 = vmatprep.mubr.bf16.mxu0 %v4294
    %10600 = vmatmul.mubr.bf16.gmra.mrb[0].mxu0 %v4280
    %v10601 = vpop.f32.mrb[0].mxu0
    %v10602 = vadd.f32 %v10562, %v10601
    %v10603 = vpop.f32.mrb[0].mxu0
    %v10604 = vpop.f32.mrb[0].mxu0
    %v10605 = vpop.f32.mrb[0].mxu0
    %10606 = vdwg.mxu0
    %10607 = vmatprep.subr.bf16.mxu0 0
    %10608 = vmatpush1.bf16.msra.mxu0 %v8727
    %10609 = vmatprep.subr.bf16.mxu0 0
    %10610 = vmatpush1.bf16.msra.mxu0 %v8728
    %10611 = vmatprep.subr.bf16.mxu0 0
    %10612 = vmatpush1.bf16.msra.mxu0 %v8729
    %10613 = vmatprep.subr.bf16.mxu0 0
    %10614 = vmatpush1.bf16.msra.mxu0 %v8730
    %10615 = vmatprep.subr.bf16.mxu0 0
    %10616 = vmatpush1.bf16.msra.mxu0 %v8731
    %10617 = vmatprep.subr.bf16.mxu0 0
    %10618 = vmatpush1.bf16.msra.mxu0 %v8732
    %10619 = vmatprep.subr.bf16.mxu0 0
    %10620 = vmatpush1.bf16.msra.mxu0 %v8733
    %10621 = vmatprep.subr.bf16.mxu0 0
    %10622 = vmatpush1.bf16.msra.mxu0 %v8734
    %10623 = vmatprep.subr.bf16.mxu0 0
    %10624 = vmatpush1.bf16.msra.mxu0 %v8735
    %10625 = vmatprep.subr.bf16.mxu0 0
    %10626 = vmatpush1.bf16.msra.mxu0 %v8736
    %10627 = vmatprep.subr.bf16.mxu0 0
    %10628 = vmatpush1.bf16.msra.mxu0 %v8737
    %10629 = vmatprep.subr.bf16.mxu0 0
    %10630 = vmatpush1.bf16.msra.mxu0 %v8738
    %10631 = vmatprep.subr.bf16.mxu0 0
    %10632 = vmatpush1.bf16.msra.mxu0 %v8739
    %10633 = vmatprep.subr.bf16.mxu0 0
    %10634 = vmatpush1.bf16.msra.mxu0 %v8740
    %10635 = vmatprep.subr.bf16.mxu0 0
    %10636 = vmatpush1.bf16.msra.mxu0 %v8741
    %10637 = vmatprep.subr.bf16.mxu0 0
    %10638 = vmatpush1.bf16.msra.mxu0 %v8742
    %10639 = vmatprep.mubr.bf16.mxu0 %v4298
    %10640 = vmatmul.mubr.bf16.gmra.mrb[0].mxu0 %v4296
    %v10641 = vpop.f32.mrb[0].mxu0
    %v10642 = vadd.f32 %v10602, %v10641
    %v10643 = vpop.f32.mrb[0].mxu0
    %v10644 = vpop.f32.mrb[0].mxu0
    %v10645 = vpop.f32.mrb[0].mxu0
    %10646 = vdwg.mxu0
    %10647 = vmatprep.subr.bf16.mxu0 0
    %10648 = vmatpush1.bf16.msra.mxu0 %v8743
    %10649 = vmatprep.subr.bf16.mxu0 0
    %10650 = vmatpush1.bf16.msra.mxu0 %v8744
    %10651 = vmatprep.subr.bf16.mxu0 0
    %10652 = vmatpush1.bf16.msra.mxu0 %v8745
    %10653 = vmatprep.subr.bf16.mxu0 0
    %10654 = vmatpush1.bf16.msra.mxu0 %v8746
    %10655 = vmatprep.subr.bf16.mxu0 0
    %10656 = vmatpush1.bf16.msra.mxu0 %v8747
    %10657 = vmatprep.subr.bf16.mxu0 0
    %10658 = vmatpush1.bf16.msra.mxu0 %v8748
    %10659 = vmatprep.subr.bf16.mxu0 0
    %10660 = vmatpush1.bf16.msra.mxu0 %v8749
    %10661 = vmatprep.subr.bf16.mxu0 0
    %10662 = vmatpush1.bf16.msra.mxu0 %v8750
    %10663 = vmatprep.subr.bf16.mxu0 0
    %10664 = vmatpush1.bf16.msra.mxu0 %v8751
    %10665 = vmatprep.subr.bf16.mxu0 0
    %10666 = vmatpush1.bf16.msra.mxu0 %v8752
    %10667 = vmatprep.subr.bf16.mxu0 0
    %10668 = vmatpush1.bf16.msra.mxu0 %v8753
    %10669 = vmatprep.subr.bf16.mxu0 0
    %10670 = vmatpush1.bf16.msra.mxu0 %v8754
    %10671 = vmatprep.subr.bf16.mxu0 0
    %10672 = vmatpush1.bf16.msra.mxu0 %v8755
    %10673 = vmatprep.subr.bf16.mxu0 0
    %10674 = vmatpush1.bf16.msra.mxu0 %v8756
    %10675 = vmatprep.subr.bf16.mxu0 0
    %10676 = vmatpush1.bf16.msra.mxu0 %v8757
    %10677 = vmatprep.subr.bf16.mxu0 0
    %10678 = vmatpush1.bf16.msra.mxu0 %v8758
    %10679 = vmatprep.mubr.bf16.mxu0 %v4336
    %10680 = vmatmul.mubr.bf16.gmra.mrb[0].mxu0 %v4322
    %v10681 = vpop.f32.mrb[0].mxu0
    %v10682 = vadd.f32 %v10642, %v10681
    %v10683 = vpop.f32.mrb[0].mxu0
    %v10684 = vpop.f32.mrb[0].mxu0
    %v10685 = vpop.f32.mrb[0].mxu0
    %10686 = vdwg.mxu0
    %10687 = vmatprep.subr.bf16.mxu0 0
    %10688 = vmatpush1.bf16.msra.mxu0 %v8759
    %10689 = vmatprep.subr.bf16.mxu0 0
    %10690 = vmatpush1.bf16.msra.mxu0 %v8760
    %10691 = vmatprep.subr.bf16.mxu0 0
    %10692 = vmatpush1.bf16.msra.mxu0 %v8761
    %10693 = vmatprep.subr.bf16.mxu0 0
    %10694 = vmatpush1.bf16.msra.mxu0 %v8762
    %10695 = vmatprep.subr.bf16.mxu0 0
    %10696 = vmatpush1.bf16.msra.mxu0 %v8763
    %10697 = vmatprep.subr.bf16.mxu0 0
    %10698 = vmatpush1.bf16.msra.mxu0 %v8764
    %10699 = vmatprep.subr.bf16.mxu0 0
    %10700 = vmatpush1.bf16.msra.mxu0 %v8765
    %10701 = vmatprep.subr.bf16.mxu0 0
    %10702 = vmatpush1.bf16.msra.mxu0 %v8766
    %10703 = vmatprep.subr.bf16.mxu0 0
    %10704 = vmatpush1.bf16.msra.mxu0 %v8767
    %10705 = vmatprep.subr.bf16.mxu0 0
    %10706 = vmatpush1.bf16.msra.mxu0 %v8768
    %10707 = vmatprep.subr.bf16.mxu0 0
    %10708 = vmatpush1.bf16.msra.mxu0 %v8769
    %10709 = vmatprep.subr.bf16.mxu0 0
    %10710 = vmatpush1.bf16.msra.mxu0 %v8770
    %10711 = vmatprep.subr.bf16.mxu0 0
    %10712 = vmatpush1.bf16.msra.mxu0 %v8771
    %10713 = vmatprep.subr.bf16.mxu0 0
    %10714 = vmatpush1.bf16.msra.mxu0 %v8772
    %10715 = vmatprep.subr.bf16.mxu0 0
    %10716 = vmatpush1.bf16.msra.mxu0 %v8773
    %10717 = vmatprep.subr.bf16.mxu0 0
    %10718 = vmatpush1.bf16.msra.mxu0 %v8774
    %10719 = vmatprep.mubr.bf16.mxu0 %v4346
    %10720 = vmatmul.mubr.bf16.gmra.mrb[0].mxu0 %v4344
    %v10721 = vpop.f32.mrb[0].mxu0
    %v10722 = vadd.f32 %v10682, %v10721
    %v10723 = vpop.f32.mrb[0].mxu0
    %v10724 = vpop.f32.mrb[0].mxu0
    %v10725 = vpop.f32.mrb[0].mxu0
    %10726 = vdwg.mxu0
    %10727 = vmatprep.subr.bf16.mxu0 0
    %10728 = vmatpush1.bf16.msra.mxu0 %v8775
    %10729 = vmatprep.subr.bf16.mxu0 0
    %10730 = vmatpush1.bf16.msra.mxu0 %v8776
    %10731 = vmatprep.subr.bf16.mxu0 0
    %10732 = vmatpush1.bf16.msra.mxu0 %v8777
    %10733 = vmatprep.subr.bf16.mxu0 0
    %10734 = vmatpush1.bf16.msra.mxu0 %v8778
    %10735 = vmatprep.subr.bf16.mxu0 0
    %10736 = vmatpush1.bf16.msra.mxu0 %v8779
    %10737 = vmatprep.subr.bf16.mxu0 0
    %10738 = vmatpush1.bf16.msra.mxu0 %v8780
    %10739 = vmatprep.subr.bf16.mxu0 0
    %10740 = vmatpush1.bf16.msra.mxu0 %v8781
    %10741 = vmatprep.subr.bf16.mxu0 0
    %10742 = vmatpush1.bf16.msra.mxu0 %v8782
    %10743 = vmatprep.subr.bf16.mxu0 0
    %10744 = vmatpush1.bf16.msra.mxu0 %v8783
    %10745 = vmatprep.subr.bf16.mxu0 0
    %10746 = vmatpush1.bf16.msra.mxu0 %v8784
    %10747 = vmatprep.subr.bf16.mxu0 0
    %10748 = vmatpush1.bf16.msra.mxu0 %v8785
    %10749 = vmatprep.subr.bf16.mxu0 0
    %10750 = vmatpush1.bf16.msra.mxu0 %v8786
    %10751 = vmatprep.subr.bf16.mxu0 0
    %10752 = vmatpush1.bf16.msra.mxu0 %v8787
    %10753 = vmatprep.subr.bf16.mxu0 0
    %10754 = vmatpush1.bf16.msra.mxu0 %v8788
    %10755 = vmatprep.subr.bf16.mxu0 0
    %10756 = vmatpush1.bf16.msra.mxu0 %v8789
    %10757 = vmatprep.subr.bf16.mxu0 0
    %10758 = vmatpush1.bf16.msra.mxu0 %v8790
    %10759 = vmatprep.mubr.bf16.mxu0 %v4343
    %10760 = vmatmul.mubr.bf16.gmra.mrb[0].mxu0 %v4329
    %v10761 = vpop.f32.mrb[0].mxu0
    %v10762 = vadd.f32 %v10722, %v10761
    %v10763 = vpop.f32.mrb[0].mxu0
    %v10764 = vpop.f32.mrb[0].mxu0
    %v10765 = vpop.f32.mrb[0].mxu0
    %10766 = vdwg.mxu0
    %10767 = vmatprep.subr.bf16.mxu0 0
    %10768 = vmatpush1.bf16.msra.mxu0 %v8791
    %10769 = vmatprep.subr.bf16.mxu0 0
    %10770 = vmatpush1.bf16.msra.mxu0 %v8792
    %10771 = vmatprep.subr.bf16.mxu0 0
    %10772 = vmatpush1.bf16.msra.mxu0 %v8793
    %10773 = vmatprep.subr.bf16.mxu0 0
    %10774 = vmatpush1.bf16.msra.mxu0 %v8794
    %10775 = vmatprep.subr.bf16.mxu0 0
    %10776 = vmatpush1.bf16.msra.mxu0 %v8795
    %10777 = vmatprep.subr.bf16.mxu0 0
    %10778 = vmatpush1.bf16.msra.mxu0 %v8796
    %10779 = vmatprep.subr.bf16.mxu0 0
    %10780 = vmatpush1.bf16.msra.mxu0 %v8797
    %10781 = vmatprep.subr.bf16.mxu0 0
    %10782 = vmatpush1.bf16.msra.mxu0 %v8798
    %10783 = vmatprep.subr.bf16.mxu0 0
    %10784 = vmatpush1.bf16.msra.mxu0 %v8799
    %10785 = vmatprep.subr.bf16.mxu0 0
    %10786 = vmatpush1.bf16.msra.mxu0 %v8800
    %10787 = vmatprep.subr.bf16.mxu0 0
    %10788 = vmatpush1.bf16.msra.mxu0 %v8801
    %10789 = vmatprep.subr.bf16.mxu0 0
    %10790 = vmatpush1.bf16.msra.mxu0 %v8802
    %10791 = vmatprep.subr.bf16.mxu0 0
    %10792 = vmatpush1.bf16.msra.mxu0 %v8803
    %10793 = vmatprep.subr.bf16.mxu0 0
    %10794 = vmatpush1.bf16.msra.mxu0 %v8804
    %10795 = vmatprep.subr.bf16.mxu0 0
    %10796 = vmatpush1.bf16.msra.mxu0 %v8805
    %10797 = vmatprep.subr.bf16.mxu0 0
    %10798 = vmatpush1.bf16.msra.mxu0 %v8806
    %10799 = vmatprep.mubr.bf16.mxu0 %v4347
    %10800 = vmatmul.mubr.bf16.gmra.mrb[0].mxu0 %v4345
    %v10801 = vpop.f32.mrb[0].mxu0
    %v10802 = vadd.f32 %v10762, %v10801
    %v10803 = vpop.f32.mrb[0].mxu0
    %v10804 = vpop.f32.mrb[0].mxu0
    %v10805 = vpop.f32.mrb[0].mxu0
    %10806 = vdwg.mxu0
    %10807 = vmatprep.subr.bf16.mxu0 0
    %10808 = vmatpush1.bf16.msra.mxu0 %v8807
    %10809 = vmatprep.subr.bf16.mxu0 0
    %10810 = vmatpush1.bf16.msra.mxu0 %v8808
    %10811 = vmatprep.subr.bf16.mxu0 0
    %10812 = vmatpush1.bf16.msra.mxu0 %v8809
    %10813 = vmatprep.subr.bf16.mxu0 0
    %10814 = vmatpush1.bf16.msra.mxu0 %v8810
    %10815 = vmatprep.subr.bf16.mxu0 0
    %10816 = vmatpush1.bf16.msra.mxu0 %v8811
    %10817 = vmatprep.subr.bf16.mxu0 0
    %10818 = vmatpush1.bf16.msra.mxu0 %v8812
    %10819 = vmatprep.subr.bf16.mxu0 0
    %10820 = vmatpush1.bf16.msra.mxu0 %v8813
    %10821 = vmatprep.subr.bf16.mxu0 0
    %10822 = vmatpush1.bf16.msra.mxu0 %v8814
    %10823 = vmatprep.subr.bf16.mxu0 0
    %10824 = vmatpush1.bf16.msra.mxu0 %v8815
    %10825 = vmatprep.subr.bf16.mxu0 0
    %10826 = vmatpush1.bf16.msra.mxu0 %v8816
    %10827 = vmatprep.subr.bf16.mxu0 0
    %10828 = vmatpush1.bf16.msra.mxu0 %v8817
    %10829 = vmatprep.subr.bf16.mxu0 0
    %10830 = vmatpush1.bf16.msra.mxu0 %v8818
    %10831 = vmatprep.subr.bf16.mxu0 0
    %10832 = vmatpush1.bf16.msra.mxu0 %v8819
    %10833 = vmatprep.subr.bf16.mxu0 0
    %10834 = vmatpush1.bf16.msra.mxu0 %v8820
    %10835 = vmatprep.subr.bf16.mxu0 0
    %10836 = vmatpush1.bf16.msra.mxu0 %v8821
    %10837 = vmatprep.subr.bf16.mxu0 0
    %10838 = vmatpush1.bf16.msra.mxu0 %v8822
    %10839 = vmatprep.mubr.bf16.mxu0 %v4385
    %10840 = vmatmul.mubr.bf16.gmra.mrb[0].mxu0 %v4371
    %v10841 = vpop.f32.mrb[0].mxu0
    %v10842 = vadd.f32 %v10802, %v10841
    %v10843 = vpop.f32.mrb[0].mxu0
    %v10844 = vpop.f32.mrb[0].mxu0
    %v10845 = vpop.f32.mrb[0].mxu0
    %10846 = vdwg.mxu0
    %10847 = vmatprep.subr.bf16.mxu0 0
    %10848 = vmatpush1.bf16.msra.mxu0 %v8823
    %10849 = vmatprep.subr.bf16.mxu0 0
    %10850 = vmatpush1.bf16.msra.mxu0 %v8824
    %10851 = vmatprep.subr.bf16.mxu0 0
    %10852 = vmatpush1.bf16.msra.mxu0 %v8825
    %10853 = vmatprep.subr.bf16.mxu0 0
    %10854 = vmatpush1.bf16.msra.mxu0 %v8826
    %10855 = vmatprep.subr.bf16.mxu0 0
    %10856 = vmatpush1.bf16.msra.mxu0 %v8827
    %10857 = vmatprep.subr.bf16.mxu0 0
    %10858 = vmatpush1.bf16.msra.mxu0 %v8828
    %10859 = vmatprep.subr.bf16.mxu0 0
    %10860 = vmatpush1.bf16.msra.mxu0 %v8829
    %10861 = vmatprep.subr.bf16.mxu0 0
    %10862 = vmatpush1.bf16.msra.mxu0 %v8830
    %10863 = vmatprep.subr.bf16.mxu0 0
    %10864 = vmatpush1.bf16.msra.mxu0 %v8831
    %10865 = vmatprep.subr.bf16.mxu0 0
    %10866 = vmatpush1.bf16.msra.mxu0 %v8832
    %10867 = vmatprep.subr.bf16.mxu0 0
    %10868 = vmatpush1.bf16.msra.mxu0 %v8833
    %10869 = vmatprep.subr.bf16.mxu0 0
    %10870 = vmatpush1.bf16.msra.mxu0 %v8834
    %10871 = vmatprep.subr.bf16.mxu0 0
    %10872 = vmatpush1.bf16.msra.mxu0 %v8835
    %10873 = vmatprep.subr.bf16.mxu0 0
    %10874 = vmatpush1.bf16.msra.mxu0 %v8836
    %10875 = vmatprep.subr.bf16.mxu0 0
    %10876 = vmatpush1.bf16.msra.mxu0 %v8837
    %10877 = vmatprep.subr.bf16.mxu0 0
    %10878 = vmatpush1.bf16.msra.mxu0 %v8838
    %10879 = vmatprep.mubr.bf16.mxu0 %v4395
    %10880 = vmatmul.mubr.bf16.gmra.mrb[0].mxu0 %v4393
    %v10881 = vpop.f32.mrb[0].mxu0
    %v10882 = vadd.f32 %v10842, %v10881
    %v10883 = vpop.f32.mrb[0].mxu0
    %v10884 = vpop.f32.mrb[0].mxu0
    %v10885 = vpop.f32.mrb[0].mxu0
    %10886 = vdwg.mxu0
    %10887 = vmatprep.subr.bf16.mxu0 0
    %10888 = vmatpush1.bf16.msra.mxu0 %v8839
    %10889 = vmatprep.subr.bf16.mxu0 0
    %10890 = vmatpush1.bf16.msra.mxu0 %v8840
    %10891 = vmatprep.subr.bf16.mxu0 0
    %10892 = vmatpush1.bf16.msra.mxu0 %v8841
    %10893 = vmatprep.subr.bf16.mxu0 0
    %10894 = vmatpush1.bf16.msra.mxu0 %v8842
    %10895 = vmatprep.subr.bf16.mxu0 0
    %10896 = vmatpush1.bf16.msra.mxu0 %v8843
    %10897 = vmatprep.subr.bf16.mxu0 0
    %10898 = vmatpush1.bf16.msra.mxu0 %v8844
    %10899 = vmatprep.subr.bf16.mxu0 0
    %10900 = vmatpush1.bf16.msra.mxu0 %v8845
    %10901 = vmatprep.subr.bf16.mxu0 0
    %10902 = vmatpush1.bf16.msra.mxu0 %v8846
    %10903 = vmatprep.subr.bf16.mxu0 0
    %10904 = vmatpush1.bf16.msra.mxu0 %v8847
    %10905 = vmatprep.subr.bf16.mxu0 0
    %10906 = vmatpush1.bf16.msra.mxu0 %v8848
    %10907 = vmatprep.subr.bf16.mxu0 0
    %10908 = vmatpush1.bf16.msra.mxu0 %v8849
    %10909 = vmatprep.subr.bf16.mxu0 0
    %10910 = vmatpush1.bf16.msra.mxu0 %v8850
    %10911 = vmatprep.subr.bf16.mxu0 0
    %10912 = vmatpush1.bf16.msra.mxu0 %v8851
    %10913 = vmatprep.subr.bf16.mxu0 0
    %10914 = vmatpush1.bf16.msra.mxu0 %v8852
    %10915 = vmatprep.subr.bf16.mxu0 0
    %10916 = vmatpush1.bf16.msra.mxu0 %v8853
    %10917 = vmatprep.subr.bf16.mxu0 0
    %10918 = vmatpush1.bf16.msra.mxu0 %v8854
    %10919 = vmatprep.mubr.bf16.mxu0 %v4392
    %10920 = vmatmul.mubr.bf16.gmra.mrb[0].mxu0 %v4378
    %v10921 = vpop.f32.mrb[0].mxu0
    %v10922 = vadd.f32 %v10882, %v10921
    %v10923 = vpop.f32.mrb[0].mxu0
    %v10924 = vpop.f32.mrb[0].mxu0
    %v10925 = vpop.f32.mrb[0].mxu0
    %10926 = vdwg.mxu0
    %10927 = vmatprep.subr.bf16.mxu0 0
    %10928 = vmatpush1.bf16.msra.mxu0 %v8855
    %10929 = vmatprep.subr.bf16.mxu0 0
    %10930 = vmatpush1.bf16.msra.mxu0 %v8856
    %10931 = vmatprep.subr.bf16.mxu0 0
    %10932 = vmatpush1.bf16.msra.mxu0 %v8857
    %10933 = vmatprep.subr.bf16.mxu0 0
    %10934 = vmatpush1.bf16.msra.mxu0 %v8858
    %10935 = vmatprep.subr.bf16.mxu0 0
    %10936 = vmatpush1.bf16.msra.mxu0 %v8859
    %10937 = vmatprep.subr.bf16.mxu0 0
    %10938 = vmatpush1.bf16.msra.mxu0 %v8860
    %10939 = vmatprep.subr.bf16.mxu0 0
    %10940 = vmatpush1.bf16.msra.mxu0 %v8861
    %10941 = vmatprep.subr.bf16.mxu0 0
    %10942 = vmatpush1.bf16.msra.mxu0 %v8862
    %10943 = vmatprep.subr.bf16.mxu0 0
    %10944 = vmatpush1.bf16.msra.mxu0 %v8863
    %10945 = vmatprep.subr.bf16.mxu0 0
    %10946 = vmatpush1.bf16.msra.mxu0 %v8864
    %10947 = vmatprep.subr.bf16.mxu0 0
    %10948 = vmatpush1.bf16.msra.mxu0 %v8865
    %10949 = vmatprep.subr.bf16.mxu0 0
    %10950 = vmatpush1.bf16.msra.mxu0 %v8866
    %10951 = vmatprep.subr.bf16.mxu0 0
    %10952 = vmatpush1.bf16.msra.mxu0 %v8867
    %10953 = vmatprep.subr.bf16.mxu0 0
    %10954 = vmatpush1.bf16.msra.mxu0 %v8868
    %10955 = vmatprep.subr.bf16.mxu0 0
    %10956 = vmatpush1.bf16.msra.mxu0 %v8869
    %10957 = vmatprep.subr.bf16.mxu0 0
    %10958 = vmatpush1.bf16.msra.mxu0 %v8870
    %10959 = vmatprep.mubr.bf16.mxu0 %v4396
    %10960 = vmatmul.mubr.bf16.gmra.mrb[0].mxu0 %v4394
    %v10961 = vpop.f32.mrb[0].mxu0
    %v10962 = vadd.f32 %v10922, %v10961
    %v10963 = vpop.f32.mrb[0].mxu0
    %v10964 = vpop.f32.mrb[0].mxu0
    %v10965 = vpop.f32.mrb[0].mxu0
    %10966 = vdwg.mxu0
    %10967 = vmatprep.subr.bf16.mxu0 0
    %10968 = vmatpush1.bf16.msra.mxu0 %v8871
    %10969 = vmatprep.subr.bf16.mxu0 0
    %10970 = vmatpush1.bf16.msra.mxu0 %v8872
    %10971 = vmatprep.subr.bf16.mxu0 0
    %10972 = vmatpush1.bf16.msra.mxu0 %v8873
    %10973 = vmatprep.subr.bf16.mxu0 0
    %10974 = vmatpush1.bf16.msra.mxu0 %v8874
    %10975 = vmatprep.subr.bf16.mxu0 0
    %10976 = vmatpush1.bf16.msra.mxu0 %v8875
    %10977 = vmatprep.subr.bf16.mxu0 0
    %10978 = vmatpush1.bf16.msra.mxu0 %v8876
    %10979 = vmatprep.subr.bf16.mxu0 0
    %10980 = vmatpush1.bf16.msra.mxu0 %v8877
    %10981 = vmatprep.subr.bf16.mxu0 0
    %10982 = vmatpush1.bf16.msra.mxu0 %v8878
    %10983 = vmatprep.subr.bf16.mxu0 0
    %10984 = vmatpush1.bf16.msra.mxu0 %v8879
    %10985 = vmatprep.subr.bf16.mxu0 0
    %10986 = vmatpush1.bf16.msra.mxu0 %v8880
    %10987 = vmatprep.subr.bf16.mxu0 0
    %10988 = vmatpush1.bf16.msra.mxu0 %v8881
    %10989 = vmatprep.subr.bf16.mxu0 0
    %10990 = vmatpush1.bf16.msra.mxu0 %v8882
    %10991 = vmatprep.subr.bf16.mxu0 0
    %10992 = vmatpush1.bf16.msra.mxu0 %v8883
    %10993 = vmatprep.subr.bf16.mxu0 0
    %10994 = vmatpush1.bf16.msra.mxu0 %v8884
    %10995 = vmatprep.subr.bf16.mxu0 0
    %10996 = vmatpush1.bf16.msra.mxu0 %v8885
    %10997 = vmatprep.subr.bf16.mxu0 0
    %10998 = vmatpush1.bf16.msra.mxu0 %v8886
    %10999 = vmatprep.mubr.bf16.mxu0 %v4434
    %11000 = vmatmul.mubr.bf16.gmra.mrb[0].mxu0 %v4420
    %v11001 = vpop.f32.mrb[0].mxu0
    %v11002 = vadd.f32 %v10962, %v11001
    %v11003 = vpop.f32.mrb[0].mxu0
    %v11004 = vpop.f32.mrb[0].mxu0
    %v11005 = vpop.f32.mrb[0].mxu0
    %11006 = vdwg.mxu0
    %11007 = vmatprep.subr.bf16.mxu0 0
    %11008 = vmatpush1.bf16.msra.mxu0 %v8887
    %11009 = vmatprep.subr.bf16.mxu0 0
    %11010 = vmatpush1.bf16.msra.mxu0 %v8888
    %11011 = vmatprep.subr.bf16.mxu0 0
    %11012 = vmatpush1.bf16.msra.mxu0 %v8889
    %11013 = vmatprep.subr.bf16.mxu0 0
    %11014 = vmatpush1.bf16.msra.mxu0 %v8890
    %11015 = vmatprep.subr.bf16.mxu0 0
    %11016 = vmatpush1.bf16.msra.mxu0 %v8891
    %11017 = vmatprep.subr.bf16.mxu0 0
    %11018 = vmatpush1.bf16.msra.mxu0 %v8892
    %11019 = vmatprep.subr.bf16.mxu0 0
    %11020 = vmatpush1.bf16.msra.mxu0 %v8893
    %11021 = vmatprep.subr.bf16.mxu0 0
    %11022 = vmatpush1.bf16.msra.mxu0 %v8894
    %11023 = vmatprep.subr.bf16.mxu0 0
    %11024 = vmatpush1.bf16.msra.mxu0 %v8895
    %11025 = vmatprep.subr.bf16.mxu0 0
    %11026 = vmatpush1.bf16.msra.mxu0 %v8896
    %11027 = vmatprep.subr.bf16.mxu0 0
    %11028 = vmatpush1.bf16.msra.mxu0 %v8897
    %11029 = vmatprep.subr.bf16.mxu0 0
    %11030 = vmatpush1.bf16.msra.mxu0 %v8898
    %11031 = vmatprep.subr.bf16.mxu0 0
    %11032 = vmatpush1.bf16.msra.mxu0 %v8899
    %11033 = vmatprep.subr.bf16.mxu0 0
    %11034 = vmatpush1.bf16.msra.mxu0 %v8900
    %11035 = vmatprep.subr.bf16.mxu0 0
    %11036 = vmatpush1.bf16.msra.mxu0 %v8901
    %11037 = vmatprep.subr.bf16.mxu0 0
    %11038 = vmatpush1.bf16.msra.mxu0 %v8902
    %11039 = vmatprep.mubr.bf16.mxu0 %v4444
    %11040 = vmatmul.mubr.bf16.gmra.mrb[0].mxu0 %v4442
    %v11041 = vpop.f32.mrb[0].mxu0
    %v11042 = vadd.f32 %v11002, %v11041
    %v11043 = vpop.f32.mrb[0].mxu0
    %v11044 = vpop.f32.mrb[0].mxu0
    %v11045 = vpop.f32.mrb[0].mxu0
    %11046 = vdwg.mxu0
    %11047 = vmatprep.subr.bf16.mxu0 0
    %11048 = vmatpush1.bf16.msra.mxu0 %v8903
    %11049 = vmatprep.subr.bf16.mxu0 0
    %11050 = vmatpush1.bf16.msra.mxu0 %v8904
    %11051 = vmatprep.subr.bf16.mxu0 0
    %11052 = vmatpush1.bf16.msra.mxu0 %v8905
    %11053 = vmatprep.subr.bf16.mxu0 0
    %11054 = vmatpush1.bf16.msra.mxu0 %v8906
    %11055 = vmatprep.subr.bf16.mxu0 0
    %11056 = vmatpush1.bf16.msra.mxu0 %v8907
    %11057 = vmatprep.subr.bf16.mxu0 0
    %11058 = vmatpush1.bf16.msra.mxu0 %v8908
    %11059 = vmatprep.subr.bf16.mxu0 0
    %11060 = vmatpush1.bf16.msra.mxu0 %v8909
    %11061 = vmatprep.subr.bf16.mxu0 0
    %11062 = vmatpush1.bf16.msra.mxu0 %v8910
    %11063 = vmatprep.subr.bf16.mxu0 0
    %11064 = vmatpush1.bf16.msra.mxu0 %v8911
    %11065 = vmatprep.subr.bf16.mxu0 0
    %11066 = vmatpush1.bf16.msra.mxu0 %v8912
    %11067 = vmatprep.subr.bf16.mxu0 0
    %11068 = vmatpush1.bf16.msra.mxu0 %v8913
    %11069 = vmatprep.subr.bf16.mxu0 0
    %11070 = vmatpush1.bf16.msra.mxu0 %v8914
    %11071 = vmatprep.subr.bf16.mxu0 0
    %11072 = vmatpush1.bf16.msra.mxu0 %v8915
    %11073 = vmatprep.subr.bf16.mxu0 0
    %11074 = vmatpush1.bf16.msra.mxu0 %v8916
    %11075 = vmatprep.subr.bf16.mxu0 0
    %11076 = vmatpush1.bf16.msra.mxu0 %v8917
    %11077 = vmatprep.subr.bf16.mxu0 0
    %11078 = vmatpush1.bf16.msra.mxu0 %v8918
    %11079 = vmatprep.mubr.bf16.mxu0 %v4441
    %11080 = vmatmul.mubr.bf16.gmra.mrb[0].mxu0 %v4427
    %v11081 = vpop.f32.mrb[0].mxu0
    %v11082 = vadd.f32 %v11042, %v11081
    %v11083 = vpop.f32.mrb[0].mxu0
    %v11084 = vpop.f32.mrb[0].mxu0
    %v11085 = vpop.f32.mrb[0].mxu0
    %11086 = vdwg.mxu0
    %11087 = vmatprep.subr.bf16.mxu0 0
    %11088 = vmatpush1.bf16.msra.mxu0 %v8919
    %11089 = vmatprep.subr.bf16.mxu0 0
    %11090 = vmatpush1.bf16.msra.mxu0 %v8920
    %11091 = vmatprep.subr.bf16.mxu0 0
    %11092 = vmatpush1.bf16.msra.mxu0 %v8921
    %11093 = vmatprep.subr.bf16.mxu0 0
    %11094 = vmatpush1.bf16.msra.mxu0 %v8922
    %11095 = vmatprep.subr.bf16.mxu0 0
    %11096 = vmatpush1.bf16.msra.mxu0 %v8923
    %11097 = vmatprep.subr.bf16.mxu0 0
    %11098 = vmatpush1.bf16.msra.mxu0 %v8924
    %11099 = vmatprep.subr.bf16.mxu0 0
    %11100 = vmatpush1.bf16.msra.mxu0 %v8925
    %11101 = vmatprep.subr.bf16.mxu0 0
    %11102 = vmatpush1.bf16.msra.mxu0 %v8926
    %11103 = vmatprep.subr.bf16.mxu0 0
    %11104 = vmatpush1.bf16.msra.mxu0 %v8927
    %11105 = vmatprep.subr.bf16.mxu0 0
    %11106 = vmatpush1.bf16.msra.mxu0 %v8928
    %11107 = vmatprep.subr.bf16.mxu0 0
    %11108 = vmatpush1.bf16.msra.mxu0 %v8929
    %11109 = vmatprep.subr.bf16.mxu0 0
    %11110 = vmatpush1.bf16.msra.mxu0 %v8930
    %11111 = vmatprep.subr.bf16.mxu0 0
    %11112 = vmatpush1.bf16.msra.mxu0 %v8931
    %11113 = vmatprep.subr.bf16.mxu0 0
    %11114 = vmatpush1.bf16.msra.mxu0 %v8932
    %11115 = vmatprep.subr.bf16.mxu0 0
    %11116 = vmatpush1.bf16.msra.mxu0 %v8933
    %11117 = vmatprep.subr.bf16.mxu0 0
    %11118 = vmatpush1.bf16.msra.mxu0 %v8934
    %11119 = vmatprep.mubr.bf16.mxu0 %v4445
    %11120 = vmatmul.mubr.bf16.gmra.mrb[0].mxu0 %v4443
    %v11121 = vpop.f32.mrb[0].mxu0
    %v11122 = vadd.f32 %v11082, %v11121
    %v11123 = vpop.f32.mrb[0].mxu0
    %v11124 = vpop.f32.mrb[0].mxu0
    %v11125 = vpop.f32.mrb[0].mxu0
    %11126 = vdwg.mxu0
    %11127 = vmatprep.subr.bf16.mxu0 0
    %11128 = vmatpush1.bf16.msra.mxu0 %v8935
    %11129 = vmatprep.subr.bf16.mxu0 0
    %11130 = vmatpush1.bf16.msra.mxu0 %v8936
    %11131 = vmatprep.subr.bf16.mxu0 0
    %11132 = vmatpush1.bf16.msra.mxu0 %v8937
    %11133 = vmatprep.subr.bf16.mxu0 0
    %11134 = vmatpush1.bf16.msra.mxu0 %v8938
    %11135 = vmatprep.subr.bf16.mxu0 0
    %11136 = vmatpush1.bf16.msra.mxu0 %v8939
    %11137 = vmatprep.subr.bf16.mxu0 0
    %11138 = vmatpush1.bf16.msra.mxu0 %v8940
    %11139 = vmatprep.subr.bf16.mxu0 0
    %11140 = vmatpush1.bf16.msra.mxu0 %v8941
    %11141 = vmatprep.subr.bf16.mxu0 0
    %11142 = vmatpush1.bf16.msra.mxu0 %v8942
    %11143 = vmatprep.subr.bf16.mxu0 0
    %11144 = vmatpush1.bf16.msra.mxu0 %v8943
    %11145 = vmatprep.subr.bf16.mxu0 0
    %11146 = vmatpush1.bf16.msra.mxu0 %v8944
    %11147 = vmatprep.subr.bf16.mxu0 0
    %11148 = vmatpush1.bf16.msra.mxu0 %v8945
    %11149 = vmatprep.subr.bf16.mxu0 0
    %11150 = vmatpush1.bf16.msra.mxu0 %v8946
    %11151 = vmatprep.subr.bf16.mxu0 0
    %11152 = vmatpush1.bf16.msra.mxu0 %v8947
    %11153 = vmatprep.subr.bf16.mxu0 0
    %11154 = vmatpush1.bf16.msra.mxu0 %v8948
    %11155 = vmatprep.subr.bf16.mxu0 0
    %11156 = vmatpush1.bf16.msra.mxu0 %v8949
    %11157 = vmatprep.subr.bf16.mxu0 0
    %11158 = vmatpush1.bf16.msra.mxu0 %v8950
    %11159 = vmatprep.mubr.bf16.mxu0 %v4483
    %11160 = vmatmul.mubr.bf16.gmra.mrb[0].mxu0 %v4469
    %v11161 = vpop.f32.mrb[0].mxu0
    %v11162 = vadd.f32 %v11122, %v11161
    %v11163 = vpop.f32.mrb[0].mxu0
    %v11164 = vpop.f32.mrb[0].mxu0
    %v11165 = vpop.f32.mrb[0].mxu0
    %11166 = vdwg.mxu0
    %11167 = vmatprep.subr.bf16.mxu0 0
    %11168 = vmatpush1.bf16.msra.mxu0 %v8951
    %11169 = vmatprep.subr.bf16.mxu0 0
    %11170 = vmatpush1.bf16.msra.mxu0 %v8952
    %11171 = vmatprep.subr.bf16.mxu0 0
    %11172 = vmatpush1.bf16.msra.mxu0 %v8953
    %11173 = vmatprep.subr.bf16.mxu0 0
    %11174 = vmatpush1.bf16.msra.mxu0 %v8954
    %11175 = vmatprep.subr.bf16.mxu0 0
    %11176 = vmatpush1.bf16.msra.mxu0 %v8955
    %11177 = vmatprep.subr.bf16.mxu0 0
    %11178 = vmatpush1.bf16.msra.mxu0 %v8956
    %11179 = vmatprep.subr.bf16.mxu0 0
    %11180 = vmatpush1.bf16.msra.mxu0 %v8957
    %11181 = vmatprep.subr.bf16.mxu0 0
    %11182 = vmatpush1.bf16.msra.mxu0 %v8958
    %11183 = vmatprep.subr.bf16.mxu0 0
    %11184 = vmatpush1.bf16.msra.mxu0 %v8959
    %11185 = vmatprep.subr.bf16.mxu0 0
    %11186 = vmatpush1.bf16.msra.mxu0 %v8960
    %11187 = vmatprep.subr.bf16.mxu0 0
    %11188 = vmatpush1.bf16.msra.mxu0 %v8961
    %11189 = vmatprep.subr.bf16.mxu0 0
    %11190 = vmatpush1.bf16.msra.mxu0 %v8962
    %11191 = vmatprep.subr.bf16.mxu0 0
    %11192 = vmatpush1.bf16.msra.mxu0 %v8963
    %11193 = vmatprep.subr.bf16.mxu0 0
    %11194 = vmatpush1.bf16.msra.mxu0 %v8964
    %11195 = vmatprep.subr.bf16.mxu0 0
    %11196 = vmatpush1.bf16.msra.mxu0 %v8965
    %11197 = vmatprep.subr.bf16.mxu0 0
    %11198 = vmatpush1.bf16.msra.mxu0 %v8966
    %11199 = vmatprep.mubr.bf16.mxu0 %v4493
    %11200 = vmatmul.mubr.bf16.gmra.mrb[0].mxu0 %v4491
    %v11201 = vpop.f32.mrb[0].mxu0
    %v11202 = vadd.f32 %v11162, %v11201
    %v11203 = vpop.f32.mrb[0].mxu0
    %v11204 = vpop.f32.mrb[0].mxu0
    %v11205 = vpop.f32.mrb[0].mxu0
    %11206 = vdwg.mxu0
    %11207 = vmatprep.subr.bf16.mxu0 0
    %11208 = vmatpush1.bf16.msra.mxu0 %v8967
    %11209 = vmatprep.subr.bf16.mxu0 0
    %11210 = vmatpush1.bf16.msra.mxu0 %v8968
    %11211 = vmatprep.subr.bf16.mxu0 0
    %11212 = vmatpush1.bf16.msra.mxu0 %v8969
    %11213 = vmatprep.subr.bf16.mxu0 0
    %11214 = vmatpush1.bf16.msra.mxu0 %v8970
    %11215 = vmatprep.subr.bf16.mxu0 0
    %11216 = vmatpush1.bf16.msra.mxu0 %v8971
    %11217 = vmatprep.subr.bf16.mxu0 0
    %11218 = vmatpush1.bf16.msra.mxu0 %v8972
    %11219 = vmatprep.subr.bf16.mxu0 0
    %11220 = vmatpush1.bf16.msra.mxu0 %v8973
    %11221 = vmatprep.subr.bf16.mxu0 0
    %11222 = vmatpush1.bf16.msra.mxu0 %v8974
    %11223 = vmatprep.subr.bf16.mxu0 0
    %11224 = vmatpush1.bf16.msra.mxu0 %v8975
    %11225 = vmatprep.subr.bf16.mxu0 0
    %11226 = vmatpush1.bf16.msra.mxu0 %v8976
    %11227 = vmatprep.subr.bf16.mxu0 0
    %11228 = vmatpush1.bf16.msra.mxu0 %v8977
    %11229 = vmatprep.subr.bf16.mxu0 0
    %11230 = vmatpush1.bf16.msra.mxu0 %v8978
    %11231 = vmatprep.subr.bf16.mxu0 0
    %11232 = vmatpush1.bf16.msra.mxu0 %v8979
    %11233 = vmatprep.subr.bf16.mxu0 0
    %11234 = vmatpush1.bf16.msra.mxu0 %v8980
    %11235 = vmatprep.subr.bf16.mxu0 0
    %11236 = vmatpush1.bf16.msra.mxu0 %v8981
    %11237 = vmatprep.subr.bf16.mxu0 0
    %11238 = vmatpush1.bf16.msra.mxu0 %v8982
    %11239 = vmatprep.mubr.bf16.mxu0 %v4490
    %11240 = vmatmul.mubr.bf16.gmra.mrb[0].mxu0 %v4476
    %v11241 = vpop.f32.mrb[0].mxu0
    %v11242 = vadd.f32 %v11202, %v11241
    %v11243 = vpop.f32.mrb[0].mxu0
    %v11244 = vpop.f32.mrb[0].mxu0
    %v11245 = vpop.f32.mrb[0].mxu0
    %11246 = vdwg.mxu0
    %11247 = vmatprep.subr.bf16.mxu0 0
    %11248 = vmatpush1.bf16.msra.mxu0 %v8983
    %11249 = vmatprep.subr.bf16.mxu0 0
    %11250 = vmatpush1.bf16.msra.mxu0 %v8984
    %11251 = vmatprep.subr.bf16.mxu0 0
    %11252 = vmatpush1.bf16.msra.mxu0 %v8985
    %11253 = vmatprep.subr.bf16.mxu0 0
    %11254 = vmatpush1.bf16.msra.mxu0 %v8986
    %11255 = vmatprep.subr.bf16.mxu0 0
    %11256 = vmatpush1.bf16.msra.mxu0 %v8987
    %11257 = vmatprep.subr.bf16.mxu0 0
    %11258 = vmatpush1.bf16.msra.mxu0 %v8988
    %11259 = vmatprep.subr.bf16.mxu0 0
    %11260 = vmatpush1.bf16.msra.mxu0 %v8989
    %11261 = vmatprep.subr.bf16.mxu0 0
    %11262 = vmatpush1.bf16.msra.mxu0 %v8990
    %11263 = vmatprep.subr.bf16.mxu0 0
    %11264 = vmatpush1.bf16.msra.mxu0 %v8991
    %11265 = vmatprep.subr.bf16.mxu0 0
    %11266 = vmatpush1.bf16.msra.mxu0 %v8992
    %11267 = vmatprep.subr.bf16.mxu0 0
    %11268 = vmatpush1.bf16.msra.mxu0 %v8993
    %11269 = vmatprep.subr.bf16.mxu0 0
    %11270 = vmatpush1.bf16.msra.mxu0 %v8994
    %11271 = vmatprep.subr.bf16.mxu0 0
    %11272 = vmatpush1.bf16.msra.mxu0 %v8995
    %11273 = vmatprep.subr.bf16.mxu0 0
    %11274 = vmatpush1.bf16.msra.mxu0 %v8996
    %11275 = vmatprep.subr.bf16.mxu0 0
    %11276 = vmatpush1.bf16.msra.mxu0 %v8997
    %11277 = vmatprep.subr.bf16.mxu0 0
    %11278 = vmatpush1.bf16.msra.mxu0 %v8998
    %11279 = vmatprep.mubr.bf16.mxu0 %v4494
    %11280 = vmatmul.mubr.bf16.gmra.mrb[0].mxu0 %v4492
    %v11281 = vpop.f32.mrb[0].mxu0
    %v11282 = vadd.f32 %v11242, %v11281
    %v11283 = vpop.f32.mrb[0].mxu0
    %v11284 = vpop.f32.mrb[0].mxu0
    %v11285 = vpop.f32.mrb[0].mxu0
    %11286 = vdwg.mxu0
    %11287 = vmatprep.subr.bf16.mxu0 0
    %11288 = vmatpush1.bf16.msra.mxu0 %v8999
    %11289 = vmatprep.subr.bf16.mxu0 0
    %11290 = vmatpush1.bf16.msra.mxu0 %v9000
    %11291 = vmatprep.subr.bf16.mxu0 0
    %11292 = vmatpush1.bf16.msra.mxu0 %v9001
    %11293 = vmatprep.subr.bf16.mxu0 0
    %11294 = vmatpush1.bf16.msra.mxu0 %v9002
    %11295 = vmatprep.subr.bf16.mxu0 0
    %11296 = vmatpush1.bf16.msra.mxu0 %v9003
    %11297 = vmatprep.subr.bf16.mxu0 0
    %11298 = vmatpush1.bf16.msra.mxu0 %v9004
    %11299 = vmatprep.subr.bf16.mxu0 0
    %11300 = vmatpush1.bf16.msra.mxu0 %v9005
    %11301 = vmatprep.subr.bf16.mxu0 0
    %11302 = vmatpush1.bf16.msra.mxu0 %v9006
    %11303 = vmatprep.subr.bf16.mxu0 0
    %11304 = vmatpush1.bf16.msra.mxu0 %v9007
    %11305 = vmatprep.subr.bf16.mxu0 0
    %11306 = vmatpush1.bf16.msra.mxu0 %v9008
    %11307 = vmatprep.subr.bf16.mxu0 0
    %11308 = vmatpush1.bf16.msra.mxu0 %v9009
    %11309 = vmatprep.subr.bf16.mxu0 0
    %11310 = vmatpush1.bf16.msra.mxu0 %v9010
    %11311 = vmatprep.subr.bf16.mxu0 0
    %11312 = vmatpush1.bf16.msra.mxu0 %v9011
    %11313 = vmatprep.subr.bf16.mxu0 0
    %11314 = vmatpush1.bf16.msra.mxu0 %v9012
    %11315 = vmatprep.subr.bf16.mxu0 0
    %11316 = vmatpush1.bf16.msra.mxu0 %v9013
    %11317 = vmatprep.subr.bf16.mxu0 0
    %11318 = vmatpush1.bf16.msra.mxu0 %v9014
    %11319 = vmatprep.mubr.bf16.mxu0 %v4532
    %11320 = vmatmul.mubr.bf16.gmra.mrb[0].mxu0 %v4518
    %v11321 = vpop.f32.mrb[0].mxu0
    %v11322 = vadd.f32 %v11282, %v11321
    %v11323 = vpop.f32.mrb[0].mxu0
    %v11324 = vpop.f32.mrb[0].mxu0
    %v11325 = vpop.f32.mrb[0].mxu0
    %11326 = vdwg.mxu0
    %11327 = vmatprep.subr.bf16.mxu0 0
    %11328 = vmatpush1.bf16.msra.mxu0 %v9015
    %11329 = vmatprep.subr.bf16.mxu0 0
    %11330 = vmatpush1.bf16.msra.mxu0 %v9016
    %11331 = vmatprep.subr.bf16.mxu0 0
    %11332 = vmatpush1.bf16.msra.mxu0 %v9017
    %11333 = vmatprep.subr.bf16.mxu0 0
    %11334 = vmatpush1.bf16.msra.mxu0 %v9018
    %11335 = vmatprep.subr.bf16.mxu0 0
    %11336 = vmatpush1.bf16.msra.mxu0 %v9019
    %11337 = vmatprep.subr.bf16.mxu0 0
    %11338 = vmatpush1.bf16.msra.mxu0 %v9020
    %11339 = vmatprep.subr.bf16.mxu0 0
    %11340 = vmatpush1.bf16.msra.mxu0 %v9021
    %11341 = vmatprep.subr.bf16.mxu0 0
    %11342 = vmatpush1.bf16.msra.mxu0 %v9022
    %11343 = vmatprep.subr.bf16.mxu0 0
    %11344 = vmatpush1.bf16.msra.mxu0 %v9023
    %11345 = vmatprep.subr.bf16.mxu0 0
    %11346 = vmatpush1.bf16.msra.mxu0 %v9024
    %11347 = vmatprep.subr.bf16.mxu0 0
    %11348 = vmatpush1.bf16.msra.mxu0 %v9025
    %11349 = vmatprep.subr.bf16.mxu0 0
    %11350 = vmatpush1.bf16.msra.mxu0 %v9026
    %11351 = vmatprep.subr.bf16.mxu0 0
    %11352 = vmatpush1.bf16.msra.mxu0 %v9027
    %11353 = vmatprep.subr.bf16.mxu0 0
    %11354 = vmatpush1.bf16.msra.mxu0 %v9028
    %11355 = vmatprep.subr.bf16.mxu0 0
    %11356 = vmatpush1.bf16.msra.mxu0 %v9029
    %11357 = vmatprep.subr.bf16.mxu0 0
    %11358 = vmatpush1.bf16.msra.mxu0 %v9030
    %11359 = vmatprep.mubr.bf16.mxu0 %v4542
    %11360 = vmatmul.mubr.bf16.gmra.mrb[0].mxu0 %v4540
    %v11361 = vpop.f32.mrb[0].mxu0
    %v11362 = vadd.f32 %v11322, %v11361
    %v11363 = vpop.f32.mrb[0].mxu0
    %v11364 = vpop.f32.mrb[0].mxu0
    %v11365 = vpop.f32.mrb[0].mxu0
    %11366 = vdwg.mxu0
    %11367 = vmatprep.subr.bf16.mxu0 0
    %11368 = vmatpush1.bf16.msra.mxu0 %v9031
    %11369 = vmatprep.subr.bf16.mxu0 0
    %11370 = vmatpush1.bf16.msra.mxu0 %v9032
    %11371 = vmatprep.subr.bf16.mxu0 0
    %11372 = vmatpush1.bf16.msra.mxu0 %v9033
    %11373 = vmatprep.subr.bf16.mxu0 0
    %11374 = vmatpush1.bf16.msra.mxu0 %v9034
    %11375 = vmatprep.subr.bf16.mxu0 0
    %11376 = vmatpush1.bf16.msra.mxu0 %v9035
    %11377 = vmatprep.subr.bf16.mxu0 0
    %11378 = vmatpush1.bf16.msra.mxu0 %v9036
    %11379 = vmatprep.subr.bf16.mxu0 0
    %11380 = vmatpush1.bf16.msra.mxu0 %v9037
    %11381 = vmatprep.subr.bf16.mxu0 0
    %11382 = vmatpush1.bf16.msra.mxu0 %v9038
    %11383 = vmatprep.subr.bf16.mxu0 0
    %11384 = vmatpush1.bf16.msra.mxu0 %v9039
    %11385 = vmatprep.subr.bf16.mxu0 0
    %11386 = vmatpush1.bf16.msra.mxu0 %v9040
    %11387 = vmatprep.subr.bf16.mxu0 0
    %11388 = vmatpush1.bf16.msra.mxu0 %v9041
    %11389 = vmatprep.subr.bf16.mxu0 0
    %11390 = vmatpush1.bf16.msra.mxu0 %v9042
    %11391 = vmatprep.subr.bf16.mxu0 0
    %11392 = vmatpush1.bf16.msra.mxu0 %v9043
    %11393 = vmatprep.subr.bf16.mxu0 0
    %11394 = vmatpush1.bf16.msra.mxu0 %v9044
    %11395 = vmatprep.subr.bf16.mxu0 0
    %11396 = vmatpush1.bf16.msra.mxu0 %v9045
    %11397 = vmatprep.subr.bf16.mxu0 0
    %11398 = vmatpush1.bf16.msra.mxu0 %v9046
    %11399 = vmatprep.mubr.bf16.mxu0 %v4539
    %11400 = vmatmul.mubr.bf16.gmra.mrb[0].mxu0 %v4525
    %v11401 = vpop.f32.mrb[0].mxu0
    %v11402 = vadd.f32 %v11362, %v11401
    %v11403 = vpop.f32.mrb[0].mxu0
    %v11404 = vpop.f32.mrb[0].mxu0
    %v11405 = vpop.f32.mrb[0].mxu0
    %11406 = vdwg.mxu0
    %11407 = vmatprep.subr.bf16.mxu0 0
    %11408 = vmatpush1.bf16.msra.mxu0 %v9047
    %11409 = vmatprep.subr.bf16.mxu0 0
    %11410 = vmatpush1.bf16.msra.mxu0 %v9048
    %11411 = vmatprep.subr.bf16.mxu0 0
    %11412 = vmatpush1.bf16.msra.mxu0 %v9049
    %11413 = vmatprep.subr.bf16.mxu0 0
    %11414 = vmatpush1.bf16.msra.mxu0 %v9050
    %11415 = vmatprep.subr.bf16.mxu0 0
    %11416 = vmatpush1.bf16.msra.mxu0 %v9051
    %11417 = vmatprep.subr.bf16.mxu0 0
    %11418 = vmatpush1.bf16.msra.mxu0 %v9052
    %11419 = vmatprep.subr.bf16.mxu0 0
    %11420 = vmatpush1.bf16.msra.mxu0 %v9053
    %11421 = vmatprep.subr.bf16.mxu0 0
    %11422 = vmatpush1.bf16.msra.mxu0 %v9054
    %11423 = vmatprep.subr.bf16.mxu0 0
    %11424 = vmatpush1.bf16.msra.mxu0 %v9055
    %11425 = vmatprep.subr.bf16.mxu0 0
    %11426 = vmatpush1.bf16.msra.mxu0 %v9056
    %11427 = vmatprep.subr.bf16.mxu0 0
    %11428 = vmatpush1.bf16.msra.mxu0 %v9057
    %11429 = vmatprep.subr.bf16.mxu0 0
    %11430 = vmatpush1.bf16.msra.mxu0 %v9058
    %11431 = vmatprep.subr.bf16.mxu0 0
    %11432 = vmatpush1.bf16.msra.mxu0 %v9059
    %11433 = vmatprep.subr.bf16.mxu0 0
    %11434 = vmatpush1.bf16.msra.mxu0 %v9060
    %11435 = vmatprep.subr.bf16.mxu0 0
    %11436 = vmatpush1.bf16.msra.mxu0 %v9061
    %11437 = vmatprep.subr.bf16.mxu0 0
    %11438 = vmatpush1.bf16.msra.mxu0 %v9062
    %11439 = vmatprep.mubr.bf16.mxu0 %v4543
    %11440 = vmatmul.mubr.bf16.gmra.mrb[0].mxu0 %v4541
    %v11441 = vpop.f32.mrb[0].mxu0
    %v11442 = vadd.f32 %v11402, %v11441
    %v11443 = vpop.f32.mrb[0].mxu0
    %v11444 = vpop.f32.mrb[0].mxu0
    %v11445 = vpop.f32.mrb[0].mxu0
    %11446 = vdwg.mxu0
    %11447 = vmatprep.subr.bf16.mxu0 0
    %11448 = vmatpush1.bf16.msra.mxu0 %v9063
    %11449 = vmatprep.subr.bf16.mxu0 0
    %11450 = vmatpush1.bf16.msra.mxu0 %v9064
    %11451 = vmatprep.subr.bf16.mxu0 0
    %11452 = vmatpush1.bf16.msra.mxu0 %v9065
    %11453 = vmatprep.subr.bf16.mxu0 0
    %11454 = vmatpush1.bf16.msra.mxu0 %v9066
    %11455 = vmatprep.subr.bf16.mxu0 0
    %11456 = vmatpush1.bf16.msra.mxu0 %v9067
    %11457 = vmatprep.subr.bf16.mxu0 0
    %11458 = vmatpush1.bf16.msra.mxu0 %v9068
    %11459 = vmatprep.subr.bf16.mxu0 0
    %11460 = vmatpush1.bf16.msra.mxu0 %v9069
    %11461 = vmatprep.subr.bf16.mxu0 0
    %11462 = vmatpush1.bf16.msra.mxu0 %v9070
    %11463 = vmatprep.subr.bf16.mxu0 0
    %11464 = vmatpush1.bf16.msra.mxu0 %v9071
    %11465 = vmatprep.subr.bf16.mxu0 0
    %11466 = vmatpush1.bf16.msra.mxu0 %v9072
    %11467 = vmatprep.subr.bf16.mxu0 0
    %11468 = vmatpush1.bf16.msra.mxu0 %v9073
    %11469 = vmatprep.subr.bf16.mxu0 0
    %11470 = vmatpush1.bf16.msra.mxu0 %v9074
    %11471 = vmatprep.subr.bf16.mxu0 0
    %11472 = vmatpush1.bf16.msra.mxu0 %v9075
    %11473 = vmatprep.subr.bf16.mxu0 0
    %11474 = vmatpush1.bf16.msra.mxu0 %v9076
    %11475 = vmatprep.subr.bf16.mxu0 0
    %11476 = vmatpush1.bf16.msra.mxu0 %v9077
    %11477 = vmatprep.subr.bf16.mxu0 0
    %11478 = vmatpush1.bf16.msra.mxu0 %v9078
    %11479 = vmatprep.mubr.bf16.mxu0 %v4581
    %11480 = vmatmul.mubr.bf16.gmra.mrb[0].mxu0 %v4567
    %v11481 = vpop.f32.mrb[0].mxu0
    %v11482 = vadd.f32 %v11442, %v11481
    %v11483 = vpop.f32.mrb[0].mxu0
    %v11484 = vpop.f32.mrb[0].mxu0
    %v11485 = vpop.f32.mrb[0].mxu0
    %11486 = vdwg.mxu0
    %11487 = vmatprep.subr.bf16.mxu0 0
    %11488 = vmatpush1.bf16.msra.mxu0 %v9079
    %11489 = vmatprep.subr.bf16.mxu0 0
    %11490 = vmatpush1.bf16.msra.mxu0 %v9080
    %11491 = vmatprep.subr.bf16.mxu0 0
    %11492 = vmatpush1.bf16.msra.mxu0 %v9081
    %11493 = vmatprep.subr.bf16.mxu0 0
    %11494 = vmatpush1.bf16.msra.mxu0 %v9082
    %11495 = vmatprep.subr.bf16.mxu0 0
    %11496 = vmatpush1.bf16.msra.mxu0 %v9083
    %11497 = vmatprep.subr.bf16.mxu0 0
    %11498 = vmatpush1.bf16.msra.mxu0 %v9084
    %11499 = vmatprep.subr.bf16.mxu0 0
    %11500 = vmatpush1.bf16.msra.mxu0 %v9085
    %11501 = vmatprep.subr.bf16.mxu0 0
    %11502 = vmatpush1.bf16.msra.mxu0 %v9086
    %11503 = vmatprep.subr.bf16.mxu0 0
    %11504 = vmatpush1.bf16.msra.mxu0 %v9087
    %11505 = vmatprep.subr.bf16.mxu0 0
    %11506 = vmatpush1.bf16.msra.mxu0 %v9088
    %11507 = vmatprep.subr.bf16.mxu0 0
    %11508 = vmatpush1.bf16.msra.mxu0 %v9089
    %11509 = vmatprep.subr.bf16.mxu0 0
    %11510 = vmatpush1.bf16.msra.mxu0 %v9090
    %11511 = vmatprep.subr.bf16.mxu0 0
    %11512 = vmatpush1.bf16.msra.mxu0 %v9091
    %11513 = vmatprep.subr.bf16.mxu0 0
    %11514 = vmatpush1.bf16.msra.mxu0 %v9092
    %11515 = vmatprep.subr.bf16.mxu0 0
    %11516 = vmatpush1.bf16.msra.mxu0 %v9093
    %11517 = vmatprep.subr.bf16.mxu0 0
    %11518 = vmatpush1.bf16.msra.mxu0 %v9094
    %11519 = vmatprep.mubr.bf16.mxu0 %v4591
    %11520 = vmatmul.mubr.bf16.gmra.mrb[0].mxu0 %v4589
    %v11521 = vpop.f32.mrb[0].mxu0
    %v11522 = vadd.f32 %v11482, %v11521
    %v11523 = vpop.f32.mrb[0].mxu0
    %v11524 = vpop.f32.mrb[0].mxu0
    %v11525 = vpop.f32.mrb[0].mxu0
    %11526 = vdwg.mxu0
    %11527 = vmatprep.subr.bf16.mxu0 0
    %11528 = vmatpush1.bf16.msra.mxu0 %v9095
    %11529 = vmatprep.subr.bf16.mxu0 0
    %11530 = vmatpush1.bf16.msra.mxu0 %v9096
    %11531 = vmatprep.subr.bf16.mxu0 0
    %11532 = vmatpush1.bf16.msra.mxu0 %v9097
    %11533 = vmatprep.subr.bf16.mxu0 0
    %11534 = vmatpush1.bf16.msra.mxu0 %v9098
    %11535 = vmatprep.subr.bf16.mxu0 0
    %11536 = vmatpush1.bf16.msra.mxu0 %v9099
    %11537 = vmatprep.subr.bf16.mxu0 0
    %11538 = vmatpush1.bf16.msra.mxu0 %v9100
    %11539 = vmatprep.subr.bf16.mxu0 0
    %11540 = vmatpush1.bf16.msra.mxu0 %v9101
    %11541 = vmatprep.subr.bf16.mxu0 0
    %11542 = vmatpush1.bf16.msra.mxu0 %v9102
    %11543 = vmatprep.subr.bf16.mxu0 0
    %11544 = vmatpush1.bf16.msra.mxu0 %v9103
    %11545 = vmatprep.subr.bf16.mxu0 0
    %11546 = vmatpush1.bf16.msra.mxu0 %v9104
    %11547 = vmatprep.subr.bf16.mxu0 0
    %11548 = vmatpush1.bf16.msra.mxu0 %v9105
    %11549 = vmatprep.subr.bf16.mxu0 0
    %11550 = vmatpush1.bf16.msra.mxu0 %v9106
    %11551 = vmatprep.subr.bf16.mxu0 0
    %11552 = vmatpush1.bf16.msra.mxu0 %v9107
    %11553 = vmatprep.subr.bf16.mxu0 0
    %11554 = vmatpush1.bf16.msra.mxu0 %v9108
    %11555 = vmatprep.subr.bf16.mxu0 0
    %11556 = vmatpush1.bf16.msra.mxu0 %v9109
    %11557 = vmatprep.subr.bf16.mxu0 0
    %11558 = vmatpush1.bf16.msra.mxu0 %v9110
    %11559 = vmatprep.mubr.bf16.mxu0 %v4588
    %11560 = vmatmul.mubr.bf16.gmra.mrb[0].mxu0 %v4574
    %v11561 = vpop.f32.mrb[0].mxu0
    %v11562 = vadd.f32 %v11522, %v11561
    %v11563 = vpop.f32.mrb[0].mxu0
    %v11564 = vpop.f32.mrb[0].mxu0
    %v11565 = vpop.f32.mrb[0].mxu0
    %11566 = vdwg.mxu0
    %11567 = vmatprep.subr.bf16.mxu0 0
    %11568 = vmatpush1.bf16.msra.mxu0 %v9111
    %11569 = vmatprep.subr.bf16.mxu0 0
    %11570 = vmatpush1.bf16.msra.mxu0 %v9112
    %11571 = vmatprep.subr.bf16.mxu0 0
    %11572 = vmatpush1.bf16.msra.mxu0 %v9113
    %11573 = vmatprep.subr.bf16.mxu0 0
    %11574 = vmatpush1.bf16.msra.mxu0 %v9114
    %11575 = vmatprep.subr.bf16.mxu0 0
    %11576 = vmatpush1.bf16.msra.mxu0 %v9115
    %11577 = vmatprep.subr.bf16.mxu0 0
    %11578 = vmatpush1.bf16.msra.mxu0 %v9116
    %11579 = vmatprep.subr.bf16.mxu0 0
    %11580 = vmatpush1.bf16.msra.mxu0 %v9117
    %11581 = vmatprep.subr.bf16.mxu0 0
    %11582 = vmatpush1.bf16.msra.mxu0 %v9118
    %11583 = vmatprep.subr.bf16.mxu0 0
    %11584 = vmatpush1.bf16.msra.mxu0 %v9119
    %11585 = vmatprep.subr.bf16.mxu0 0
    %11586 = vmatpush1.bf16.msra.mxu0 %v9120
    %11587 = vmatprep.subr.bf16.mxu0 0
    %11588 = vmatpush1.bf16.msra.mxu0 %v9121
    %11589 = vmatprep.subr.bf16.mxu0 0
    %11590 = vmatpush1.bf16.msra.mxu0 %v9122
    %11591 = vmatprep.subr.bf16.mxu0 0
    %11592 = vmatpush1.bf16.msra.mxu0 %v9123
    %11593 = vmatprep.subr.bf16.mxu0 0
    %11594 = vmatpush1.bf16.msra.mxu0 %v9124
    %11595 = vmatprep.subr.bf16.mxu0 0
    %11596 = vmatpush1.bf16.msra.mxu0 %v9125
    %11597 = vmatprep.subr.bf16.mxu0 0
    %11598 = vmatpush1.bf16.msra.mxu0 %v9126
    %11599 = vmatprep.mubr.bf16.mxu0 %v4592
    %11600 = vmatmul.mubr.bf16.gmra.mrb[0].mxu0 %v4590
    %v11601 = vpop.f32.mrb[0].mxu0
    %v11602 = vadd.f32 %v11562, %v11601
    %v11603 = vpop.f32.mrb[0].mxu0
    %v11604 = vpop.f32.mrb[0].mxu0
    %v11605 = vpop.f32.mrb[0].mxu0
    %11606 = vdwg.mxu0
    %11607 = vmatprep.subr.bf16.mxu0 0
    %11608 = vmatpush1.bf16.msra.mxu0 %v9127
    %11609 = vmatprep.subr.bf16.mxu0 0
    %11610 = vmatpush1.bf16.msra.mxu0 %v9128
    %11611 = vmatprep.subr.bf16.mxu0 0
    %11612 = vmatpush1.bf16.msra.mxu0 %v9129
    %11613 = vmatprep.subr.bf16.mxu0 0
    %11614 = vmatpush1.bf16.msra.mxu0 %v9130
    %11615 = vmatprep.subr.bf16.mxu0 0
    %11616 = vmatpush1.bf16.msra.mxu0 %v9131
    %11617 = vmatprep.subr.bf16.mxu0 0
    %11618 = vmatpush1.bf16.msra.mxu0 %v9132
    %11619 = vmatprep.subr.bf16.mxu0 0
    %11620 = vmatpush1.bf16.msra.mxu0 %v9133
    %11621 = vmatprep.subr.bf16.mxu0 0
    %11622 = vmatpush1.bf16.msra.mxu0 %v9134
    %11623 = vmatprep.subr.bf16.mxu0 0
    %11624 = vmatpush1.bf16.msra.mxu0 %v9135
    %11625 = vmatprep.subr.bf16.mxu0 0
    %11626 = vmatpush1.bf16.msra.mxu0 %v9136
    %11627 = vmatprep.subr.bf16.mxu0 0
    %11628 = vmatpush1.bf16.msra.mxu0 %v9137
    %11629 = vmatprep.subr.bf16.mxu0 0
    %11630 = vmatpush1.bf16.msra.mxu0 %v9138
    %11631 = vmatprep.subr.bf16.mxu0 0
    %11632 = vmatpush1.bf16.msra.mxu0 %v9139
    %11633 = vmatprep.subr.bf16.mxu0 0
    %11634 = vmatpush1.bf16.msra.mxu0 %v9140
    %11635 = vmatprep.subr.bf16.mxu0 0
    %11636 = vmatpush1.bf16.msra.mxu0 %v9141
    %11637 = vmatprep.subr.bf16.mxu0 0
    %11638 = vmatpush1.bf16.msra.mxu0 %v9142
    %11639 = vmatprep.mubr.bf16.mxu0 %v4630
    %11640 = vmatmul.mubr.bf16.gmra.mrb[0].mxu0 %v4616
    %v11641 = vpop.f32.mrb[0].mxu0
    %v11642 = vadd.f32 %v11602, %v11641
    %v11643 = vpop.f32.mrb[0].mxu0
    %v11644 = vpop.f32.mrb[0].mxu0
    %v11645 = vpop.f32.mrb[0].mxu0
    %11646 = vdwg.mxu0
    %11647 = vmatprep.subr.bf16.mxu0 0
    %11648 = vmatpush1.bf16.msra.mxu0 %v9143
    %11649 = vmatprep.subr.bf16.mxu0 0
    %11650 = vmatpush1.bf16.msra.mxu0 %v9144
    %11651 = vmatprep.subr.bf16.mxu0 0
    %11652 = vmatpush1.bf16.msra.mxu0 %v9145
    %11653 = vmatprep.subr.bf16.mxu0 0
    %11654 = vmatpush1.bf16.msra.mxu0 %v9146
    %11655 = vmatprep.subr.bf16.mxu0 0
    %11656 = vmatpush1.bf16.msra.mxu0 %v9147
    %11657 = vmatprep.subr.bf16.mxu0 0
    %11658 = vmatpush1.bf16.msra.mxu0 %v9148
    %11659 = vmatprep.subr.bf16.mxu0 0
    %11660 = vmatpush1.bf16.msra.mxu0 %v9149
    %11661 = vmatprep.subr.bf16.mxu0 0
    %11662 = vmatpush1.bf16.msra.mxu0 %v9150
    %11663 = vmatprep.subr.bf16.mxu0 0
    %11664 = vmatpush1.bf16.msra.mxu0 %v9151
    %11665 = vmatprep.subr.bf16.mxu0 0
    %11666 = vmatpush1.bf16.msra.mxu0 %v9152
    %11667 = vmatprep.subr.bf16.mxu0 0
    %11668 = vmatpush1.bf16.msra.mxu0 %v9153
    %11669 = vmatprep.subr.bf16.mxu0 0
    %11670 = vmatpush1.bf16.msra.mxu0 %v9154
    %11671 = vmatprep.subr.bf16.mxu0 0
    %11672 = vmatpush1.bf16.msra.mxu0 %v9155
    %11673 = vmatprep.subr.bf16.mxu0 0
    %11674 = vmatpush1.bf16.msra.mxu0 %v9156
    %11675 = vmatprep.subr.bf16.mxu0 0
    %11676 = vmatpush1.bf16.msra.mxu0 %v9157
    %11677 = vmatprep.subr.bf16.mxu0 0
    %11678 = vmatpush1.bf16.msra.mxu0 %v9158
    %11679 = vmatprep.mubr.bf16.mxu0 %v4640
    %11680 = vmatmul.mubr.bf16.gmra.mrb[0].mxu0 %v4638
    %v11681 = vpop.f32.mrb[0].mxu0
    %v11682 = vadd.f32 %v11642, %v11681
    %v11683 = vpop.f32.mrb[0].mxu0
    %v11684 = vpop.f32.mrb[0].mxu0
    %v11685 = vpop.f32.mrb[0].mxu0
    %11686 = vdwg.mxu0
    %11687 = vmatprep.subr.bf16.mxu0 0
    %11688 = vmatpush1.bf16.msra.mxu0 %v9159
    %11689 = vmatprep.subr.bf16.mxu0 0
    %11690 = vmatpush1.bf16.msra.mxu0 %v9160
    %11691 = vmatprep.subr.bf16.mxu0 0
    %11692 = vmatpush1.bf16.msra.mxu0 %v9161
    %11693 = vmatprep.subr.bf16.mxu0 0
    %11694 = vmatpush1.bf16.msra.mxu0 %v9162
    %11695 = vmatprep.subr.bf16.mxu0 0
    %11696 = vmatpush1.bf16.msra.mxu0 %v9163
    %11697 = vmatprep.subr.bf16.mxu0 0
    %11698 = vmatpush1.bf16.msra.mxu0 %v9164
    %11699 = vmatprep.subr.bf16.mxu0 0
    %11700 = vmatpush1.bf16.msra.mxu0 %v9165
    %11701 = vmatprep.subr.bf16.mxu0 0
    %11702 = vmatpush1.bf16.msra.mxu0 %v9166
    %11703 = vmatprep.subr.bf16.mxu0 0
    %11704 = vmatpush1.bf16.msra.mxu0 %v9167
    %11705 = vmatprep.subr.bf16.mxu0 0
    %11706 = vmatpush1.bf16.msra.mxu0 %v9168
    %11707 = vmatprep.subr.bf16.mxu0 0
    %11708 = vmatpush1.bf16.msra.mxu0 %v9169
    %11709 = vmatprep.subr.bf16.mxu0 0
    %11710 = vmatpush1.bf16.msra.mxu0 %v9170
    %11711 = vmatprep.subr.bf16.mxu0 0
    %11712 = vmatpush1.bf16.msra.mxu0 %v9171
    %11713 = vmatprep.subr.bf16.mxu0 0
    %11714 = vmatpush1.bf16.msra.mxu0 %v9172
    %11715 = vmatprep.subr.bf16.mxu0 0
    %11716 = vmatpush1.bf16.msra.mxu0 %v9173
    %11717 = vmatprep.subr.bf16.mxu0 0
    %11718 = vmatpush1.bf16.msra.mxu0 %v9174
    %11719 = vmatprep.mubr.bf16.mxu0 %v4637
    %11720 = vmatmul.mubr.bf16.gmra.mrb[0].mxu0 %v4623
    %v11721 = vpop.f32.mrb[0].mxu0
    %v11722 = vadd.f32 %v11682, %v11721
    %v11723 = vpop.f32.mrb[0].mxu0
    %v11724 = vpop.f32.mrb[0].mxu0
    %v11725 = vpop.f32.mrb[0].mxu0
    %11726 = vdwg.mxu0
    %11727 = vmatprep.subr.bf16.mxu0 0
    %11728 = vmatpush1.bf16.msra.mxu0 %v9175
    %11729 = vmatprep.subr.bf16.mxu0 0
    %11730 = vmatpush1.bf16.msra.mxu0 %v9176
    %11731 = vmatprep.subr.bf16.mxu0 0
    %11732 = vmatpush1.bf16.msra.mxu0 %v9177
    %11733 = vmatprep.subr.bf16.mxu0 0
    %11734 = vmatpush1.bf16.msra.mxu0 %v9178
    %11735 = vmatprep.subr.bf16.mxu0 0
    %11736 = vmatpush1.bf16.msra.mxu0 %v9179
    %11737 = vmatprep.subr.bf16.mxu0 0
    %11738 = vmatpush1.bf16.msra.mxu0 %v9180
    %11739 = vmatprep.subr.bf16.mxu0 0
    %11740 = vmatpush1.bf16.msra.mxu0 %v9181
    %11741 = vmatprep.subr.bf16.mxu0 0
    %11742 = vmatpush1.bf16.msra.mxu0 %v9182
    %11743 = vmatprep.subr.bf16.mxu0 0
    %11744 = vmatpush1.bf16.msra.mxu0 %v9183
    %11745 = vmatprep.subr.bf16.mxu0 0
    %11746 = vmatpush1.bf16.msra.mxu0 %v9184
    %11747 = vmatprep.subr.bf16.mxu0 0
    %11748 = vmatpush1.bf16.msra.mxu0 %v9185
    %11749 = vmatprep.subr.bf16.mxu0 0
    %11750 = vmatpush1.bf16.msra.mxu0 %v9186
    %11751 = vmatprep.subr.bf16.mxu0 0
    %11752 = vmatpush1.bf16.msra.mxu0 %v9187
    %11753 = vmatprep.subr.bf16.mxu0 0
    %11754 = vmatpush1.bf16.msra.mxu0 %v9188
    %11755 = vmatprep.subr.bf16.mxu0 0
    %11756 = vmatpush1.bf16.msra.mxu0 %v9189
    %11757 = vmatprep.subr.bf16.mxu0 0
    %11758 = vmatpush1.bf16.msra.mxu0 %v9190
    %11759 = vmatprep.mubr.bf16.mxu0 %v4641
    %11760 = vmatmul.mubr.bf16.gmra.mrb[0].mxu0 %v4639
    %v11761 = vpop.f32.mrb[0].mxu0
    %v11762 = vadd.f32 %v11722, %v11761
    %v11763 = vpop.f32.mrb[0].mxu0
    %v11764 = vpop.f32.mrb[0].mxu0
    %v11765 = vpop.f32.mrb[0].mxu0
    %11766 = vdwg.mxu0
    %11767 = vmatprep.subr.bf16.mxu0 0
    %11768 = vmatpush1.bf16.msra.mxu0 %v9191
    %11769 = vmatprep.subr.bf16.mxu0 0
    %11770 = vmatpush1.bf16.msra.mxu0 %v9192
    %11771 = vmatprep.subr.bf16.mxu0 0
    %11772 = vmatpush1.bf16.msra.mxu0 %v9193
    %11773 = vmatprep.subr.bf16.mxu0 0
    %11774 = vmatpush1.bf16.msra.mxu0 %v9194
    %11775 = vmatprep.subr.bf16.mxu0 0
    %11776 = vmatpush1.bf16.msra.mxu0 %v9195
    %11777 = vmatprep.subr.bf16.mxu0 0
    %11778 = vmatpush1.bf16.msra.mxu0 %v9196
    %11779 = vmatprep.subr.bf16.mxu0 0
    %11780 = vmatpush1.bf16.msra.mxu0 %v9197
    %11781 = vmatprep.subr.bf16.mxu0 0
    %11782 = vmatpush1.bf16.msra.mxu0 %v9198
    %11783 = vmatprep.subr.bf16.mxu0 0
    %11784 = vmatpush1.bf16.msra.mxu0 %v9199
    %11785 = vmatprep.subr.bf16.mxu0 0
    %11786 = vmatpush1.bf16.msra.mxu0 %v9200
    %11787 = vmatprep.subr.bf16.mxu0 0
    %11788 = vmatpush1.bf16.msra.mxu0 %v9201
    %11789 = vmatprep.subr.bf16.mxu0 0
    %11790 = vmatpush1.bf16.msra.mxu0 %v9202
    %11791 = vmatprep.subr.bf16.mxu0 0
    %11792 = vmatpush1.bf16.msra.mxu0 %v9203
    %11793 = vmatprep.subr.bf16.mxu0 0
    %11794 = vmatpush1.bf16.msra.mxu0 %v9204
    %11795 = vmatprep.subr.bf16.mxu0 0
    %11796 = vmatpush1.bf16.msra.mxu0 %v9205
    %11797 = vmatprep.subr.bf16.mxu0 0
    %11798 = vmatpush1.bf16.msra.mxu0 %v9206
    %11799 = vmatprep.mubr.bf16.mxu0 %v4679
    %11800 = vmatmul.mubr.bf16.gmra.mrb[0].mxu0 %v4665
    %v11801 = vpop.f32.mrb[0].mxu0
    %v11802 = vadd.f32 %v11762, %v11801
    %v11803 = vpop.f32.mrb[0].mxu0
    %v11804 = vpop.f32.mrb[0].mxu0
    %v11805 = vpop.f32.mrb[0].mxu0
    %11806 = vdwg.mxu0
    %11807 = vmatprep.subr.bf16.mxu0 0
    %11808 = vmatpush1.bf16.msra.mxu0 %v9207
    %11809 = vmatprep.subr.bf16.mxu0 0
    %11810 = vmatpush1.bf16.msra.mxu0 %v9208
    %11811 = vmatprep.subr.bf16.mxu0 0
    %11812 = vmatpush1.bf16.msra.mxu0 %v9209
    %11813 = vmatprep.subr.bf16.mxu0 0
    %11814 = vmatpush1.bf16.msra.mxu0 %v9210
    %11815 = vmatprep.subr.bf16.mxu0 0
    %11816 = vmatpush1.bf16.msra.mxu0 %v9211
    %11817 = vmatprep.subr.bf16.mxu0 0
    %11818 = vmatpush1.bf16.msra.mxu0 %v9212
    %11819 = vmatprep.subr.bf16.mxu0 0
    %11820 = vmatpush1.bf16.msra.mxu0 %v9213
    %11821 = vmatprep.subr.bf16.mxu0 0
    %11822 = vmatpush1.bf16.msra.mxu0 %v9214
    %11823 = vmatprep.subr.bf16.mxu0 0
    %11824 = vmatpush1.bf16.msra.mxu0 %v9215
    %11825 = vmatprep.subr.bf16.mxu0 0
    %11826 = vmatpush1.bf16.msra.mxu0 %v9216
    %11827 = vmatprep.subr.bf16.mxu0 0
    %11828 = vmatpush1.bf16.msra.mxu0 %v9217
    %11829 = vmatprep.subr.bf16.mxu0 0
    %11830 = vmatpush1.bf16.msra.mxu0 %v9218
    %11831 = vmatprep.subr.bf16.mxu0 0
    %11832 = vmatpush1.bf16.msra.mxu0 %v9219
    %11833 = vmatprep.subr.bf16.mxu0 0
    %11834 = vmatpush1.bf16.msra.mxu0 %v9220
    %11835 = vmatprep.subr.bf16.mxu0 0
    %11836 = vmatpush1.bf16.msra.mxu0 %v9221
    %11837 = vmatprep.subr.bf16.mxu0 0
    %11838 = vmatpush1.bf16.msra.mxu0 %v9222
    %11839 = vmatprep.mubr.bf16.mxu0 %v4689
    %11840 = vmatmul.mubr.bf16.gmra.mrb[0].mxu0 %v4687
    %v11841 = vpop.f32.mrb[0].mxu0
    %v11842 = vadd.f32 %v11802, %v11841
    %v11843 = vpop.f32.mrb[0].mxu0
    %v11844 = vpop.f32.mrb[0].mxu0
    %v11845 = vpop.f32.mrb[0].mxu0
    %11846 = vdwg.mxu0
    %11847 = vmatprep.subr.bf16.mxu0 0
    %11848 = vmatpush1.bf16.msra.mxu0 %v9223
    %11849 = vmatprep.subr.bf16.mxu0 0
    %11850 = vmatpush1.bf16.msra.mxu0 %v9224
    %11851 = vmatprep.subr.bf16.mxu0 0
    %11852 = vmatpush1.bf16.msra.mxu0 %v9225
    %11853 = vmatprep.subr.bf16.mxu0 0
    %11854 = vmatpush1.bf16.msra.mxu0 %v9226
    %11855 = vmatprep.subr.bf16.mxu0 0
    %11856 = vmatpush1.bf16.msra.mxu0 %v9227
    %11857 = vmatprep.subr.bf16.mxu0 0
    %11858 = vmatpush1.bf16.msra.mxu0 %v9228
    %11859 = vmatprep.subr.bf16.mxu0 0
    %11860 = vmatpush1.bf16.msra.mxu0 %v9229
    %11861 = vmatprep.subr.bf16.mxu0 0
    %11862 = vmatpush1.bf16.msra.mxu0 %v9230
    %11863 = vmatprep.subr.bf16.mxu0 0
    %11864 = vmatpush1.bf16.msra.mxu0 %v9231
    %11865 = vmatprep.subr.bf16.mxu0 0
    %11866 = vmatpush1.bf16.msra.mxu0 %v9232
    %11867 = vmatprep.subr.bf16.mxu0 0
    %11868 = vmatpush1.bf16.msra.mxu0 %v9233
    %11869 = vmatprep.subr.bf16.mxu0 0
    %11870 = vmatpush1.bf16.msra.mxu0 %v9234
    %11871 = vmatprep.subr.bf16.mxu0 0
    %11872 = vmatpush1.bf16.msra.mxu0 %v9235
    %11873 = vmatprep.subr.bf16.mxu0 0
    %11874 = vmatpush1.bf16.msra.mxu0 %v9236
    %11875 = vmatprep.subr.bf16.mxu0 0
    %11876 = vmatpush1.bf16.msra.mxu0 %v9237
    %11877 = vmatprep.subr.bf16.mxu0 0
    %11878 = vmatpush1.bf16.msra.mxu0 %v9238
    %11879 = vmatprep.mubr.bf16.mxu0 %v4686
    %11880 = vmatmul.mubr.bf16.gmra.mrb[0].mxu0 %v4672
    %v11881 = vpop.f32.mrb[0].mxu0
    %v11882 = vadd.f32 %v11842, %v11881
    %v11883 = vpop.f32.mrb[0].mxu0
    %v11884 = vpop.f32.mrb[0].mxu0
    %v11885 = vpop.f32.mrb[0].mxu0
    %11886 = vdwg.mxu0
    %11887 = vmatprep.subr.bf16.mxu0 0
    %11888 = vmatpush1.bf16.msra.mxu0 %v9239
    %11889 = vmatprep.subr.bf16.mxu0 0
    %11890 = vmatpush1.bf16.msra.mxu0 %v9240
    %11891 = vmatprep.subr.bf16.mxu0 0
    %11892 = vmatpush1.bf16.msra.mxu0 %v9241
    %11893 = vmatprep.subr.bf16.mxu0 0
    %11894 = vmatpush1.bf16.msra.mxu0 %v9242
    %11895 = vmatprep.subr.bf16.mxu0 0
    %11896 = vmatpush1.bf16.msra.mxu0 %v9243
    %11897 = vmatprep.subr.bf16.mxu0 0
    %11898 = vmatpush1.bf16.msra.mxu0 %v9244
    %11899 = vmatprep.subr.bf16.mxu0 0
    %11900 = vmatpush1.bf16.msra.mxu0 %v9245
    %11901 = vmatprep.subr.bf16.mxu0 0
    %11902 = vmatpush1.bf16.msra.mxu0 %v9246
    %11903 = vmatprep.subr.bf16.mxu0 0
    %11904 = vmatpush1.bf16.msra.mxu0 %v9247
    %11905 = vmatprep.subr.bf16.mxu0 0
    %11906 = vmatpush1.bf16.msra.mxu0 %v9248
    %11907 = vmatprep.subr.bf16.mxu0 0
    %11908 = vmatpush1.bf16.msra.mxu0 %v9249
    %11909 = vmatprep.subr.bf16.mxu0 0
    %11910 = vmatpush1.bf16.msra.mxu0 %v9250
    %11911 = vmatprep.subr.bf16.mxu0 0
    %11912 = vmatpush1.bf16.msra.mxu0 %v9251
    %11913 = vmatprep.subr.bf16.mxu0 0
    %11914 = vmatpush1.bf16.msra.mxu0 %v9252
    %11915 = vmatprep.subr.bf16.mxu0 0
    %11916 = vmatpush1.bf16.msra.mxu0 %v9253
    %11917 = vmatprep.subr.bf16.mxu0 0
    %11918 = vmatpush1.bf16.msra.mxu0 %v9254
    %11919 = vmatprep.mubr.bf16.mxu0 %v4690
    %11920 = vmatmul.mubr.bf16.gmra.mrb[0].mxu0 %v4688
    %v11921 = vpop.f32.mrb[0].mxu0
    %v11922 = vadd.f32 %v11882, %v11921
    %v11923 = vpop.f32.mrb[0].mxu0
    %v11924 = vpop.f32.mrb[0].mxu0
    %v11925 = vpop.f32.mrb[0].mxu0
    %11926 = vdwg.mxu0
    %11927 = vmatprep.subr.bf16.mxu0 0
    %11928 = vmatpush1.bf16.msra.mxu0 %v9255
    %11929 = vmatprep.subr.bf16.mxu0 0
    %11930 = vmatpush1.bf16.msra.mxu0 %v9256
    %11931 = vmatprep.subr.bf16.mxu0 0
    %11932 = vmatpush1.bf16.msra.mxu0 %v9257
    %11933 = vmatprep.subr.bf16.mxu0 0
    %11934 = vmatpush1.bf16.msra.mxu0 %v9258
    %11935 = vmatprep.subr.bf16.mxu0 0
    %11936 = vmatpush1.bf16.msra.mxu0 %v9259
    %11937 = vmatprep.subr.bf16.mxu0 0
    %11938 = vmatpush1.bf16.msra.mxu0 %v9260
    %11939 = vmatprep.subr.bf16.mxu0 0
    %11940 = vmatpush1.bf16.msra.mxu0 %v9261
    %11941 = vmatprep.subr.bf16.mxu0 0
    %11942 = vmatpush1.bf16.msra.mxu0 %v9262
    %11943 = vmatprep.subr.bf16.mxu0 0
    %11944 = vmatpush1.bf16.msra.mxu0 %v9263
    %11945 = vmatprep.subr.bf16.mxu0 0
    %11946 = vmatpush1.bf16.msra.mxu0 %v9264
    %11947 = vmatprep.subr.bf16.mxu0 0
    %11948 = vmatpush1.bf16.msra.mxu0 %v9265
    %11949 = vmatprep.subr.bf16.mxu0 0
    %11950 = vmatpush1.bf16.msra.mxu0 %v9266
    %11951 = vmatprep.subr.bf16.mxu0 0
    %11952 = vmatpush1.bf16.msra.mxu0 %v9267
    %11953 = vmatprep.subr.bf16.mxu0 0
    %11954 = vmatpush1.bf16.msra.mxu0 %v9268
    %11955 = vmatprep.subr.bf16.mxu0 0
    %11956 = vmatpush1.bf16.msra.mxu0 %v9269
    %11957 = vmatprep.subr.bf16.mxu0 0
    %11958 = vmatpush1.bf16.msra.mxu0 %v9270
    %11959 = vmatprep.mubr.bf16.mxu0 %v4728
    %11960 = vmatmul.mubr.bf16.gmra.mrb[0].mxu0 %v4714
    %v11961 = vpop.f32.mrb[0].mxu0
    %v11962 = vadd.f32 %v11922, %v11961
    %v11963 = vpop.f32.mrb[0].mxu0
    %v11964 = vpop.f32.mrb[0].mxu0
    %v11965 = vpop.f32.mrb[0].mxu0
    %11966 = vdwg.mxu0
    %11967 = vmatprep.subr.bf16.mxu0 0
    %11968 = vmatpush1.bf16.msra.mxu0 %v9271
    %11969 = vmatprep.subr.bf16.mxu0 0
    %11970 = vmatpush1.bf16.msra.mxu0 %v9272
    %11971 = vmatprep.subr.bf16.mxu0 0
    %11972 = vmatpush1.bf16.msra.mxu0 %v9273
    %11973 = vmatprep.subr.bf16.mxu0 0
    %11974 = vmatpush1.bf16.msra.mxu0 %v9274
    %11975 = vmatprep.subr.bf16.mxu0 0
    %11976 = vmatpush1.bf16.msra.mxu0 %v9275
    %11977 = vmatprep.subr.bf16.mxu0 0
    %11978 = vmatpush1.bf16.msra.mxu0 %v9276
    %11979 = vmatprep.subr.bf16.mxu0 0
    %11980 = vmatpush1.bf16.msra.mxu0 %v9277
    %11981 = vmatprep.subr.bf16.mxu0 0
    %11982 = vmatpush1.bf16.msra.mxu0 %v9278
    %11983 = vmatprep.subr.bf16.mxu0 0
    %11984 = vmatpush1.bf16.msra.mxu0 %v9279
    %11985 = vmatprep.subr.bf16.mxu0 0
    %11986 = vmatpush1.bf16.msra.mxu0 %v9280
    %11987 = vmatprep.subr.bf16.mxu0 0
    %11988 = vmatpush1.bf16.msra.mxu0 %v9281
    %11989 = vmatprep.subr.bf16.mxu0 0
    %11990 = vmatpush1.bf16.msra.mxu0 %v9282
    %11991 = vmatprep.subr.bf16.mxu0 0
    %11992 = vmatpush1.bf16.msra.mxu0 %v9283
    %11993 = vmatprep.subr.bf16.mxu0 0
    %11994 = vmatpush1.bf16.msra.mxu0 %v9284
    %11995 = vmatprep.subr.bf16.mxu0 0
    %11996 = vmatpush1.bf16.msra.mxu0 %v9285
    %11997 = vmatprep.subr.bf16.mxu0 0
    %11998 = vmatpush1.bf16.msra.mxu0 %v9286
    %11999 = vmatprep.mubr.bf16.mxu0 %v4738
    %12000 = vmatmul.mubr.bf16.gmra.mrb[0].mxu0 %v4736
    %v12001 = vpop.f32.mrb[0].mxu0
    %v12002 = vadd.f32 %v11962, %v12001
    %v12003 = vpop.f32.mrb[0].mxu0
    %v12004 = vpop.f32.mrb[0].mxu0
    %v12005 = vpop.f32.mrb[0].mxu0
    %12006 = vdwg.mxu0
    %12007 = vmatprep.subr.bf16.mxu0 0
    %12008 = vmatpush1.bf16.msra.mxu0 %v9287
    %12009 = vmatprep.subr.bf16.mxu0 0
    %12010 = vmatpush1.bf16.msra.mxu0 %v9288
    %12011 = vmatprep.subr.bf16.mxu0 0
    %12012 = vmatpush1.bf16.msra.mxu0 %v9289
    %12013 = vmatprep.subr.bf16.mxu0 0
    %12014 = vmatpush1.bf16.msra.mxu0 %v9290
    %12015 = vmatprep.subr.bf16.mxu0 0
    %12016 = vmatpush1.bf16.msra.mxu0 %v9291
    %12017 = vmatprep.subr.bf16.mxu0 0
    %12018 = vmatpush1.bf16.msra.mxu0 %v9292
    %12019 = vmatprep.subr.bf16.mxu0 0
    %12020 = vmatpush1.bf16.msra.mxu0 %v9293
    %12021 = vmatprep.subr.bf16.mxu0 0
    %12022 = vmatpush1.bf16.msra.mxu0 %v9294
    %12023 = vmatprep.subr.bf16.mxu0 0
    %12024 = vmatpush1.bf16.msra.mxu0 %v9295
    %12025 = vmatprep.subr.bf16.mxu0 0
    %12026 = vmatpush1.bf16.msra.mxu0 %v9296
    %12027 = vmatprep.subr.bf16.mxu0 0
    %12028 = vmatpush1.bf16.msra.mxu0 %v9297
    %12029 = vmatprep.subr.bf16.mxu0 0
    %12030 = vmatpush1.bf16.msra.mxu0 %v9298
    %12031 = vmatprep.subr.bf16.mxu0 0
    %12032 = vmatpush1.bf16.msra.mxu0 %v9299
    %12033 = vmatprep.subr.bf16.mxu0 0
    %12034 = vmatpush1.bf16.msra.mxu0 %v9300
    %12035 = vmatprep.subr.bf16.mxu0 0
    %12036 = vmatpush1.bf16.msra.mxu0 %v9301
    %12037 = vmatprep.subr.bf16.mxu0 0
    %12038 = vmatpush1.bf16.msra.mxu0 %v9302
    %12039 = vmatprep.mubr.bf16.mxu0 %v4735
    %12040 = vmatmul.mubr.bf16.gmra.mrb[0].mxu0 %v4721
    %v12041 = vpop.f32.mrb[0].mxu0
    %v12042 = vadd.f32 %v12002, %v12041
    %v12043 = vpop.f32.mrb[0].mxu0
    %v12044 = vpop.f32.mrb[0].mxu0
    %v12045 = vpop.f32.mrb[0].mxu0
    %12046 = vdwg.mxu0
    %12047 = vmatprep.subr.bf16.mxu0 0
    %12048 = vmatpush1.bf16.msra.mxu0 %v9303
    %12049 = vmatprep.subr.bf16.mxu0 0
    %12050 = vmatpush1.bf16.msra.mxu0 %v9304
    %12051 = vmatprep.subr.bf16.mxu0 0
    %12052 = vmatpush1.bf16.msra.mxu0 %v9305
    %12053 = vmatprep.subr.bf16.mxu0 0
    %12054 = vmatpush1.bf16.msra.mxu0 %v9306
    %12055 = vmatprep.subr.bf16.mxu0 0
    %12056 = vmatpush1.bf16.msra.mxu0 %v9307
    %12057 = vmatprep.subr.bf16.mxu0 0
    %12058 = vmatpush1.bf16.msra.mxu0 %v9308
    %12059 = vmatprep.subr.bf16.mxu0 0
    %12060 = vmatpush1.bf16.msra.mxu0 %v9309
    %12061 = vmatprep.subr.bf16.mxu0 0
    %12062 = vmatpush1.bf16.msra.mxu0 %v9310
    %12063 = vmatprep.subr.bf16.mxu0 0
    %12064 = vmatpush1.bf16.msra.mxu0 %v9311
    %12065 = vmatprep.subr.bf16.mxu0 0
    %12066 = vmatpush1.bf16.msra.mxu0 %v9312
    %12067 = vmatprep.subr.bf16.mxu0 0
    %12068 = vmatpush1.bf16.msra.mxu0 %v9313
    %12069 = vmatprep.subr.bf16.mxu0 0
    %12070 = vmatpush1.bf16.msra.mxu0 %v9314
    %12071 = vmatprep.subr.bf16.mxu0 0
    %12072 = vmatpush1.bf16.msra.mxu0 %v9315
    %12073 = vmatprep.subr.bf16.mxu0 0
    %12074 = vmatpush1.bf16.msra.mxu0 %v9316
    %12075 = vmatprep.subr.bf16.mxu0 0
    %12076 = vmatpush1.bf16.msra.mxu0 %v9317
    %12077 = vmatprep.subr.bf16.mxu0 0
    %12078 = vmatpush1.bf16.msra.mxu0 %v9318
    %12079 = vmatprep.mubr.bf16.mxu0 %v4739
    %12080 = vmatmul.mubr.bf16.gmra.mrb[0].mxu0 %v4737
    %v12081 = vpop.f32.mrb[0].mxu0
    %v12082 = vadd.f32 %v12042, %v12081
    %v12083 = vpop.f32.mrb[0].mxu0
    %v12084 = vpop.f32.mrb[0].mxu0
    %v12085 = vpop.f32.mrb[0].mxu0
    %12086 = vdwg.mxu0
    %12087 = vmatprep.subr.bf16.mxu0 0
    %12088 = vmatpush1.bf16.msra.mxu0 %v9319
    %12089 = vmatprep.subr.bf16.mxu0 0
    %12090 = vmatpush1.bf16.msra.mxu0 %v9320
    %12091 = vmatprep.subr.bf16.mxu0 0
    %12092 = vmatpush1.bf16.msra.mxu0 %v9321
    %12093 = vmatprep.subr.bf16.mxu0 0
    %12094 = vmatpush1.bf16.msra.mxu0 %v9322
    %12095 = vmatprep.subr.bf16.mxu0 0
    %12096 = vmatpush1.bf16.msra.mxu0 %v9323
    %12097 = vmatprep.subr.bf16.mxu0 0
    %12098 = vmatpush1.bf16.msra.mxu0 %v9324
    %12099 = vmatprep.subr.bf16.mxu0 0
    %12100 = vmatpush1.bf16.msra.mxu0 %v9325
    %12101 = vmatprep.subr.bf16.mxu0 0
    %12102 = vmatpush1.bf16.msra.mxu0 %v9326
    %12103 = vmatprep.subr.bf16.mxu0 0
    %12104 = vmatpush1.bf16.msra.mxu0 %v9327
    %12105 = vmatprep.subr.bf16.mxu0 0
    %12106 = vmatpush1.bf16.msra.mxu0 %v9328
    %12107 = vmatprep.subr.bf16.mxu0 0
    %12108 = vmatpush1.bf16.msra.mxu0 %v9329
    %12109 = vmatprep.subr.bf16.mxu0 0
    %12110 = vmatpush1.bf16.msra.mxu0 %v9330
    %12111 = vmatprep.subr.bf16.mxu0 0
    %12112 = vmatpush1.bf16.msra.mxu0 %v9331
    %12113 = vmatprep.subr.bf16.mxu0 0
    %12114 = vmatpush1.bf16.msra.mxu0 %v9332
    %12115 = vmatprep.subr.bf16.mxu0 0
    %12116 = vmatpush1.bf16.msra.mxu0 %v9333
    %12117 = vmatprep.subr.bf16.mxu0 0
    %12118 = vmatpush1.bf16.msra.mxu0 %v9334
    %12119 = vmatprep.mubr.bf16.mxu0 %v4777
    %12120 = vmatmul.mubr.bf16.gmra.mrb[0].mxu0 %v4763
    %v12121 = vpop.f32.mrb[0].mxu0
    %v12122 = vadd.f32 %v12082, %v12121
    %v12123 = vpop.f32.mrb[0].mxu0
    %v12124 = vpop.f32.mrb[0].mxu0
    %v12125 = vpop.f32.mrb[0].mxu0
    %12126 = vdwg.mxu0
    %12127 = vmatprep.subr.bf16.mxu0 0
    %12128 = vmatpush1.bf16.msra.mxu0 %v9335
    %12129 = vmatprep.subr.bf16.mxu0 0
    %12130 = vmatpush1.bf16.msra.mxu0 %v9336
    %12131 = vmatprep.subr.bf16.mxu0 0
    %12132 = vmatpush1.bf16.msra.mxu0 %v9337
    %12133 = vmatprep.subr.bf16.mxu0 0
    %12134 = vmatpush1.bf16.msra.mxu0 %v9338
    %12135 = vmatprep.subr.bf16.mxu0 0
    %12136 = vmatpush1.bf16.msra.mxu0 %v9339
    %12137 = vmatprep.subr.bf16.mxu0 0
    %12138 = vmatpush1.bf16.msra.mxu0 %v9340
    %12139 = vmatprep.subr.bf16.mxu0 0
    %12140 = vmatpush1.bf16.msra.mxu0 %v9341
    %12141 = vmatprep.subr.bf16.mxu0 0
    %12142 = vmatpush1.bf16.msra.mxu0 %v9342
    %12143 = vmatprep.subr.bf16.mxu0 0
    %12144 = vmatpush1.bf16.msra.mxu0 %v9343
    %12145 = vmatprep.subr.bf16.mxu0 0
    %12146 = vmatpush1.bf16.msra.mxu0 %v9344
    %12147 = vmatprep.subr.bf16.mxu0 0
    %12148 = vmatpush1.bf16.msra.mxu0 %v9345
    %12149 = vmatprep.subr.bf16.mxu0 0
    %12150 = vmatpush1.bf16.msra.mxu0 %v9346
    %12151 = vmatprep.subr.bf16.mxu0 0
    %12152 = vmatpush1.bf16.msra.mxu0 %v9347
    %12153 = vmatprep.subr.bf16.mxu0 0
    %12154 = vmatpush1.bf16.msra.mxu0 %v9348
    %12155 = vmatprep.subr.bf16.mxu0 0
    %12156 = vmatpush1.bf16.msra.mxu0 %v9349
    %12157 = vmatprep.subr.bf16.mxu0 0
    %12158 = vmatpush1.bf16.msra.mxu0 %v9350
    %12159 = vmatprep.mubr.bf16.mxu0 %v4787
    %12160 = vmatmul.mubr.bf16.gmra.mrb[0].mxu0 %v4785
    %v12161 = vpop.f32.mrb[0].mxu0
    %v12162 = vadd.f32 %v12122, %v12161
    %v12163 = vpop.f32.mrb[0].mxu0
    %v12164 = vpop.f32.mrb[0].mxu0
    %v12165 = vpop.f32.mrb[0].mxu0
    %12166 = vdwg.mxu0
    %12167 = vmatprep.subr.bf16.mxu0 0
    %12168 = vmatpush1.bf16.msra.mxu0 %v9351
    %12169 = vmatprep.subr.bf16.mxu0 0
    %12170 = vmatpush1.bf16.msra.mxu0 %v9352
    %12171 = vmatprep.subr.bf16.mxu0 0
    %12172 = vmatpush1.bf16.msra.mxu0 %v9353
    %12173 = vmatprep.subr.bf16.mxu0 0
    %12174 = vmatpush1.bf16.msra.mxu0 %v9354
    %12175 = vmatprep.subr.bf16.mxu0 0
    %12176 = vmatpush1.bf16.msra.mxu0 %v9355
    %12177 = vmatprep.subr.bf16.mxu0 0
    %12178 = vmatpush1.bf16.msra.mxu0 %v9356
    %12179 = vmatprep.subr.bf16.mxu0 0
    %12180 = vmatpush1.bf16.msra.mxu0 %v9357
    %12181 = vmatprep.subr.bf16.mxu0 0
    %12182 = vmatpush1.bf16.msra.mxu0 %v9358
    %12183 = vmatprep.subr.bf16.mxu0 0
    %12184 = vmatpush1.bf16.msra.mxu0 %v9359
    %12185 = vmatprep.subr.bf16.mxu0 0
    %12186 = vmatpush1.bf16.msra.mxu0 %v9360
    %12187 = vmatprep.subr.bf16.mxu0 0
    %12188 = vmatpush1.bf16.msra.mxu0 %v9361
    %12189 = vmatprep.subr.bf16.mxu0 0
    %12190 = vmatpush1.bf16.msra.mxu0 %v9362
    %12191 = vmatprep.subr.bf16.mxu0 0
    %12192 = vmatpush1.bf16.msra.mxu0 %v9363
    %12193 = vmatprep.subr.bf16.mxu0 0
    %12194 = vmatpush1.bf16.msra.mxu0 %v9364
    %12195 = vmatprep.subr.bf16.mxu0 0
    %12196 = vmatpush1.bf16.msra.mxu0 %v9365
    %12197 = vmatprep.subr.bf16.mxu0 0
    %12198 = vmatpush1.bf16.msra.mxu0 %v9366
    %12199 = vmatprep.mubr.bf16.mxu0 %v4784
    %12200 = vmatmul.mubr.bf16.gmra.mrb[0].mxu0 %v4770
    %v12201 = vpop.f32.mrb[0].mxu0
    %v12202 = vadd.f32 %v12162, %v12201
    %v12203 = vpop.f32.mrb[0].mxu0
    %v12204 = vpop.f32.mrb[0].mxu0
    %v12205 = vpop.f32.mrb[0].mxu0
    %12206 = vdwg.mxu0
    %12207 = vmatprep.subr.bf16.mxu0 0
    %12208 = vmatpush1.bf16.msra.mxu0 %v9367
    %12209 = vmatprep.subr.bf16.mxu0 0
    %12210 = vmatpush1.bf16.msra.mxu0 %v9368
    %12211 = vmatprep.subr.bf16.mxu0 0
    %12212 = vmatpush1.bf16.msra.mxu0 %v9369
    %12213 = vmatprep.subr.bf16.mxu0 0
    %12214 = vmatpush1.bf16.msra.mxu0 %v9370
    %12215 = vmatprep.subr.bf16.mxu0 0
    %12216 = vmatpush1.bf16.msra.mxu0 %v9371
    %12217 = vmatprep.subr.bf16.mxu0 0
    %12218 = vmatpush1.bf16.msra.mxu0 %v9372
    %12219 = vmatprep.subr.bf16.mxu0 0
    %12220 = vmatpush1.bf16.msra.mxu0 %v9373
    %12221 = vmatprep.subr.bf16.mxu0 0
    %12222 = vmatpush1.bf16.msra.mxu0 %v9374
    %12223 = vmatprep.subr.bf16.mxu0 0
    %12224 = vmatpush1.bf16.msra.mxu0 %v9375
    %12225 = vmatprep.subr.bf16.mxu0 0
    %12226 = vmatpush1.bf16.msra.mxu0 %v9376
    %12227 = vmatprep.subr.bf16.mxu0 0
    %12228 = vmatpush1.bf16.msra.mxu0 %v9377
    %12229 = vmatprep.subr.bf16.mxu0 0
    %12230 = vmatpush1.bf16.msra.mxu0 %v9378
    %12231 = vmatprep.subr.bf16.mxu0 0
    %12232 = vmatpush1.bf16.msra.mxu0 %v9379
    %12233 = vmatprep.subr.bf16.mxu0 0
    %12234 = vmatpush1.bf16.msra.mxu0 %v9380
    %12235 = vmatprep.subr.bf16.mxu0 0
    %12236 = vmatpush1.bf16.msra.mxu0 %v9381
    %12237 = vmatprep.subr.bf16.mxu0 0
    %12238 = vmatpush1.bf16.msra.mxu0 %v9382
    %12239 = vmatprep.mubr.bf16.mxu0 %v4788
    %12240 = vmatmul.mubr.bf16.gmra.mrb[0].mxu0 %v4786
    %v12241 = vpop.f32.mrb[0].mxu0
    %v12242 = vadd.f32 %v12202, %v12241
    %v12243 = vpop.f32.mrb[0].mxu0
    %v12244 = vpop.f32.mrb[0].mxu0
    %v12245 = vpop.f32.mrb[0].mxu0
    %12246 = vdwg.mxu0
    %12247 = vmatprep.subr.bf16.mxu0 0
    %12248 = vmatpush1.bf16.msra.mxu0 %v9383
    %12249 = vmatprep.subr.bf16.mxu0 0
    %12250 = vmatpush1.bf16.msra.mxu0 %v9384
    %12251 = vmatprep.subr.bf16.mxu0 0
    %12252 = vmatpush1.bf16.msra.mxu0 %v9385
    %12253 = vmatprep.subr.bf16.mxu0 0
    %12254 = vmatpush1.bf16.msra.mxu0 %v9386
    %12255 = vmatprep.subr.bf16.mxu0 0
    %12256 = vmatpush1.bf16.msra.mxu0 %v9387
    %12257 = vmatprep.subr.bf16.mxu0 0
    %12258 = vmatpush1.bf16.msra.mxu0 %v9388
    %12259 = vmatprep.subr.bf16.mxu0 0
    %12260 = vmatpush1.bf16.msra.mxu0 %v9389
    %12261 = vmatprep.subr.bf16.mxu0 0
    %12262 = vmatpush1.bf16.msra.mxu0 %v9390
    %12263 = vmatprep.subr.bf16.mxu0 0
    %12264 = vmatpush1.bf16.msra.mxu0 %v9391
    %12265 = vmatprep.subr.bf16.mxu0 0
    %12266 = vmatpush1.bf16.msra.mxu0 %v9392
    %12267 = vmatprep.subr.bf16.mxu0 0
    %12268 = vmatpush1.bf16.msra.mxu0 %v9393
    %12269 = vmatprep.subr.bf16.mxu0 0
    %12270 = vmatpush1.bf16.msra.mxu0 %v9394
    %12271 = vmatprep.subr.bf16.mxu0 0
    %12272 = vmatpush1.bf16.msra.mxu0 %v9395
    %12273 = vmatprep.subr.bf16.mxu0 0
    %12274 = vmatpush1.bf16.msra.mxu0 %v9396
    %12275 = vmatprep.subr.bf16.mxu0 0
    %12276 = vmatpush1.bf16.msra.mxu0 %v9397
    %12277 = vmatprep.subr.bf16.mxu0 0
    %12278 = vmatpush1.bf16.msra.mxu0 %v9398
    %12279 = vmatprep.mubr.bf16.mxu0 %v4826
    %12280 = vmatmul.mubr.bf16.gmra.mrb[0].mxu0 %v4812
    %v12281 = vpop.f32.mrb[0].mxu0
    %v12282 = vadd.f32 %v12242, %v12281
    %v12283 = vpop.f32.mrb[0].mxu0
    %v12284 = vpop.f32.mrb[0].mxu0
    %v12285 = vpop.f32.mrb[0].mxu0
    %12286 = vdwg.mxu0
    %12287 = vmatprep.subr.bf16.mxu0 0
    %12288 = vmatpush1.bf16.msra.mxu0 %v9399
    %12289 = vmatprep.subr.bf16.mxu0 0
    %12290 = vmatpush1.bf16.msra.mxu0 %v9400
    %12291 = vmatprep.subr.bf16.mxu0 0
    %12292 = vmatpush1.bf16.msra.mxu0 %v9401
    %12293 = vmatprep.subr.bf16.mxu0 0
    %12294 = vmatpush1.bf16.msra.mxu0 %v9402
    %12295 = vmatprep.subr.bf16.mxu0 0
    %12296 = vmatpush1.bf16.msra.mxu0 %v9403
    %12297 = vmatprep.subr.bf16.mxu0 0
    %12298 = vmatpush1.bf16.msra.mxu0 %v9404
    %12299 = vmatprep.subr.bf16.mxu0 0
    %12300 = vmatpush1.bf16.msra.mxu0 %v9405
    %12301 = vmatprep.subr.bf16.mxu0 0
    %12302 = vmatpush1.bf16.msra.mxu0 %v9406
    %12303 = vmatprep.subr.bf16.mxu0 0
    %12304 = vmatpush1.bf16.msra.mxu0 %v9407
    %12305 = vmatprep.subr.bf16.mxu0 0
    %12306 = vmatpush1.bf16.msra.mxu0 %v9408
    %12307 = vmatprep.subr.bf16.mxu0 0
    %12308 = vmatpush1.bf16.msra.mxu0 %v9409
    %12309 = vmatprep.subr.bf16.mxu0 0
    %12310 = vmatpush1.bf16.msra.mxu0 %v9410
    %12311 = vmatprep.subr.bf16.mxu0 0
    %12312 = vmatpush1.bf16.msra.mxu0 %v9411
    %12313 = vmatprep.subr.bf16.mxu0 0
    %12314 = vmatpush1.bf16.msra.mxu0 %v9412
    %12315 = vmatprep.subr.bf16.mxu0 0
    %12316 = vmatpush1.bf16.msra.mxu0 %v9413
    %12317 = vmatprep.subr.bf16.mxu0 0
    %12318 = vmatpush1.bf16.msra.mxu0 %v9414
    %12319 = vmatprep.mubr.bf16.mxu0 %v4836
    %12320 = vmatmul.mubr.bf16.gmra.mrb[0].mxu0 %v4834
    %v12321 = vpop.f32.mrb[0].mxu0
    %v12322 = vadd.f32 %v12282, %v12321
    %v12323 = vpop.f32.mrb[0].mxu0
    %v12324 = vpop.f32.mrb[0].mxu0
    %v12325 = vpop.f32.mrb[0].mxu0
    %12326 = vdwg.mxu0
    %12327 = vmatprep.subr.bf16.mxu0 0
    %12328 = vmatpush1.bf16.msra.mxu0 %v9415
    %12329 = vmatprep.subr.bf16.mxu0 0
    %12330 = vmatpush1.bf16.msra.mxu0 %v9416
    %12331 = vmatprep.subr.bf16.mxu0 0
    %12332 = vmatpush1.bf16.msra.mxu0 %v9417
    %12333 = vmatprep.subr.bf16.mxu0 0
    %12334 = vmatpush1.bf16.msra.mxu0 %v9418
    %12335 = vmatprep.subr.bf16.mxu0 0
    %12336 = vmatpush1.bf16.msra.mxu0 %v9419
    %12337 = vmatprep.subr.bf16.mxu0 0
    %12338 = vmatpush1.bf16.msra.mxu0 %v9420
    %12339 = vmatprep.subr.bf16.mxu0 0
    %12340 = vmatpush1.bf16.msra.mxu0 %v9421
    %12341 = vmatprep.subr.bf16.mxu0 0
    %12342 = vmatpush1.bf16.msra.mxu0 %v9422
    %12343 = vmatprep.subr.bf16.mxu0 0
    %12344 = vmatpush1.bf16.msra.mxu0 %v9423
    %12345 = vmatprep.subr.bf16.mxu0 0
    %12346 = vmatpush1.bf16.msra.mxu0 %v9424
    %12347 = vmatprep.subr.bf16.mxu0 0
    %12348 = vmatpush1.bf16.msra.mxu0 %v9425
    %12349 = vmatprep.subr.bf16.mxu0 0
    %12350 = vmatpush1.bf16.msra.mxu0 %v9426
    %12351 = vmatprep.subr.bf16.mxu0 0
    %12352 = vmatpush1.bf16.msra.mxu0 %v9427
    %12353 = vmatprep.subr.bf16.mxu0 0
    %12354 = vmatpush1.bf16.msra.mxu0 %v9428
    %12355 = vmatprep.subr.bf16.mxu0 0
    %12356 = vmatpush1.bf16.msra.mxu0 %v9429
    %12357 = vmatprep.subr.bf16.mxu0 0
    %12358 = vmatpush1.bf16.msra.mxu0 %v9430
    %12359 = vmatprep.mubr.bf16.mxu0 %v4833
    %12360 = vmatmul.mubr.bf16.gmra.mrb[0].mxu0 %v4819
    %v12361 = vpop.f32.mrb[0].mxu0
    %v12362 = vadd.f32 %v12322, %v12361
    %v12363 = vpop.f32.mrb[0].mxu0
    %v12364 = vpop.f32.mrb[0].mxu0
    %v12365 = vpop.f32.mrb[0].mxu0
    %12366 = vdwg.mxu0
    %12367 = vmatprep.subr.bf16.mxu0 0
    %12368 = vmatpush1.bf16.msra.mxu0 %v9431
    %12369 = vmatprep.subr.bf16.mxu0 0
    %12370 = vmatpush1.bf16.msra.mxu0 %v9432
    %12371 = vmatprep.subr.bf16.mxu0 0
    %12372 = vmatpush1.bf16.msra.mxu0 %v9433
    %12373 = vmatprep.subr.bf16.mxu0 0
    %12374 = vmatpush1.bf16.msra.mxu0 %v9434
    %12375 = vmatprep.subr.bf16.mxu0 0
    %12376 = vmatpush1.bf16.msra.mxu0 %v9435
    %12377 = vmatprep.subr.bf16.mxu0 0
    %12378 = vmatpush1.bf16.msra.mxu0 %v9436
    %12379 = vmatprep.subr.bf16.mxu0 0
    %12380 = vmatpush1.bf16.msra.mxu0 %v9437
    %12381 = vmatprep.subr.bf16.mxu0 0
    %12382 = vmatpush1.bf16.msra.mxu0 %v9438
    %12383 = vmatprep.subr.bf16.mxu0 0
    %12384 = vmatpush1.bf16.msra.mxu0 %v9439
    %12385 = vmatprep.subr.bf16.mxu0 0
    %12386 = vmatpush1.bf16.msra.mxu0 %v9440
    %12387 = vmatprep.subr.bf16.mxu0 0
    %12388 = vmatpush1.bf16.msra.mxu0 %v9441
    %12389 = vmatprep.subr.bf16.mxu0 0
    %12390 = vmatpush1.bf16.msra.mxu0 %v9442
    %12391 = vmatprep.subr.bf16.mxu0 0
    %12392 = vmatpush1.bf16.msra.mxu0 %v9443
    %12393 = vmatprep.subr.bf16.mxu0 0
    %12394 = vmatpush1.bf16.msra.mxu0 %v9444
    %12395 = vmatprep.subr.bf16.mxu0 0
    %12396 = vmatpush1.bf16.msra.mxu0 %v9445
    %12397 = vmatprep.subr.bf16.mxu0 0
    %12398 = vmatpush1.bf16.msra.mxu0 %v9446
    %12399 = vmatprep.mubr.bf16.mxu0 %v4837
    %12400 = vmatmul.mubr.bf16.gmra.mrb[0].mxu0 %v4835
    %v12401 = vpop.f32.mrb[0].mxu0
    %v12402 = vadd.f32 %v12362, %v12401
    %v12403 = vpop.f32.mrb[0].mxu0
    %v12404 = vpop.f32.mrb[0].mxu0
    %v12405 = vpop.f32.mrb[0].mxu0
    %12406 = vdwg.mxu0
    %12407 = vmatprep.subr.bf16.mxu0 0
    %12408 = vmatpush1.bf16.msra.mxu0 %v9447
    %12409 = vmatprep.subr.bf16.mxu0 0
    %12410 = vmatpush1.bf16.msra.mxu0 %v9448
    %12411 = vmatprep.subr.bf16.mxu0 0
    %12412 = vmatpush1.bf16.msra.mxu0 %v9449
    %12413 = vmatprep.subr.bf16.mxu0 0
    %12414 = vmatpush1.bf16.msra.mxu0 %v9450
    %12415 = vmatprep.subr.bf16.mxu0 0
    %12416 = vmatpush1.bf16.msra.mxu0 %v9451
    %12417 = vmatprep.subr.bf16.mxu0 0
    %12418 = vmatpush1.bf16.msra.mxu0 %v9452
    %12419 = vmatprep.subr.bf16.mxu0 0
    %12420 = vmatpush1.bf16.msra.mxu0 %v9453
    %12421 = vmatprep.subr.bf16.mxu0 0
    %12422 = vmatpush1.bf16.msra.mxu0 %v9454
    %12423 = vmatprep.subr.bf16.mxu0 0
    %12424 = vmatpush1.bf16.msra.mxu0 %v9455
    %12425 = vmatprep.subr.bf16.mxu0 0
    %12426 = vmatpush1.bf16.msra.mxu0 %v9456
    %12427 = vmatprep.subr.bf16.mxu0 0
    %12428 = vmatpush1.bf16.msra.mxu0 %v9457
    %12429 = vmatprep.subr.bf16.mxu0 0
    %12430 = vmatpush1.bf16.msra.mxu0 %v9458
    %12431 = vmatprep.subr.bf16.mxu0 0
    %12432 = vmatpush1.bf16.msra.mxu0 %v9459
    %12433 = vmatprep.subr.bf16.mxu0 0
    %12434 = vmatpush1.bf16.msra.mxu0 %v9460
    %12435 = vmatprep.subr.bf16.mxu0 0
    %12436 = vmatpush1.bf16.msra.mxu0 %v9461
    %12437 = vmatprep.subr.bf16.mxu0 0
    %12438 = vmatpush1.bf16.msra.mxu0 %v9462
    %12439 = vmatprep.mubr.bf16.mxu0 %v4875
    %12440 = vmatmul.mubr.bf16.gmra.mrb[0].mxu0 %v4861
    %v12441 = vpop.f32.mrb[0].mxu0
    %v12442 = vadd.f32 %v12402, %v12441
    %v12443 = vpop.f32.mrb[0].mxu0
    %v12444 = vpop.f32.mrb[0].mxu0
    %v12445 = vpop.f32.mrb[0].mxu0
    %12446 = vdwg.mxu0
    %12447 = vmatprep.subr.bf16.mxu0 0
    %12448 = vmatpush1.bf16.msra.mxu0 %v9463
    %12449 = vmatprep.subr.bf16.mxu0 0
    %12450 = vmatpush1.bf16.msra.mxu0 %v9464
    %12451 = vmatprep.subr.bf16.mxu0 0
    %12452 = vmatpush1.bf16.msra.mxu0 %v9465
    %12453 = vmatprep.subr.bf16.mxu0 0
    %12454 = vmatpush1.bf16.msra.mxu0 %v9466
    %12455 = vmatprep.subr.bf16.mxu0 0
    %12456 = vmatpush1.bf16.msra.mxu0 %v9467
    %12457 = vmatprep.subr.bf16.mxu0 0
    %12458 = vmatpush1.bf16.msra.mxu0 %v9468
    %12459 = vmatprep.subr.bf16.mxu0 0
    %12460 = vmatpush1.bf16.msra.mxu0 %v9469
    %12461 = vmatprep.subr.bf16.mxu0 0
    %12462 = vmatpush1.bf16.msra.mxu0 %v9470
    %12463 = vmatprep.subr.bf16.mxu0 0
    %12464 = vmatpush1.bf16.msra.mxu0 %v9471
    %12465 = vmatprep.subr.bf16.mxu0 0
    %12466 = vmatpush1.bf16.msra.mxu0 %v9472
    %12467 = vmatprep.subr.bf16.mxu0 0
    %12468 = vmatpush1.bf16.msra.mxu0 %v9473
    %12469 = vmatprep.subr.bf16.mxu0 0
    %12470 = vmatpush1.bf16.msra.mxu0 %v9474
    %12471 = vmatprep.subr.bf16.mxu0 0
    %12472 = vmatpush1.bf16.msra.mxu0 %v9475
    %12473 = vmatprep.subr.bf16.mxu0 0
    %12474 = vmatpush1.bf16.msra.mxu0 %v9476
    %12475 = vmatprep.subr.bf16.mxu0 0
    %12476 = vmatpush1.bf16.msra.mxu0 %v9477
    %12477 = vmatprep.subr.bf16.mxu0 0
    %12478 = vmatpush1.bf16.msra.mxu0 %v9478
    %12479 = vmatprep.mubr.bf16.mxu0 %v4885
    %12480 = vmatmul.mubr.bf16.gmra.mrb[0].mxu0 %v4883
    %v12481 = vpop.f32.mrb[0].mxu0
    %v12482 = vadd.f32 %v12442, %v12481
    %v12483 = vpop.f32.mrb[0].mxu0
    %v12484 = vpop.f32.mrb[0].mxu0
    %v12485 = vpop.f32.mrb[0].mxu0
    %12486 = vdwg.mxu0
    %12487 = vmatprep.subr.bf16.mxu0 0
    %12488 = vmatpush1.bf16.msra.mxu0 %v9479
    %12489 = vmatprep.subr.bf16.mxu0 0
    %12490 = vmatpush1.bf16.msra.mxu0 %v9480
    %12491 = vmatprep.subr.bf16.mxu0 0
    %12492 = vmatpush1.bf16.msra.mxu0 %v9481
    %12493 = vmatprep.subr.bf16.mxu0 0
    %12494 = vmatpush1.bf16.msra.mxu0 %v9482
    %12495 = vmatprep.subr.bf16.mxu0 0
    %12496 = vmatpush1.bf16.msra.mxu0 %v9483
    %12497 = vmatprep.subr.bf16.mxu0 0
    %12498 = vmatpush1.bf16.msra.mxu0 %v9484
    %12499 = vmatprep.subr.bf16.mxu0 0
    %12500 = vmatpush1.bf16.msra.mxu0 %v9485
    %12501 = vmatprep.subr.bf16.mxu0 0
    %12502 = vmatpush1.bf16.msra.mxu0 %v9486
    %12503 = vmatprep.subr.bf16.mxu0 0
    %12504 = vmatpush1.bf16.msra.mxu0 %v9487
    %12505 = vmatprep.subr.bf16.mxu0 0
    %12506 = vmatpush1.bf16.msra.mxu0 %v9488
    %12507 = vmatprep.subr.bf16.mxu0 0
    %12508 = vmatpush1.bf16.msra.mxu0 %v9489
    %12509 = vmatprep.subr.bf16.mxu0 0
    %12510 = vmatpush1.bf16.msra.mxu0 %v9490
    %12511 = vmatprep.subr.bf16.mxu0 0
    %12512 = vmatpush1.bf16.msra.mxu0 %v9491
    %12513 = vmatprep.subr.bf16.mxu0 0
    %12514 = vmatpush1.bf16.msra.mxu0 %v9492
    %12515 = vmatprep.subr.bf16.mxu0 0
    %12516 = vmatpush1.bf16.msra.mxu0 %v9493
    %12517 = vmatprep.subr.bf16.mxu0 0
    %12518 = vmatpush1.bf16.msra.mxu0 %v9494
    %12519 = vmatprep.mubr.bf16.mxu0 %v4882
    %12520 = vmatmul.mubr.bf16.gmra.mrb[0].mxu0 %v4868
    %v12521 = vpop.f32.mrb[0].mxu0
    %v12522 = vadd.f32 %v12482, %v12521
    %v12523 = vpop.f32.mrb[0].mxu0
    %v12524 = vpop.f32.mrb[0].mxu0
    %v12525 = vpop.f32.mrb[0].mxu0
    %12526 = vdwg.mxu0
    %12527 = vmatprep.subr.bf16.mxu0 0
    %12528 = vmatpush1.bf16.msra.mxu0 %v9495
    %12529 = vmatprep.subr.bf16.mxu0 0
    %12530 = vmatpush1.bf16.msra.mxu0 %v9496
    %12531 = vmatprep.subr.bf16.mxu0 0
    %12532 = vmatpush1.bf16.msra.mxu0 %v9497
    %12533 = vmatprep.subr.bf16.mxu0 0
    %12534 = vmatpush1.bf16.msra.mxu0 %v9498
    %12535 = vmatprep.subr.bf16.mxu0 0
    %12536 = vmatpush1.bf16.msra.mxu0 %v9499
    %12537 = vmatprep.subr.bf16.mxu0 0
    %12538 = vmatpush1.bf16.msra.mxu0 %v9500
    %12539 = vmatprep.subr.bf16.mxu0 0
    %12540 = vmatpush1.bf16.msra.mxu0 %v9501
    %12541 = vmatprep.subr.bf16.mxu0 0
    %12542 = vmatpush1.bf16.msra.mxu0 %v9502
    %12543 = vmatprep.subr.bf16.mxu0 0
    %12544 = vmatpush1.bf16.msra.mxu0 %v9503
    %12545 = vmatprep.subr.bf16.mxu0 0
    %12546 = vmatpush1.bf16.msra.mxu0 %v9504
    %12547 = vmatprep.subr.bf16.mxu0 0
    %12548 = vmatpush1.bf16.msra.mxu0 %v9505
    %12549 = vmatprep.subr.bf16.mxu0 0
    %12550 = vmatpush1.bf16.msra.mxu0 %v9506
    %12551 = vmatprep.subr.bf16.mxu0 0
    %12552 = vmatpush1.bf16.msra.mxu0 %v9507
    %12553 = vmatprep.subr.bf16.mxu0 0
    %12554 = vmatpush1.bf16.msra.mxu0 %v9508
    %12555 = vmatprep.subr.bf16.mxu0 0
    %12556 = vmatpush1.bf16.msra.mxu0 %v9509
    %12557 = vmatprep.subr.bf16.mxu0 0
    %12558 = vmatpush1.bf16.msra.mxu0 %v9510
    %12559 = vmatprep.mubr.bf16.mxu0 %v4886
    %12560 = vmatmul.mubr.bf16.gmra.mrb[0].mxu0 %v4884
    %v12561 = vpop.f32.mrb[0].mxu0
    %v12562 = vadd.f32 %v12522, %v12561
    %v12563 = vpop.f32.mrb[0].mxu0
    %v12564 = vpop.f32.mrb[0].mxu0
    %v12565 = vpop.f32.mrb[0].mxu0
    %12566 = vdwg.mxu0
    %12567 = vmatprep.subr.bf16.mxu0 0
    %12568 = vmatpush1.bf16.msra.mxu0 %v9511
    %12569 = vmatprep.subr.bf16.mxu0 0
    %12570 = vmatpush1.bf16.msra.mxu0 %v9512
    %12571 = vmatprep.subr.bf16.mxu0 0
    %12572 = vmatpush1.bf16.msra.mxu0 %v9513
    %12573 = vmatprep.subr.bf16.mxu0 0
    %12574 = vmatpush1.bf16.msra.mxu0 %v9514
    %12575 = vmatprep.subr.bf16.mxu0 0
    %12576 = vmatpush1.bf16.msra.mxu0 %v9515
    %12577 = vmatprep.subr.bf16.mxu0 0
    %12578 = vmatpush1.bf16.msra.mxu0 %v9516
    %12579 = vmatprep.subr.bf16.mxu0 0
    %12580 = vmatpush1.bf16.msra.mxu0 %v9517
    %12581 = vmatprep.subr.bf16.mxu0 0
    %12582 = vmatpush1.bf16.msra.mxu0 %v9518
    %12583 = vmatprep.subr.bf16.mxu0 0
    %12584 = vmatpush1.bf16.msra.mxu0 %v9519
    %12585 = vmatprep.subr.bf16.mxu0 0
    %12586 = vmatpush1.bf16.msra.mxu0 %v9520
    %12587 = vmatprep.subr.bf16.mxu0 0
    %12588 = vmatpush1.bf16.msra.mxu0 %v9521
    %12589 = vmatprep.subr.bf16.mxu0 0
    %12590 = vmatpush1.bf16.msra.mxu0 %v9522
    %12591 = vmatprep.subr.bf16.mxu0 0
    %12592 = vmatpush1.bf16.msra.mxu0 %v9523
    %12593 = vmatprep.subr.bf16.mxu0 0
    %12594 = vmatpush1.bf16.msra.mxu0 %v9524
    %12595 = vmatprep.subr.bf16.mxu0 0
    %12596 = vmatpush1.bf16.msra.mxu0 %v9525
    %12597 = vmatprep.subr.bf16.mxu0 0
    %12598 = vmatpush1.bf16.msra.mxu0 %v9526
    %12599 = vmatprep.mubr.bf16.mxu0 %v4924
    %12600 = vmatmul.mubr.bf16.gmra.mrb[0].mxu0 %v4910
    %v12601 = vpop.f32.mrb[0].mxu0
    %v12602 = vadd.f32 %v12562, %v12601
    %v12603 = vpop.f32.mrb[0].mxu0
    %v12604 = vpop.f32.mrb[0].mxu0
    %v12605 = vpop.f32.mrb[0].mxu0
    %12606 = vdwg.mxu0
    %12607 = vmatprep.subr.bf16.mxu0 0
    %12608 = vmatpush1.bf16.msra.mxu0 %v9527
    %12609 = vmatprep.subr.bf16.mxu0 0
    %12610 = vmatpush1.bf16.msra.mxu0 %v9528
    %12611 = vmatprep.subr.bf16.mxu0 0
    %12612 = vmatpush1.bf16.msra.mxu0 %v9529
    %12613 = vmatprep.subr.bf16.mxu0 0
    %12614 = vmatpush1.bf16.msra.mxu0 %v9530
    %12615 = vmatprep.subr.bf16.mxu0 0
    %12616 = vmatpush1.bf16.msra.mxu0 %v9531
    %12617 = vmatprep.subr.bf16.mxu0 0
    %12618 = vmatpush1.bf16.msra.mxu0 %v9532
    %12619 = vmatprep.subr.bf16.mxu0 0
    %12620 = vmatpush1.bf16.msra.mxu0 %v9533
    %12621 = vmatprep.subr.bf16.mxu0 0
    %12622 = vmatpush1.bf16.msra.mxu0 %v9534
    %12623 = vmatprep.subr.bf16.mxu0 0
    %12624 = vmatpush1.bf16.msra.mxu0 %v9535
    %12625 = vmatprep.subr.bf16.mxu0 0
    %12626 = vmatpush1.bf16.msra.mxu0 %v9536
    %12627 = vmatprep.subr.bf16.mxu0 0
    %12628 = vmatpush1.bf16.msra.mxu0 %v9537
    %12629 = vmatprep.subr.bf16.mxu0 0
    %12630 = vmatpush1.bf16.msra.mxu0 %v9538
    %12631 = vmatprep.subr.bf16.mxu0 0
    %12632 = vmatpush1.bf16.msra.mxu0 %v9539
    %12633 = vmatprep.subr.bf16.mxu0 0
    %12634 = vmatpush1.bf16.msra.mxu0 %v9540
    %12635 = vmatprep.subr.bf16.mxu0 0
    %12636 = vmatpush1.bf16.msra.mxu0 %v9541
    %12637 = vmatprep.subr.bf16.mxu0 0
    %12638 = vmatpush1.bf16.msra.mxu0 %v9542
    %12639 = vmatprep.mubr.bf16.mxu0 %v4934
    %12640 = vmatmul.mubr.bf16.gmra.mrb[0].mxu0 %v4932
    %v12641 = vpop.f32.mrb[0].mxu0
    %v12642 = vadd.f32 %v12602, %v12641
    %v12643 = vpop.f32.mrb[0].mxu0
    %v12644 = vpop.f32.mrb[0].mxu0
    %v12645 = vpop.f32.mrb[0].mxu0
    %12646 = vdwg.mxu0
    %12647 = vmatprep.subr.bf16.mxu0 0
    %12648 = vmatpush1.bf16.msra.mxu0 %v9543
    %12649 = vmatprep.subr.bf16.mxu0 0
    %12650 = vmatpush1.bf16.msra.mxu0 %v9544
    %12651 = vmatprep.subr.bf16.mxu0 0
    %12652 = vmatpush1.bf16.msra.mxu0 %v9545
    %12653 = vmatprep.subr.bf16.mxu0 0
    %12654 = vmatpush1.bf16.msra.mxu0 %v9546
    %12655 = vmatprep.subr.bf16.mxu0 0
    %12656 = vmatpush1.bf16.msra.mxu0 %v9547
    %12657 = vmatprep.subr.bf16.mxu0 0
    %12658 = vmatpush1.bf16.msra.mxu0 %v9548
    %12659 = vmatprep.subr.bf16.mxu0 0
    %12660 = vmatpush1.bf16.msra.mxu0 %v9549
    %12661 = vmatprep.subr.bf16.mxu0 0
    %12662 = vmatpush1.bf16.msra.mxu0 %v9550
    %12663 = vmatprep.subr.bf16.mxu0 0
    %12664 = vmatpush1.bf16.msra.mxu0 %v9551
    %12665 = vmatprep.subr.bf16.mxu0 0
    %12666 = vmatpush1.bf16.msra.mxu0 %v9552
    %12667 = vmatprep.subr.bf16.mxu0 0
    %12668 = vmatpush1.bf16.msra.mxu0 %v9553
    %12669 = vmatprep.subr.bf16.mxu0 0
    %12670 = vmatpush1.bf16.msra.mxu0 %v9554
    %12671 = vmatprep.subr.bf16.mxu0 0
    %12672 = vmatpush1.bf16.msra.mxu0 %v9555
    %12673 = vmatprep.subr.bf16.mxu0 0
    %12674 = vmatpush1.bf16.msra.mxu0 %v9556
    %12675 = vmatprep.subr.bf16.mxu0 0
    %12676 = vmatpush1.bf16.msra.mxu0 %v9557
    %12677 = vmatprep.subr.bf16.mxu0 0
    %12678 = vmatpush1.bf16.msra.mxu0 %v9558
    %12679 = vmatprep.mubr.bf16.mxu0 %v4931
    %12680 = vmatmul.mubr.bf16.gmra.mrb[0].mxu0 %v4917
    %v12681 = vpop.f32.mrb[0].mxu0
    %v12682 = vadd.f32 %v12642, %v12681
    %v12683 = vpop.f32.mrb[0].mxu0
    %v12684 = vpop.f32.mrb[0].mxu0
    %v12685 = vpop.f32.mrb[0].mxu0
    %12686 = vdwg.mxu0
    %12687 = vmatprep.subr.bf16.mxu0 0
    %12688 = vmatpush1.bf16.msra.mxu0 %v9559
    %12689 = vmatprep.subr.bf16.mxu0 0
    %12690 = vmatpush1.bf16.msra.mxu0 %v9560
    %12691 = vmatprep.subr.bf16.mxu0 0
    %12692 = vmatpush1.bf16.msra.mxu0 %v9561
    %12693 = vmatprep.subr.bf16.mxu0 0
    %12694 = vmatpush1.bf16.msra.mxu0 %v9562
    %12695 = vmatprep.subr.bf16.mxu0 0
    %12696 = vmatpush1.bf16.msra.mxu0 %v9563
    %12697 = vmatprep.subr.bf16.mxu0 0
    %12698 = vmatpush1.bf16.msra.mxu0 %v9564
    %12699 = vmatprep.subr.bf16.mxu0 0
    %12700 = vmatpush1.bf16.msra.mxu0 %v9565
    %12701 = vmatprep.subr.bf16.mxu0 0
    %12702 = vmatpush1.bf16.msra.mxu0 %v9566
    %12703 = vmatprep.subr.bf16.mxu0 0
    %12704 = vmatpush1.bf16.msra.mxu0 %v9567
    %12705 = vmatprep.subr.bf16.mxu0 0
    %12706 = vmatpush1.bf16.msra.mxu0 %v9568
    %12707 = vmatprep.subr.bf16.mxu0 0
    %12708 = vmatpush1.bf16.msra.mxu0 %v9569
    %12709 = vmatprep.subr.bf16.mxu0 0
    %12710 = vmatpush1.bf16.msra.mxu0 %v9570
    %12711 = vmatprep.subr.bf16.mxu0 0
    %12712 = vmatpush1.bf16.msra.mxu0 %v9571
    %12713 = vmatprep.subr.bf16.mxu0 0
    %12714 = vmatpush1.bf16.msra.mxu0 %v9572
    %12715 = vmatprep.subr.bf16.mxu0 0
    %12716 = vmatpush1.bf16.msra.mxu0 %v9573
    %12717 = vmatprep.subr.bf16.mxu0 0
    %12718 = vmatpush1.bf16.msra.mxu0 %v9574
    %12719 = vmatprep.mubr.bf16.mxu0 %v4935
    %12720 = vmatmul.mubr.bf16.gmra.mrb[0].mxu0 %v4933
    %v12721 = vpop.f32.mrb[0].mxu0
    %v12722 = vadd.f32 %v12682, %v12721
    %v12723 = vpop.f32.mrb[0].mxu0
    %v12724 = vpop.f32.mrb[0].mxu0
    %v12725 = vpop.f32.mrb[0].mxu0
    %12726 = vdwg.mxu0
    %12727 = vmatprep.subr.bf16.mxu0 0
    %12728 = vmatpush1.bf16.msra.mxu0 %v9575
    %12729 = vmatprep.subr.bf16.mxu0 0
    %12730 = vmatpush1.bf16.msra.mxu0 %v9576
    %12731 = vmatprep.subr.bf16.mxu0 0
    %12732 = vmatpush1.bf16.msra.mxu0 %v9577
    %12733 = vmatprep.subr.bf16.mxu0 0
    %12734 = vmatpush1.bf16.msra.mxu0 %v9578
    %12735 = vmatprep.subr.bf16.mxu0 0
    %12736 = vmatpush1.bf16.msra.mxu0 %v9579
    %12737 = vmatprep.subr.bf16.mxu0 0
    %12738 = vmatpush1.bf16.msra.mxu0 %v9580
    %12739 = vmatprep.subr.bf16.mxu0 0
    %12740 = vmatpush1.bf16.msra.mxu0 %v9581
    %12741 = vmatprep.subr.bf16.mxu0 0
    %12742 = vmatpush1.bf16.msra.mxu0 %v9582
    %12743 = vmatprep.subr.bf16.mxu0 0
    %12744 = vmatpush1.bf16.msra.mxu0 0
    %12745 = vmatprep.subr.bf16.mxu0 0
    %12746 = vmatpush1.bf16.msra.mxu0 0
    %12747 = vmatprep.subr.bf16.mxu0 0
    %12748 = vmatpush1.bf16.msra.mxu0 0
    %12749 = vmatprep.subr.bf16.mxu0 0
    %12750 = vmatpush1.bf16.msra.mxu0 0
    %12751 = vmatprep.subr.bf16.mxu0 0
    %12752 = vmatpush1.bf16.msra.mxu0 0
    %12753 = vmatprep.subr.bf16.mxu0 0
    %12754 = vmatpush1.bf16.msra.mxu0 0
    %12755 = vmatprep.subr.bf16.mxu0 0
    %12756 = vmatpush1.bf16.msra.mxu0 0
    %12757 = vmatprep.subr.bf16.mxu0 0
    %12758 = vmatpush1.bf16.msra.mxu0 0
    %12759 = vmatprep.mubr.bf16.mxu0 0
    %12760 = vmatmul.mubr.bf16.gmra.mrb[0].mxu0 %v4949
    %v12761 = vpop.f32.mrb[0].mxu0
    %v12762 = vadd.f32 %v12722, %v12761
    %v12763 = vpop.f32.mrb[0].mxu0
    %v12764 = vpop.f32.mrb[0].mxu0
    %v12765 = vpop.f32.mrb[0].mxu0
    %12766 = vdwg.mxu0
    %v12767 = vadd.f32 %v2411, %v12762
    %vm12768 = vcmask 975872
    %12769 = vst.msk [vmem:[#allocation2] sm:$0x3] %vm12768, %v12767
    // Predicated region
    $region34: #{mio_forward.2} parent=1 // pred_check
      %p12770 = pneg %p2405
    $region35: #{mio_forward.2} parent=1 // pred_check_branch
      %12772 = sbr.rel (%p12770) target = $region37
    $region36: #{mio_forward.2} parent=1 // pred_region
      %v12773 = vld [vmem:[#allocation2] sm:$0x3]
      %v12774 = vld [vmem:[%s1] sm:$0x1]
      %v12776 = vlaneseq
      %v12777 = vshrl.u32 %v12776, 7
      %v12778 = vsub.s32 0, %v12777
      %v12779 = vrot.slane %v12774, %v12778
      %v12781 = vadd.f32 %v12773, %v12779
      %v12782 = vld [vmem:[%s2] sm:$0xff]
      %v12783 = vld [vmem:[%s2 + $0x8] sm:$0xff]
      %v12784 = vld [vmem:[%s2 + $0x10] sm:$0xff]
      %v12785 = vld [vmem:[%s2 + $0x18] sm:$0xff]
      %v12786 = vld [vmem:[%s2 + $0x20] sm:$0xff]
      %v12787 = vld [vmem:[%s2 + $0x28] sm:$0xff]
      %v12788 = vld [vmem:[%s2 + $0x30] sm:$0xff]
      %v12789 = vld [vmem:[%s2 + $0x38] sm:$0xff]
      %v12790 = vld [vmem:[%s2 + $0x40] sm:$0xff]
      %v12791 = vld [vmem:[%s2 + $0x48] sm:$0xff]
      %v12792 = vld [vmem:[%s2 + $0x50] sm:$0xff]
      %v12793 = vld [vmem:[%s2 + $0x58] sm:$0xff]
      %v12794 = vld [vmem:[%s2 + $0x60] sm:$0xff]
      %v12795 = vld [vmem:[%s2 + $0x68] sm:$0xff]
      %v12796 = vld [vmem:[%s2 + $0x70] sm:$0xff]
      %v12797 = vld [vmem:[%s3] sm:$0x1]
      %v12799 = vlaneseq
      %v12800 = vshrl.u32 %v12799, 7
      %v12801 = vsub.s32 0, %v12800
      %v12802 = vrot.slane %v12797, %v12801
      %vm12804 = vcmask 982016
      %v12806 = vsel %vm12804, %v12781, 0
      %12808 = vmatprep.subr.mxu0 0.0
      %12809 = vmatpush1.msra.mxu0 %v12782
      %12810 = vmatprep.subr.mxu0 0.0
      %12811 = vmatpush1.msra.mxu0 %v12783
      %12812 = vmatprep.subr.mxu0 0.0
      %12813 = vmatpush1.msra.mxu0 %v12784
      %12814 = vmatprep.subr.mxu0 0.0
      %12815 = vmatpush1.msra.mxu0 %v12785
      %12816 = vmatprep.subr.mxu0 0.0
      %12817 = vmatpush1.msra.mxu0 %v12786
      %12818 = vmatprep.subr.mxu0 0.0
      %12819 = vmatpush1.msra.mxu0 %v12787
      %12820 = vmatprep.subr.mxu0 0.0
      %12821 = vmatpush1.msra.mxu0 %v12788
      %12822 = vmatprep.subr.mxu0 0.0
      %12823 = vmatpush1.msra.mxu0 %v12789
      %12824 = vmatprep.subr.mxu0 0.0
      %12825 = vmatpush1.msra.mxu0 %v12790
      %12826 = vmatprep.subr.mxu0 0.0
      %12827 = vmatpush1.msra.mxu0 %v12791
      %12828 = vmatprep.subr.mxu0 0.0
      %12829 = vmatpush1.msra.mxu0 %v12792
      %12830 = vmatprep.subr.mxu0 0.0
      %12831 = vmatpush1.msra.mxu0 %v12793
      %12832 = vmatprep.subr.mxu0 0.0
      %12833 = vmatpush1.msra.mxu0 %v12794
      %12834 = vmatprep.subr.mxu0 0.0
      %12835 = vmatpush1.msra.mxu0 %v12795
      %12836 = vmatprep.subr.mxu0 0.0
      %12837 = vmatpush1.msra.mxu0 %v12796
      %12838 = vmatprep.subr.mxu0 0.0
      %12839 = vmatpush1.msra.mxu0 0.0
      %12840 = vmatprep.subr.mxu0 0.0
      %12841 = vmatpush1.msra.mxu0 0.0
      %12842 = vmatprep.subr.mxu0 0.0
      %12843 = vmatpush1.msra.mxu0 0.0
      %12844 = vmatprep.subr.mxu0 0.0
      %12845 = vmatpush1.msra.mxu0 0.0
      %12846 = vmatprep.subr.mxu0 0.0
      %12847 = vmatpush1.msra.mxu0 0.0
      %12848 = vmatprep.subr.mxu0 0.0
      %12849 = vmatpush1.msra.mxu0 0.0
      %12850 = vmatprep.subr.mxu0 0.0
      %12851 = vmatpush1.msra.mxu0 0.0
      %12852 = vmatprep.subr.mxu0 0.0
      %12853 = vmatpush1.msra.mxu0 0.0
      %12854 = vmatprep.subr.mxu0 0.0
      %12855 = vmatpush1.msra.mxu0 0.0
      %12856 = vmatprep.subr.mxu0 0.0
      %12857 = vmatpush1.msra.mxu0 0.0
      %12858 = vmatprep.subr.mxu0 0.0
      %12859 = vmatpush1.msra.mxu0 0.0
      %12860 = vmatprep.subr.mxu0 0.0
      %12861 = vmatpush1.msra.mxu0 0.0
      %12862 = vmatprep.subr.mxu0 0.0
      %12863 = vmatpush1.msra.mxu0 0.0
      %12864 = vmatprep.subr.mxu0 0.0
      %12865 = vmatpush1.msra.mxu0 0.0
      %12866 = vmatprep.subr.mxu0 0.0
      %12867 = vmatpush1.msra.mxu0 0.0
      %12868 = vmatprep.subr.mxu0 0.0
      %12869 = vmatpush1.msra.mxu0 0.0
      %12870 = vmatprep.subr.mxu0 0.0
      %12871 = vmatpush1.msra.mxu0 0.0
      %12872 = vmatprep.mubr.f32.mxu0 0.0
      %12873 = vmatmul.mubr.f32.gmra.mrb[0].mxu0 %v12806
      %v12874 = vpop.f32.mrb[0].mxu0
      %v12875 = vadd.f32 %v12802, %v12874
      %v12876 = vpop.f32.mrb[0].mxu0
      %12877 = vdwg.mxu0
      %v12878 = vmax.f32 %v12875, 0.0
      %v12879 = vld [vmem:[%s4] sm:$0xff]
      %v12880 = vld [vmem:[%s4 + $0x8] sm:$0xff]
      %v12881 = vld [vmem:[%s4 + $0x10] sm:$0xff]
      %v12882 = vld [vmem:[%s4 + $0x18] sm:$0xff]
      %v12883 = vld [vmem:[%s4 + $0x20] sm:$0xff]
      %v12884 = vld [vmem:[%s4 + $0x28] sm:$0xff]
      %v12885 = vld [vmem:[%s4 + $0x30] sm:$0xff]
      %v12886 = vld [vmem:[%s4 + $0x38] sm:$0xff]
      %v12887 = vld [vmem:[%s4 + $0x40] sm:$0xff]
      %v12888 = vld [vmem:[%s4 + $0x48] sm:$0xff]
      %v12889 = vld [vmem:[%s4 + $0x50] sm:$0xff]
      %v12890 = vld [vmem:[%s4 + $0x58] sm:$0xff]
      %v12891 = vld [vmem:[%s4 + $0x60] sm:$0xff]
      %v12892 = vld [vmem:[%s4 + $0x68] sm:$0xff]
      %v12893 = vld [vmem:[%s4 + $0x70] sm:$0xff]
      %v12894 = vld [vmem:[%s4 + $0x78] sm:$0xff]
      %v12895 = vld [vmem:[%s5] sm:$0x1]
      %v12897 = vlaneseq
      %v12898 = vshrl.u32 %v12897, 7
      %v12899 = vsub.s32 0, %v12898
      %v12900 = vrot.slane %v12895, %v12899
      %12902 = vmatprep.subr.mxu0 0.0
      %12903 = vmatpush1.msra.mxu0 %v12879
      %12904 = vmatprep.subr.mxu0 0.0
      %12905 = vmatpush1.msra.mxu0 %v12880
      %12906 = vmatprep.subr.mxu0 0.0
      %12907 = vmatpush1.msra.mxu0 %v12881
      %12908 = vmatprep.subr.mxu0 0.0
      %12909 = vmatpush1.msra.mxu0 %v12882
      %12910 = vmatprep.subr.mxu0 0.0
      %12911 = vmatpush1.msra.mxu0 %v12883
      %12912 = vmatprep.subr.mxu0 0.0
      %12913 = vmatpush1.msra.mxu0 %v12884
      %12914 = vmatprep.subr.mxu0 0.0
      %12915 = vmatpush1.msra.mxu0 %v12885
      %12916 = vmatprep.subr.mxu0 0.0
      %12917 = vmatpush1.msra.mxu0 %v12886
      %12918 = vmatprep.subr.mxu0 0.0
      %12919 = vmatpush1.msra.mxu0 %v12887
      %12920 = vmatprep.subr.mxu0 0.0
      %12921 = vmatpush1.msra.mxu0 %v12888
      %12922 = vmatprep.subr.mxu0 0.0
      %12923 = vmatpush1.msra.mxu0 %v12889
      %12924 = vmatprep.subr.mxu0 0.0
      %12925 = vmatpush1.msra.mxu0 %v12890
      %12926 = vmatprep.subr.mxu0 0.0
      %12927 = vmatpush1.msra.mxu0 %v12891
      %12928 = vmatprep.subr.mxu0 0.0
      %12929 = vmatpush1.msra.mxu0 %v12892
      %12930 = vmatprep.subr.mxu0 0.0
      %12931 = vmatpush1.msra.mxu0 %v12893
      %12932 = vmatprep.subr.mxu0 0.0
      %12933 = vmatpush1.msra.mxu0 %v12894
      %12934 = vmatprep.subr.mxu0 0.0
      %12935 = vmatpush1.msra.mxu0 0.0
      %12936 = vmatprep.subr.mxu0 0.0
      %12937 = vmatpush1.msra.mxu0 0.0
      %12938 = vmatprep.subr.mxu0 0.0
      %12939 = vmatpush1.msra.mxu0 0.0
      %12940 = vmatprep.subr.mxu0 0.0
      %12941 = vmatpush1.msra.mxu0 0.0
      %12942 = vmatprep.subr.mxu0 0.0
      %12943 = vmatpush1.msra.mxu0 0.0
      %12944 = vmatprep.subr.mxu0 0.0
      %12945 = vmatpush1.msra.mxu0 0.0
      %12946 = vmatprep.subr.mxu0 0.0
      %12947 = vmatpush1.msra.mxu0 0.0
      %12948 = vmatprep.subr.mxu0 0.0
      %12949 = vmatpush1.msra.mxu0 0.0
      %12950 = vmatprep.subr.mxu0 0.0
      %12951 = vmatpush1.msra.mxu0 0.0
      %12952 = vmatprep.subr.mxu0 0.0
      %12953 = vmatpush1.msra.mxu0 0.0
      %12954 = vmatprep.subr.mxu0 0.0
      %12955 = vmatpush1.msra.mxu0 0.0
      %12956 = vmatprep.subr.mxu0 0.0
      %12957 = vmatpush1.msra.mxu0 0.0
      %12958 = vmatprep.subr.mxu0 0.0
      %12959 = vmatpush1.msra.mxu0 0.0
      %12960 = vmatprep.subr.mxu0 0.0
      %12961 = vmatpush1.msra.mxu0 0.0
      %12962 = vmatprep.subr.mxu0 0.0
      %12963 = vmatpush1.msra.mxu0 0.0
      %12964 = vmatprep.subr.mxu0 0.0
      %12965 = vmatpush1.msra.mxu0 0.0
      %12966 = vmatprep.mubr.f32.mxu0 0.0
      %12967 = vmatmul.mubr.f32.gmra.mrb[0].mxu0 %v12878
      %v12968 = vpop.f32.mrb[0].mxu0
      %v12969 = vadd.f32 %v12900, %v12968
      %v12970 = vpop.f32.mrb[0].mxu0
      %12971 = vdwg.mxu0
      %vm12972 = vcmask 9216
      %v12973 = vsel %vm12972, %v12969, -inf
      %12974 = vmax.xlane.f32.xlu0 %v12973
      %v12975 = vpop.xlane.xlu0 %12974
      %v12976 = vsub.f32 %v12969, %v12975
      %v12977 = vmul.f32 %v12976, 1.442695
      %v12978 = vpow.pop %v12977
      %v12979 = vsel %vm12972, %v12978, 0.0
      %12980 = vadd.xlane.f32.xlu0 %v12979
      %v12981 = vpop.xlane.xlu0 %12980
      %v12982 = vrcp.pop %v12981
      %v12983 = vmul.f32 %v12978, %v12982
      %12984 = vst.msk [vmem:[#allocation8] sm:$0x3] %vm12972, %v12983
    $region37: #{mio_forward.2} parent=1 // pred_fallthru
      _
    // Predicated region
    $region38: #{mio_forward.2} parent=1 // pred_check
      _
    $region39: #{mio_forward.2} parent=1 // pred_check_branch
      %12986 = sbr.rel (0) target = $region41
    $region40: #{mio_forward.2} parent=1 // pred_region
      %s12988 = ssub.s32 32, 32
      %12989 = vsyncadd [#allocation9], %s12988
      %s12991 = sshll.u32 [#allocation8], 4
      %s12992 = int_to_ptr.vmem [resolvable:$true] %s12991
      %12994 = dma.vmem_to_hbm [thread:$0]  %s12992, 32, %s8, [#allocation9]
    $region41: #{mio_forward.2} parent=1 // pred_fallthru
      _
    // Predicated region
    $region42: #{mio_forward.2} parent=1 // pred_check
      _
    $region43: #{mio_forward.2} parent=1 // pred_check_branch
      %12996 = sbr.rel (0) target = $region45
    $region44: #{mio_forward.2} parent=1 // pred_region
      %12997 = dma.done [#allocation9], 32
    $region45: #{mio_forward.2} parent=1 // pred_fallthru
      _
    %12998 = vsyncpa [#allocation9], 1

</llo_original>
